<compile_context>
chip_gen: v7x
topology: tpu7x:2x2x1
jax: 0.10.0
libtpu: 0.0.40
codegen_flags: <defaults>
</compile_context>

<pallas_src>
import numpy as np
import jax
import jax.numpy as jnp
from jax import lax
from jax.experimental import pallas as pl
from jax.experimental.pallas import tpu as pltpu

# ----- hyper-parameters (TSP_TabNet defaults, small synthetic sizes) -----
INPUT_DIM = 16            # number of features
OUTPUT_DIM = 4
OUT_PAD = 8               # final-mapping rows padded to one full sublane group
N_D = 8
N_A = 8
N_STEPS = 3
GAMMA = 1.3
EPSILON = 1e-15
BN_EPS = 1e-5
VBS = 128                 # virtual_batch_size == GhostBN chunk == one lane group
MAX_CHUNKS_PER_TILE = 4   # batch tile width cap: 4 * 128 = 512 lanes
N_GLU_PER_FT = 4          # n_shared(2) + n_independent(2)
N_FT = N_STEPS + 1        # initial_splitter + one FeatTransformer per step
BATCH = 512               # demo batch: 2 grid tiles x 2 GhostBN chunks per tile


def _make_kernel(n_d, n_a, n_steps, gamma, eps):
    sqrt_half = np.float32(np.sqrt(np.float32(0.5)))
    f32 = jnp.float32
    bf16 = jnp.bfloat16

    def kernel(x_ref, ibn_gb_ref, ws0_ref, ws1_ref, indw_ref, ft_gb_ref,
               attw_ref, att_gb_ref, finw_ref, out_ref, mloss_ref):
        x = x_ref[...].astype(f32)                   # (D, TB): features x batch
        D, TB = x.shape
        n_chunks = TB // VBS                         # GhostBN chunks per tile

        # Matmul operands in bf16 (f32 accumulation); weights are tiny and
        # resident, so the cast is negligible.
        ws0 = ws0_ref[...].astype(bf16)              # (2H, D)  shared GLU fc0
        ws1 = ws1_ref[...].astype(bf16)              # (2H, H)  shared GLU fc1
        finw = finw_ref[...].astype(bf16)            # (OUT_PAD, n_d)

        # ---- torch.sort(x, dim=1, descending=True): streamed rank sort -------
        # rank[j, b] = #{k : x[k,b] > x[j,b]  or  (x[k,b] == x[j,b] and k < j)}
        row_idx = lax.broadcasted_iota(jnp.int32, (D, TB), 0)   # reused below
        rank = jnp.zeros((D, TB), jnp.int32)
        for k in range(D):                           # (D, TB) working set only
            xk = x[k:k + 1, :]                       # (1, TB)
            rank = rank + ((xk > x) |
                           ((xk == x) & (row_idx > k))).astype(jnp.int32)
        xs = jnp.zeros((D, TB), f32)
        for j in range(D):                           # place x[j] at row rank[j]
            xs = jnp.where(row_idx == rank[j:j + 1, :], x[j:j + 1, :], xs)
        x = xs

        # ---- GhostBatchNorm: per-128-lane (virtual-batch) statistics ---------
        def bn(h, g, b):
            cols = []
            for c in range(n_chunks):
                hc = h[:, c * VBS:(c + 1) * VBS]     # lane-aligned 128-wide chunk
                mu = jnp.mean(hc, axis=1, keepdims=True)
                d = hc - mu
                var = jnp.mean(d * d, axis=1, keepdims=True)
                cols.append(d * lax.rsqrt(var + BN_EPS))
            hn = cols[0] if n_chunks == 1 else jnp.concatenate(cols, axis=1)
            return hn * g + b
        # TODO(synk): running-mean/var momentum updates (training-time side
        # effect) are not emitted; they do not affect the forward outputs.

        def glu_layer(h, w_bf16, g, b):
            z = bn(jnp.dot(w_bf16, h.astype(bf16),
                           preferred_element_type=f32), g, b)     # (2H, TB)
            half = z.shape[0] // 2
            return z[:half, :] * jax.nn.sigmoid(z[half:, :])      # (H, TB)

        def feat_transformer(h, ft):
            def g(l): return ft_gb_ref[0, N_GLU_PER_FT * ft + l, :, :]
            def b(l): return ft_gb_ref[1, N_GLU_PER_FT * ft + l, :, :]
            # shared GLU block (first layer: no residual)
            h = glu_layer(h, ws0, g(0), b(0))
            h = (h + glu_layer(h, ws1, g(1), b(1))) * sqrt_half
            # independent GLU block
            h = (h + glu_layer(h, indw_ref[2 * ft + 0].astype(bf16), g(2), b(2))) * sqrt_half
            h = (h + glu_layer(h, indw_ref[2 * ft + 1].astype(bf16), g(3), b(3))) * sqrt_half
            return h

        # ---- sparsemax over the feature (sublane) axis, streamed over D ------
        def sparsemax(z):                            # z: (D, TB)
            num_ge = jnp.zeros_like(z)               # k_i = #{j : z_j >= z_i}
            sum_ge = jnp.zeros_like(z)               # s_i = sum_{j: z_j >= z_i} z_j
            for j in range(z.shape[0]):
                zj = z[j:j + 1, :]                   # (1, TB)
                ge = (zj >= z).astype(f32)
                num_ge = num_ge + ge
                sum_ge = sum_ge + ge * zj
            support = ((1.0 + num_ge * z - sum_ge) > 0.0).astype(f32)
            cnt = jnp.sum(support, axis=0, keepdims=True)
            ssum = jnp.sum(z * support, axis=0, keepdims=True)
            tau = (ssum - 1.0) / cnt
            return jnp.maximum(z - tau, 0.0)

        # ---- TabNetNoEmbeddings forward ---------------------------------------
        # TODO(synk): the initial (non-ghost) BatchNorm1d uses per-128-row
        # statistics here instead of full-batch statistics when B > 128.
        x = bn(x, ibn_gb_ref[0, :, :], ibn_gb_ref[1, :, :])

        att = feat_transformer(x, 0)[n_d:, :]       # (n_a, TB)
        prior = jnp.ones_like(x)
        m_loss = jnp.zeros((), f32)
        d_sum = jnp.zeros((n_d, TB), f32)

        for step in range(n_steps):
            h = jnp.dot(attw_ref[step].astype(bf16), att.astype(bf16),
                        preferred_element_type=f32)                    # (D, TB)
            h = bn(h, att_gb_ref[0, step, :, :], att_gb_ref[1, step, :, :])
            M = sparsemax(h * prior)
            m_loss = m_loss + jnp.mean(jnp.sum(M * jnp.log(M + eps), axis=0))
            prior = (gamma - M) * prior
            out = feat_transformer(M * x, step + 1)
            d_sum = d_sum + jnp.maximum(out[:n_d, :], 0.0)              # ReLU(d)
            att = out[n_d:, :]

        m_loss = m_loss / n_steps
        # Lane-dense, full-sublane-group (8, TB) store; rows >= OUTPUT_DIM are 0.
        out_ref[...] = jnp.dot(finw, d_sum.astype(bf16),
                               preferred_element_type=f32)
        # One (1, 1, 128) partial per tile (equal tiles -> wrapper mean is exact).
        mloss_ref[...] = jnp.full(mloss_ref.shape, m_loss, dtype=f32)

    return kernel


def init_params(key):
    """Deterministic synthetic parameters (shapes from TSP_TabNet.__init__).

    Linear weights are stored (out_dim, in_dim); per-channel BN affine params
    are stored as column vectors (C, 1) for the (features, batch) layout.
    """
    two_h = 2 * (N_D + N_A)      # 32
    hdim = N_D + N_A             # 16
    ks = jax.random.split(key, 12)

    def nrm(k, shape, scale=0.3):
        return (scale * jax.random.normal(k, shape)).astype(jnp.float32)

    params = {
        # initial BatchNorm1d(input_dim)
        "ibn_g": 1.0 + 0.1 * jax.random.normal(ks[0], (INPUT_DIM, 1)),
        "ibn_b": 0.1 * jax.random.normal(ks[1], (INPUT_DIM, 1)),
        # shared GLU fc weights: Linear(D, 32) and Linear(16, 32), stored (out, in)
        "ws0": nrm(ks[2], (two_h, INPUT_DIM)),
        "ws1": nrm(ks[3], (two_h, hdim)),
        # independent GLU fc weights: 2 per FeatTransformer, Linear(16, 32)
        "indw": nrm(ks[4], (2 * N_FT, two_h, hdim)),
        # per-FeatTransformer GBN affine params (4 GLU layers each, width 32)
        "ftg": 1.0 + 0.1 * jax.random.normal(ks[5], (N_GLU_PER_FT * N_FT, two_h, 1)),
        "ftb": 0.1 * jax.random.normal(ks[6], (N_GLU_PER_FT * N_FT, two_h, 1)),
        # AttentiveTransformer: Linear(n_a, D) stored (D, n_a) + GBN(D)
        "attw": nrm(ks[7], (N_STEPS, INPUT_DIM, N_A)),
        "attg": 1.0 + 0.1 * jax.random.normal(ks[8], (N_STEPS, INPUT_DIM, 1)),
        "attb": 0.1 * jax.random.normal(ks[9], (N_STEPS, INPUT_DIM, 1)),
        # final_mapping: Linear(n_d, output_dim, bias=False), stored (out, n_d)
        "finw": nrm(ks[10], (OUTPUT_DIM, N_D)),
    }
    return {k: v.astype(jnp.float32) for k, v in params.items()}


def _full_block(arr):
    """Whole-array VMEM block with a constant index_map (weights stay resident)."""
    nd = arr.ndim
    return pl.BlockSpec(arr.shape, lambda i, _n=nd: (0,) * _n)


def _chunks_per_tile(num_vbs, max_chunks=MAX_CHUNKS_PER_TILE):
    """Largest divisor of num_vbs that is <= max_chunks and (when possible)
    still leaves >= 2 grid steps, so both v7x TensorCores get work."""
    best = 1
    for c in range(1, min(num_vbs, max_chunks) + 1):
        if num_vbs % c == 0 and (num_vbs // c >= 2 or num_vbs == 1):
            best = c
    return best


@jax.jit
def tsp_tabnet_forward(x, params):
    """x: (batch, features) f32 -> ((batch, OUTPUT_DIM) f32, scalar M_loss)."""
    B, D = x.shape
    assert D == INPUT_DIM
    # TODO(synk): batches that are not a multiple of virtual_batch_size=128
    # (ragged last GhostBN chunk) are not supported.
    assert B % VBS == 0, "batch must be a multiple of virtual_batch_size (128)"
    num_vbs = B // VBS
    cpt = _chunks_per_tile(num_vbs)       # GhostBN chunks per batch tile
    tile_b = cpt * VBS                    # lane-axis tile width (multiple of 128)
    num_tiles = B // tile_b               # equal tiles -> exact M_loss mean

    # Batch on the lane axis.  x is only D=16 wide, so this one-off XLA
    # transpose is nowhere near the HBM roofline; an in-kernel transpose of a
    # lane-sparse (tile_b, 16) block would buy nothing here.
    x_t = x.T.astype(jnp.float32)         # (D, B)

    p = params
    # Pack gamma/beta per-channel BN params ((C,1) columns, channels on
    # sublanes) into stacked arrays -> fewer inputs / DMA descriptors.  The
    # residual 128-lane padding of the (C,1) columns is ~0.5 MiB, negligible.
    ibn_gb = jnp.stack([p["ibn_g"], p["ibn_b"]])          # (2, D, 1)
    ft_gb = jnp.stack([p["ftg"], p["ftb"]])               # (2, 16, 2H, 1)
    att_gb = jnp.stack([p["attg"], p["attb"]])            # (2, steps, D, 1)
    # Pad final mapping 4 -> 8 output rows so the (8, TB) store is a full,
    # unmasked sublane group; the wrapper slices the real rows back out.
    finw_pad = jnp.zeros((OUT_PAD, N_D), jnp.float32).at[:OUTPUT_DIM].set(p["finw"])

    kernel = _make_kernel(N_D, N_A, N_STEPS, GAMMA, EPSILON)
    args = (x_t, ibn_gb, p["ws0"], p["ws1"], p["indw"], ft_gb,
            p["attw"], att_gb, finw_pad)

    in_specs = [pl.BlockSpec((D, tile_b), lambda i: (0, i))]   # x tiled over batch
    in_specs += [_full_block(a) for a in args[1:]]             # params: resident

    out_t, mloss_tiles = pl.pallas_call(
        kernel,
        grid=(num_tiles,),
        in_specs=in_specs,
        out_specs=(pl.BlockSpec((OUT_PAD, tile_b), lambda i: (0, i)),
                   pl.BlockSpec((1, 1, 128), lambda i: (i, 0, 0))),
        out_shape=(jax.ShapeDtypeStruct((OUT_PAD, B), jnp.float32),
                   jax.ShapeDtypeStruct((num_tiles, 1, 128), jnp.float32)),
        compiler_params=pltpu.CompilerParams(
            dimension_semantics=("parallel",),
            # Explicit, portable scoped-VMEM budget (v5e default is only 16 MiB;
            # actual footprint here is ~2-3 MiB, so 32 MiB is ample headroom).
            vmem_limit_bytes=32 * 1024 * 1024),
    )(*args)

    # Equal-sized tiles -> mean of per-tile means == global batch mean.
    return out_t[:OUTPUT_DIM, :].T, jnp.mean(mloss_tiles[:, 0, 0])


if __name__ == "__main__":
    key = jax.random.PRNGKey(0)
    kx, kp = jax.random.split(key)
    x = jax.random.normal(kx, (BATCH, INPUT_DIM), dtype=jnp.float32)
    params = init_params(kp)

    res, m_loss = tsp_tabnet_forward(x, params)
    jax.block_until_ready((res, m_loss))

    assert res.shape == (BATCH, OUTPUT_DIM)
    assert bool(jnp.all(jnp.isfinite(res))) and bool(jnp.isfinite(m_loss))
    print("KERNEL_OK")
</pallas_src>

<mosaic_0001>
module attributes {stable_mosaic.version = 11 : i64} {
  func.func @kernel(%arg0: i32, %arg1: memref<16x256xf32, #tpu.memory_space<vmem>>, %arg2: memref<2x16x1xf32, #tpu.memory_space<vmem>>, %arg3: memref<32x16xf32, #tpu.memory_space<vmem>>, %arg4: memref<32x16xf32, #tpu.memory_space<vmem>>, %arg5: memref<8x32x16xf32, #tpu.memory_space<vmem>>, %arg6: memref<2x16x32x1xf32, #tpu.memory_space<vmem>>, %arg7: memref<3x16x8xf32, #tpu.memory_space<vmem>>, %arg8: memref<2x3x16x1xf32, #tpu.memory_space<vmem>>, %arg9: memref<8x8xf32, #tpu.memory_space<vmem>>, %arg10: memref<8x256xf32, #tpu.memory_space<vmem>>, %arg11: memref<1x1x128xf32, #tpu.memory_space<vmem>>) attributes {dimension_semantics = [#tpu.dimension_semantics<parallel>], iteration_bounds = array<i64: 2>, scalar_prefetch = 0 : i64, scratch_operands = 0 : i64, tpu.core_type = #tpu.core_type<tc>, window_params = [{transform_indices = @transform_0, window_bounds = array<i64: 16, 256>}, {pipeline_mode = #tpu.pipeline_mode<synchronous>, transform_indices = @transform_1, window_bounds = array<i64: 2, 16, 1>}, {pipeline_mode = #tpu.pipeline_mode<synchronous>, transform_indices = @transform_2, window_bounds = array<i64: 32, 16>}, {pipeline_mode = #tpu.pipeline_mode<synchronous>, transform_indices = @transform_3, window_bounds = array<i64: 32, 16>}, {pipeline_mode = #tpu.pipeline_mode<synchronous>, transform_indices = @transform_4, window_bounds = array<i64: 8, 32, 16>}, {pipeline_mode = #tpu.pipeline_mode<synchronous>, transform_indices = @transform_5, window_bounds = array<i64: 2, 16, 32, 1>}, {pipeline_mode = #tpu.pipeline_mode<synchronous>, transform_indices = @transform_6, window_bounds = array<i64: 3, 16, 8>}, {pipeline_mode = #tpu.pipeline_mode<synchronous>, transform_indices = @transform_7, window_bounds = array<i64: 2, 3, 16, 1>}, {pipeline_mode = #tpu.pipeline_mode<synchronous>, transform_indices = @transform_8, window_bounds = array<i64: 8, 8>}, {transform_indices = @transform_9, window_bounds = array<i64: 8, 256>}, {transform_indices = @transform_10, window_bounds = array<i64: 1, 1, 128>}]} {
    %c0 = arith.constant 0 : index
    %c0_0 = arith.constant 0 : index
    %0 = vector.load %arg1[%c0, %c0_0] : memref<16x256xf32, #tpu.memory_space<vmem>>, vector<16x256xf32>
    %c0_1 = arith.constant 0 : index
    %c0_2 = arith.constant 0 : index
    %1 = vector.load %arg3[%c0_1, %c0_2] : memref<32x16xf32, #tpu.memory_space<vmem>>, vector<32x16xf32>
    %2 = arith.truncf %1 : vector<32x16xf32> to vector<32x16xbf16>
    %c0_3 = arith.constant 0 : index
    %c0_4 = arith.constant 0 : index
    %3 = vector.load %arg4[%c0_3, %c0_4] : memref<32x16xf32, #tpu.memory_space<vmem>>, vector<32x16xf32>
    %4 = arith.truncf %3 : vector<32x16xf32> to vector<32x16xbf16>
    %c0_5 = arith.constant 0 : index
    %c0_6 = arith.constant 0 : index
    %5 = vector.load %arg9[%c0_5, %c0_6] : memref<8x8xf32, #tpu.memory_space<vmem>>, vector<8x8xf32>
    %6 = arith.truncf %5 : vector<8x8xf32> to vector<8x8xbf16>
    %7 = tpu.iota {dimensions = array<i32: 0>} : vector<16x256xi32>
    %c0_i32 = arith.constant 0 : i32
    %8 = vector.broadcast %c0_i32 : i32 to vector<16x256xi32>
    %9 = vector.extract_strided_slice %0 {offsets = [0, 0], sizes = [1, 256], strides = [1, 1]} : vector<16x256xf32> to vector<1x256xf32>
    %10 = vector.broadcast %9 : vector<1x256xf32> to vector<16x256xf32>
    %11 = arith.cmpf ogt, %10, %0 : vector<16x256xf32>
    %12 = vector.broadcast %9 : vector<1x256xf32> to vector<16x256xf32>
    %13 = arith.cmpf oeq, %12, %0 : vector<16x256xf32>
    %c0_i32_7 = arith.constant 0 : i32
    %14 = vector.broadcast %c0_i32_7 : i32 to vector<16x256xi32>
    %15 = arith.cmpi sgt, %7, %14 : vector<16x256xi32>
    %16 = arith.andi %13, %15 : vector<16x256xi1>
    %17 = arith.ori %11, %16 : vector<16x256xi1>
    %18 = arith.extui %17 : vector<16x256xi1> to vector<16x256xi32>
    %19 = arith.addi %8, %18 : vector<16x256xi32>
    %20 = vector.extract_strided_slice %0 {offsets = [1, 0], sizes = [1, 256], strides = [1, 1]} : vector<16x256xf32> to vector<1x256xf32>
    %21 = vector.broadcast %20 : vector<1x256xf32> to vector<16x256xf32>
    %22 = arith.cmpf ogt, %21, %0 : vector<16x256xf32>
    %23 = vector.broadcast %20 : vector<1x256xf32> to vector<16x256xf32>
    %24 = arith.cmpf oeq, %23, %0 : vector<16x256xf32>
    %c1_i32 = arith.constant 1 : i32
    %25 = vector.broadcast %c1_i32 : i32 to vector<16x256xi32>
    %26 = arith.cmpi sgt, %7, %25 : vector<16x256xi32>
    %27 = arith.andi %24, %26 : vector<16x256xi1>
    %28 = arith.ori %22, %27 : vector<16x256xi1>
    %29 = arith.extui %28 : vector<16x256xi1> to vector<16x256xi32>
    %30 = arith.addi %19, %29 : vector<16x256xi32>
    %31 = vector.extract_strided_slice %0 {offsets = [2, 0], sizes = [1, 256], strides = [1, 1]} : vector<16x256xf32> to vector<1x256xf32>
    %32 = vector.broadcast %31 : vector<1x256xf32> to vector<16x256xf32>
    %33 = arith.cmpf ogt, %32, %0 : vector<16x256xf32>
    %34 = vector.broadcast %31 : vector<1x256xf32> to vector<16x256xf32>
    %35 = arith.cmpf oeq, %34, %0 : vector<16x256xf32>
    %c2_i32 = arith.constant 2 : i32
    %36 = vector.broadcast %c2_i32 : i32 to vector<16x256xi32>
    %37 = arith.cmpi sgt, %7, %36 : vector<16x256xi32>
    %38 = arith.andi %35, %37 : vector<16x256xi1>
    %39 = arith.ori %33, %38 : vector<16x256xi1>
    %40 = arith.extui %39 : vector<16x256xi1> to vector<16x256xi32>
    %41 = arith.addi %30, %40 : vector<16x256xi32>
    %42 = vector.extract_strided_slice %0 {offsets = [3, 0], sizes = [1, 256], strides = [1, 1]} : vector<16x256xf32> to vector<1x256xf32>
    %43 = vector.broadcast %42 : vector<1x256xf32> to vector<16x256xf32>
    %44 = arith.cmpf ogt, %43, %0 : vector<16x256xf32>
    %45 = vector.broadcast %42 : vector<1x256xf32> to vector<16x256xf32>
    %46 = arith.cmpf oeq, %45, %0 : vector<16x256xf32>
    %c3_i32 = arith.constant 3 : i32
    %47 = vector.broadcast %c3_i32 : i32 to vector<16x256xi32>
    %48 = arith.cmpi sgt, %7, %47 : vector<16x256xi32>
    %49 = arith.andi %46, %48 : vector<16x256xi1>
    %50 = arith.ori %44, %49 : vector<16x256xi1>
    %51 = arith.extui %50 : vector<16x256xi1> to vector<16x256xi32>
    %52 = arith.addi %41, %51 : vector<16x256xi32>
    %53 = vector.extract_strided_slice %0 {offsets = [4, 0], sizes = [1, 256], strides = [1, 1]} : vector<16x256xf32> to vector<1x256xf32>
    %54 = vector.broadcast %53 : vector<1x256xf32> to vector<16x256xf32>
    %55 = arith.cmpf ogt, %54, %0 : vector<16x256xf32>
    %56 = vector.broadcast %53 : vector<1x256xf32> to vector<16x256xf32>
    %57 = arith.cmpf oeq, %56, %0 : vector<16x256xf32>
    %c4_i32 = arith.constant 4 : i32
    %58 = vector.broadcast %c4_i32 : i32 to vector<16x256xi32>
    %59 = arith.cmpi sgt, %7, %58 : vector<16x256xi32>
    %60 = arith.andi %57, %59 : vector<16x256xi1>
    %61 = arith.ori %55, %60 : vector<16x256xi1>
    %62 = arith.extui %61 : vector<16x256xi1> to vector<16x256xi32>
    %63 = arith.addi %52, %62 : vector<16x256xi32>
    %64 = vector.extract_strided_slice %0 {offsets = [5, 0], sizes = [1, 256], strides = [1, 1]} : vector<16x256xf32> to vector<1x256xf32>
    %65 = vector.broadcast %64 : vector<1x256xf32> to vector<16x256xf32>
    %66 = arith.cmpf ogt, %65, %0 : vector<16x256xf32>
    %67 = vector.broadcast %64 : vector<1x256xf32> to vector<16x256xf32>
    %68 = arith.cmpf oeq, %67, %0 : vector<16x256xf32>
    %c5_i32 = arith.constant 5 : i32
    %69 = vector.broadcast %c5_i32 : i32 to vector<16x256xi32>
    %70 = arith.cmpi sgt, %7, %69 : vector<16x256xi32>
    %71 = arith.andi %68, %70 : vector<16x256xi1>
    %72 = arith.ori %66, %71 : vector<16x256xi1>
    %73 = arith.extui %72 : vector<16x256xi1> to vector<16x256xi32>
    %74 = arith.addi %63, %73 : vector<16x256xi32>
    %75 = vector.extract_strided_slice %0 {offsets = [6, 0], sizes = [1, 256], strides = [1, 1]} : vector<16x256xf32> to vector<1x256xf32>
    %76 = vector.broadcast %75 : vector<1x256xf32> to vector<16x256xf32>
    %77 = arith.cmpf ogt, %76, %0 : vector<16x256xf32>
    %78 = vector.broadcast %75 : vector<1x256xf32> to vector<16x256xf32>
    %79 = arith.cmpf oeq, %78, %0 : vector<16x256xf32>
    %c6_i32 = arith.constant 6 : i32
    %80 = vector.broadcast %c6_i32 : i32 to vector<16x256xi32>
    %81 = arith.cmpi sgt, %7, %80 : vector<16x256xi32>
    %82 = arith.andi %79, %81 : vector<16x256xi1>
    %83 = arith.ori %77, %82 : vector<16x256xi1>
    %84 = arith.extui %83 : vector<16x256xi1> to vector<16x256xi32>
    %85 = arith.addi %74, %84 : vector<16x256xi32>
    %86 = vector.extract_strided_slice %0 {offsets = [7, 0], sizes = [1, 256], strides = [1, 1]} : vector<16x256xf32> to vector<1x256xf32>
    %87 = vector.broadcast %86 : vector<1x256xf32> to vector<16x256xf32>
    %88 = arith.cmpf ogt, %87, %0 : vector<16x256xf32>
    %89 = vector.broadcast %86 : vector<1x256xf32> to vector<16x256xf32>
    %90 = arith.cmpf oeq, %89, %0 : vector<16x256xf32>
    %c7_i32 = arith.constant 7 : i32
    %91 = vector.broadcast %c7_i32 : i32 to vector<16x256xi32>
    %92 = arith.cmpi sgt, %7, %91 : vector<16x256xi32>
    %93 = arith.andi %90, %92 : vector<16x256xi1>
    %94 = arith.ori %88, %93 : vector<16x256xi1>
    %95 = arith.extui %94 : vector<16x256xi1> to vector<16x256xi32>
    %96 = arith.addi %85, %95 : vector<16x256xi32>
    %97 = vector.extract_strided_slice %0 {offsets = [8, 0], sizes = [1, 256], strides = [1, 1]} : vector<16x256xf32> to vector<1x256xf32>
    %98 = vector.broadcast %97 : vector<1x256xf32> to vector<16x256xf32>
    %99 = arith.cmpf ogt, %98, %0 : vector<16x256xf32>
    %100 = vector.broadcast %97 : vector<1x256xf32> to vector<16x256xf32>
    %101 = arith.cmpf oeq, %100, %0 : vector<16x256xf32>
    %c8_i32 = arith.constant 8 : i32
    %102 = vector.broadcast %c8_i32 : i32 to vector<16x256xi32>
    %103 = arith.cmpi sgt, %7, %102 : vector<16x256xi32>
    %104 = arith.andi %101, %103 : vector<16x256xi1>
    %105 = arith.ori %99, %104 : vector<16x256xi1>
    %106 = arith.extui %105 : vector<16x256xi1> to vector<16x256xi32>
    %107 = arith.addi %96, %106 : vector<16x256xi32>
    %108 = vector.extract_strided_slice %0 {offsets = [9, 0], sizes = [1, 256], strides = [1, 1]} : vector<16x256xf32> to vector<1x256xf32>
    %109 = vector.broadcast %108 : vector<1x256xf32> to vector<16x256xf32>
    %110 = arith.cmpf ogt, %109, %0 : vector<16x256xf32>
    %111 = vector.broadcast %108 : vector<1x256xf32> to vector<16x256xf32>
    %112 = arith.cmpf oeq, %111, %0 : vector<16x256xf32>
    %c9_i32 = arith.constant 9 : i32
    %113 = vector.broadcast %c9_i32 : i32 to vector<16x256xi32>
    %114 = arith.cmpi sgt, %7, %113 : vector<16x256xi32>
    %115 = arith.andi %112, %114 : vector<16x256xi1>
    %116 = arith.ori %110, %115 : vector<16x256xi1>
    %117 = arith.extui %116 : vector<16x256xi1> to vector<16x256xi32>
    %118 = arith.addi %107, %117 : vector<16x256xi32>
    %119 = vector.extract_strided_slice %0 {offsets = [10, 0], sizes = [1, 256], strides = [1, 1]} : vector<16x256xf32> to vector<1x256xf32>
    %120 = vector.broadcast %119 : vector<1x256xf32> to vector<16x256xf32>
    %121 = arith.cmpf ogt, %120, %0 : vector<16x256xf32>
    %122 = vector.broadcast %119 : vector<1x256xf32> to vector<16x256xf32>
    %123 = arith.cmpf oeq, %122, %0 : vector<16x256xf32>
    %c10_i32 = arith.constant 10 : i32
    %124 = vector.broadcast %c10_i32 : i32 to vector<16x256xi32>
    %125 = arith.cmpi sgt, %7, %124 : vector<16x256xi32>
    %126 = arith.andi %123, %125 : vector<16x256xi1>
    %127 = arith.ori %121, %126 : vector<16x256xi1>
    %128 = arith.extui %127 : vector<16x256xi1> to vector<16x256xi32>
    %129 = arith.addi %118, %128 : vector<16x256xi32>
    %130 = vector.extract_strided_slice %0 {offsets = [11, 0], sizes = [1, 256], strides = [1, 1]} : vector<16x256xf32> to vector<1x256xf32>
    %131 = vector.broadcast %130 : vector<1x256xf32> to vector<16x256xf32>
    %132 = arith.cmpf ogt, %131, %0 : vector<16x256xf32>
    %133 = vector.broadcast %130 : vector<1x256xf32> to vector<16x256xf32>
    %134 = arith.cmpf oeq, %133, %0 : vector<16x256xf32>
    %c11_i32 = arith.constant 11 : i32
    %135 = vector.broadcast %c11_i32 : i32 to vector<16x256xi32>
    %136 = arith.cmpi sgt, %7, %135 : vector<16x256xi32>
    %137 = arith.andi %134, %136 : vector<16x256xi1>
    %138 = arith.ori %132, %137 : vector<16x256xi1>
    %139 = arith.extui %138 : vector<16x256xi1> to vector<16x256xi32>
    %140 = arith.addi %129, %139 : vector<16x256xi32>
    %141 = vector.extract_strided_slice %0 {offsets = [12, 0], sizes = [1, 256], strides = [1, 1]} : vector<16x256xf32> to vector<1x256xf32>
    %142 = vector.broadcast %141 : vector<1x256xf32> to vector<16x256xf32>
    %143 = arith.cmpf ogt, %142, %0 : vector<16x256xf32>
    %144 = vector.broadcast %141 : vector<1x256xf32> to vector<16x256xf32>
    %145 = arith.cmpf oeq, %144, %0 : vector<16x256xf32>
    %c12_i32 = arith.constant 12 : i32
    %146 = vector.broadcast %c12_i32 : i32 to vector<16x256xi32>
    %147 = arith.cmpi sgt, %7, %146 : vector<16x256xi32>
    %148 = arith.andi %145, %147 : vector<16x256xi1>
    %149 = arith.ori %143, %148 : vector<16x256xi1>
    %150 = arith.extui %149 : vector<16x256xi1> to vector<16x256xi32>
    %151 = arith.addi %140, %150 : vector<16x256xi32>
    %152 = vector.extract_strided_slice %0 {offsets = [13, 0], sizes = [1, 256], strides = [1, 1]} : vector<16x256xf32> to vector<1x256xf32>
    %153 = vector.broadcast %152 : vector<1x256xf32> to vector<16x256xf32>
    %154 = arith.cmpf ogt, %153, %0 : vector<16x256xf32>
    %155 = vector.broadcast %152 : vector<1x256xf32> to vector<16x256xf32>
    %156 = arith.cmpf oeq, %155, %0 : vector<16x256xf32>
    %c13_i32 = arith.constant 13 : i32
    %157 = vector.broadcast %c13_i32 : i32 to vector<16x256xi32>
    %158 = arith.cmpi sgt, %7, %157 : vector<16x256xi32>
    %159 = arith.andi %156, %158 : vector<16x256xi1>
    %160 = arith.ori %154, %159 : vector<16x256xi1>
    %161 = arith.extui %160 : vector<16x256xi1> to vector<16x256xi32>
    %162 = arith.addi %151, %161 : vector<16x256xi32>
    %163 = vector.extract_strided_slice %0 {offsets = [14, 0], sizes = [1, 256], strides = [1, 1]} : vector<16x256xf32> to vector<1x256xf32>
    %164 = vector.broadcast %163 : vector<1x256xf32> to vector<16x256xf32>
    %165 = arith.cmpf ogt, %164, %0 : vector<16x256xf32>
    %166 = vector.broadcast %163 : vector<1x256xf32> to vector<16x256xf32>
    %167 = arith.cmpf oeq, %166, %0 : vector<16x256xf32>
    %c14_i32 = arith.constant 14 : i32
    %168 = vector.broadcast %c14_i32 : i32 to vector<16x256xi32>
    %169 = arith.cmpi sgt, %7, %168 : vector<16x256xi32>
    %170 = arith.andi %167, %169 : vector<16x256xi1>
    %171 = arith.ori %165, %170 : vector<16x256xi1>
    %172 = arith.extui %171 : vector<16x256xi1> to vector<16x256xi32>
    %173 = arith.addi %162, %172 : vector<16x256xi32>
    %174 = vector.extract_strided_slice %0 {offsets = [15, 0], sizes = [1, 256], strides = [1, 1]} : vector<16x256xf32> to vector<1x256xf32>
    %175 = vector.broadcast %174 : vector<1x256xf32> to vector<16x256xf32>
    %176 = arith.cmpf ogt, %175, %0 : vector<16x256xf32>
    %177 = vector.broadcast %174 : vector<1x256xf32> to vector<16x256xf32>
    %178 = arith.cmpf oeq, %177, %0 : vector<16x256xf32>
    %c15_i32 = arith.constant 15 : i32
    %179 = vector.broadcast %c15_i32 : i32 to vector<16x256xi32>
    %180 = arith.cmpi sgt, %7, %179 : vector<16x256xi32>
    %181 = arith.andi %178, %180 : vector<16x256xi1>
    %182 = arith.ori %176, %181 : vector<16x256xi1>
    %183 = arith.extui %182 : vector<16x256xi1> to vector<16x256xi32>
    %184 = arith.addi %173, %183 : vector<16x256xi32>
    %cst = arith.constant 0.000000e+00 : f32
    %185 = vector.broadcast %cst : f32 to vector<16x256xf32>
    %186 = vector.extract_strided_slice %184 {offsets = [0, 0], sizes = [1, 256], strides = [1, 1]} : vector<16x256xi32> to vector<1x256xi32>
    %187 = vector.broadcast %186 : vector<1x256xi32> to vector<16x256xi32>
    %188 = arith.cmpi eq, %7, %187 : vector<16x256xi32>
    %189 = vector.extract_strided_slice %0 {offsets = [0, 0], sizes = [1, 256], strides = [1, 1]} : vector<16x256xf32> to vector<1x256xf32>
    %190 = vector.shape_cast %189 : vector<1x256xf32> to vector<1x256xf32>
    %191 = vector.broadcast %190 : vector<1x256xf32> to vector<16x256xf32>
    %192 = arith.select %188, %191, %185 : vector<16x256xi1>, vector<16x256xf32>
    %193 = vector.extract_strided_slice %184 {offsets = [1, 0], sizes = [1, 256], strides = [1, 1]} : vector<16x256xi32> to vector<1x256xi32>
    %194 = vector.broadcast %193 : vector<1x256xi32> to vector<16x256xi32>
    %195 = arith.cmpi eq, %7, %194 : vector<16x256xi32>
    %196 = vector.extract_strided_slice %0 {offsets = [1, 0], sizes = [1, 256], strides = [1, 1]} : vector<16x256xf32> to vector<1x256xf32>
    %197 = vector.shape_cast %196 : vector<1x256xf32> to vector<1x256xf32>
    %198 = vector.broadcast %197 : vector<1x256xf32> to vector<16x256xf32>
    %199 = arith.select %195, %198, %192 : vector<16x256xi1>, vector<16x256xf32>
    %200 = vector.extract_strided_slice %184 {offsets = [2, 0], sizes = [1, 256], strides = [1, 1]} : vector<16x256xi32> to vector<1x256xi32>
    %201 = vector.broadcast %200 : vector<1x256xi32> to vector<16x256xi32>
    %202 = arith.cmpi eq, %7, %201 : vector<16x256xi32>
    %203 = vector.extract_strided_slice %0 {offsets = [2, 0], sizes = [1, 256], strides = [1, 1]} : vector<16x256xf32> to vector<1x256xf32>
    %204 = vector.shape_cast %203 : vector<1x256xf32> to vector<1x256xf32>
    %205 = vector.broadcast %204 : vector<1x256xf32> to vector<16x256xf32>
    %206 = arith.select %202, %205, %199 : vector<16x256xi1>, vector<16x256xf32>
    %207 = vector.extract_strided_slice %184 {offsets = [3, 0], sizes = [1, 256], strides = [1, 1]} : vector<16x256xi32> to vector<1x256xi32>
    %208 = vector.broadcast %207 : vector<1x256xi32> to vector<16x256xi32>
    %209 = arith.cmpi eq, %7, %208 : vector<16x256xi32>
    %210 = vector.extract_strided_slice %0 {offsets = [3, 0], sizes = [1, 256], strides = [1, 1]} : vector<16x256xf32> to vector<1x256xf32>
    %211 = vector.shape_cast %210 : vector<1x256xf32> to vector<1x256xf32>
    %212 = vector.broadcast %211 : vector<1x256xf32> to vector<16x256xf32>
    %213 = arith.select %209, %212, %206 : vector<16x256xi1>, vector<16x256xf32>
    %214 = vector.extract_strided_slice %184 {offsets = [4, 0], sizes = [1, 256], strides = [1, 1]} : vector<16x256xi32> to vector<1x256xi32>
    %215 = vector.broadcast %214 : vector<1x256xi32> to vector<16x256xi32>
    %216 = arith.cmpi eq, %7, %215 : vector<16x256xi32>
    %217 = vector.extract_strided_slice %0 {offsets = [4, 0], sizes = [1, 256], strides = [1, 1]} : vector<16x256xf32> to vector<1x256xf32>
    %218 = vector.shape_cast %217 : vector<1x256xf32> to vector<1x256xf32>
    %219 = vector.broadcast %218 : vector<1x256xf32> to vector<16x256xf32>
    %220 = arith.select %216, %219, %213 : vector<16x256xi1>, vector<16x256xf32>
    %221 = vector.extract_strided_slice %184 {offsets = [5, 0], sizes = [1, 256], strides = [1, 1]} : vector<16x256xi32> to vector<1x256xi32>
    %222 = vector.broadcast %221 : vector<1x256xi32> to vector<16x256xi32>
    %223 = arith.cmpi eq, %7, %222 : vector<16x256xi32>
    %224 = vector.extract_strided_slice %0 {offsets = [5, 0], sizes = [1, 256], strides = [1, 1]} : vector<16x256xf32> to vector<1x256xf32>
    %225 = vector.shape_cast %224 : vector<1x256xf32> to vector<1x256xf32>
    %226 = vector.broadcast %225 : vector<1x256xf32> to vector<16x256xf32>
    %227 = arith.select %223, %226, %220 : vector<16x256xi1>, vector<16x256xf32>
    %228 = vector.extract_strided_slice %184 {offsets = [6, 0], sizes = [1, 256], strides = [1, 1]} : vector<16x256xi32> to vector<1x256xi32>
    %229 = vector.broadcast %228 : vector<1x256xi32> to vector<16x256xi32>
    %230 = arith.cmpi eq, %7, %229 : vector<16x256xi32>
    %231 = vector.extract_strided_slice %0 {offsets = [6, 0], sizes = [1, 256], strides = [1, 1]} : vector<16x256xf32> to vector<1x256xf32>
    %232 = vector.shape_cast %231 : vector<1x256xf32> to vector<1x256xf32>
    %233 = vector.broadcast %232 : vector<1x256xf32> to vector<16x256xf32>
    %234 = arith.select %230, %233, %227 : vector<16x256xi1>, vector<16x256xf32>
    %235 = vector.extract_strided_slice %184 {offsets = [7, 0], sizes = [1, 256], strides = [1, 1]} : vector<16x256xi32> to vector<1x256xi32>
    %236 = vector.broadcast %235 : vector<1x256xi32> to vector<16x256xi32>
    %237 = arith.cmpi eq, %7, %236 : vector<16x256xi32>
    %238 = vector.extract_strided_slice %0 {offsets = [7, 0], sizes = [1, 256], strides = [1, 1]} : vector<16x256xf32> to vector<1x256xf32>
    %239 = vector.shape_cast %238 : vector<1x256xf32> to vector<1x256xf32>
    %240 = vector.broadcast %239 : vector<1x256xf32> to vector<16x256xf32>
    %241 = arith.select %237, %240, %234 : vector<16x256xi1>, vector<16x256xf32>
    %242 = vector.extract_strided_slice %184 {offsets = [8, 0], sizes = [1, 256], strides = [1, 1]} : vector<16x256xi32> to vector<1x256xi32>
    %243 = vector.broadcast %242 : vector<1x256xi32> to vector<16x256xi32>
    %244 = arith.cmpi eq, %7, %243 : vector<16x256xi32>
    %245 = vector.extract_strided_slice %0 {offsets = [8, 0], sizes = [1, 256], strides = [1, 1]} : vector<16x256xf32> to vector<1x256xf32>
    %246 = vector.shape_cast %245 : vector<1x256xf32> to vector<1x256xf32>
    %247 = vector.broadcast %246 : vector<1x256xf32> to vector<16x256xf32>
    %248 = arith.select %244, %247, %241 : vector<16x256xi1>, vector<16x256xf32>
    %249 = vector.extract_strided_slice %184 {offsets = [9, 0], sizes = [1, 256], strides = [1, 1]} : vector<16x256xi32> to vector<1x256xi32>
    %250 = vector.broadcast %249 : vector<1x256xi32> to vector<16x256xi32>
    %251 = arith.cmpi eq, %7, %250 : vector<16x256xi32>
    %252 = vector.extract_strided_slice %0 {offsets = [9, 0], sizes = [1, 256], strides = [1, 1]} : vector<16x256xf32> to vector<1x256xf32>
    %253 = vector.shape_cast %252 : vector<1x256xf32> to vector<1x256xf32>
    %254 = vector.broadcast %253 : vector<1x256xf32> to vector<16x256xf32>
    %255 = arith.select %251, %254, %248 : vector<16x256xi1>, vector<16x256xf32>
    %256 = vector.extract_strided_slice %184 {offsets = [10, 0], sizes = [1, 256], strides = [1, 1]} : vector<16x256xi32> to vector<1x256xi32>
    %257 = vector.broadcast %256 : vector<1x256xi32> to vector<16x256xi32>
    %258 = arith.cmpi eq, %7, %257 : vector<16x256xi32>
    %259 = vector.extract_strided_slice %0 {offsets = [10, 0], sizes = [1, 256], strides = [1, 1]} : vector<16x256xf32> to vector<1x256xf32>
    %260 = vector.shape_cast %259 : vector<1x256xf32> to vector<1x256xf32>
    %261 = vector.broadcast %260 : vector<1x256xf32> to vector<16x256xf32>
    %262 = arith.select %258, %261, %255 : vector<16x256xi1>, vector<16x256xf32>
    %263 = vector.extract_strided_slice %184 {offsets = [11, 0], sizes = [1, 256], strides = [1, 1]} : vector<16x256xi32> to vector<1x256xi32>
    %264 = vector.broadcast %263 : vector<1x256xi32> to vector<16x256xi32>
    %265 = arith.cmpi eq, %7, %264 : vector<16x256xi32>
    %266 = vector.extract_strided_slice %0 {offsets = [11, 0], sizes = [1, 256], strides = [1, 1]} : vector<16x256xf32> to vector<1x256xf32>
    %267 = vector.shape_cast %266 : vector<1x256xf32> to vector<1x256xf32>
    %268 = vector.broadcast %267 : vector<1x256xf32> to vector<16x256xf32>
    %269 = arith.select %265, %268, %262 : vector<16x256xi1>, vector<16x256xf32>
    %270 = vector.extract_strided_slice %184 {offsets = [12, 0], sizes = [1, 256], strides = [1, 1]} : vector<16x256xi32> to vector<1x256xi32>
    %271 = vector.broadcast %270 : vector<1x256xi32> to vector<16x256xi32>
    %272 = arith.cmpi eq, %7, %271 : vector<16x256xi32>
    %273 = vector.extract_strided_slice %0 {offsets = [12, 0], sizes = [1, 256], strides = [1, 1]} : vector<16x256xf32> to vector<1x256xf32>
    %274 = vector.shape_cast %273 : vector<1x256xf32> to vector<1x256xf32>
    %275 = vector.broadcast %274 : vector<1x256xf32> to vector<16x256xf32>
    %276 = arith.select %272, %275, %269 : vector<16x256xi1>, vector<16x256xf32>
    %277 = vector.extract_strided_slice %184 {offsets = [13, 0], sizes = [1, 256], strides = [1, 1]} : vector<16x256xi32> to vector<1x256xi32>
    %278 = vector.broadcast %277 : vector<1x256xi32> to vector<16x256xi32>
    %279 = arith.cmpi eq, %7, %278 : vector<16x256xi32>
    %280 = vector.extract_strided_slice %0 {offsets = [13, 0], sizes = [1, 256], strides = [1, 1]} : vector<16x256xf32> to vector<1x256xf32>
    %281 = vector.shape_cast %280 : vector<1x256xf32> to vector<1x256xf32>
    %282 = vector.broadcast %281 : vector<1x256xf32> to vector<16x256xf32>
    %283 = arith.select %279, %282, %276 : vector<16x256xi1>, vector<16x256xf32>
    %284 = vector.extract_strided_slice %184 {offsets = [14, 0], sizes = [1, 256], strides = [1, 1]} : vector<16x256xi32> to vector<1x256xi32>
    %285 = vector.broadcast %284 : vector<1x256xi32> to vector<16x256xi32>
    %286 = arith.cmpi eq, %7, %285 : vector<16x256xi32>
    %287 = vector.extract_strided_slice %0 {offsets = [14, 0], sizes = [1, 256], strides = [1, 1]} : vector<16x256xf32> to vector<1x256xf32>
    %288 = vector.shape_cast %287 : vector<1x256xf32> to vector<1x256xf32>
    %289 = vector.broadcast %288 : vector<1x256xf32> to vector<16x256xf32>
    %290 = arith.select %286, %289, %283 : vector<16x256xi1>, vector<16x256xf32>
    %291 = vector.extract_strided_slice %184 {offsets = [15, 0], sizes = [1, 256], strides = [1, 1]} : vector<16x256xi32> to vector<1x256xi32>
    %292 = vector.broadcast %291 : vector<1x256xi32> to vector<16x256xi32>
    %293 = arith.cmpi eq, %7, %292 : vector<16x256xi32>
    %294 = vector.extract_strided_slice %0 {offsets = [15, 0], sizes = [1, 256], strides = [1, 1]} : vector<16x256xf32> to vector<1x256xf32>
    %295 = vector.shape_cast %294 : vector<1x256xf32> to vector<1x256xf32>
    %296 = vector.broadcast %295 : vector<1x256xf32> to vector<16x256xf32>
    %297 = arith.select %293, %296, %290 : vector<16x256xi1>, vector<16x256xf32>
    %c0_8 = arith.constant 0 : index
    %c0_9 = arith.constant 0 : index
    %c0_10 = arith.constant 0 : index
    %298 = vector.load %arg2[%c0_8, %c0_9, %c0_10] : memref<2x16x1xf32, #tpu.memory_space<vmem>>, vector<1x16x1xf32>
    %299 = vector.shape_cast %298 : vector<1x16x1xf32> to vector<16x1xf32>
    %c1 = arith.constant 1 : index
    %c0_11 = arith.constant 0 : index
    %c0_12 = arith.constant 0 : index
    %300 = vector.load %arg2[%c1, %c0_11, %c0_12] : memref<2x16x1xf32, #tpu.memory_space<vmem>>, vector<1x16x1xf32>
    %301 = vector.shape_cast %300 : vector<1x16x1xf32> to vector<16x1xf32>
    %302 = vector.extract_strided_slice %297 {offsets = [0, 0], sizes = [16, 128], strides = [1, 1]} : vector<16x256xf32> to vector<16x128xf32>
    %cst_13 = arith.constant dense<0.000000e+00> : vector<16xf32>
    %303 = vector.multi_reduction <add>, %302, %cst_13 [1] : vector<16x128xf32> to vector<16xf32>
    %304 = vector.shape_cast %303 : vector<16xf32> to vector<16x1xf32>
    %cst_14 = arith.constant 1.280000e+02 : f32
    %305 = vector.broadcast %cst_14 : f32 to vector<16x1xf32>
    %306 = arith.divf %304, %305 : vector<16x1xf32>
    %307 = vector.broadcast %306 : vector<16x1xf32> to vector<16x128xf32>
    %308 = arith.subf %302, %307 : vector<16x128xf32>
    %309 = arith.mulf %308, %308 : vector<16x128xf32>
    %cst_15 = arith.constant dense<0.000000e+00> : vector<16xf32>
    %310 = vector.multi_reduction <add>, %309, %cst_15 [1] : vector<16x128xf32> to vector<16xf32>
    %311 = vector.shape_cast %310 : vector<16xf32> to vector<16x1xf32>
    %cst_16 = arith.constant 1.280000e+02 : f32
    %312 = vector.broadcast %cst_16 : f32 to vector<16x1xf32>
    %313 = arith.divf %311, %312 : vector<16x1xf32>
    %cst_17 = arith.constant 9.99999974E-6 : f32
    %314 = vector.broadcast %cst_17 : f32 to vector<16x1xf32>
    %315 = arith.addf %313, %314 : vector<16x1xf32>
    %316 = math.rsqrt %315 : vector<16x1xf32>
    %317 = vector.broadcast %316 : vector<16x1xf32> to vector<16x128xf32>
    %318 = arith.mulf %308, %317 : vector<16x128xf32>
    %319 = vector.extract_strided_slice %297 {offsets = [0, 128], sizes = [16, 128], strides = [1, 1]} : vector<16x256xf32> to vector<16x128xf32>
    %cst_18 = arith.constant dense<0.000000e+00> : vector<16xf32>
    %320 = vector.multi_reduction <add>, %319, %cst_18 [1] : vector<16x128xf32> to vector<16xf32>
    %321 = vector.shape_cast %320 : vector<16xf32> to vector<16x1xf32>
    %cst_19 = arith.constant 1.280000e+02 : f32
    %322 = vector.broadcast %cst_19 : f32 to vector<16x1xf32>
    %323 = arith.divf %321, %322 : vector<16x1xf32>
    %324 = vector.broadcast %323 : vector<16x1xf32> to vector<16x128xf32>
    %325 = arith.subf %319, %324 : vector<16x128xf32>
    %326 = arith.mulf %325, %325 : vector<16x128xf32>
    %cst_20 = arith.constant dense<0.000000e+00> : vector<16xf32>
    %327 = vector.multi_reduction <add>, %326, %cst_20 [1] : vector<16x128xf32> to vector<16xf32>
    %328 = vector.shape_cast %327 : vector<16xf32> to vector<16x1xf32>
    %cst_21 = arith.constant 1.280000e+02 : f32
    %329 = vector.broadcast %cst_21 : f32 to vector<16x1xf32>
    %330 = arith.divf %328, %329 : vector<16x1xf32>
    %cst_22 = arith.constant 9.99999974E-6 : f32
    %331 = vector.broadcast %cst_22 : f32 to vector<16x1xf32>
    %332 = arith.addf %330, %331 : vector<16x1xf32>
    %333 = math.rsqrt %332 : vector<16x1xf32>
    %334 = vector.broadcast %333 : vector<16x1xf32> to vector<16x128xf32>
    %335 = arith.mulf %325, %334 : vector<16x128xf32>
    %336 = tpu.concatenate %318, %335 in 1 : vector<16x128xf32>, vector<16x128xf32> -> vector<16x256xf32>
    %337 = vector.broadcast %299 : vector<16x1xf32> to vector<16x256xf32>
    %338 = arith.mulf %336, %337 : vector<16x256xf32>
    %339 = vector.broadcast %301 : vector<16x1xf32> to vector<16x256xf32>
    %340 = arith.addf %338, %339 : vector<16x256xf32>
    %c0_23 = arith.constant 0 : index
    %c0_24 = arith.constant 0 : index
    %c0_25 = arith.constant 0 : index
    %c0_26 = arith.constant 0 : index
    %341 = vector.load %arg6[%c0_23, %c0_24, %c0_25, %c0_26] : memref<2x16x32x1xf32, #tpu.memory_space<vmem>>, vector<1x1x32x1xf32>
    %342 = vector.shape_cast %341 : vector<1x1x32x1xf32> to vector<32x1xf32>
    %c1_27 = arith.constant 1 : index
    %c0_28 = arith.constant 0 : index
    %c0_29 = arith.constant 0 : index
    %c0_30 = arith.constant 0 : index
    %343 = vector.load %arg6[%c1_27, %c0_28, %c0_29, %c0_30] : memref<2x16x32x1xf32, #tpu.memory_space<vmem>>, vector<1x1x32x1xf32>
    %344 = vector.shape_cast %343 : vector<1x1x32x1xf32> to vector<32x1xf32>
    %345 = arith.truncf %340 : vector<16x256xf32> to vector<16x256xbf16>
    %cst_31 = arith.constant dense<0.000000e+00> : vector<32x256xf32>
    %346 = tpu.matmul %2, %345, %cst_31 {dimension_numbers = #tpu.dot_dimension_numbers<[1], [0], [0], [1], [0, 0, 1, 1], [], []>} : vector<32x16xbf16>, vector<16x256xbf16>, vector<32x256xf32> -> vector<32x256xf32>
    %347 = vector.extract_strided_slice %346 {offsets = [0, 0], sizes = [32, 128], strides = [1, 1]} : vector<32x256xf32> to vector<32x128xf32>
    %cst_32 = arith.constant dense<0.000000e+00> : vector<32xf32>
    %348 = vector.multi_reduction <add>, %347, %cst_32 [1] : vector<32x128xf32> to vector<32xf32>
    %349 = vector.shape_cast %348 : vector<32xf32> to vector<32x1xf32>
    %cst_33 = arith.constant 1.280000e+02 : f32
    %350 = vector.broadcast %cst_33 : f32 to vector<32x1xf32>
    %351 = arith.divf %349, %350 : vector<32x1xf32>
    %352 = vector.broadcast %351 : vector<32x1xf32> to vector<32x128xf32>
    %353 = arith.subf %347, %352 : vector<32x128xf32>
    %354 = arith.mulf %353, %353 : vector<32x128xf32>
    %cst_34 = arith.constant dense<0.000000e+00> : vector<32xf32>
    %355 = vector.multi_reduction <add>, %354, %cst_34 [1] : vector<32x128xf32> to vector<32xf32>
    %356 = vector.shape_cast %355 : vector<32xf32> to vector<32x1xf32>
    %cst_35 = arith.constant 1.280000e+02 : f32
    %357 = vector.broadcast %cst_35 : f32 to vector<32x1xf32>
    %358 = arith.divf %356, %357 : vector<32x1xf32>
    %cst_36 = arith.constant 9.99999974E-6 : f32
    %359 = vector.broadcast %cst_36 : f32 to vector<32x1xf32>
    %360 = arith.addf %358, %359 : vector<32x1xf32>
    %361 = math.rsqrt %360 : vector<32x1xf32>
    %362 = vector.broadcast %361 : vector<32x1xf32> to vector<32x128xf32>
    %363 = arith.mulf %353, %362 : vector<32x128xf32>
    %364 = vector.extract_strided_slice %346 {offsets = [0, 128], sizes = [32, 128], strides = [1, 1]} : vector<32x256xf32> to vector<32x128xf32>
    %cst_37 = arith.constant dense<0.000000e+00> : vector<32xf32>
    %365 = vector.multi_reduction <add>, %364, %cst_37 [1] : vector<32x128xf32> to vector<32xf32>
    %366 = vector.shape_cast %365 : vector<32xf32> to vector<32x1xf32>
    %cst_38 = arith.constant 1.280000e+02 : f32
    %367 = vector.broadcast %cst_38 : f32 to vector<32x1xf32>
    %368 = arith.divf %366, %367 : vector<32x1xf32>
    %369 = vector.broadcast %368 : vector<32x1xf32> to vector<32x128xf32>
    %370 = arith.subf %364, %369 : vector<32x128xf32>
    %371 = arith.mulf %370, %370 : vector<32x128xf32>
    %cst_39 = arith.constant dense<0.000000e+00> : vector<32xf32>
    %372 = vector.multi_reduction <add>, %371, %cst_39 [1] : vector<32x128xf32> to vector<32xf32>
    %373 = vector.shape_cast %372 : vector<32xf32> to vector<32x1xf32>
    %cst_40 = arith.constant 1.280000e+02 : f32
    %374 = vector.broadcast %cst_40 : f32 to vector<32x1xf32>
    %375 = arith.divf %373, %374 : vector<32x1xf32>
    %cst_41 = arith.constant 9.99999974E-6 : f32
    %376 = vector.broadcast %cst_41 : f32 to vector<32x1xf32>
    %377 = arith.addf %375, %376 : vector<32x1xf32>
    %378 = math.rsqrt %377 : vector<32x1xf32>
    %379 = vector.broadcast %378 : vector<32x1xf32> to vector<32x128xf32>
    %380 = arith.mulf %370, %379 : vector<32x128xf32>
    %381 = tpu.concatenate %363, %380 in 1 : vector<32x128xf32>, vector<32x128xf32> -> vector<32x256xf32>
    %382 = vector.broadcast %342 : vector<32x1xf32> to vector<32x256xf32>
    %383 = arith.mulf %381, %382 : vector<32x256xf32>
    %384 = vector.broadcast %344 : vector<32x1xf32> to vector<32x256xf32>
    %385 = arith.addf %383, %384 : vector<32x256xf32>
    %386 = vector.extract_strided_slice %385 {offsets = [0, 0], sizes = [16, 256], strides = [1, 1]} : vector<32x256xf32> to vector<16x256xf32>
    %387 = vector.extract_strided_slice %385 {offsets = [16, 0], sizes = [16, 256], strides = [1, 1]} : vector<32x256xf32> to vector<16x256xf32>
    %388 = arith.negf %387 : vector<16x256xf32>
    %389 = math.exp %388 : vector<16x256xf32>
    %cst_42 = arith.constant 1.000000e+00 : f32
    %390 = vector.broadcast %cst_42 : f32 to vector<16x256xf32>
    %391 = arith.addf %390, %389 : vector<16x256xf32>
    %392 = arith.divf %390, %391 : vector<16x256xf32>
    %393 = arith.mulf %386, %392 : vector<16x256xf32>
    %c0_43 = arith.constant 0 : index
    %c1_44 = arith.constant 1 : index
    %c0_45 = arith.constant 0 : index
    %c0_46 = arith.constant 0 : index
    %394 = vector.load %arg6[%c0_43, %c1_44, %c0_45, %c0_46] : memref<2x16x32x1xf32, #tpu.memory_space<vmem>>, vector<1x1x32x1xf32>
    %395 = vector.shape_cast %394 : vector<1x1x32x1xf32> to vector<32x1xf32>
    %c1_47 = arith.constant 1 : index
    %c1_48 = arith.constant 1 : index
    %c0_49 = arith.constant 0 : index
    %c0_50 = arith.constant 0 : index
    %396 = vector.load %arg6[%c1_47, %c1_48, %c0_49, %c0_50] : memref<2x16x32x1xf32, #tpu.memory_space<vmem>>, vector<1x1x32x1xf32>
    %397 = vector.shape_cast %396 : vector<1x1x32x1xf32> to vector<32x1xf32>
    %398 = arith.truncf %393 : vector<16x256xf32> to vector<16x256xbf16>
    %cst_51 = arith.constant dense<0.000000e+00> : vector<32x256xf32>
    %399 = tpu.matmul %4, %398, %cst_51 {dimension_numbers = #tpu.dot_dimension_numbers<[1], [0], [0], [1], [0, 0, 1, 1], [], []>} : vector<32x16xbf16>, vector<16x256xbf16>, vector<32x256xf32> -> vector<32x256xf32>
    %400 = vector.extract_strided_slice %399 {offsets = [0, 0], sizes = [32, 128], strides = [1, 1]} : vector<32x256xf32> to vector<32x128xf32>
    %cst_52 = arith.constant dense<0.000000e+00> : vector<32xf32>
    %401 = vector.multi_reduction <add>, %400, %cst_52 [1] : vector<32x128xf32> to vector<32xf32>
    %402 = vector.shape_cast %401 : vector<32xf32> to vector<32x1xf32>
    %cst_53 = arith.constant 1.280000e+02 : f32
    %403 = vector.broadcast %cst_53 : f32 to vector<32x1xf32>
    %404 = arith.divf %402, %403 : vector<32x1xf32>
    %405 = vector.broadcast %404 : vector<32x1xf32> to vector<32x128xf32>
    %406 = arith.subf %400, %405 : vector<32x128xf32>
    %407 = arith.mulf %406, %406 : vector<32x128xf32>
    %cst_54 = arith.constant dense<0.000000e+00> : vector<32xf32>
    %408 = vector.multi_reduction <add>, %407, %cst_54 [1] : vector<32x128xf32> to vector<32xf32>
    %409 = vector.shape_cast %408 : vector<32xf32> to vector<32x1xf32>
    %cst_55 = arith.constant 1.280000e+02 : f32
    %410 = vector.broadcast %cst_55 : f32 to vector<32x1xf32>
    %411 = arith.divf %409, %410 : vector<32x1xf32>
    %cst_56 = arith.constant 9.99999974E-6 : f32
    %412 = vector.broadcast %cst_56 : f32 to vector<32x1xf32>
    %413 = arith.addf %411, %412 : vector<32x1xf32>
    %414 = math.rsqrt %413 : vector<32x1xf32>
    %415 = vector.broadcast %414 : vector<32x1xf32> to vector<32x128xf32>
    %416 = arith.mulf %406, %415 : vector<32x128xf32>
    %417 = vector.extract_strided_slice %399 {offsets = [0, 128], sizes = [32, 128], strides = [1, 1]} : vector<32x256xf32> to vector<32x128xf32>
    %cst_57 = arith.constant dense<0.000000e+00> : vector<32xf32>
    %418 = vector.multi_reduction <add>, %417, %cst_57 [1] : vector<32x128xf32> to vector<32xf32>
    %419 = vector.shape_cast %418 : vector<32xf32> to vector<32x1xf32>
    %cst_58 = arith.constant 1.280000e+02 : f32
    %420 = vector.broadcast %cst_58 : f32 to vector<32x1xf32>
    %421 = arith.divf %419, %420 : vector<32x1xf32>
    %422 = vector.broadcast %421 : vector<32x1xf32> to vector<32x128xf32>
    %423 = arith.subf %417, %422 : vector<32x128xf32>
    %424 = arith.mulf %423, %423 : vector<32x128xf32>
    %cst_59 = arith.constant dense<0.000000e+00> : vector<32xf32>
    %425 = vector.multi_reduction <add>, %424, %cst_59 [1] : vector<32x128xf32> to vector<32xf32>
    %426 = vector.shape_cast %425 : vector<32xf32> to vector<32x1xf32>
    %cst_60 = arith.constant 1.280000e+02 : f32
    %427 = vector.broadcast %cst_60 : f32 to vector<32x1xf32>
    %428 = arith.divf %426, %427 : vector<32x1xf32>
    %cst_61 = arith.constant 9.99999974E-6 : f32
    %429 = vector.broadcast %cst_61 : f32 to vector<32x1xf32>
    %430 = arith.addf %428, %429 : vector<32x1xf32>
    %431 = math.rsqrt %430 : vector<32x1xf32>
    %432 = vector.broadcast %431 : vector<32x1xf32> to vector<32x128xf32>
    %433 = arith.mulf %423, %432 : vector<32x128xf32>
    %434 = tpu.concatenate %416, %433 in 1 : vector<32x128xf32>, vector<32x128xf32> -> vector<32x256xf32>
    %435 = vector.broadcast %395 : vector<32x1xf32> to vector<32x256xf32>
    %436 = arith.mulf %434, %435 : vector<32x256xf32>
    %437 = vector.broadcast %397 : vector<32x1xf32> to vector<32x256xf32>
    %438 = arith.addf %436, %437 : vector<32x256xf32>
    %439 = vector.extract_strided_slice %438 {offsets = [0, 0], sizes = [16, 256], strides = [1, 1]} : vector<32x256xf32> to vector<16x256xf32>
    %440 = vector.extract_strided_slice %438 {offsets = [16, 0], sizes = [16, 256], strides = [1, 1]} : vector<32x256xf32> to vector<16x256xf32>
    %441 = arith.negf %440 : vector<16x256xf32>
    %442 = math.exp %441 : vector<16x256xf32>
    %cst_62 = arith.constant 1.000000e+00 : f32
    %443 = vector.broadcast %cst_62 : f32 to vector<16x256xf32>
    %444 = arith.addf %443, %442 : vector<16x256xf32>
    %445 = arith.divf %443, %444 : vector<16x256xf32>
    %446 = arith.mulf %439, %445 : vector<16x256xf32>
    %447 = arith.addf %393, %446 : vector<16x256xf32>
    %cst_63 = arith.constant 0.707106769 : f32
    %448 = vector.broadcast %cst_63 : f32 to vector<16x256xf32>
    %449 = arith.mulf %447, %448 : vector<16x256xf32>
    %c0_64 = arith.constant 0 : index
    %c0_65 = arith.constant 0 : index
    %c0_66 = arith.constant 0 : index
    %450 = vector.load %arg5[%c0_64, %c0_65, %c0_66] : memref<8x32x16xf32, #tpu.memory_space<vmem>>, vector<1x32x16xf32>
    %451 = vector.shape_cast %450 : vector<1x32x16xf32> to vector<32x16xf32>
    %452 = arith.truncf %451 : vector<32x16xf32> to vector<32x16xbf16>
    %c0_67 = arith.constant 0 : index
    %c2 = arith.constant 2 : index
    %c0_68 = arith.constant 0 : index
    %c0_69 = arith.constant 0 : index
    %453 = vector.load %arg6[%c0_67, %c2, %c0_68, %c0_69] : memref<2x16x32x1xf32, #tpu.memory_space<vmem>>, vector<1x1x32x1xf32>
    %454 = vector.shape_cast %453 : vector<1x1x32x1xf32> to vector<32x1xf32>
    %c1_70 = arith.constant 1 : index
    %c2_71 = arith.constant 2 : index
    %c0_72 = arith.constant 0 : index
    %c0_73 = arith.constant 0 : index
    %455 = vector.load %arg6[%c1_70, %c2_71, %c0_72, %c0_73] : memref<2x16x32x1xf32, #tpu.memory_space<vmem>>, vector<1x1x32x1xf32>
    %456 = vector.shape_cast %455 : vector<1x1x32x1xf32> to vector<32x1xf32>
    %457 = arith.truncf %449 : vector<16x256xf32> to vector<16x256xbf16>
    %cst_74 = arith.constant dense<0.000000e+00> : vector<32x256xf32>
    %458 = tpu.matmul %452, %457, %cst_74 {dimension_numbers = #tpu.dot_dimension_numbers<[1], [0], [0], [1], [0, 0, 1, 1], [], []>} : vector<32x16xbf16>, vector<16x256xbf16>, vector<32x256xf32> -> vector<32x256xf32>
    %459 = vector.extract_strided_slice %458 {offsets = [0, 0], sizes = [32, 128], strides = [1, 1]} : vector<32x256xf32> to vector<32x128xf32>
    %cst_75 = arith.constant dense<0.000000e+00> : vector<32xf32>
    %460 = vector.multi_reduction <add>, %459, %cst_75 [1] : vector<32x128xf32> to vector<32xf32>
    %461 = vector.shape_cast %460 : vector<32xf32> to vector<32x1xf32>
    %cst_76 = arith.constant 1.280000e+02 : f32
    %462 = vector.broadcast %cst_76 : f32 to vector<32x1xf32>
    %463 = arith.divf %461, %462 : vector<32x1xf32>
    %464 = vector.broadcast %463 : vector<32x1xf32> to vector<32x128xf32>
    %465 = arith.subf %459, %464 : vector<32x128xf32>
    %466 = arith.mulf %465, %465 : vector<32x128xf32>
    %cst_77 = arith.constant dense<0.000000e+00> : vector<32xf32>
    %467 = vector.multi_reduction <add>, %466, %cst_77 [1] : vector<32x128xf32> to vector<32xf32>
    %468 = vector.shape_cast %467 : vector<32xf32> to vector<32x1xf32>
    %cst_78 = arith.constant 1.280000e+02 : f32
    %469 = vector.broadcast %cst_78 : f32 to vector<32x1xf32>
    %470 = arith.divf %468, %469 : vector<32x1xf32>
    %cst_79 = arith.constant 9.99999974E-6 : f32
    %471 = vector.broadcast %cst_79 : f32 to vector<32x1xf32>
    %472 = arith.addf %470, %471 : vector<32x1xf32>
    %473 = math.rsqrt %472 : vector<32x1xf32>
    %474 = vector.broadcast %473 : vector<32x1xf32> to vector<32x128xf32>
    %475 = arith.mulf %465, %474 : vector<32x128xf32>
    %476 = vector.extract_strided_slice %458 {offsets = [0, 128], sizes = [32, 128], strides = [1, 1]} : vector<32x256xf32> to vector<32x128xf32>
    %cst_80 = arith.constant dense<0.000000e+00> : vector<32xf32>
    %477 = vector.multi_reduction <add>, %476, %cst_80 [1] : vector<32x128xf32> to vector<32xf32>
    %478 = vector.shape_cast %477 : vector<32xf32> to vector<32x1xf32>
    %cst_81 = arith.constant 1.280000e+02 : f32
    %479 = vector.broadcast %cst_81 : f32 to vector<32x1xf32>
    %480 = arith.divf %478, %479 : vector<32x1xf32>
    %481 = vector.broadcast %480 : vector<32x1xf32> to vector<32x128xf32>
    %482 = arith.subf %476, %481 : vector<32x128xf32>
    %483 = arith.mulf %482, %482 : vector<32x128xf32>
    %cst_82 = arith.constant dense<0.000000e+00> : vector<32xf32>
    %484 = vector.multi_reduction <add>, %483, %cst_82 [1] : vector<32x128xf32> to vector<32xf32>
    %485 = vector.shape_cast %484 : vector<32xf32> to vector<32x1xf32>
    %cst_83 = arith.constant 1.280000e+02 : f32
    %486 = vector.broadcast %cst_83 : f32 to vector<32x1xf32>
    %487 = arith.divf %485, %486 : vector<32x1xf32>
    %cst_84 = arith.constant 9.99999974E-6 : f32
    %488 = vector.broadcast %cst_84 : f32 to vector<32x1xf32>
    %489 = arith.addf %487, %488 : vector<32x1xf32>
    %490 = math.rsqrt %489 : vector<32x1xf32>
    %491 = vector.broadcast %490 : vector<32x1xf32> to vector<32x128xf32>
    %492 = arith.mulf %482, %491 : vector<32x128xf32>
    %493 = tpu.concatenate %475, %492 in 1 : vector<32x128xf32>, vector<32x128xf32> -> vector<32x256xf32>
    %494 = vector.broadcast %454 : vector<32x1xf32> to vector<32x256xf32>
    %495 = arith.mulf %493, %494 : vector<32x256xf32>
    %496 = vector.broadcast %456 : vector<32x1xf32> to vector<32x256xf32>
    %497 = arith.addf %495, %496 : vector<32x256xf32>
    %498 = vector.extract_strided_slice %497 {offsets = [0, 0], sizes = [16, 256], strides = [1, 1]} : vector<32x256xf32> to vector<16x256xf32>
    %499 = vector.extract_strided_slice %497 {offsets = [16, 0], sizes = [16, 256], strides = [1, 1]} : vector<32x256xf32> to vector<16x256xf32>
    %500 = arith.negf %499 : vector<16x256xf32>
    %501 = math.exp %500 : vector<16x256xf32>
    %cst_85 = arith.constant 1.000000e+00 : f32
    %502 = vector.broadcast %cst_85 : f32 to vector<16x256xf32>
    %503 = arith.addf %502, %501 : vector<16x256xf32>
    %504 = arith.divf %502, %503 : vector<16x256xf32>
    %505 = arith.mulf %498, %504 : vector<16x256xf32>
    %506 = arith.addf %449, %505 : vector<16x256xf32>
    %cst_86 = arith.constant 0.707106769 : f32
    %507 = vector.broadcast %cst_86 : f32 to vector<16x256xf32>
    %508 = arith.mulf %506, %507 : vector<16x256xf32>
    %c1_87 = arith.constant 1 : index
    %c0_88 = arith.constant 0 : index
    %c0_89 = arith.constant 0 : index
    %509 = vector.load %arg5[%c1_87, %c0_88, %c0_89] : memref<8x32x16xf32, #tpu.memory_space<vmem>>, vector<1x32x16xf32>
    %510 = vector.shape_cast %509 : vector<1x32x16xf32> to vector<32x16xf32>
    %511 = arith.truncf %510 : vector<32x16xf32> to vector<32x16xbf16>
    %c0_90 = arith.constant 0 : index
    %c3 = arith.constant 3 : index
    %c0_91 = arith.constant 0 : index
    %c0_92 = arith.constant 0 : index
    %512 = vector.load %arg6[%c0_90, %c3, %c0_91, %c0_92] : memref<2x16x32x1xf32, #tpu.memory_space<vmem>>, vector<1x1x32x1xf32>
    %513 = vector.shape_cast %512 : vector<1x1x32x1xf32> to vector<32x1xf32>
    %c1_93 = arith.constant 1 : index
    %c3_94 = arith.constant 3 : index
    %c0_95 = arith.constant 0 : index
    %c0_96 = arith.constant 0 : index
    %514 = vector.load %arg6[%c1_93, %c3_94, %c0_95, %c0_96] : memref<2x16x32x1xf32, #tpu.memory_space<vmem>>, vector<1x1x32x1xf32>
    %515 = vector.shape_cast %514 : vector<1x1x32x1xf32> to vector<32x1xf32>
    %516 = arith.truncf %508 : vector<16x256xf32> to vector<16x256xbf16>
    %cst_97 = arith.constant dense<0.000000e+00> : vector<32x256xf32>
    %517 = tpu.matmul %511, %516, %cst_97 {dimension_numbers = #tpu.dot_dimension_numbers<[1], [0], [0], [1], [0, 0, 1, 1], [], []>} : vector<32x16xbf16>, vector<16x256xbf16>, vector<32x256xf32> -> vector<32x256xf32>
    %518 = vector.extract_strided_slice %517 {offsets = [0, 0], sizes = [32, 128], strides = [1, 1]} : vector<32x256xf32> to vector<32x128xf32>
    %cst_98 = arith.constant dense<0.000000e+00> : vector<32xf32>
    %519 = vector.multi_reduction <add>, %518, %cst_98 [1] : vector<32x128xf32> to vector<32xf32>
    %520 = vector.shape_cast %519 : vector<32xf32> to vector<32x1xf32>
    %cst_99 = arith.constant 1.280000e+02 : f32
    %521 = vector.broadcast %cst_99 : f32 to vector<32x1xf32>
    %522 = arith.divf %520, %521 : vector<32x1xf32>
    %523 = vector.broadcast %522 : vector<32x1xf32> to vector<32x128xf32>
    %524 = arith.subf %518, %523 : vector<32x128xf32>
    %525 = arith.mulf %524, %524 : vector<32x128xf32>
    %cst_100 = arith.constant dense<0.000000e+00> : vector<32xf32>
    %526 = vector.multi_reduction <add>, %525, %cst_100 [1] : vector<32x128xf32> to vector<32xf32>
    %527 = vector.shape_cast %526 : vector<32xf32> to vector<32x1xf32>
    %cst_101 = arith.constant 1.280000e+02 : f32
    %528 = vector.broadcast %cst_101 : f32 to vector<32x1xf32>
    %529 = arith.divf %527, %528 : vector<32x1xf32>
    %cst_102 = arith.constant 9.99999974E-6 : f32
    %530 = vector.broadcast %cst_102 : f32 to vector<32x1xf32>
    %531 = arith.addf %529, %530 : vector<32x1xf32>
    %532 = math.rsqrt %531 : vector<32x1xf32>
    %533 = vector.broadcast %532 : vector<32x1xf32> to vector<32x128xf32>
    %534 = arith.mulf %524, %533 : vector<32x128xf32>
    %535 = vector.extract_strided_slice %517 {offsets = [0, 128], sizes = [32, 128], strides = [1, 1]} : vector<32x256xf32> to vector<32x128xf32>
    %cst_103 = arith.constant dense<0.000000e+00> : vector<32xf32>
    %536 = vector.multi_reduction <add>, %535, %cst_103 [1] : vector<32x128xf32> to vector<32xf32>
    %537 = vector.shape_cast %536 : vector<32xf32> to vector<32x1xf32>
    %cst_104 = arith.constant 1.280000e+02 : f32
    %538 = vector.broadcast %cst_104 : f32 to vector<32x1xf32>
    %539 = arith.divf %537, %538 : vector<32x1xf32>
    %540 = vector.broadcast %539 : vector<32x1xf32> to vector<32x128xf32>
    %541 = arith.subf %535, %540 : vector<32x128xf32>
    %542 = arith.mulf %541, %541 : vector<32x128xf32>
    %cst_105 = arith.constant dense<0.000000e+00> : vector<32xf32>
    %543 = vector.multi_reduction <add>, %542, %cst_105 [1] : vector<32x128xf32> to vector<32xf32>
    %544 = vector.shape_cast %543 : vector<32xf32> to vector<32x1xf32>
    %cst_106 = arith.constant 1.280000e+02 : f32
    %545 = vector.broadcast %cst_106 : f32 to vector<32x1xf32>
    %546 = arith.divf %544, %545 : vector<32x1xf32>
    %cst_107 = arith.constant 9.99999974E-6 : f32
    %547 = vector.broadcast %cst_107 : f32 to vector<32x1xf32>
    %548 = arith.addf %546, %547 : vector<32x1xf32>
    %549 = math.rsqrt %548 : vector<32x1xf32>
    %550 = vector.broadcast %549 : vector<32x1xf32> to vector<32x128xf32>
    %551 = arith.mulf %541, %550 : vector<32x128xf32>
    %552 = tpu.concatenate %534, %551 in 1 : vector<32x128xf32>, vector<32x128xf32> -> vector<32x256xf32>
    %553 = vector.broadcast %513 : vector<32x1xf32> to vector<32x256xf32>
    %554 = arith.mulf %552, %553 : vector<32x256xf32>
    %555 = vector.broadcast %515 : vector<32x1xf32> to vector<32x256xf32>
    %556 = arith.addf %554, %555 : vector<32x256xf32>
    %557 = vector.extract_strided_slice %556 {offsets = [0, 0], sizes = [16, 256], strides = [1, 1]} : vector<32x256xf32> to vector<16x256xf32>
    %558 = vector.extract_strided_slice %556 {offsets = [16, 0], sizes = [16, 256], strides = [1, 1]} : vector<32x256xf32> to vector<16x256xf32>
    %559 = arith.negf %558 : vector<16x256xf32>
    %560 = math.exp %559 : vector<16x256xf32>
    %cst_108 = arith.constant 1.000000e+00 : f32
    %561 = vector.broadcast %cst_108 : f32 to vector<16x256xf32>
    %562 = arith.addf %561, %560 : vector<16x256xf32>
    %563 = arith.divf %561, %562 : vector<16x256xf32>
    %564 = arith.mulf %557, %563 : vector<16x256xf32>
    %565 = arith.addf %508, %564 : vector<16x256xf32>
    %cst_109 = arith.constant 0.707106769 : f32
    %566 = vector.broadcast %cst_109 : f32 to vector<16x256xf32>
    %567 = arith.mulf %565, %566 : vector<16x256xf32>
    %568 = vector.extract_strided_slice %567 {offsets = [8, 0], sizes = [8, 256], strides = [1, 1]} : vector<16x256xf32> to vector<8x256xf32>
    %cst_110 = arith.constant 1.000000e+00 : f32
    %569 = vector.broadcast %cst_110 : f32 to vector<16x256xf32>
    %cst_111 = arith.constant 0.000000e+00 : f32
    %570 = vector.broadcast %cst_111 : f32 to vector<8x256xf32>
    %c0_112 = arith.constant 0 : index
    %c0_113 = arith.constant 0 : index
    %c0_114 = arith.constant 0 : index
    %571 = vector.load %arg7[%c0_112, %c0_113, %c0_114] : memref<3x16x8xf32, #tpu.memory_space<vmem>>, vector<1x16x8xf32>
    %572 = vector.shape_cast %571 : vector<1x16x8xf32> to vector<16x8xf32>
    %573 = arith.truncf %572 : vector<16x8xf32> to vector<16x8xbf16>
    %574 = arith.truncf %568 : vector<8x256xf32> to vector<8x256xbf16>
    %cst_115 = arith.constant dense<0.000000e+00> : vector<16x256xf32>
    %575 = tpu.matmul %573, %574, %cst_115 {dimension_numbers = #tpu.dot_dimension_numbers<[1], [0], [0], [1], [0, 0, 1, 1], [], []>} : vector<16x8xbf16>, vector<8x256xbf16>, vector<16x256xf32> -> vector<16x256xf32>
    %c0_116 = arith.constant 0 : index
    %c0_117 = arith.constant 0 : index
    %c0_118 = arith.constant 0 : index
    %c0_119 = arith.constant 0 : index
    %576 = vector.load %arg8[%c0_116, %c0_117, %c0_118, %c0_119] : memref<2x3x16x1xf32, #tpu.memory_space<vmem>>, vector<1x1x16x1xf32>
    %577 = vector.shape_cast %576 : vector<1x1x16x1xf32> to vector<16x1xf32>
    %c1_120 = arith.constant 1 : index
    %c0_121 = arith.constant 0 : index
    %c0_122 = arith.constant 0 : index
    %c0_123 = arith.constant 0 : index
    %578 = vector.load %arg8[%c1_120, %c0_121, %c0_122, %c0_123] : memref<2x3x16x1xf32, #tpu.memory_space<vmem>>, vector<1x1x16x1xf32>
    %579 = vector.shape_cast %578 : vector<1x1x16x1xf32> to vector<16x1xf32>
    %580 = vector.extract_strided_slice %575 {offsets = [0, 0], sizes = [16, 128], strides = [1, 1]} : vector<16x256xf32> to vector<16x128xf32>
    %cst_124 = arith.constant dense<0.000000e+00> : vector<16xf32>
    %581 = vector.multi_reduction <add>, %580, %cst_124 [1] : vector<16x128xf32> to vector<16xf32>
    %582 = vector.shape_cast %581 : vector<16xf32> to vector<16x1xf32>
    %cst_125 = arith.constant 1.280000e+02 : f32
    %583 = vector.broadcast %cst_125 : f32 to vector<16x1xf32>
    %584 = arith.divf %582, %583 : vector<16x1xf32>
    %585 = vector.broadcast %584 : vector<16x1xf32> to vector<16x128xf32>
    %586 = arith.subf %580, %585 : vector<16x128xf32>
    %587 = arith.mulf %586, %586 : vector<16x128xf32>
    %cst_126 = arith.constant dense<0.000000e+00> : vector<16xf32>
    %588 = vector.multi_reduction <add>, %587, %cst_126 [1] : vector<16x128xf32> to vector<16xf32>
    %589 = vector.shape_cast %588 : vector<16xf32> to vector<16x1xf32>
    %cst_127 = arith.constant 1.280000e+02 : f32
    %590 = vector.broadcast %cst_127 : f32 to vector<16x1xf32>
    %591 = arith.divf %589, %590 : vector<16x1xf32>
    %cst_128 = arith.constant 9.99999974E-6 : f32
    %592 = vector.broadcast %cst_128 : f32 to vector<16x1xf32>
    %593 = arith.addf %591, %592 : vector<16x1xf32>
    %594 = math.rsqrt %593 : vector<16x1xf32>
    %595 = vector.broadcast %594 : vector<16x1xf32> to vector<16x128xf32>
    %596 = arith.mulf %586, %595 : vector<16x128xf32>
    %597 = vector.extract_strided_slice %575 {offsets = [0, 128], sizes = [16, 128], strides = [1, 1]} : vector<16x256xf32> to vector<16x128xf32>
    %cst_129 = arith.constant dense<0.000000e+00> : vector<16xf32>
    %598 = vector.multi_reduction <add>, %597, %cst_129 [1] : vector<16x128xf32> to vector<16xf32>
    %599 = vector.shape_cast %598 : vector<16xf32> to vector<16x1xf32>
    %cst_130 = arith.constant 1.280000e+02 : f32
    %600 = vector.broadcast %cst_130 : f32 to vector<16x1xf32>
    %601 = arith.divf %599, %600 : vector<16x1xf32>
    %602 = vector.broadcast %601 : vector<16x1xf32> to vector<16x128xf32>
    %603 = arith.subf %597, %602 : vector<16x128xf32>
    %604 = arith.mulf %603, %603 : vector<16x128xf32>
    %cst_131 = arith.constant dense<0.000000e+00> : vector<16xf32>
    %605 = vector.multi_reduction <add>, %604, %cst_131 [1] : vector<16x128xf32> to vector<16xf32>
    %606 = vector.shape_cast %605 : vector<16xf32> to vector<16x1xf32>
    %cst_132 = arith.constant 1.280000e+02 : f32
    %607 = vector.broadcast %cst_132 : f32 to vector<16x1xf32>
    %608 = arith.divf %606, %607 : vector<16x1xf32>
    %cst_133 = arith.constant 9.99999974E-6 : f32
    %609 = vector.broadcast %cst_133 : f32 to vector<16x1xf32>
    %610 = arith.addf %608, %609 : vector<16x1xf32>
    %611 = math.rsqrt %610 : vector<16x1xf32>
    %612 = vector.broadcast %611 : vector<16x1xf32> to vector<16x128xf32>
    %613 = arith.mulf %603, %612 : vector<16x128xf32>
    %614 = tpu.concatenate %596, %613 in 1 : vector<16x128xf32>, vector<16x128xf32> -> vector<16x256xf32>
    %615 = vector.broadcast %577 : vector<16x1xf32> to vector<16x256xf32>
    %616 = arith.mulf %614, %615 : vector<16x256xf32>
    %617 = vector.broadcast %579 : vector<16x1xf32> to vector<16x256xf32>
    %618 = arith.addf %616, %617 : vector<16x256xf32>
    %619 = arith.mulf %618, %569 : vector<16x256xf32>
    %cst_134 = arith.constant 0.000000e+00 : f32
    %620 = vector.broadcast %cst_134 : f32 to vector<16x256xf32>
    %cst_135 = arith.constant 0.000000e+00 : f32
    %621 = vector.broadcast %cst_135 : f32 to vector<16x256xf32>
    %622 = vector.extract_strided_slice %619 {offsets = [0, 0], sizes = [1, 256], strides = [1, 1]} : vector<16x256xf32> to vector<1x256xf32>
    %623 = vector.broadcast %622 : vector<1x256xf32> to vector<16x256xf32>
    %624 = arith.cmpf oge, %623, %619 : vector<16x256xf32>
    %625 = arith.extui %624 : vector<16x256xi1> to vector<16x256xi32>
    %626 = arith.sitofp %625 : vector<16x256xi32> to vector<16x256xf32>
    %627 = arith.addf %620, %626 : vector<16x256xf32>
    %628 = vector.broadcast %622 : vector<1x256xf32> to vector<16x256xf32>
    %629 = arith.mulf %626, %628 : vector<16x256xf32>
    %630 = arith.addf %621, %629 : vector<16x256xf32>
    %631 = vector.extract_strided_slice %619 {offsets = [1, 0], sizes = [1, 256], strides = [1, 1]} : vector<16x256xf32> to vector<1x256xf32>
    %632 = vector.broadcast %631 : vector<1x256xf32> to vector<16x256xf32>
    %633 = arith.cmpf oge, %632, %619 : vector<16x256xf32>
    %634 = arith.extui %633 : vector<16x256xi1> to vector<16x256xi32>
    %635 = arith.sitofp %634 : vector<16x256xi32> to vector<16x256xf32>
    %636 = arith.addf %627, %635 : vector<16x256xf32>
    %637 = vector.broadcast %631 : vector<1x256xf32> to vector<16x256xf32>
    %638 = arith.mulf %635, %637 : vector<16x256xf32>
    %639 = arith.addf %630, %638 : vector<16x256xf32>
    %640 = vector.extract_strided_slice %619 {offsets = [2, 0], sizes = [1, 256], strides = [1, 1]} : vector<16x256xf32> to vector<1x256xf32>
    %641 = vector.broadcast %640 : vector<1x256xf32> to vector<16x256xf32>
    %642 = arith.cmpf oge, %641, %619 : vector<16x256xf32>
    %643 = arith.extui %642 : vector<16x256xi1> to vector<16x256xi32>
    %644 = arith.sitofp %643 : vector<16x256xi32> to vector<16x256xf32>
    %645 = arith.addf %636, %644 : vector<16x256xf32>
    %646 = vector.broadcast %640 : vector<1x256xf32> to vector<16x256xf32>
    %647 = arith.mulf %644, %646 : vector<16x256xf32>
    %648 = arith.addf %639, %647 : vector<16x256xf32>
    %649 = vector.extract_strided_slice %619 {offsets = [3, 0], sizes = [1, 256], strides = [1, 1]} : vector<16x256xf32> to vector<1x256xf32>
    %650 = vector.broadcast %649 : vector<1x256xf32> to vector<16x256xf32>
    %651 = arith.cmpf oge, %650, %619 : vector<16x256xf32>
    %652 = arith.extui %651 : vector<16x256xi1> to vector<16x256xi32>
    %653 = arith.sitofp %652 : vector<16x256xi32> to vector<16x256xf32>
    %654 = arith.addf %645, %653 : vector<16x256xf32>
    %655 = vector.broadcast %649 : vector<1x256xf32> to vector<16x256xf32>
    %656 = arith.mulf %653, %655 : vector<16x256xf32>
    %657 = arith.addf %648, %656 : vector<16x256xf32>
    %658 = vector.extract_strided_slice %619 {offsets = [4, 0], sizes = [1, 256], strides = [1, 1]} : vector<16x256xf32> to vector<1x256xf32>
    %659 = vector.broadcast %658 : vector<1x256xf32> to vector<16x256xf32>
    %660 = arith.cmpf oge, %659, %619 : vector<16x256xf32>
    %661 = arith.extui %660 : vector<16x256xi1> to vector<16x256xi32>
    %662 = arith.sitofp %661 : vector<16x256xi32> to vector<16x256xf32>
    %663 = arith.addf %654, %662 : vector<16x256xf32>
    %664 = vector.broadcast %658 : vector<1x256xf32> to vector<16x256xf32>
    %665 = arith.mulf %662, %664 : vector<16x256xf32>
    %666 = arith.addf %657, %665 : vector<16x256xf32>
    %667 = vector.extract_strided_slice %619 {offsets = [5, 0], sizes = [1, 256], strides = [1, 1]} : vector<16x256xf32> to vector<1x256xf32>
    %668 = vector.broadcast %667 : vector<1x256xf32> to vector<16x256xf32>
    %669 = arith.cmpf oge, %668, %619 : vector<16x256xf32>
    %670 = arith.extui %669 : vector<16x256xi1> to vector<16x256xi32>
    %671 = arith.sitofp %670 : vector<16x256xi32> to vector<16x256xf32>
    %672 = arith.addf %663, %671 : vector<16x256xf32>
    %673 = vector.broadcast %667 : vector<1x256xf32> to vector<16x256xf32>
    %674 = arith.mulf %671, %673 : vector<16x256xf32>
    %675 = arith.addf %666, %674 : vector<16x256xf32>
    %676 = vector.extract_strided_slice %619 {offsets = [6, 0], sizes = [1, 256], strides = [1, 1]} : vector<16x256xf32> to vector<1x256xf32>
    %677 = vector.broadcast %676 : vector<1x256xf32> to vector<16x256xf32>
    %678 = arith.cmpf oge, %677, %619 : vector<16x256xf32>
    %679 = arith.extui %678 : vector<16x256xi1> to vector<16x256xi32>
    %680 = arith.sitofp %679 : vector<16x256xi32> to vector<16x256xf32>
    %681 = arith.addf %672, %680 : vector<16x256xf32>
    %682 = vector.broadcast %676 : vector<1x256xf32> to vector<16x256xf32>
    %683 = arith.mulf %680, %682 : vector<16x256xf32>
    %684 = arith.addf %675, %683 : vector<16x256xf32>
    %685 = vector.extract_strided_slice %619 {offsets = [7, 0], sizes = [1, 256], strides = [1, 1]} : vector<16x256xf32> to vector<1x256xf32>
    %686 = vector.broadcast %685 : vector<1x256xf32> to vector<16x256xf32>
    %687 = arith.cmpf oge, %686, %619 : vector<16x256xf32>
    %688 = arith.extui %687 : vector<16x256xi1> to vector<16x256xi32>
    %689 = arith.sitofp %688 : vector<16x256xi32> to vector<16x256xf32>
    %690 = arith.addf %681, %689 : vector<16x256xf32>
    %691 = vector.broadcast %685 : vector<1x256xf32> to vector<16x256xf32>
    %692 = arith.mulf %689, %691 : vector<16x256xf32>
    %693 = arith.addf %684, %692 : vector<16x256xf32>
    %694 = vector.extract_strided_slice %619 {offsets = [8, 0], sizes = [1, 256], strides = [1, 1]} : vector<16x256xf32> to vector<1x256xf32>
    %695 = vector.broadcast %694 : vector<1x256xf32> to vector<16x256xf32>
    %696 = arith.cmpf oge, %695, %619 : vector<16x256xf32>
    %697 = arith.extui %696 : vector<16x256xi1> to vector<16x256xi32>
    %698 = arith.sitofp %697 : vector<16x256xi32> to vector<16x256xf32>
    %699 = arith.addf %690, %698 : vector<16x256xf32>
    %700 = vector.broadcast %694 : vector<1x256xf32> to vector<16x256xf32>
    %701 = arith.mulf %698, %700 : vector<16x256xf32>
    %702 = arith.addf %693, %701 : vector<16x256xf32>
    %703 = vector.extract_strided_slice %619 {offsets = [9, 0], sizes = [1, 256], strides = [1, 1]} : vector<16x256xf32> to vector<1x256xf32>
    %704 = vector.broadcast %703 : vector<1x256xf32> to vector<16x256xf32>
    %705 = arith.cmpf oge, %704, %619 : vector<16x256xf32>
    %706 = arith.extui %705 : vector<16x256xi1> to vector<16x256xi32>
    %707 = arith.sitofp %706 : vector<16x256xi32> to vector<16x256xf32>
    %708 = arith.addf %699, %707 : vector<16x256xf32>
    %709 = vector.broadcast %703 : vector<1x256xf32> to vector<16x256xf32>
    %710 = arith.mulf %707, %709 : vector<16x256xf32>
    %711 = arith.addf %702, %710 : vector<16x256xf32>
    %712 = vector.extract_strided_slice %619 {offsets = [10, 0], sizes = [1, 256], strides = [1, 1]} : vector<16x256xf32> to vector<1x256xf32>
    %713 = vector.broadcast %712 : vector<1x256xf32> to vector<16x256xf32>
    %714 = arith.cmpf oge, %713, %619 : vector<16x256xf32>
    %715 = arith.extui %714 : vector<16x256xi1> to vector<16x256xi32>
    %716 = arith.sitofp %715 : vector<16x256xi32> to vector<16x256xf32>
    %717 = arith.addf %708, %716 : vector<16x256xf32>
    %718 = vector.broadcast %712 : vector<1x256xf32> to vector<16x256xf32>
    %719 = arith.mulf %716, %718 : vector<16x256xf32>
    %720 = arith.addf %711, %719 : vector<16x256xf32>
    %721 = vector.extract_strided_slice %619 {offsets = [11, 0], sizes = [1, 256], strides = [1, 1]} : vector<16x256xf32> to vector<1x256xf32>
    %722 = vector.broadcast %721 : vector<1x256xf32> to vector<16x256xf32>
    %723 = arith.cmpf oge, %722, %619 : vector<16x256xf32>
    %724 = arith.extui %723 : vector<16x256xi1> to vector<16x256xi32>
    %725 = arith.sitofp %724 : vector<16x256xi32> to vector<16x256xf32>
    %726 = arith.addf %717, %725 : vector<16x256xf32>
    %727 = vector.broadcast %721 : vector<1x256xf32> to vector<16x256xf32>
    %728 = arith.mulf %725, %727 : vector<16x256xf32>
    %729 = arith.addf %720, %728 : vector<16x256xf32>
    %730 = vector.extract_strided_slice %619 {offsets = [12, 0], sizes = [1, 256], strides = [1, 1]} : vector<16x256xf32> to vector<1x256xf32>
    %731 = vector.broadcast %730 : vector<1x256xf32> to vector<16x256xf32>
    %732 = arith.cmpf oge, %731, %619 : vector<16x256xf32>
    %733 = arith.extui %732 : vector<16x256xi1> to vector<16x256xi32>
    %734 = arith.sitofp %733 : vector<16x256xi32> to vector<16x256xf32>
    %735 = arith.addf %726, %734 : vector<16x256xf32>
    %736 = vector.broadcast %730 : vector<1x256xf32> to vector<16x256xf32>
    %737 = arith.mulf %734, %736 : vector<16x256xf32>
    %738 = arith.addf %729, %737 : vector<16x256xf32>
    %739 = vector.extract_strided_slice %619 {offsets = [13, 0], sizes = [1, 256], strides = [1, 1]} : vector<16x256xf32> to vector<1x256xf32>
    %740 = vector.broadcast %739 : vector<1x256xf32> to vector<16x256xf32>
    %741 = arith.cmpf oge, %740, %619 : vector<16x256xf32>
    %742 = arith.extui %741 : vector<16x256xi1> to vector<16x256xi32>
    %743 = arith.sitofp %742 : vector<16x256xi32> to vector<16x256xf32>
    %744 = arith.addf %735, %743 : vector<16x256xf32>
    %745 = vector.broadcast %739 : vector<1x256xf32> to vector<16x256xf32>
    %746 = arith.mulf %743, %745 : vector<16x256xf32>
    %747 = arith.addf %738, %746 : vector<16x256xf32>
    %748 = vector.extract_strided_slice %619 {offsets = [14, 0], sizes = [1, 256], strides = [1, 1]} : vector<16x256xf32> to vector<1x256xf32>
    %749 = vector.broadcast %748 : vector<1x256xf32> to vector<16x256xf32>
    %750 = arith.cmpf oge, %749, %619 : vector<16x256xf32>
    %751 = arith.extui %750 : vector<16x256xi1> to vector<16x256xi32>
    %752 = arith.sitofp %751 : vector<16x256xi32> to vector<16x256xf32>
    %753 = arith.addf %744, %752 : vector<16x256xf32>
    %754 = vector.broadcast %748 : vector<1x256xf32> to vector<16x256xf32>
    %755 = arith.mulf %752, %754 : vector<16x256xf32>
    %756 = arith.addf %747, %755 : vector<16x256xf32>
    %757 = vector.extract_strided_slice %619 {offsets = [15, 0], sizes = [1, 256], strides = [1, 1]} : vector<16x256xf32> to vector<1x256xf32>
    %758 = vector.broadcast %757 : vector<1x256xf32> to vector<16x256xf32>
    %759 = arith.cmpf oge, %758, %619 : vector<16x256xf32>
    %760 = arith.extui %759 : vector<16x256xi1> to vector<16x256xi32>
    %761 = arith.sitofp %760 : vector<16x256xi32> to vector<16x256xf32>
    %762 = arith.addf %753, %761 : vector<16x256xf32>
    %763 = vector.broadcast %757 : vector<1x256xf32> to vector<16x256xf32>
    %764 = arith.mulf %761, %763 : vector<16x256xf32>
    %765 = arith.addf %756, %764 : vector<16x256xf32>
    %766 = arith.mulf %762, %619 : vector<16x256xf32>
    %cst_136 = arith.constant 1.000000e+00 : f32
    %767 = vector.broadcast %cst_136 : f32 to vector<16x256xf32>
    %768 = arith.addf %767, %766 : vector<16x256xf32>
    %769 = arith.subf %768, %765 : vector<16x256xf32>
    %cst_137 = arith.constant 0.000000e+00 : f32
    %770 = vector.broadcast %cst_137 : f32 to vector<16x256xf32>
    %771 = arith.cmpf ogt, %769, %770 : vector<16x256xf32>
    %772 = arith.extui %771 : vector<16x256xi1> to vector<16x256xi32>
    %773 = arith.sitofp %772 : vector<16x256xi32> to vector<16x256xf32>
    %cst_138 = arith.constant dense<0.000000e+00> : vector<256xf32>
    %774 = vector.multi_reduction <add>, %773, %cst_138 [0] : vector<16x256xf32> to vector<256xf32>
    %775 = vector.shape_cast %774 : vector<256xf32> to vector<1x256xf32>
    %776 = arith.mulf %619, %773 : vector<16x256xf32>
    %cst_139 = arith.constant dense<0.000000e+00> : vector<256xf32>
    %777 = vector.multi_reduction <add>, %776, %cst_139 [0] : vector<16x256xf32> to vector<256xf32>
    %778 = vector.shape_cast %777 : vector<256xf32> to vector<1x256xf32>
    %cst_140 = arith.constant 1.000000e+00 : f32
    %779 = vector.broadcast %cst_140 : f32 to vector<1x256xf32>
    %780 = arith.subf %778, %779 : vector<1x256xf32>
    %781 = arith.divf %780, %775 : vector<1x256xf32>
    %782 = vector.broadcast %781 : vector<1x256xf32> to vector<16x256xf32>
    %783 = arith.subf %619, %782 : vector<16x256xf32>
    %cst_141 = arith.constant 0.000000e+00 : f32
    %784 = vector.broadcast %cst_141 : f32 to vector<16x256xf32>
    %785 = arith.maximumf %783, %784 : vector<16x256xf32>
    %cst_142 = arith.constant 1.000000e-15 : f32
    %786 = vector.broadcast %cst_142 : f32 to vector<16x256xf32>
    %787 = arith.addf %785, %786 : vector<16x256xf32>
    %788 = math.log %787 : vector<16x256xf32>
    %789 = arith.mulf %785, %788 : vector<16x256xf32>
    %cst_143 = arith.constant dense<0.000000e+00> : vector<256xf32>
    %790 = vector.multi_reduction <add>, %789, %cst_143 [0] : vector<16x256xf32> to vector<256xf32>
    %791 = vector.shape_cast %790 : vector<256xf32> to vector<1x256xf32>
    %cst_144 = arith.constant dense<0.000000e+00> : vector<1xf32>
    %792 = vector.multi_reduction <add>, %791, %cst_144 [1] : vector<1x256xf32> to vector<1xf32>
    %793 = vector.shape_cast %792 : vector<1xf32> to vector<1x1xf32>
    %794 = vector.extract %793[0, 0] : f32 from vector<1x1xf32>
    %cst_145 = arith.constant 2.560000e+02 : f32
    %795 = arith.divf %794, %cst_145 : f32
    %cst_146 = arith.constant 0.000000e+00 : f32
    %796 = arith.addf %cst_146, %795 : f32
    %cst_147 = arith.constant 1.300000e+00 : f32
    %797 = vector.broadcast %cst_147 : f32 to vector<16x256xf32>
    %798 = arith.subf %797, %785 : vector<16x256xf32>
    %799 = arith.mulf %798, %569 : vector<16x256xf32>
    %800 = arith.mulf %785, %340 : vector<16x256xf32>
    %c0_148 = arith.constant 0 : index
    %c4 = arith.constant 4 : index
    %c0_149 = arith.constant 0 : index
    %c0_150 = arith.constant 0 : index
    %801 = vector.load %arg6[%c0_148, %c4, %c0_149, %c0_150] : memref<2x16x32x1xf32, #tpu.memory_space<vmem>>, vector<1x1x32x1xf32>
    %802 = vector.shape_cast %801 : vector<1x1x32x1xf32> to vector<32x1xf32>
    %c1_151 = arith.constant 1 : index
    %c4_152 = arith.constant 4 : index
    %c0_153 = arith.constant 0 : index
    %c0_154 = arith.constant 0 : index
    %803 = vector.load %arg6[%c1_151, %c4_152, %c0_153, %c0_154] : memref<2x16x32x1xf32, #tpu.memory_space<vmem>>, vector<1x1x32x1xf32>
    %804 = vector.shape_cast %803 : vector<1x1x32x1xf32> to vector<32x1xf32>
    %805 = arith.truncf %800 : vector<16x256xf32> to vector<16x256xbf16>
    %cst_155 = arith.constant dense<0.000000e+00> : vector<32x256xf32>
    %806 = tpu.matmul %2, %805, %cst_155 {dimension_numbers = #tpu.dot_dimension_numbers<[1], [0], [0], [1], [0, 0, 1, 1], [], []>} : vector<32x16xbf16>, vector<16x256xbf16>, vector<32x256xf32> -> vector<32x256xf32>
    %807 = vector.extract_strided_slice %806 {offsets = [0, 0], sizes = [32, 128], strides = [1, 1]} : vector<32x256xf32> to vector<32x128xf32>
    %cst_156 = arith.constant dense<0.000000e+00> : vector<32xf32>
    %808 = vector.multi_reduction <add>, %807, %cst_156 [1] : vector<32x128xf32> to vector<32xf32>
    %809 = vector.shape_cast %808 : vector<32xf32> to vector<32x1xf32>
    %cst_157 = arith.constant 1.280000e+02 : f32
    %810 = vector.broadcast %cst_157 : f32 to vector<32x1xf32>
    %811 = arith.divf %809, %810 : vector<32x1xf32>
    %812 = vector.broadcast %811 : vector<32x1xf32> to vector<32x128xf32>
    %813 = arith.subf %807, %812 : vector<32x128xf32>
    %814 = arith.mulf %813, %813 : vector<32x128xf32>
    %cst_158 = arith.constant dense<0.000000e+00> : vector<32xf32>
    %815 = vector.multi_reduction <add>, %814, %cst_158 [1] : vector<32x128xf32> to vector<32xf32>
    %816 = vector.shape_cast %815 : vector<32xf32> to vector<32x1xf32>
    %cst_159 = arith.constant 1.280000e+02 : f32
    %817 = vector.broadcast %cst_159 : f32 to vector<32x1xf32>
    %818 = arith.divf %816, %817 : vector<32x1xf32>
    %cst_160 = arith.constant 9.99999974E-6 : f32
    %819 = vector.broadcast %cst_160 : f32 to vector<32x1xf32>
    %820 = arith.addf %818, %819 : vector<32x1xf32>
    %821 = math.rsqrt %820 : vector<32x1xf32>
    %822 = vector.broadcast %821 : vector<32x1xf32> to vector<32x128xf32>
    %823 = arith.mulf %813, %822 : vector<32x128xf32>
    %824 = vector.extract_strided_slice %806 {offsets = [0, 128], sizes = [32, 128], strides = [1, 1]} : vector<32x256xf32> to vector<32x128xf32>
    %cst_161 = arith.constant dense<0.000000e+00> : vector<32xf32>
    %825 = vector.multi_reduction <add>, %824, %cst_161 [1] : vector<32x128xf32> to vector<32xf32>
    %826 = vector.shape_cast %825 : vector<32xf32> to vector<32x1xf32>
    %cst_162 = arith.constant 1.280000e+02 : f32
    %827 = vector.broadcast %cst_162 : f32 to vector<32x1xf32>
    %828 = arith.divf %826, %827 : vector<32x1xf32>
    %829 = vector.broadcast %828 : vector<32x1xf32> to vector<32x128xf32>
    %830 = arith.subf %824, %829 : vector<32x128xf32>
    %831 = arith.mulf %830, %830 : vector<32x128xf32>
    %cst_163 = arith.constant dense<0.000000e+00> : vector<32xf32>
    %832 = vector.multi_reduction <add>, %831, %cst_163 [1] : vector<32x128xf32> to vector<32xf32>
    %833 = vector.shape_cast %832 : vector<32xf32> to vector<32x1xf32>
    %cst_164 = arith.constant 1.280000e+02 : f32
    %834 = vector.broadcast %cst_164 : f32 to vector<32x1xf32>
    %835 = arith.divf %833, %834 : vector<32x1xf32>
    %cst_165 = arith.constant 9.99999974E-6 : f32
    %836 = vector.broadcast %cst_165 : f32 to vector<32x1xf32>
    %837 = arith.addf %835, %836 : vector<32x1xf32>
    %838 = math.rsqrt %837 : vector<32x1xf32>
    %839 = vector.broadcast %838 : vector<32x1xf32> to vector<32x128xf32>
    %840 = arith.mulf %830, %839 : vector<32x128xf32>
    %841 = tpu.concatenate %823, %840 in 1 : vector<32x128xf32>, vector<32x128xf32> -> vector<32x256xf32>
    %842 = vector.broadcast %802 : vector<32x1xf32> to vector<32x256xf32>
    %843 = arith.mulf %841, %842 : vector<32x256xf32>
    %844 = vector.broadcast %804 : vector<32x1xf32> to vector<32x256xf32>
    %845 = arith.addf %843, %844 : vector<32x256xf32>
    %846 = vector.extract_strided_slice %845 {offsets = [0, 0], sizes = [16, 256], strides = [1, 1]} : vector<32x256xf32> to vector<16x256xf32>
    %847 = vector.extract_strided_slice %845 {offsets = [16, 0], sizes = [16, 256], strides = [1, 1]} : vector<32x256xf32> to vector<16x256xf32>
    %848 = arith.negf %847 : vector<16x256xf32>
    %849 = math.exp %848 : vector<16x256xf32>
    %cst_166 = arith.constant 1.000000e+00 : f32
    %850 = vector.broadcast %cst_166 : f32 to vector<16x256xf32>
    %851 = arith.addf %850, %849 : vector<16x256xf32>
    %852 = arith.divf %850, %851 : vector<16x256xf32>
    %853 = arith.mulf %846, %852 : vector<16x256xf32>
    %c0_167 = arith.constant 0 : index
    %c5 = arith.constant 5 : index
    %c0_168 = arith.constant 0 : index
    %c0_169 = arith.constant 0 : index
    %854 = vector.load %arg6[%c0_167, %c5, %c0_168, %c0_169] : memref<2x16x32x1xf32, #tpu.memory_space<vmem>>, vector<1x1x32x1xf32>
    %855 = vector.shape_cast %854 : vector<1x1x32x1xf32> to vector<32x1xf32>
    %c1_170 = arith.constant 1 : index
    %c5_171 = arith.constant 5 : index
    %c0_172 = arith.constant 0 : index
    %c0_173 = arith.constant 0 : index
    %856 = vector.load %arg6[%c1_170, %c5_171, %c0_172, %c0_173] : memref<2x16x32x1xf32, #tpu.memory_space<vmem>>, vector<1x1x32x1xf32>
    %857 = vector.shape_cast %856 : vector<1x1x32x1xf32> to vector<32x1xf32>
    %858 = arith.truncf %853 : vector<16x256xf32> to vector<16x256xbf16>
    %cst_174 = arith.constant dense<0.000000e+00> : vector<32x256xf32>
    %859 = tpu.matmul %4, %858, %cst_174 {dimension_numbers = #tpu.dot_dimension_numbers<[1], [0], [0], [1], [0, 0, 1, 1], [], []>} : vector<32x16xbf16>, vector<16x256xbf16>, vector<32x256xf32> -> vector<32x256xf32>
    %860 = vector.extract_strided_slice %859 {offsets = [0, 0], sizes = [32, 128], strides = [1, 1]} : vector<32x256xf32> to vector<32x128xf32>
    %cst_175 = arith.constant dense<0.000000e+00> : vector<32xf32>
    %861 = vector.multi_reduction <add>, %860, %cst_175 [1] : vector<32x128xf32> to vector<32xf32>
    %862 = vector.shape_cast %861 : vector<32xf32> to vector<32x1xf32>
    %cst_176 = arith.constant 1.280000e+02 : f32
    %863 = vector.broadcast %cst_176 : f32 to vector<32x1xf32>
    %864 = arith.divf %862, %863 : vector<32x1xf32>
    %865 = vector.broadcast %864 : vector<32x1xf32> to vector<32x128xf32>
    %866 = arith.subf %860, %865 : vector<32x128xf32>
    %867 = arith.mulf %866, %866 : vector<32x128xf32>
    %cst_177 = arith.constant dense<0.000000e+00> : vector<32xf32>
    %868 = vector.multi_reduction <add>, %867, %cst_177 [1] : vector<32x128xf32> to vector<32xf32>
    %869 = vector.shape_cast %868 : vector<32xf32> to vector<32x1xf32>
    %cst_178 = arith.constant 1.280000e+02 : f32
    %870 = vector.broadcast %cst_178 : f32 to vector<32x1xf32>
    %871 = arith.divf %869, %870 : vector<32x1xf32>
    %cst_179 = arith.constant 9.99999974E-6 : f32
    %872 = vector.broadcast %cst_179 : f32 to vector<32x1xf32>
    %873 = arith.addf %871, %872 : vector<32x1xf32>
    %874 = math.rsqrt %873 : vector<32x1xf32>
    %875 = vector.broadcast %874 : vector<32x1xf32> to vector<32x128xf32>
    %876 = arith.mulf %866, %875 : vector<32x128xf32>
    %877 = vector.extract_strided_slice %859 {offsets = [0, 128], sizes = [32, 128], strides = [1, 1]} : vector<32x256xf32> to vector<32x128xf32>
    %cst_180 = arith.constant dense<0.000000e+00> : vector<32xf32>
    %878 = vector.multi_reduction <add>, %877, %cst_180 [1] : vector<32x128xf32> to vector<32xf32>
    %879 = vector.shape_cast %878 : vector<32xf32> to vector<32x1xf32>
    %cst_181 = arith.constant 1.280000e+02 : f32
    %880 = vector.broadcast %cst_181 : f32 to vector<32x1xf32>
    %881 = arith.divf %879, %880 : vector<32x1xf32>
    %882 = vector.broadcast %881 : vector<32x1xf32> to vector<32x128xf32>
    %883 = arith.subf %877, %882 : vector<32x128xf32>
    %884 = arith.mulf %883, %883 : vector<32x128xf32>
    %cst_182 = arith.constant dense<0.000000e+00> : vector<32xf32>
    %885 = vector.multi_reduction <add>, %884, %cst_182 [1] : vector<32x128xf32> to vector<32xf32>
    %886 = vector.shape_cast %885 : vector<32xf32> to vector<32x1xf32>
    %cst_183 = arith.constant 1.280000e+02 : f32
    %887 = vector.broadcast %cst_183 : f32 to vector<32x1xf32>
    %888 = arith.divf %886, %887 : vector<32x1xf32>
    %cst_184 = arith.constant 9.99999974E-6 : f32
    %889 = vector.broadcast %cst_184 : f32 to vector<32x1xf32>
    %890 = arith.addf %888, %889 : vector<32x1xf32>
    %891 = math.rsqrt %890 : vector<32x1xf32>
    %892 = vector.broadcast %891 : vector<32x1xf32> to vector<32x128xf32>
    %893 = arith.mulf %883, %892 : vector<32x128xf32>
    %894 = tpu.concatenate %876, %893 in 1 : vector<32x128xf32>, vector<32x128xf32> -> vector<32x256xf32>
    %895 = vector.broadcast %855 : vector<32x1xf32> to vector<32x256xf32>
    %896 = arith.mulf %894, %895 : vector<32x256xf32>
    %897 = vector.broadcast %857 : vector<32x1xf32> to vector<32x256xf32>
    %898 = arith.addf %896, %897 : vector<32x256xf32>
    %899 = vector.extract_strided_slice %898 {offsets = [0, 0], sizes = [16, 256], strides = [1, 1]} : vector<32x256xf32> to vector<16x256xf32>
    %900 = vector.extract_strided_slice %898 {offsets = [16, 0], sizes = [16, 256], strides = [1, 1]} : vector<32x256xf32> to vector<16x256xf32>
    %901 = arith.negf %900 : vector<16x256xf32>
    %902 = math.exp %901 : vector<16x256xf32>
    %cst_185 = arith.constant 1.000000e+00 : f32
    %903 = vector.broadcast %cst_185 : f32 to vector<16x256xf32>
    %904 = arith.addf %903, %902 : vector<16x256xf32>
    %905 = arith.divf %903, %904 : vector<16x256xf32>
    %906 = arith.mulf %899, %905 : vector<16x256xf32>
    %907 = arith.addf %853, %906 : vector<16x256xf32>
    %cst_186 = arith.constant 0.707106769 : f32
    %908 = vector.broadcast %cst_186 : f32 to vector<16x256xf32>
    %909 = arith.mulf %907, %908 : vector<16x256xf32>
    %c2_187 = arith.constant 2 : index
    %c0_188 = arith.constant 0 : index
    %c0_189 = arith.constant 0 : index
    %910 = vector.load %arg5[%c2_187, %c0_188, %c0_189] : memref<8x32x16xf32, #tpu.memory_space<vmem>>, vector<1x32x16xf32>
    %911 = vector.shape_cast %910 : vector<1x32x16xf32> to vector<32x16xf32>
    %912 = arith.truncf %911 : vector<32x16xf32> to vector<32x16xbf16>
    %c0_190 = arith.constant 0 : index
    %c6 = arith.constant 6 : index
    %c0_191 = arith.constant 0 : index
    %c0_192 = arith.constant 0 : index
    %913 = vector.load %arg6[%c0_190, %c6, %c0_191, %c0_192] : memref<2x16x32x1xf32, #tpu.memory_space<vmem>>, vector<1x1x32x1xf32>
    %914 = vector.shape_cast %913 : vector<1x1x32x1xf32> to vector<32x1xf32>
    %c1_193 = arith.constant 1 : index
    %c6_194 = arith.constant 6 : index
    %c0_195 = arith.constant 0 : index
    %c0_196 = arith.constant 0 : index
    %915 = vector.load %arg6[%c1_193, %c6_194, %c0_195, %c0_196] : memref<2x16x32x1xf32, #tpu.memory_space<vmem>>, vector<1x1x32x1xf32>
    %916 = vector.shape_cast %915 : vector<1x1x32x1xf32> to vector<32x1xf32>
    %917 = arith.truncf %909 : vector<16x256xf32> to vector<16x256xbf16>
    %cst_197 = arith.constant dense<0.000000e+00> : vector<32x256xf32>
    %918 = tpu.matmul %912, %917, %cst_197 {dimension_numbers = #tpu.dot_dimension_numbers<[1], [0], [0], [1], [0, 0, 1, 1], [], []>} : vector<32x16xbf16>, vector<16x256xbf16>, vector<32x256xf32> -> vector<32x256xf32>
    %919 = vector.extract_strided_slice %918 {offsets = [0, 0], sizes = [32, 128], strides = [1, 1]} : vector<32x256xf32> to vector<32x128xf32>
    %cst_198 = arith.constant dense<0.000000e+00> : vector<32xf32>
    %920 = vector.multi_reduction <add>, %919, %cst_198 [1] : vector<32x128xf32> to vector<32xf32>
    %921 = vector.shape_cast %920 : vector<32xf32> to vector<32x1xf32>
    %cst_199 = arith.constant 1.280000e+02 : f32
    %922 = vector.broadcast %cst_199 : f32 to vector<32x1xf32>
    %923 = arith.divf %921, %922 : vector<32x1xf32>
    %924 = vector.broadcast %923 : vector<32x1xf32> to vector<32x128xf32>
    %925 = arith.subf %919, %924 : vector<32x128xf32>
    %926 = arith.mulf %925, %925 : vector<32x128xf32>
    %cst_200 = arith.constant dense<0.000000e+00> : vector<32xf32>
    %927 = vector.multi_reduction <add>, %926, %cst_200 [1] : vector<32x128xf32> to vector<32xf32>
    %928 = vector.shape_cast %927 : vector<32xf32> to vector<32x1xf32>
    %cst_201 = arith.constant 1.280000e+02 : f32
    %929 = vector.broadcast %cst_201 : f32 to vector<32x1xf32>
    %930 = arith.divf %928, %929 : vector<32x1xf32>
    %cst_202 = arith.constant 9.99999974E-6 : f32
    %931 = vector.broadcast %cst_202 : f32 to vector<32x1xf32>
    %932 = arith.addf %930, %931 : vector<32x1xf32>
    %933 = math.rsqrt %932 : vector<32x1xf32>
    %934 = vector.broadcast %933 : vector<32x1xf32> to vector<32x128xf32>
    %935 = arith.mulf %925, %934 : vector<32x128xf32>
    %936 = vector.extract_strided_slice %918 {offsets = [0, 128], sizes = [32, 128], strides = [1, 1]} : vector<32x256xf32> to vector<32x128xf32>
    %cst_203 = arith.constant dense<0.000000e+00> : vector<32xf32>
    %937 = vector.multi_reduction <add>, %936, %cst_203 [1] : vector<32x128xf32> to vector<32xf32>
    %938 = vector.shape_cast %937 : vector<32xf32> to vector<32x1xf32>
    %cst_204 = arith.constant 1.280000e+02 : f32
    %939 = vector.broadcast %cst_204 : f32 to vector<32x1xf32>
    %940 = arith.divf %938, %939 : vector<32x1xf32>
    %941 = vector.broadcast %940 : vector<32x1xf32> to vector<32x128xf32>
    %942 = arith.subf %936, %941 : vector<32x128xf32>
    %943 = arith.mulf %942, %942 : vector<32x128xf32>
    %cst_205 = arith.constant dense<0.000000e+00> : vector<32xf32>
    %944 = vector.multi_reduction <add>, %943, %cst_205 [1] : vector<32x128xf32> to vector<32xf32>
    %945 = vector.shape_cast %944 : vector<32xf32> to vector<32x1xf32>
    %cst_206 = arith.constant 1.280000e+02 : f32
    %946 = vector.broadcast %cst_206 : f32 to vector<32x1xf32>
    %947 = arith.divf %945, %946 : vector<32x1xf32>
    %cst_207 = arith.constant 9.99999974E-6 : f32
    %948 = vector.broadcast %cst_207 : f32 to vector<32x1xf32>
    %949 = arith.addf %947, %948 : vector<32x1xf32>
    %950 = math.rsqrt %949 : vector<32x1xf32>
    %951 = vector.broadcast %950 : vector<32x1xf32> to vector<32x128xf32>
    %952 = arith.mulf %942, %951 : vector<32x128xf32>
    %953 = tpu.concatenate %935, %952 in 1 : vector<32x128xf32>, vector<32x128xf32> -> vector<32x256xf32>
    %954 = vector.broadcast %914 : vector<32x1xf32> to vector<32x256xf32>
    %955 = arith.mulf %953, %954 : vector<32x256xf32>
    %956 = vector.broadcast %916 : vector<32x1xf32> to vector<32x256xf32>
    %957 = arith.addf %955, %956 : vector<32x256xf32>
    %958 = vector.extract_strided_slice %957 {offsets = [0, 0], sizes = [16, 256], strides = [1, 1]} : vector<32x256xf32> to vector<16x256xf32>
    %959 = vector.extract_strided_slice %957 {offsets = [16, 0], sizes = [16, 256], strides = [1, 1]} : vector<32x256xf32> to vector<16x256xf32>
    %960 = arith.negf %959 : vector<16x256xf32>
    %961 = math.exp %960 : vector<16x256xf32>
    %cst_208 = arith.constant 1.000000e+00 : f32
    %962 = vector.broadcast %cst_208 : f32 to vector<16x256xf32>
    %963 = arith.addf %962, %961 : vector<16x256xf32>
    %964 = arith.divf %962, %963 : vector<16x256xf32>
    %965 = arith.mulf %958, %964 : vector<16x256xf32>
    %966 = arith.addf %909, %965 : vector<16x256xf32>
    %cst_209 = arith.constant 0.707106769 : f32
    %967 = vector.broadcast %cst_209 : f32 to vector<16x256xf32>
    %968 = arith.mulf %966, %967 : vector<16x256xf32>
    %c3_210 = arith.constant 3 : index
    %c0_211 = arith.constant 0 : index
    %c0_212 = arith.constant 0 : index
    %969 = vector.load %arg5[%c3_210, %c0_211, %c0_212] : memref<8x32x16xf32, #tpu.memory_space<vmem>>, vector<1x32x16xf32>
    %970 = vector.shape_cast %969 : vector<1x32x16xf32> to vector<32x16xf32>
    %971 = arith.truncf %970 : vector<32x16xf32> to vector<32x16xbf16>
    %c0_213 = arith.constant 0 : index
    %c7 = arith.constant 7 : index
    %c0_214 = arith.constant 0 : index
    %c0_215 = arith.constant 0 : index
    %972 = vector.load %arg6[%c0_213, %c7, %c0_214, %c0_215] : memref<2x16x32x1xf32, #tpu.memory_space<vmem>>, vector<1x1x32x1xf32>
    %973 = vector.shape_cast %972 : vector<1x1x32x1xf32> to vector<32x1xf32>
    %c1_216 = arith.constant 1 : index
    %c7_217 = arith.constant 7 : index
    %c0_218 = arith.constant 0 : index
    %c0_219 = arith.constant 0 : index
    %974 = vector.load %arg6[%c1_216, %c7_217, %c0_218, %c0_219] : memref<2x16x32x1xf32, #tpu.memory_space<vmem>>, vector<1x1x32x1xf32>
    %975 = vector.shape_cast %974 : vector<1x1x32x1xf32> to vector<32x1xf32>
    %976 = arith.truncf %968 : vector<16x256xf32> to vector<16x256xbf16>
    %cst_220 = arith.constant dense<0.000000e+00> : vector<32x256xf32>
    %977 = tpu.matmul %971, %976, %cst_220 {dimension_numbers = #tpu.dot_dimension_numbers<[1], [0], [0], [1], [0, 0, 1, 1], [], []>} : vector<32x16xbf16>, vector<16x256xbf16>, vector<32x256xf32> -> vector<32x256xf32>
    %978 = vector.extract_strided_slice %977 {offsets = [0, 0], sizes = [32, 128], strides = [1, 1]} : vector<32x256xf32> to vector<32x128xf32>
    %cst_221 = arith.constant dense<0.000000e+00> : vector<32xf32>
    %979 = vector.multi_reduction <add>, %978, %cst_221 [1] : vector<32x128xf32> to vector<32xf32>
    %980 = vector.shape_cast %979 : vector<32xf32> to vector<32x1xf32>
    %cst_222 = arith.constant 1.280000e+02 : f32
    %981 = vector.broadcast %cst_222 : f32 to vector<32x1xf32>
    %982 = arith.divf %980, %981 : vector<32x1xf32>
    %983 = vector.broadcast %982 : vector<32x1xf32> to vector<32x128xf32>
    %984 = arith.subf %978, %983 : vector<32x128xf32>
    %985 = arith.mulf %984, %984 : vector<32x128xf32>
    %cst_223 = arith.constant dense<0.000000e+00> : vector<32xf32>
    %986 = vector.multi_reduction <add>, %985, %cst_223 [1] : vector<32x128xf32> to vector<32xf32>
    %987 = vector.shape_cast %986 : vector<32xf32> to vector<32x1xf32>
    %cst_224 = arith.constant 1.280000e+02 : f32
    %988 = vector.broadcast %cst_224 : f32 to vector<32x1xf32>
    %989 = arith.divf %987, %988 : vector<32x1xf32>
    %cst_225 = arith.constant 9.99999974E-6 : f32
    %990 = vector.broadcast %cst_225 : f32 to vector<32x1xf32>
    %991 = arith.addf %989, %990 : vector<32x1xf32>
    %992 = math.rsqrt %991 : vector<32x1xf32>
    %993 = vector.broadcast %992 : vector<32x1xf32> to vector<32x128xf32>
    %994 = arith.mulf %984, %993 : vector<32x128xf32>
    %995 = vector.extract_strided_slice %977 {offsets = [0, 128], sizes = [32, 128], strides = [1, 1]} : vector<32x256xf32> to vector<32x128xf32>
    %cst_226 = arith.constant dense<0.000000e+00> : vector<32xf32>
    %996 = vector.multi_reduction <add>, %995, %cst_226 [1] : vector<32x128xf32> to vector<32xf32>
    %997 = vector.shape_cast %996 : vector<32xf32> to vector<32x1xf32>
    %cst_227 = arith.constant 1.280000e+02 : f32
    %998 = vector.broadcast %cst_227 : f32 to vector<32x1xf32>
    %999 = arith.divf %997, %998 : vector<32x1xf32>
    %1000 = vector.broadcast %999 : vector<32x1xf32> to vector<32x128xf32>
    %1001 = arith.subf %995, %1000 : vector<32x128xf32>
    %1002 = arith.mulf %1001, %1001 : vector<32x128xf32>
    %cst_228 = arith.constant dense<0.000000e+00> : vector<32xf32>
    %1003 = vector.multi_reduction <add>, %1002, %cst_228 [1] : vector<32x128xf32> to vector<32xf32>
    %1004 = vector.shape_cast %1003 : vector<32xf32> to vector<32x1xf32>
    %cst_229 = arith.constant 1.280000e+02 : f32
    %1005 = vector.broadcast %cst_229 : f32 to vector<32x1xf32>
    %1006 = arith.divf %1004, %1005 : vector<32x1xf32>
    %cst_230 = arith.constant 9.99999974E-6 : f32
    %1007 = vector.broadcast %cst_230 : f32 to vector<32x1xf32>
    %1008 = arith.addf %1006, %1007 : vector<32x1xf32>
    %1009 = math.rsqrt %1008 : vector<32x1xf32>
    %1010 = vector.broadcast %1009 : vector<32x1xf32> to vector<32x128xf32>
    %1011 = arith.mulf %1001, %1010 : vector<32x128xf32>
    %1012 = tpu.concatenate %994, %1011 in 1 : vector<32x128xf32>, vector<32x128xf32> -> vector<32x256xf32>
    %1013 = vector.broadcast %973 : vector<32x1xf32> to vector<32x256xf32>
    %1014 = arith.mulf %1012, %1013 : vector<32x256xf32>
    %1015 = vector.broadcast %975 : vector<32x1xf32> to vector<32x256xf32>
    %1016 = arith.addf %1014, %1015 : vector<32x256xf32>
    %1017 = vector.extract_strided_slice %1016 {offsets = [0, 0], sizes = [16, 256], strides = [1, 1]} : vector<32x256xf32> to vector<16x256xf32>
    %1018 = vector.extract_strided_slice %1016 {offsets = [16, 0], sizes = [16, 256], strides = [1, 1]} : vector<32x256xf32> to vector<16x256xf32>
    %1019 = arith.negf %1018 : vector<16x256xf32>
    %1020 = math.exp %1019 : vector<16x256xf32>
    %cst_231 = arith.constant 1.000000e+00 : f32
    %1021 = vector.broadcast %cst_231 : f32 to vector<16x256xf32>
    %1022 = arith.addf %1021, %1020 : vector<16x256xf32>
    %1023 = arith.divf %1021, %1022 : vector<16x256xf32>
    %1024 = arith.mulf %1017, %1023 : vector<16x256xf32>
    %1025 = arith.addf %968, %1024 : vector<16x256xf32>
    %cst_232 = arith.constant 0.707106769 : f32
    %1026 = vector.broadcast %cst_232 : f32 to vector<16x256xf32>
    %1027 = arith.mulf %1025, %1026 : vector<16x256xf32>
    %1028 = vector.extract_strided_slice %1027 {offsets = [0, 0], sizes = [8, 256], strides = [1, 1]} : vector<16x256xf32> to vector<8x256xf32>
    %cst_233 = arith.constant 0.000000e+00 : f32
    %1029 = vector.broadcast %cst_233 : f32 to vector<8x256xf32>
    %1030 = arith.maximumf %1028, %1029 : vector<8x256xf32>
    %1031 = arith.addf %570, %1030 : vector<8x256xf32>
    %1032 = vector.extract_strided_slice %1027 {offsets = [8, 0], sizes = [8, 256], strides = [1, 1]} : vector<16x256xf32> to vector<8x256xf32>
    %c1_234 = arith.constant 1 : index
    %c0_235 = arith.constant 0 : index
    %c0_236 = arith.constant 0 : index
    %1033 = vector.load %arg7[%c1_234, %c0_235, %c0_236] : memref<3x16x8xf32, #tpu.memory_space<vmem>>, vector<1x16x8xf32>
    %1034 = vector.shape_cast %1033 : vector<1x16x8xf32> to vector<16x8xf32>
    %1035 = arith.truncf %1034 : vector<16x8xf32> to vector<16x8xbf16>
    %1036 = arith.truncf %1032 : vector<8x256xf32> to vector<8x256xbf16>
    %cst_237 = arith.constant dense<0.000000e+00> : vector<16x256xf32>
    %1037 = tpu.matmul %1035, %1036, %cst_237 {dimension_numbers = #tpu.dot_dimension_numbers<[1], [0], [0], [1], [0, 0, 1, 1], [], []>} : vector<16x8xbf16>, vector<8x256xbf16>, vector<16x256xf32> -> vector<16x256xf32>
    %c0_238 = arith.constant 0 : index
    %c1_239 = arith.constant 1 : index
    %c0_240 = arith.constant 0 : index
    %c0_241 = arith.constant 0 : index
    %1038 = vector.load %arg8[%c0_238, %c1_239, %c0_240, %c0_241] : memref<2x3x16x1xf32, #tpu.memory_space<vmem>>, vector<1x1x16x1xf32>
    %1039 = vector.shape_cast %1038 : vector<1x1x16x1xf32> to vector<16x1xf32>
    %c1_242 = arith.constant 1 : index
    %c1_243 = arith.constant 1 : index
    %c0_244 = arith.constant 0 : index
    %c0_245 = arith.constant 0 : index
    %1040 = vector.load %arg8[%c1_242, %c1_243, %c0_244, %c0_245] : memref<2x3x16x1xf32, #tpu.memory_space<vmem>>, vector<1x1x16x1xf32>
    %1041 = vector.shape_cast %1040 : vector<1x1x16x1xf32> to vector<16x1xf32>
    %1042 = vector.extract_strided_slice %1037 {offsets = [0, 0], sizes = [16, 128], strides = [1, 1]} : vector<16x256xf32> to vector<16x128xf32>
    %cst_246 = arith.constant dense<0.000000e+00> : vector<16xf32>
    %1043 = vector.multi_reduction <add>, %1042, %cst_246 [1] : vector<16x128xf32> to vector<16xf32>
    %1044 = vector.shape_cast %1043 : vector<16xf32> to vector<16x1xf32>
    %cst_247 = arith.constant 1.280000e+02 : f32
    %1045 = vector.broadcast %cst_247 : f32 to vector<16x1xf32>
    %1046 = arith.divf %1044, %1045 : vector<16x1xf32>
    %1047 = vector.broadcast %1046 : vector<16x1xf32> to vector<16x128xf32>
    %1048 = arith.subf %1042, %1047 : vector<16x128xf32>
    %1049 = arith.mulf %1048, %1048 : vector<16x128xf32>
    %cst_248 = arith.constant dense<0.000000e+00> : vector<16xf32>
    %1050 = vector.multi_reduction <add>, %1049, %cst_248 [1] : vector<16x128xf32> to vector<16xf32>
    %1051 = vector.shape_cast %1050 : vector<16xf32> to vector<16x1xf32>
    %cst_249 = arith.constant 1.280000e+02 : f32
    %1052 = vector.broadcast %cst_249 : f32 to vector<16x1xf32>
    %1053 = arith.divf %1051, %1052 : vector<16x1xf32>
    %cst_250 = arith.constant 9.99999974E-6 : f32
    %1054 = vector.broadcast %cst_250 : f32 to vector<16x1xf32>
    %1055 = arith.addf %1053, %1054 : vector<16x1xf32>
    %1056 = math.rsqrt %1055 : vector<16x1xf32>
    %1057 = vector.broadcast %1056 : vector<16x1xf32> to vector<16x128xf32>
    %1058 = arith.mulf %1048, %1057 : vector<16x128xf32>
    %1059 = vector.extract_strided_slice %1037 {offsets = [0, 128], sizes = [16, 128], strides = [1, 1]} : vector<16x256xf32> to vector<16x128xf32>
    %cst_251 = arith.constant dense<0.000000e+00> : vector<16xf32>
    %1060 = vector.multi_reduction <add>, %1059, %cst_251 [1] : vector<16x128xf32> to vector<16xf32>
    %1061 = vector.shape_cast %1060 : vector<16xf32> to vector<16x1xf32>
    %cst_252 = arith.constant 1.280000e+02 : f32
    %1062 = vector.broadcast %cst_252 : f32 to vector<16x1xf32>
    %1063 = arith.divf %1061, %1062 : vector<16x1xf32>
    %1064 = vector.broadcast %1063 : vector<16x1xf32> to vector<16x128xf32>
    %1065 = arith.subf %1059, %1064 : vector<16x128xf32>
    %1066 = arith.mulf %1065, %1065 : vector<16x128xf32>
    %cst_253 = arith.constant dense<0.000000e+00> : vector<16xf32>
    %1067 = vector.multi_reduction <add>, %1066, %cst_253 [1] : vector<16x128xf32> to vector<16xf32>
    %1068 = vector.shape_cast %1067 : vector<16xf32> to vector<16x1xf32>
    %cst_254 = arith.constant 1.280000e+02 : f32
    %1069 = vector.broadcast %cst_254 : f32 to vector<16x1xf32>
    %1070 = arith.divf %1068, %1069 : vector<16x1xf32>
    %cst_255 = arith.constant 9.99999974E-6 : f32
    %1071 = vector.broadcast %cst_255 : f32 to vector<16x1xf32>
    %1072 = arith.addf %1070, %1071 : vector<16x1xf32>
    %1073 = math.rsqrt %1072 : vector<16x1xf32>
    %1074 = vector.broadcast %1073 : vector<16x1xf32> to vector<16x128xf32>
    %1075 = arith.mulf %1065, %1074 : vector<16x128xf32>
    %1076 = tpu.concatenate %1058, %1075 in 1 : vector<16x128xf32>, vector<16x128xf32> -> vector<16x256xf32>
    %1077 = vector.broadcast %1039 : vector<16x1xf32> to vector<16x256xf32>
    %1078 = arith.mulf %1076, %1077 : vector<16x256xf32>
    %1079 = vector.broadcast %1041 : vector<16x1xf32> to vector<16x256xf32>
    %1080 = arith.addf %1078, %1079 : vector<16x256xf32>
    %1081 = arith.mulf %1080, %799 : vector<16x256xf32>
    %cst_256 = arith.constant 0.000000e+00 : f32
    %1082 = vector.broadcast %cst_256 : f32 to vector<16x256xf32>
    %cst_257 = arith.constant 0.000000e+00 : f32
    %1083 = vector.broadcast %cst_257 : f32 to vector<16x256xf32>
    %1084 = vector.extract_strided_slice %1081 {offsets = [0, 0], sizes = [1, 256], strides = [1, 1]} : vector<16x256xf32> to vector<1x256xf32>
    %1085 = vector.broadcast %1084 : vector<1x256xf32> to vector<16x256xf32>
    %1086 = arith.cmpf oge, %1085, %1081 : vector<16x256xf32>
    %1087 = arith.extui %1086 : vector<16x256xi1> to vector<16x256xi32>
    %1088 = arith.sitofp %1087 : vector<16x256xi32> to vector<16x256xf32>
    %1089 = arith.addf %1082, %1088 : vector<16x256xf32>
    %1090 = vector.broadcast %1084 : vector<1x256xf32> to vector<16x256xf32>
    %1091 = arith.mulf %1088, %1090 : vector<16x256xf32>
    %1092 = arith.addf %1083, %1091 : vector<16x256xf32>
    %1093 = vector.extract_strided_slice %1081 {offsets = [1, 0], sizes = [1, 256], strides = [1, 1]} : vector<16x256xf32> to vector<1x256xf32>
    %1094 = vector.broadcast %1093 : vector<1x256xf32> to vector<16x256xf32>
    %1095 = arith.cmpf oge, %1094, %1081 : vector<16x256xf32>
    %1096 = arith.extui %1095 : vector<16x256xi1> to vector<16x256xi32>
    %1097 = arith.sitofp %1096 : vector<16x256xi32> to vector<16x256xf32>
    %1098 = arith.addf %1089, %1097 : vector<16x256xf32>
    %1099 = vector.broadcast %1093 : vector<1x256xf32> to vector<16x256xf32>
    %1100 = arith.mulf %1097, %1099 : vector<16x256xf32>
    %1101 = arith.addf %1092, %1100 : vector<16x256xf32>
    %1102 = vector.extract_strided_slice %1081 {offsets = [2, 0], sizes = [1, 256], strides = [1, 1]} : vector<16x256xf32> to vector<1x256xf32>
    %1103 = vector.broadcast %1102 : vector<1x256xf32> to vector<16x256xf32>
    %1104 = arith.cmpf oge, %1103, %1081 : vector<16x256xf32>
    %1105 = arith.extui %1104 : vector<16x256xi1> to vector<16x256xi32>
    %1106 = arith.sitofp %1105 : vector<16x256xi32> to vector<16x256xf32>
    %1107 = arith.addf %1098, %1106 : vector<16x256xf32>
    %1108 = vector.broadcast %1102 : vector<1x256xf32> to vector<16x256xf32>
    %1109 = arith.mulf %1106, %1108 : vector<16x256xf32>
    %1110 = arith.addf %1101, %1109 : vector<16x256xf32>
    %1111 = vector.extract_strided_slice %1081 {offsets = [3, 0], sizes = [1, 256], strides = [1, 1]} : vector<16x256xf32> to vector<1x256xf32>
    %1112 = vector.broadcast %1111 : vector<1x256xf32> to vector<16x256xf32>
    %1113 = arith.cmpf oge, %1112, %1081 : vector<16x256xf32>
    %1114 = arith.extui %1113 : vector<16x256xi1> to vector<16x256xi32>
    %1115 = arith.sitofp %1114 : vector<16x256xi32> to vector<16x256xf32>
    %1116 = arith.addf %1107, %1115 : vector<16x256xf32>
    %1117 = vector.broadcast %1111 : vector<1x256xf32> to vector<16x256xf32>
    %1118 = arith.mulf %1115, %1117 : vector<16x256xf32>
    %1119 = arith.addf %1110, %1118 : vector<16x256xf32>
    %1120 = vector.extract_strided_slice %1081 {offsets = [4, 0], sizes = [1, 256], strides = [1, 1]} : vector<16x256xf32> to vector<1x256xf32>
    %1121 = vector.broadcast %1120 : vector<1x256xf32> to vector<16x256xf32>
    %1122 = arith.cmpf oge, %1121, %1081 : vector<16x256xf32>
    %1123 = arith.extui %1122 : vector<16x256xi1> to vector<16x256xi32>
    %1124 = arith.sitofp %1123 : vector<16x256xi32> to vector<16x256xf32>
    %1125 = arith.addf %1116, %1124 : vector<16x256xf32>
    %1126 = vector.broadcast %1120 : vector<1x256xf32> to vector<16x256xf32>
    %1127 = arith.mulf %1124, %1126 : vector<16x256xf32>
    %1128 = arith.addf %1119, %1127 : vector<16x256xf32>
    %1129 = vector.extract_strided_slice %1081 {offsets = [5, 0], sizes = [1, 256], strides = [1, 1]} : vector<16x256xf32> to vector<1x256xf32>
    %1130 = vector.broadcast %1129 : vector<1x256xf32> to vector<16x256xf32>
    %1131 = arith.cmpf oge, %1130, %1081 : vector<16x256xf32>
    %1132 = arith.extui %1131 : vector<16x256xi1> to vector<16x256xi32>
    %1133 = arith.sitofp %1132 : vector<16x256xi32> to vector<16x256xf32>
    %1134 = arith.addf %1125, %1133 : vector<16x256xf32>
    %1135 = vector.broadcast %1129 : vector<1x256xf32> to vector<16x256xf32>
    %1136 = arith.mulf %1133, %1135 : vector<16x256xf32>
    %1137 = arith.addf %1128, %1136 : vector<16x256xf32>
    %1138 = vector.extract_strided_slice %1081 {offsets = [6, 0], sizes = [1, 256], strides = [1, 1]} : vector<16x256xf32> to vector<1x256xf32>
    %1139 = vector.broadcast %1138 : vector<1x256xf32> to vector<16x256xf32>
    %1140 = arith.cmpf oge, %1139, %1081 : vector<16x256xf32>
    %1141 = arith.extui %1140 : vector<16x256xi1> to vector<16x256xi32>
    %1142 = arith.sitofp %1141 : vector<16x256xi32> to vector<16x256xf32>
    %1143 = arith.addf %1134, %1142 : vector<16x256xf32>
    %1144 = vector.broadcast %1138 : vector<1x256xf32> to vector<16x256xf32>
    %1145 = arith.mulf %1142, %1144 : vector<16x256xf32>
    %1146 = arith.addf %1137, %1145 : vector<16x256xf32>
    %1147 = vector.extract_strided_slice %1081 {offsets = [7, 0], sizes = [1, 256], strides = [1, 1]} : vector<16x256xf32> to vector<1x256xf32>
    %1148 = vector.broadcast %1147 : vector<1x256xf32> to vector<16x256xf32>
    %1149 = arith.cmpf oge, %1148, %1081 : vector<16x256xf32>
    %1150 = arith.extui %1149 : vector<16x256xi1> to vector<16x256xi32>
    %1151 = arith.sitofp %1150 : vector<16x256xi32> to vector<16x256xf32>
    %1152 = arith.addf %1143, %1151 : vector<16x256xf32>
    %1153 = vector.broadcast %1147 : vector<1x256xf32> to vector<16x256xf32>
    %1154 = arith.mulf %1151, %1153 : vector<16x256xf32>
    %1155 = arith.addf %1146, %1154 : vector<16x256xf32>
    %1156 = vector.extract_strided_slice %1081 {offsets = [8, 0], sizes = [1, 256], strides = [1, 1]} : vector<16x256xf32> to vector<1x256xf32>
    %1157 = vector.broadcast %1156 : vector<1x256xf32> to vector<16x256xf32>
    %1158 = arith.cmpf oge, %1157, %1081 : vector<16x256xf32>
    %1159 = arith.extui %1158 : vector<16x256xi1> to vector<16x256xi32>
    %1160 = arith.sitofp %1159 : vector<16x256xi32> to vector<16x256xf32>
    %1161 = arith.addf %1152, %1160 : vector<16x256xf32>
    %1162 = vector.broadcast %1156 : vector<1x256xf32> to vector<16x256xf32>
    %1163 = arith.mulf %1160, %1162 : vector<16x256xf32>
    %1164 = arith.addf %1155, %1163 : vector<16x256xf32>
    %1165 = vector.extract_strided_slice %1081 {offsets = [9, 0], sizes = [1, 256], strides = [1, 1]} : vector<16x256xf32> to vector<1x256xf32>
    %1166 = vector.broadcast %1165 : vector<1x256xf32> to vector<16x256xf32>
    %1167 = arith.cmpf oge, %1166, %1081 : vector<16x256xf32>
    %1168 = arith.extui %1167 : vector<16x256xi1> to vector<16x256xi32>
    %1169 = arith.sitofp %1168 : vector<16x256xi32> to vector<16x256xf32>
    %1170 = arith.addf %1161, %1169 : vector<16x256xf32>
    %1171 = vector.broadcast %1165 : vector<1x256xf32> to vector<16x256xf32>
    %1172 = arith.mulf %1169, %1171 : vector<16x256xf32>
    %1173 = arith.addf %1164, %1172 : vector<16x256xf32>
    %1174 = vector.extract_strided_slice %1081 {offsets = [10, 0], sizes = [1, 256], strides = [1, 1]} : vector<16x256xf32> to vector<1x256xf32>
    %1175 = vector.broadcast %1174 : vector<1x256xf32> to vector<16x256xf32>
    %1176 = arith.cmpf oge, %1175, %1081 : vector<16x256xf32>
    %1177 = arith.extui %1176 : vector<16x256xi1> to vector<16x256xi32>
    %1178 = arith.sitofp %1177 : vector<16x256xi32> to vector<16x256xf32>
    %1179 = arith.addf %1170, %1178 : vector<16x256xf32>
    %1180 = vector.broadcast %1174 : vector<1x256xf32> to vector<16x256xf32>
    %1181 = arith.mulf %1178, %1180 : vector<16x256xf32>
    %1182 = arith.addf %1173, %1181 : vector<16x256xf32>
    %1183 = vector.extract_strided_slice %1081 {offsets = [11, 0], sizes = [1, 256], strides = [1, 1]} : vector<16x256xf32> to vector<1x256xf32>
    %1184 = vector.broadcast %1183 : vector<1x256xf32> to vector<16x256xf32>
    %1185 = arith.cmpf oge, %1184, %1081 : vector<16x256xf32>
    %1186 = arith.extui %1185 : vector<16x256xi1> to vector<16x256xi32>
    %1187 = arith.sitofp %1186 : vector<16x256xi32> to vector<16x256xf32>
    %1188 = arith.addf %1179, %1187 : vector<16x256xf32>
    %1189 = vector.broadcast %1183 : vector<1x256xf32> to vector<16x256xf32>
    %1190 = arith.mulf %1187, %1189 : vector<16x256xf32>
    %1191 = arith.addf %1182, %1190 : vector<16x256xf32>
    %1192 = vector.extract_strided_slice %1081 {offsets = [12, 0], sizes = [1, 256], strides = [1, 1]} : vector<16x256xf32> to vector<1x256xf32>
    %1193 = vector.broadcast %1192 : vector<1x256xf32> to vector<16x256xf32>
    %1194 = arith.cmpf oge, %1193, %1081 : vector<16x256xf32>
    %1195 = arith.extui %1194 : vector<16x256xi1> to vector<16x256xi32>
    %1196 = arith.sitofp %1195 : vector<16x256xi32> to vector<16x256xf32>
    %1197 = arith.addf %1188, %1196 : vector<16x256xf32>
    %1198 = vector.broadcast %1192 : vector<1x256xf32> to vector<16x256xf32>
    %1199 = arith.mulf %1196, %1198 : vector<16x256xf32>
    %1200 = arith.addf %1191, %1199 : vector<16x256xf32>
    %1201 = vector.extract_strided_slice %1081 {offsets = [13, 0], sizes = [1, 256], strides = [1, 1]} : vector<16x256xf32> to vector<1x256xf32>
    %1202 = vector.broadcast %1201 : vector<1x256xf32> to vector<16x256xf32>
    %1203 = arith.cmpf oge, %1202, %1081 : vector<16x256xf32>
    %1204 = arith.extui %1203 : vector<16x256xi1> to vector<16x256xi32>
    %1205 = arith.sitofp %1204 : vector<16x256xi32> to vector<16x256xf32>
    %1206 = arith.addf %1197, %1205 : vector<16x256xf32>
    %1207 = vector.broadcast %1201 : vector<1x256xf32> to vector<16x256xf32>
    %1208 = arith.mulf %1205, %1207 : vector<16x256xf32>
    %1209 = arith.addf %1200, %1208 : vector<16x256xf32>
    %1210 = vector.extract_strided_slice %1081 {offsets = [14, 0], sizes = [1, 256], strides = [1, 1]} : vector<16x256xf32> to vector<1x256xf32>
    %1211 = vector.broadcast %1210 : vector<1x256xf32> to vector<16x256xf32>
    %1212 = arith.cmpf oge, %1211, %1081 : vector<16x256xf32>
    %1213 = arith.extui %1212 : vector<16x256xi1> to vector<16x256xi32>
    %1214 = arith.sitofp %1213 : vector<16x256xi32> to vector<16x256xf32>
    %1215 = arith.addf %1206, %1214 : vector<16x256xf32>
    %1216 = vector.broadcast %1210 : vector<1x256xf32> to vector<16x256xf32>
    %1217 = arith.mulf %1214, %1216 : vector<16x256xf32>
    %1218 = arith.addf %1209, %1217 : vector<16x256xf32>
    %1219 = vector.extract_strided_slice %1081 {offsets = [15, 0], sizes = [1, 256], strides = [1, 1]} : vector<16x256xf32> to vector<1x256xf32>
    %1220 = vector.broadcast %1219 : vector<1x256xf32> to vector<16x256xf32>
    %1221 = arith.cmpf oge, %1220, %1081 : vector<16x256xf32>
    %1222 = arith.extui %1221 : vector<16x256xi1> to vector<16x256xi32>
    %1223 = arith.sitofp %1222 : vector<16x256xi32> to vector<16x256xf32>
    %1224 = arith.addf %1215, %1223 : vector<16x256xf32>
    %1225 = vector.broadcast %1219 : vector<1x256xf32> to vector<16x256xf32>
    %1226 = arith.mulf %1223, %1225 : vector<16x256xf32>
    %1227 = arith.addf %1218, %1226 : vector<16x256xf32>
    %1228 = arith.mulf %1224, %1081 : vector<16x256xf32>
    %cst_258 = arith.constant 1.000000e+00 : f32
    %1229 = vector.broadcast %cst_258 : f32 to vector<16x256xf32>
    %1230 = arith.addf %1229, %1228 : vector<16x256xf32>
    %1231 = arith.subf %1230, %1227 : vector<16x256xf32>
    %cst_259 = arith.constant 0.000000e+00 : f32
    %1232 = vector.broadcast %cst_259 : f32 to vector<16x256xf32>
    %1233 = arith.cmpf ogt, %1231, %1232 : vector<16x256xf32>
    %1234 = arith.extui %1233 : vector<16x256xi1> to vector<16x256xi32>
    %1235 = arith.sitofp %1234 : vector<16x256xi32> to vector<16x256xf32>
    %cst_260 = arith.constant dense<0.000000e+00> : vector<256xf32>
    %1236 = vector.multi_reduction <add>, %1235, %cst_260 [0] : vector<16x256xf32> to vector<256xf32>
    %1237 = vector.shape_cast %1236 : vector<256xf32> to vector<1x256xf32>
    %1238 = arith.mulf %1081, %1235 : vector<16x256xf32>
    %cst_261 = arith.constant dense<0.000000e+00> : vector<256xf32>
    %1239 = vector.multi_reduction <add>, %1238, %cst_261 [0] : vector<16x256xf32> to vector<256xf32>
    %1240 = vector.shape_cast %1239 : vector<256xf32> to vector<1x256xf32>
    %cst_262 = arith.constant 1.000000e+00 : f32
    %1241 = vector.broadcast %cst_262 : f32 to vector<1x256xf32>
    %1242 = arith.subf %1240, %1241 : vector<1x256xf32>
    %1243 = arith.divf %1242, %1237 : vector<1x256xf32>
    %1244 = vector.broadcast %1243 : vector<1x256xf32> to vector<16x256xf32>
    %1245 = arith.subf %1081, %1244 : vector<16x256xf32>
    %cst_263 = arith.constant 0.000000e+00 : f32
    %1246 = vector.broadcast %cst_263 : f32 to vector<16x256xf32>
    %1247 = arith.maximumf %1245, %1246 : vector<16x256xf32>
    %cst_264 = arith.constant 1.000000e-15 : f32
    %1248 = vector.broadcast %cst_264 : f32 to vector<16x256xf32>
    %1249 = arith.addf %1247, %1248 : vector<16x256xf32>
    %1250 = math.log %1249 : vector<16x256xf32>
    %1251 = arith.mulf %1247, %1250 : vector<16x256xf32>
    %cst_265 = arith.constant dense<0.000000e+00> : vector<256xf32>
    %1252 = vector.multi_reduction <add>, %1251, %cst_265 [0] : vector<16x256xf32> to vector<256xf32>
    %1253 = vector.shape_cast %1252 : vector<256xf32> to vector<1x256xf32>
    %cst_266 = arith.constant dense<0.000000e+00> : vector<1xf32>
    %1254 = vector.multi_reduction <add>, %1253, %cst_266 [1] : vector<1x256xf32> to vector<1xf32>
    %1255 = vector.shape_cast %1254 : vector<1xf32> to vector<1x1xf32>
    %1256 = vector.extract %1255[0, 0] : f32 from vector<1x1xf32>
    %cst_267 = arith.constant 2.560000e+02 : f32
    %1257 = arith.divf %1256, %cst_267 : f32
    %1258 = arith.addf %796, %1257 : f32
    %cst_268 = arith.constant 1.300000e+00 : f32
    %1259 = vector.broadcast %cst_268 : f32 to vector<16x256xf32>
    %1260 = arith.subf %1259, %1247 : vector<16x256xf32>
    %1261 = arith.mulf %1260, %799 : vector<16x256xf32>
    %1262 = arith.mulf %1247, %340 : vector<16x256xf32>
    %c0_269 = arith.constant 0 : index
    %c8 = arith.constant 8 : index
    %c0_270 = arith.constant 0 : index
    %c0_271 = arith.constant 0 : index
    %1263 = vector.load %arg6[%c0_269, %c8, %c0_270, %c0_271] : memref<2x16x32x1xf32, #tpu.memory_space<vmem>>, vector<1x1x32x1xf32>
    %1264 = vector.shape_cast %1263 : vector<1x1x32x1xf32> to vector<32x1xf32>
    %c1_272 = arith.constant 1 : index
    %c8_273 = arith.constant 8 : index
    %c0_274 = arith.constant 0 : index
    %c0_275 = arith.constant 0 : index
    %1265 = vector.load %arg6[%c1_272, %c8_273, %c0_274, %c0_275] : memref<2x16x32x1xf32, #tpu.memory_space<vmem>>, vector<1x1x32x1xf32>
    %1266 = vector.shape_cast %1265 : vector<1x1x32x1xf32> to vector<32x1xf32>
    %1267 = arith.truncf %1262 : vector<16x256xf32> to vector<16x256xbf16>
    %cst_276 = arith.constant dense<0.000000e+00> : vector<32x256xf32>
    %1268 = tpu.matmul %2, %1267, %cst_276 {dimension_numbers = #tpu.dot_dimension_numbers<[1], [0], [0], [1], [0, 0, 1, 1], [], []>} : vector<32x16xbf16>, vector<16x256xbf16>, vector<32x256xf32> -> vector<32x256xf32>
    %1269 = vector.extract_strided_slice %1268 {offsets = [0, 0], sizes = [32, 128], strides = [1, 1]} : vector<32x256xf32> to vector<32x128xf32>
    %cst_277 = arith.constant dense<0.000000e+00> : vector<32xf32>
    %1270 = vector.multi_reduction <add>, %1269, %cst_277 [1] : vector<32x128xf32> to vector<32xf32>
    %1271 = vector.shape_cast %1270 : vector<32xf32> to vector<32x1xf32>
    %cst_278 = arith.constant 1.280000e+02 : f32
    %1272 = vector.broadcast %cst_278 : f32 to vector<32x1xf32>
    %1273 = arith.divf %1271, %1272 : vector<32x1xf32>
    %1274 = vector.broadcast %1273 : vector<32x1xf32> to vector<32x128xf32>
    %1275 = arith.subf %1269, %1274 : vector<32x128xf32>
    %1276 = arith.mulf %1275, %1275 : vector<32x128xf32>
    %cst_279 = arith.constant dense<0.000000e+00> : vector<32xf32>
    %1277 = vector.multi_reduction <add>, %1276, %cst_279 [1] : vector<32x128xf32> to vector<32xf32>
    %1278 = vector.shape_cast %1277 : vector<32xf32> to vector<32x1xf32>
    %cst_280 = arith.constant 1.280000e+02 : f32
    %1279 = vector.broadcast %cst_280 : f32 to vector<32x1xf32>
    %1280 = arith.divf %1278, %1279 : vector<32x1xf32>
    %cst_281 = arith.constant 9.99999974E-6 : f32
    %1281 = vector.broadcast %cst_281 : f32 to vector<32x1xf32>
    %1282 = arith.addf %1280, %1281 : vector<32x1xf32>
    %1283 = math.rsqrt %1282 : vector<32x1xf32>
    %1284 = vector.broadcast %1283 : vector<32x1xf32> to vector<32x128xf32>
    %1285 = arith.mulf %1275, %1284 : vector<32x128xf32>
    %1286 = vector.extract_strided_slice %1268 {offsets = [0, 128], sizes = [32, 128], strides = [1, 1]} : vector<32x256xf32> to vector<32x128xf32>
    %cst_282 = arith.constant dense<0.000000e+00> : vector<32xf32>
    %1287 = vector.multi_reduction <add>, %1286, %cst_282 [1] : vector<32x128xf32> to vector<32xf32>
    %1288 = vector.shape_cast %1287 : vector<32xf32> to vector<32x1xf32>
    %cst_283 = arith.constant 1.280000e+02 : f32
    %1289 = vector.broadcast %cst_283 : f32 to vector<32x1xf32>
    %1290 = arith.divf %1288, %1289 : vector<32x1xf32>
    %1291 = vector.broadcast %1290 : vector<32x1xf32> to vector<32x128xf32>
    %1292 = arith.subf %1286, %1291 : vector<32x128xf32>
    %1293 = arith.mulf %1292, %1292 : vector<32x128xf32>
    %cst_284 = arith.constant dense<0.000000e+00> : vector<32xf32>
    %1294 = vector.multi_reduction <add>, %1293, %cst_284 [1] : vector<32x128xf32> to vector<32xf32>
    %1295 = vector.shape_cast %1294 : vector<32xf32> to vector<32x1xf32>
    %cst_285 = arith.constant 1.280000e+02 : f32
    %1296 = vector.broadcast %cst_285 : f32 to vector<32x1xf32>
    %1297 = arith.divf %1295, %1296 : vector<32x1xf32>
    %cst_286 = arith.constant 9.99999974E-6 : f32
    %1298 = vector.broadcast %cst_286 : f32 to vector<32x1xf32>
    %1299 = arith.addf %1297, %1298 : vector<32x1xf32>
    %1300 = math.rsqrt %1299 : vector<32x1xf32>
    %1301 = vector.broadcast %1300 : vector<32x1xf32> to vector<32x128xf32>
    %1302 = arith.mulf %1292, %1301 : vector<32x128xf32>
    %1303 = tpu.concatenate %1285, %1302 in 1 : vector<32x128xf32>, vector<32x128xf32> -> vector<32x256xf32>
    %1304 = vector.broadcast %1264 : vector<32x1xf32> to vector<32x256xf32>
    %1305 = arith.mulf %1303, %1304 : vector<32x256xf32>
    %1306 = vector.broadcast %1266 : vector<32x1xf32> to vector<32x256xf32>
    %1307 = arith.addf %1305, %1306 : vector<32x256xf32>
    %1308 = vector.extract_strided_slice %1307 {offsets = [0, 0], sizes = [16, 256], strides = [1, 1]} : vector<32x256xf32> to vector<16x256xf32>
    %1309 = vector.extract_strided_slice %1307 {offsets = [16, 0], sizes = [16, 256], strides = [1, 1]} : vector<32x256xf32> to vector<16x256xf32>
    %1310 = arith.negf %1309 : vector<16x256xf32>
    %1311 = math.exp %1310 : vector<16x256xf32>
    %cst_287 = arith.constant 1.000000e+00 : f32
    %1312 = vector.broadcast %cst_287 : f32 to vector<16x256xf32>
    %1313 = arith.addf %1312, %1311 : vector<16x256xf32>
    %1314 = arith.divf %1312, %1313 : vector<16x256xf32>
    %1315 = arith.mulf %1308, %1314 : vector<16x256xf32>
    %c0_288 = arith.constant 0 : index
    %c9 = arith.constant 9 : index
    %c0_289 = arith.constant 0 : index
    %c0_290 = arith.constant 0 : index
    %1316 = vector.load %arg6[%c0_288, %c9, %c0_289, %c0_290] : memref<2x16x32x1xf32, #tpu.memory_space<vmem>>, vector<1x1x32x1xf32>
    %1317 = vector.shape_cast %1316 : vector<1x1x32x1xf32> to vector<32x1xf32>
    %c1_291 = arith.constant 1 : index
    %c9_292 = arith.constant 9 : index
    %c0_293 = arith.constant 0 : index
    %c0_294 = arith.constant 0 : index
    %1318 = vector.load %arg6[%c1_291, %c9_292, %c0_293, %c0_294] : memref<2x16x32x1xf32, #tpu.memory_space<vmem>>, vector<1x1x32x1xf32>
    %1319 = vector.shape_cast %1318 : vector<1x1x32x1xf32> to vector<32x1xf32>
    %1320 = arith.truncf %1315 : vector<16x256xf32> to vector<16x256xbf16>
    %cst_295 = arith.constant dense<0.000000e+00> : vector<32x256xf32>
    %1321 = tpu.matmul %4, %1320, %cst_295 {dimension_numbers = #tpu.dot_dimension_numbers<[1], [0], [0], [1], [0, 0, 1, 1], [], []>} : vector<32x16xbf16>, vector<16x256xbf16>, vector<32x256xf32> -> vector<32x256xf32>
    %1322 = vector.extract_strided_slice %1321 {offsets = [0, 0], sizes = [32, 128], strides = [1, 1]} : vector<32x256xf32> to vector<32x128xf32>
    %cst_296 = arith.constant dense<0.000000e+00> : vector<32xf32>
    %1323 = vector.multi_reduction <add>, %1322, %cst_296 [1] : vector<32x128xf32> to vector<32xf32>
    %1324 = vector.shape_cast %1323 : vector<32xf32> to vector<32x1xf32>
    %cst_297 = arith.constant 1.280000e+02 : f32
    %1325 = vector.broadcast %cst_297 : f32 to vector<32x1xf32>
    %1326 = arith.divf %1324, %1325 : vector<32x1xf32>
    %1327 = vector.broadcast %1326 : vector<32x1xf32> to vector<32x128xf32>
    %1328 = arith.subf %1322, %1327 : vector<32x128xf32>
    %1329 = arith.mulf %1328, %1328 : vector<32x128xf32>
    %cst_298 = arith.constant dense<0.000000e+00> : vector<32xf32>
    %1330 = vector.multi_reduction <add>, %1329, %cst_298 [1] : vector<32x128xf32> to vector<32xf32>
    %1331 = vector.shape_cast %1330 : vector<32xf32> to vector<32x1xf32>
    %cst_299 = arith.constant 1.280000e+02 : f32
    %1332 = vector.broadcast %cst_299 : f32 to vector<32x1xf32>
    %1333 = arith.divf %1331, %1332 : vector<32x1xf32>
    %cst_300 = arith.constant 9.99999974E-6 : f32
    %1334 = vector.broadcast %cst_300 : f32 to vector<32x1xf32>
    %1335 = arith.addf %1333, %1334 : vector<32x1xf32>
    %1336 = math.rsqrt %1335 : vector<32x1xf32>
    %1337 = vector.broadcast %1336 : vector<32x1xf32> to vector<32x128xf32>
    %1338 = arith.mulf %1328, %1337 : vector<32x128xf32>
    %1339 = vector.extract_strided_slice %1321 {offsets = [0, 128], sizes = [32, 128], strides = [1, 1]} : vector<32x256xf32> to vector<32x128xf32>
    %cst_301 = arith.constant dense<0.000000e+00> : vector<32xf32>
    %1340 = vector.multi_reduction <add>, %1339, %cst_301 [1] : vector<32x128xf32> to vector<32xf32>
    %1341 = vector.shape_cast %1340 : vector<32xf32> to vector<32x1xf32>
    %cst_302 = arith.constant 1.280000e+02 : f32
    %1342 = vector.broadcast %cst_302 : f32 to vector<32x1xf32>
    %1343 = arith.divf %1341, %1342 : vector<32x1xf32>
    %1344 = vector.broadcast %1343 : vector<32x1xf32> to vector<32x128xf32>
    %1345 = arith.subf %1339, %1344 : vector<32x128xf32>
    %1346 = arith.mulf %1345, %1345 : vector<32x128xf32>
    %cst_303 = arith.constant dense<0.000000e+00> : vector<32xf32>
    %1347 = vector.multi_reduction <add>, %1346, %cst_303 [1] : vector<32x128xf32> to vector<32xf32>
    %1348 = vector.shape_cast %1347 : vector<32xf32> to vector<32x1xf32>
    %cst_304 = arith.constant 1.280000e+02 : f32
    %1349 = vector.broadcast %cst_304 : f32 to vector<32x1xf32>
    %1350 = arith.divf %1348, %1349 : vector<32x1xf32>
    %cst_305 = arith.constant 9.99999974E-6 : f32
    %1351 = vector.broadcast %cst_305 : f32 to vector<32x1xf32>
    %1352 = arith.addf %1350, %1351 : vector<32x1xf32>
    %1353 = math.rsqrt %1352 : vector<32x1xf32>
    %1354 = vector.broadcast %1353 : vector<32x1xf32> to vector<32x128xf32>
    %1355 = arith.mulf %1345, %1354 : vector<32x128xf32>
    %1356 = tpu.concatenate %1338, %1355 in 1 : vector<32x128xf32>, vector<32x128xf32> -> vector<32x256xf32>
    %1357 = vector.broadcast %1317 : vector<32x1xf32> to vector<32x256xf32>
    %1358 = arith.mulf %1356, %1357 : vector<32x256xf32>
    %1359 = vector.broadcast %1319 : vector<32x1xf32> to vector<32x256xf32>
    %1360 = arith.addf %1358, %1359 : vector<32x256xf32>
    %1361 = vector.extract_strided_slice %1360 {offsets = [0, 0], sizes = [16, 256], strides = [1, 1]} : vector<32x256xf32> to vector<16x256xf32>
    %1362 = vector.extract_strided_slice %1360 {offsets = [16, 0], sizes = [16, 256], strides = [1, 1]} : vector<32x256xf32> to vector<16x256xf32>
    %1363 = arith.negf %1362 : vector<16x256xf32>
    %1364 = math.exp %1363 : vector<16x256xf32>
    %cst_306 = arith.constant 1.000000e+00 : f32
    %1365 = vector.broadcast %cst_306 : f32 to vector<16x256xf32>
    %1366 = arith.addf %1365, %1364 : vector<16x256xf32>
    %1367 = arith.divf %1365, %1366 : vector<16x256xf32>
    %1368 = arith.mulf %1361, %1367 : vector<16x256xf32>
    %1369 = arith.addf %1315, %1368 : vector<16x256xf32>
    %cst_307 = arith.constant 0.707106769 : f32
    %1370 = vector.broadcast %cst_307 : f32 to vector<16x256xf32>
    %1371 = arith.mulf %1369, %1370 : vector<16x256xf32>
    %c4_308 = arith.constant 4 : index
    %c0_309 = arith.constant 0 : index
    %c0_310 = arith.constant 0 : index
    %1372 = vector.load %arg5[%c4_308, %c0_309, %c0_310] : memref<8x32x16xf32, #tpu.memory_space<vmem>>, vector<1x32x16xf32>
    %1373 = vector.shape_cast %1372 : vector<1x32x16xf32> to vector<32x16xf32>
    %1374 = arith.truncf %1373 : vector<32x16xf32> to vector<32x16xbf16>
    %c0_311 = arith.constant 0 : index
    %c10 = arith.constant 10 : index
    %c0_312 = arith.constant 0 : index
    %c0_313 = arith.constant 0 : index
    %1375 = vector.load %arg6[%c0_311, %c10, %c0_312, %c0_313] : memref<2x16x32x1xf32, #tpu.memory_space<vmem>>, vector<1x1x32x1xf32>
    %1376 = vector.shape_cast %1375 : vector<1x1x32x1xf32> to vector<32x1xf32>
    %c1_314 = arith.constant 1 : index
    %c10_315 = arith.constant 10 : index
    %c0_316 = arith.constant 0 : index
    %c0_317 = arith.constant 0 : index
    %1377 = vector.load %arg6[%c1_314, %c10_315, %c0_316, %c0_317] : memref<2x16x32x1xf32, #tpu.memory_space<vmem>>, vector<1x1x32x1xf32>
    %1378 = vector.shape_cast %1377 : vector<1x1x32x1xf32> to vector<32x1xf32>
    %1379 = arith.truncf %1371 : vector<16x256xf32> to vector<16x256xbf16>
    %cst_318 = arith.constant dense<0.000000e+00> : vector<32x256xf32>
    %1380 = tpu.matmul %1374, %1379, %cst_318 {dimension_numbers = #tpu.dot_dimension_numbers<[1], [0], [0], [1], [0, 0, 1, 1], [], []>} : vector<32x16xbf16>, vector<16x256xbf16>, vector<32x256xf32> -> vector<32x256xf32>
    %1381 = vector.extract_strided_slice %1380 {offsets = [0, 0], sizes = [32, 128], strides = [1, 1]} : vector<32x256xf32> to vector<32x128xf32>
    %cst_319 = arith.constant dense<0.000000e+00> : vector<32xf32>
    %1382 = vector.multi_reduction <add>, %1381, %cst_319 [1] : vector<32x128xf32> to vector<32xf32>
    %1383 = vector.shape_cast %1382 : vector<32xf32> to vector<32x1xf32>
    %cst_320 = arith.constant 1.280000e+02 : f32
    %1384 = vector.broadcast %cst_320 : f32 to vector<32x1xf32>
    %1385 = arith.divf %1383, %1384 : vector<32x1xf32>
    %1386 = vector.broadcast %1385 : vector<32x1xf32> to vector<32x128xf32>
    %1387 = arith.subf %1381, %1386 : vector<32x128xf32>
    %1388 = arith.mulf %1387, %1387 : vector<32x128xf32>
    %cst_321 = arith.constant dense<0.000000e+00> : vector<32xf32>
    %1389 = vector.multi_reduction <add>, %1388, %cst_321 [1] : vector<32x128xf32> to vector<32xf32>
    %1390 = vector.shape_cast %1389 : vector<32xf32> to vector<32x1xf32>
    %cst_322 = arith.constant 1.280000e+02 : f32
    %1391 = vector.broadcast %cst_322 : f32 to vector<32x1xf32>
    %1392 = arith.divf %1390, %1391 : vector<32x1xf32>
    %cst_323 = arith.constant 9.99999974E-6 : f32
    %1393 = vector.broadcast %cst_323 : f32 to vector<32x1xf32>
    %1394 = arith.addf %1392, %1393 : vector<32x1xf32>
    %1395 = math.rsqrt %1394 : vector<32x1xf32>
    %1396 = vector.broadcast %1395 : vector<32x1xf32> to vector<32x128xf32>
    %1397 = arith.mulf %1387, %1396 : vector<32x128xf32>
    %1398 = vector.extract_strided_slice %1380 {offsets = [0, 128], sizes = [32, 128], strides = [1, 1]} : vector<32x256xf32> to vector<32x128xf32>
    %cst_324 = arith.constant dense<0.000000e+00> : vector<32xf32>
    %1399 = vector.multi_reduction <add>, %1398, %cst_324 [1] : vector<32x128xf32> to vector<32xf32>
    %1400 = vector.shape_cast %1399 : vector<32xf32> to vector<32x1xf32>
    %cst_325 = arith.constant 1.280000e+02 : f32
    %1401 = vector.broadcast %cst_325 : f32 to vector<32x1xf32>
    %1402 = arith.divf %1400, %1401 : vector<32x1xf32>
    %1403 = vector.broadcast %1402 : vector<32x1xf32> to vector<32x128xf32>
    %1404 = arith.subf %1398, %1403 : vector<32x128xf32>
    %1405 = arith.mulf %1404, %1404 : vector<32x128xf32>
    %cst_326 = arith.constant dense<0.000000e+00> : vector<32xf32>
    %1406 = vector.multi_reduction <add>, %1405, %cst_326 [1] : vector<32x128xf32> to vector<32xf32>
    %1407 = vector.shape_cast %1406 : vector<32xf32> to vector<32x1xf32>
    %cst_327 = arith.constant 1.280000e+02 : f32
    %1408 = vector.broadcast %cst_327 : f32 to vector<32x1xf32>
    %1409 = arith.divf %1407, %1408 : vector<32x1xf32>
    %cst_328 = arith.constant 9.99999974E-6 : f32
    %1410 = vector.broadcast %cst_328 : f32 to vector<32x1xf32>
    %1411 = arith.addf %1409, %1410 : vector<32x1xf32>
    %1412 = math.rsqrt %1411 : vector<32x1xf32>
    %1413 = vector.broadcast %1412 : vector<32x1xf32> to vector<32x128xf32>
    %1414 = arith.mulf %1404, %1413 : vector<32x128xf32>
    %1415 = tpu.concatenate %1397, %1414 in 1 : vector<32x128xf32>, vector<32x128xf32> -> vector<32x256xf32>
    %1416 = vector.broadcast %1376 : vector<32x1xf32> to vector<32x256xf32>
    %1417 = arith.mulf %1415, %1416 : vector<32x256xf32>
    %1418 = vector.broadcast %1378 : vector<32x1xf32> to vector<32x256xf32>
    %1419 = arith.addf %1417, %1418 : vector<32x256xf32>
    %1420 = vector.extract_strided_slice %1419 {offsets = [0, 0], sizes = [16, 256], strides = [1, 1]} : vector<32x256xf32> to vector<16x256xf32>
    %1421 = vector.extract_strided_slice %1419 {offsets = [16, 0], sizes = [16, 256], strides = [1, 1]} : vector<32x256xf32> to vector<16x256xf32>
    %1422 = arith.negf %1421 : vector<16x256xf32>
    %1423 = math.exp %1422 : vector<16x256xf32>
    %cst_329 = arith.constant 1.000000e+00 : f32
    %1424 = vector.broadcast %cst_329 : f32 to vector<16x256xf32>
    %1425 = arith.addf %1424, %1423 : vector<16x256xf32>
    %1426 = arith.divf %1424, %1425 : vector<16x256xf32>
    %1427 = arith.mulf %1420, %1426 : vector<16x256xf32>
    %1428 = arith.addf %1371, %1427 : vector<16x256xf32>
    %cst_330 = arith.constant 0.707106769 : f32
    %1429 = vector.broadcast %cst_330 : f32 to vector<16x256xf32>
    %1430 = arith.mulf %1428, %1429 : vector<16x256xf32>
    %c5_331 = arith.constant 5 : index
    %c0_332 = arith.constant 0 : index
    %c0_333 = arith.constant 0 : index
    %1431 = vector.load %arg5[%c5_331, %c0_332, %c0_333] : memref<8x32x16xf32, #tpu.memory_space<vmem>>, vector<1x32x16xf32>
    %1432 = vector.shape_cast %1431 : vector<1x32x16xf32> to vector<32x16xf32>
    %1433 = arith.truncf %1432 : vector<32x16xf32> to vector<32x16xbf16>
    %c0_334 = arith.constant 0 : index
    %c11 = arith.constant 11 : index
    %c0_335 = arith.constant 0 : index
    %c0_336 = arith.constant 0 : index
    %1434 = vector.load %arg6[%c0_334, %c11, %c0_335, %c0_336] : memref<2x16x32x1xf32, #tpu.memory_space<vmem>>, vector<1x1x32x1xf32>
    %1435 = vector.shape_cast %1434 : vector<1x1x32x1xf32> to vector<32x1xf32>
    %c1_337 = arith.constant 1 : index
    %c11_338 = arith.constant 11 : index
    %c0_339 = arith.constant 0 : index
    %c0_340 = arith.constant 0 : index
    %1436 = vector.load %arg6[%c1_337, %c11_338, %c0_339, %c0_340] : memref<2x16x32x1xf32, #tpu.memory_space<vmem>>, vector<1x1x32x1xf32>
    %1437 = vector.shape_cast %1436 : vector<1x1x32x1xf32> to vector<32x1xf32>
    %1438 = arith.truncf %1430 : vector<16x256xf32> to vector<16x256xbf16>
    %cst_341 = arith.constant dense<0.000000e+00> : vector<32x256xf32>
    %1439 = tpu.matmul %1433, %1438, %cst_341 {dimension_numbers = #tpu.dot_dimension_numbers<[1], [0], [0], [1], [0, 0, 1, 1], [], []>} : vector<32x16xbf16>, vector<16x256xbf16>, vector<32x256xf32> -> vector<32x256xf32>
    %1440 = vector.extract_strided_slice %1439 {offsets = [0, 0], sizes = [32, 128], strides = [1, 1]} : vector<32x256xf32> to vector<32x128xf32>
    %cst_342 = arith.constant dense<0.000000e+00> : vector<32xf32>
    %1441 = vector.multi_reduction <add>, %1440, %cst_342 [1] : vector<32x128xf32> to vector<32xf32>
    %1442 = vector.shape_cast %1441 : vector<32xf32> to vector<32x1xf32>
    %cst_343 = arith.constant 1.280000e+02 : f32
    %1443 = vector.broadcast %cst_343 : f32 to vector<32x1xf32>
    %1444 = arith.divf %1442, %1443 : vector<32x1xf32>
    %1445 = vector.broadcast %1444 : vector<32x1xf32> to vector<32x128xf32>
    %1446 = arith.subf %1440, %1445 : vector<32x128xf32>
    %1447 = arith.mulf %1446, %1446 : vector<32x128xf32>
    %cst_344 = arith.constant dense<0.000000e+00> : vector<32xf32>
    %1448 = vector.multi_reduction <add>, %1447, %cst_344 [1] : vector<32x128xf32> to vector<32xf32>
    %1449 = vector.shape_cast %1448 : vector<32xf32> to vector<32x1xf32>
    %cst_345 = arith.constant 1.280000e+02 : f32
    %1450 = vector.broadcast %cst_345 : f32 to vector<32x1xf32>
    %1451 = arith.divf %1449, %1450 : vector<32x1xf32>
    %cst_346 = arith.constant 9.99999974E-6 : f32
    %1452 = vector.broadcast %cst_346 : f32 to vector<32x1xf32>
    %1453 = arith.addf %1451, %1452 : vector<32x1xf32>
    %1454 = math.rsqrt %1453 : vector<32x1xf32>
    %1455 = vector.broadcast %1454 : vector<32x1xf32> to vector<32x128xf32>
    %1456 = arith.mulf %1446, %1455 : vector<32x128xf32>
    %1457 = vector.extract_strided_slice %1439 {offsets = [0, 128], sizes = [32, 128], strides = [1, 1]} : vector<32x256xf32> to vector<32x128xf32>
    %cst_347 = arith.constant dense<0.000000e+00> : vector<32xf32>
    %1458 = vector.multi_reduction <add>, %1457, %cst_347 [1] : vector<32x128xf32> to vector<32xf32>
    %1459 = vector.shape_cast %1458 : vector<32xf32> to vector<32x1xf32>
    %cst_348 = arith.constant 1.280000e+02 : f32
    %1460 = vector.broadcast %cst_348 : f32 to vector<32x1xf32>
    %1461 = arith.divf %1459, %1460 : vector<32x1xf32>
    %1462 = vector.broadcast %1461 : vector<32x1xf32> to vector<32x128xf32>
    %1463 = arith.subf %1457, %1462 : vector<32x128xf32>
    %1464 = arith.mulf %1463, %1463 : vector<32x128xf32>
    %cst_349 = arith.constant dense<0.000000e+00> : vector<32xf32>
    %1465 = vector.multi_reduction <add>, %1464, %cst_349 [1] : vector<32x128xf32> to vector<32xf32>
    %1466 = vector.shape_cast %1465 : vector<32xf32> to vector<32x1xf32>
    %cst_350 = arith.constant 1.280000e+02 : f32
    %1467 = vector.broadcast %cst_350 : f32 to vector<32x1xf32>
    %1468 = arith.divf %1466, %1467 : vector<32x1xf32>
    %cst_351 = arith.constant 9.99999974E-6 : f32
    %1469 = vector.broadcast %cst_351 : f32 to vector<32x1xf32>
    %1470 = arith.addf %1468, %1469 : vector<32x1xf32>
    %1471 = math.rsqrt %1470 : vector<32x1xf32>
    %1472 = vector.broadcast %1471 : vector<32x1xf32> to vector<32x128xf32>
    %1473 = arith.mulf %1463, %1472 : vector<32x128xf32>
    %1474 = tpu.concatenate %1456, %1473 in 1 : vector<32x128xf32>, vector<32x128xf32> -> vector<32x256xf32>
    %1475 = vector.broadcast %1435 : vector<32x1xf32> to vector<32x256xf32>
    %1476 = arith.mulf %1474, %1475 : vector<32x256xf32>
    %1477 = vector.broadcast %1437 : vector<32x1xf32> to vector<32x256xf32>
    %1478 = arith.addf %1476, %1477 : vector<32x256xf32>
    %1479 = vector.extract_strided_slice %1478 {offsets = [0, 0], sizes = [16, 256], strides = [1, 1]} : vector<32x256xf32> to vector<16x256xf32>
    %1480 = vector.extract_strided_slice %1478 {offsets = [16, 0], sizes = [16, 256], strides = [1, 1]} : vector<32x256xf32> to vector<16x256xf32>
    %1481 = arith.negf %1480 : vector<16x256xf32>
    %1482 = math.exp %1481 : vector<16x256xf32>
    %cst_352 = arith.constant 1.000000e+00 : f32
    %1483 = vector.broadcast %cst_352 : f32 to vector<16x256xf32>
    %1484 = arith.addf %1483, %1482 : vector<16x256xf32>
    %1485 = arith.divf %1483, %1484 : vector<16x256xf32>
    %1486 = arith.mulf %1479, %1485 : vector<16x256xf32>
    %1487 = arith.addf %1430, %1486 : vector<16x256xf32>
    %cst_353 = arith.constant 0.707106769 : f32
    %1488 = vector.broadcast %cst_353 : f32 to vector<16x256xf32>
    %1489 = arith.mulf %1487, %1488 : vector<16x256xf32>
    %1490 = vector.extract_strided_slice %1489 {offsets = [0, 0], sizes = [8, 256], strides = [1, 1]} : vector<16x256xf32> to vector<8x256xf32>
    %cst_354 = arith.constant 0.000000e+00 : f32
    %1491 = vector.broadcast %cst_354 : f32 to vector<8x256xf32>
    %1492 = arith.maximumf %1490, %1491 : vector<8x256xf32>
    %1493 = arith.addf %1031, %1492 : vector<8x256xf32>
    %1494 = vector.extract_strided_slice %1489 {offsets = [8, 0], sizes = [8, 256], strides = [1, 1]} : vector<16x256xf32> to vector<8x256xf32>
    %c2_355 = arith.constant 2 : index
    %c0_356 = arith.constant 0 : index
    %c0_357 = arith.constant 0 : index
    %1495 = vector.load %arg7[%c2_355, %c0_356, %c0_357] : memref<3x16x8xf32, #tpu.memory_space<vmem>>, vector<1x16x8xf32>
    %1496 = vector.shape_cast %1495 : vector<1x16x8xf32> to vector<16x8xf32>
    %1497 = arith.truncf %1496 : vector<16x8xf32> to vector<16x8xbf16>
    %1498 = arith.truncf %1494 : vector<8x256xf32> to vector<8x256xbf16>
    %cst_358 = arith.constant dense<0.000000e+00> : vector<16x256xf32>
    %1499 = tpu.matmul %1497, %1498, %cst_358 {dimension_numbers = #tpu.dot_dimension_numbers<[1], [0], [0], [1], [0, 0, 1, 1], [], []>} : vector<16x8xbf16>, vector<8x256xbf16>, vector<16x256xf32> -> vector<16x256xf32>
    %c0_359 = arith.constant 0 : index
    %c2_360 = arith.constant 2 : index
    %c0_361 = arith.constant 0 : index
    %c0_362 = arith.constant 0 : index
    %1500 = vector.load %arg8[%c0_359, %c2_360, %c0_361, %c0_362] : memref<2x3x16x1xf32, #tpu.memory_space<vmem>>, vector<1x1x16x1xf32>
    %1501 = vector.shape_cast %1500 : vector<1x1x16x1xf32> to vector<16x1xf32>
    %c1_363 = arith.constant 1 : index
    %c2_364 = arith.constant 2 : index
    %c0_365 = arith.constant 0 : index
    %c0_366 = arith.constant 0 : index
    %1502 = vector.load %arg8[%c1_363, %c2_364, %c0_365, %c0_366] : memref<2x3x16x1xf32, #tpu.memory_space<vmem>>, vector<1x1x16x1xf32>
    %1503 = vector.shape_cast %1502 : vector<1x1x16x1xf32> to vector<16x1xf32>
    %1504 = vector.extract_strided_slice %1499 {offsets = [0, 0], sizes = [16, 128], strides = [1, 1]} : vector<16x256xf32> to vector<16x128xf32>
    %cst_367 = arith.constant dense<0.000000e+00> : vector<16xf32>
    %1505 = vector.multi_reduction <add>, %1504, %cst_367 [1] : vector<16x128xf32> to vector<16xf32>
    %1506 = vector.shape_cast %1505 : vector<16xf32> to vector<16x1xf32>
    %cst_368 = arith.constant 1.280000e+02 : f32
    %1507 = vector.broadcast %cst_368 : f32 to vector<16x1xf32>
    %1508 = arith.divf %1506, %1507 : vector<16x1xf32>
    %1509 = vector.broadcast %1508 : vector<16x1xf32> to vector<16x128xf32>
    %1510 = arith.subf %1504, %1509 : vector<16x128xf32>
    %1511 = arith.mulf %1510, %1510 : vector<16x128xf32>
    %cst_369 = arith.constant dense<0.000000e+00> : vector<16xf32>
    %1512 = vector.multi_reduction <add>, %1511, %cst_369 [1] : vector<16x128xf32> to vector<16xf32>
    %1513 = vector.shape_cast %1512 : vector<16xf32> to vector<16x1xf32>
    %cst_370 = arith.constant 1.280000e+02 : f32
    %1514 = vector.broadcast %cst_370 : f32 to vector<16x1xf32>
    %1515 = arith.divf %1513, %1514 : vector<16x1xf32>
    %cst_371 = arith.constant 9.99999974E-6 : f32
    %1516 = vector.broadcast %cst_371 : f32 to vector<16x1xf32>
    %1517 = arith.addf %1515, %1516 : vector<16x1xf32>
    %1518 = math.rsqrt %1517 : vector<16x1xf32>
    %1519 = vector.broadcast %1518 : vector<16x1xf32> to vector<16x128xf32>
    %1520 = arith.mulf %1510, %1519 : vector<16x128xf32>
    %1521 = vector.extract_strided_slice %1499 {offsets = [0, 128], sizes = [16, 128], strides = [1, 1]} : vector<16x256xf32> to vector<16x128xf32>
    %cst_372 = arith.constant dense<0.000000e+00> : vector<16xf32>
    %1522 = vector.multi_reduction <add>, %1521, %cst_372 [1] : vector<16x128xf32> to vector<16xf32>
    %1523 = vector.shape_cast %1522 : vector<16xf32> to vector<16x1xf32>
    %cst_373 = arith.constant 1.280000e+02 : f32
    %1524 = vector.broadcast %cst_373 : f32 to vector<16x1xf32>
    %1525 = arith.divf %1523, %1524 : vector<16x1xf32>
    %1526 = vector.broadcast %1525 : vector<16x1xf32> to vector<16x128xf32>
    %1527 = arith.subf %1521, %1526 : vector<16x128xf32>
    %1528 = arith.mulf %1527, %1527 : vector<16x128xf32>
    %cst_374 = arith.constant dense<0.000000e+00> : vector<16xf32>
    %1529 = vector.multi_reduction <add>, %1528, %cst_374 [1] : vector<16x128xf32> to vector<16xf32>
    %1530 = vector.shape_cast %1529 : vector<16xf32> to vector<16x1xf32>
    %cst_375 = arith.constant 1.280000e+02 : f32
    %1531 = vector.broadcast %cst_375 : f32 to vector<16x1xf32>
    %1532 = arith.divf %1530, %1531 : vector<16x1xf32>
    %cst_376 = arith.constant 9.99999974E-6 : f32
    %1533 = vector.broadcast %cst_376 : f32 to vector<16x1xf32>
    %1534 = arith.addf %1532, %1533 : vector<16x1xf32>
    %1535 = math.rsqrt %1534 : vector<16x1xf32>
    %1536 = vector.broadcast %1535 : vector<16x1xf32> to vector<16x128xf32>
    %1537 = arith.mulf %1527, %1536 : vector<16x128xf32>
    %1538 = tpu.concatenate %1520, %1537 in 1 : vector<16x128xf32>, vector<16x128xf32> -> vector<16x256xf32>
    %1539 = vector.broadcast %1501 : vector<16x1xf32> to vector<16x256xf32>
    %1540 = arith.mulf %1538, %1539 : vector<16x256xf32>
    %1541 = vector.broadcast %1503 : vector<16x1xf32> to vector<16x256xf32>
    %1542 = arith.addf %1540, %1541 : vector<16x256xf32>
    %1543 = arith.mulf %1542, %1261 : vector<16x256xf32>
    %cst_377 = arith.constant 0.000000e+00 : f32
    %1544 = vector.broadcast %cst_377 : f32 to vector<16x256xf32>
    %cst_378 = arith.constant 0.000000e+00 : f32
    %1545 = vector.broadcast %cst_378 : f32 to vector<16x256xf32>
    %1546 = vector.extract_strided_slice %1543 {offsets = [0, 0], sizes = [1, 256], strides = [1, 1]} : vector<16x256xf32> to vector<1x256xf32>
    %1547 = vector.broadcast %1546 : vector<1x256xf32> to vector<16x256xf32>
    %1548 = arith.cmpf oge, %1547, %1543 : vector<16x256xf32>
    %1549 = arith.extui %1548 : vector<16x256xi1> to vector<16x256xi32>
    %1550 = arith.sitofp %1549 : vector<16x256xi32> to vector<16x256xf32>
    %1551 = arith.addf %1544, %1550 : vector<16x256xf32>
    %1552 = vector.broadcast %1546 : vector<1x256xf32> to vector<16x256xf32>
    %1553 = arith.mulf %1550, %1552 : vector<16x256xf32>
    %1554 = arith.addf %1545, %1553 : vector<16x256xf32>
    %1555 = vector.extract_strided_slice %1543 {offsets = [1, 0], sizes = [1, 256], strides = [1, 1]} : vector<16x256xf32> to vector<1x256xf32>
    %1556 = vector.broadcast %1555 : vector<1x256xf32> to vector<16x256xf32>
    %1557 = arith.cmpf oge, %1556, %1543 : vector<16x256xf32>
    %1558 = arith.extui %1557 : vector<16x256xi1> to vector<16x256xi32>
    %1559 = arith.sitofp %1558 : vector<16x256xi32> to vector<16x256xf32>
    %1560 = arith.addf %1551, %1559 : vector<16x256xf32>
    %1561 = vector.broadcast %1555 : vector<1x256xf32> to vector<16x256xf32>
    %1562 = arith.mulf %1559, %1561 : vector<16x256xf32>
    %1563 = arith.addf %1554, %1562 : vector<16x256xf32>
    %1564 = vector.extract_strided_slice %1543 {offsets = [2, 0], sizes = [1, 256], strides = [1, 1]} : vector<16x256xf32> to vector<1x256xf32>
    %1565 = vector.broadcast %1564 : vector<1x256xf32> to vector<16x256xf32>
    %1566 = arith.cmpf oge, %1565, %1543 : vector<16x256xf32>
    %1567 = arith.extui %1566 : vector<16x256xi1> to vector<16x256xi32>
    %1568 = arith.sitofp %1567 : vector<16x256xi32> to vector<16x256xf32>
    %1569 = arith.addf %1560, %1568 : vector<16x256xf32>
    %1570 = vector.broadcast %1564 : vector<1x256xf32> to vector<16x256xf32>
    %1571 = arith.mulf %1568, %1570 : vector<16x256xf32>
    %1572 = arith.addf %1563, %1571 : vector<16x256xf32>
    %1573 = vector.extract_strided_slice %1543 {offsets = [3, 0], sizes = [1, 256], strides = [1, 1]} : vector<16x256xf32> to vector<1x256xf32>
    %1574 = vector.broadcast %1573 : vector<1x256xf32> to vector<16x256xf32>
    %1575 = arith.cmpf oge, %1574, %1543 : vector<16x256xf32>
    %1576 = arith.extui %1575 : vector<16x256xi1> to vector<16x256xi32>
    %1577 = arith.sitofp %1576 : vector<16x256xi32> to vector<16x256xf32>
    %1578 = arith.addf %1569, %1577 : vector<16x256xf32>
    %1579 = vector.broadcast %1573 : vector<1x256xf32> to vector<16x256xf32>
    %1580 = arith.mulf %1577, %1579 : vector<16x256xf32>
    %1581 = arith.addf %1572, %1580 : vector<16x256xf32>
    %1582 = vector.extract_strided_slice %1543 {offsets = [4, 0], sizes = [1, 256], strides = [1, 1]} : vector<16x256xf32> to vector<1x256xf32>
    %1583 = vector.broadcast %1582 : vector<1x256xf32> to vector<16x256xf32>
    %1584 = arith.cmpf oge, %1583, %1543 : vector<16x256xf32>
    %1585 = arith.extui %1584 : vector<16x256xi1> to vector<16x256xi32>
    %1586 = arith.sitofp %1585 : vector<16x256xi32> to vector<16x256xf32>
    %1587 = arith.addf %1578, %1586 : vector<16x256xf32>
    %1588 = vector.broadcast %1582 : vector<1x256xf32> to vector<16x256xf32>
    %1589 = arith.mulf %1586, %1588 : vector<16x256xf32>
    %1590 = arith.addf %1581, %1589 : vector<16x256xf32>
    %1591 = vector.extract_strided_slice %1543 {offsets = [5, 0], sizes = [1, 256], strides = [1, 1]} : vector<16x256xf32> to vector<1x256xf32>
    %1592 = vector.broadcast %1591 : vector<1x256xf32> to vector<16x256xf32>
    %1593 = arith.cmpf oge, %1592, %1543 : vector<16x256xf32>
    %1594 = arith.extui %1593 : vector<16x256xi1> to vector<16x256xi32>
    %1595 = arith.sitofp %1594 : vector<16x256xi32> to vector<16x256xf32>
    %1596 = arith.addf %1587, %1595 : vector<16x256xf32>
    %1597 = vector.broadcast %1591 : vector<1x256xf32> to vector<16x256xf32>
    %1598 = arith.mulf %1595, %1597 : vector<16x256xf32>
    %1599 = arith.addf %1590, %1598 : vector<16x256xf32>
    %1600 = vector.extract_strided_slice %1543 {offsets = [6, 0], sizes = [1, 256], strides = [1, 1]} : vector<16x256xf32> to vector<1x256xf32>
    %1601 = vector.broadcast %1600 : vector<1x256xf32> to vector<16x256xf32>
    %1602 = arith.cmpf oge, %1601, %1543 : vector<16x256xf32>
    %1603 = arith.extui %1602 : vector<16x256xi1> to vector<16x256xi32>
    %1604 = arith.sitofp %1603 : vector<16x256xi32> to vector<16x256xf32>
    %1605 = arith.addf %1596, %1604 : vector<16x256xf32>
    %1606 = vector.broadcast %1600 : vector<1x256xf32> to vector<16x256xf32>
    %1607 = arith.mulf %1604, %1606 : vector<16x256xf32>
    %1608 = arith.addf %1599, %1607 : vector<16x256xf32>
    %1609 = vector.extract_strided_slice %1543 {offsets = [7, 0], sizes = [1, 256], strides = [1, 1]} : vector<16x256xf32> to vector<1x256xf32>
    %1610 = vector.broadcast %1609 : vector<1x256xf32> to vector<16x256xf32>
    %1611 = arith.cmpf oge, %1610, %1543 : vector<16x256xf32>
    %1612 = arith.extui %1611 : vector<16x256xi1> to vector<16x256xi32>
    %1613 = arith.sitofp %1612 : vector<16x256xi32> to vector<16x256xf32>
    %1614 = arith.addf %1605, %1613 : vector<16x256xf32>
    %1615 = vector.broadcast %1609 : vector<1x256xf32> to vector<16x256xf32>
    %1616 = arith.mulf %1613, %1615 : vector<16x256xf32>
    %1617 = arith.addf %1608, %1616 : vector<16x256xf32>
    %1618 = vector.extract_strided_slice %1543 {offsets = [8, 0], sizes = [1, 256], strides = [1, 1]} : vector<16x256xf32> to vector<1x256xf32>
    %1619 = vector.broadcast %1618 : vector<1x256xf32> to vector<16x256xf32>
    %1620 = arith.cmpf oge, %1619, %1543 : vector<16x256xf32>
    %1621 = arith.extui %1620 : vector<16x256xi1> to vector<16x256xi32>
    %1622 = arith.sitofp %1621 : vector<16x256xi32> to vector<16x256xf32>
    %1623 = arith.addf %1614, %1622 : vector<16x256xf32>
    %1624 = vector.broadcast %1618 : vector<1x256xf32> to vector<16x256xf32>
    %1625 = arith.mulf %1622, %1624 : vector<16x256xf32>
    %1626 = arith.addf %1617, %1625 : vector<16x256xf32>
    %1627 = vector.extract_strided_slice %1543 {offsets = [9, 0], sizes = [1, 256], strides = [1, 1]} : vector<16x256xf32> to vector<1x256xf32>
    %1628 = vector.broadcast %1627 : vector<1x256xf32> to vector<16x256xf32>
    %1629 = arith.cmpf oge, %1628, %1543 : vector<16x256xf32>
    %1630 = arith.extui %1629 : vector<16x256xi1> to vector<16x256xi32>
    %1631 = arith.sitofp %1630 : vector<16x256xi32> to vector<16x256xf32>
    %1632 = arith.addf %1623, %1631 : vector<16x256xf32>
    %1633 = vector.broadcast %1627 : vector<1x256xf32> to vector<16x256xf32>
    %1634 = arith.mulf %1631, %1633 : vector<16x256xf32>
    %1635 = arith.addf %1626, %1634 : vector<16x256xf32>
    %1636 = vector.extract_strided_slice %1543 {offsets = [10, 0], sizes = [1, 256], strides = [1, 1]} : vector<16x256xf32> to vector<1x256xf32>
    %1637 = vector.broadcast %1636 : vector<1x256xf32> to vector<16x256xf32>
    %1638 = arith.cmpf oge, %1637, %1543 : vector<16x256xf32>
    %1639 = arith.extui %1638 : vector<16x256xi1> to vector<16x256xi32>
    %1640 = arith.sitofp %1639 : vector<16x256xi32> to vector<16x256xf32>
    %1641 = arith.addf %1632, %1640 : vector<16x256xf32>
    %1642 = vector.broadcast %1636 : vector<1x256xf32> to vector<16x256xf32>
    %1643 = arith.mulf %1640, %1642 : vector<16x256xf32>
    %1644 = arith.addf %1635, %1643 : vector<16x256xf32>
    %1645 = vector.extract_strided_slice %1543 {offsets = [11, 0], sizes = [1, 256], strides = [1, 1]} : vector<16x256xf32> to vector<1x256xf32>
    %1646 = vector.broadcast %1645 : vector<1x256xf32> to vector<16x256xf32>
    %1647 = arith.cmpf oge, %1646, %1543 : vector<16x256xf32>
    %1648 = arith.extui %1647 : vector<16x256xi1> to vector<16x256xi32>
    %1649 = arith.sitofp %1648 : vector<16x256xi32> to vector<16x256xf32>
    %1650 = arith.addf %1641, %1649 : vector<16x256xf32>
    %1651 = vector.broadcast %1645 : vector<1x256xf32> to vector<16x256xf32>
    %1652 = arith.mulf %1649, %1651 : vector<16x256xf32>
    %1653 = arith.addf %1644, %1652 : vector<16x256xf32>
    %1654 = vector.extract_strided_slice %1543 {offsets = [12, 0], sizes = [1, 256], strides = [1, 1]} : vector<16x256xf32> to vector<1x256xf32>
    %1655 = vector.broadcast %1654 : vector<1x256xf32> to vector<16x256xf32>
    %1656 = arith.cmpf oge, %1655, %1543 : vector<16x256xf32>
    %1657 = arith.extui %1656 : vector<16x256xi1> to vector<16x256xi32>
    %1658 = arith.sitofp %1657 : vector<16x256xi32> to vector<16x256xf32>
    %1659 = arith.addf %1650, %1658 : vector<16x256xf32>
    %1660 = vector.broadcast %1654 : vector<1x256xf32> to vector<16x256xf32>
    %1661 = arith.mulf %1658, %1660 : vector<16x256xf32>
    %1662 = arith.addf %1653, %1661 : vector<16x256xf32>
    %1663 = vector.extract_strided_slice %1543 {offsets = [13, 0], sizes = [1, 256], strides = [1, 1]} : vector<16x256xf32> to vector<1x256xf32>
    %1664 = vector.broadcast %1663 : vector<1x256xf32> to vector<16x256xf32>
    %1665 = arith.cmpf oge, %1664, %1543 : vector<16x256xf32>
    %1666 = arith.extui %1665 : vector<16x256xi1> to vector<16x256xi32>
    %1667 = arith.sitofp %1666 : vector<16x256xi32> to vector<16x256xf32>
    %1668 = arith.addf %1659, %1667 : vector<16x256xf32>
    %1669 = vector.broadcast %1663 : vector<1x256xf32> to vector<16x256xf32>
    %1670 = arith.mulf %1667, %1669 : vector<16x256xf32>
    %1671 = arith.addf %1662, %1670 : vector<16x256xf32>
    %1672 = vector.extract_strided_slice %1543 {offsets = [14, 0], sizes = [1, 256], strides = [1, 1]} : vector<16x256xf32> to vector<1x256xf32>
    %1673 = vector.broadcast %1672 : vector<1x256xf32> to vector<16x256xf32>
    %1674 = arith.cmpf oge, %1673, %1543 : vector<16x256xf32>
    %1675 = arith.extui %1674 : vector<16x256xi1> to vector<16x256xi32>
    %1676 = arith.sitofp %1675 : vector<16x256xi32> to vector<16x256xf32>
    %1677 = arith.addf %1668, %1676 : vector<16x256xf32>
    %1678 = vector.broadcast %1672 : vector<1x256xf32> to vector<16x256xf32>
    %1679 = arith.mulf %1676, %1678 : vector<16x256xf32>
    %1680 = arith.addf %1671, %1679 : vector<16x256xf32>
    %1681 = vector.extract_strided_slice %1543 {offsets = [15, 0], sizes = [1, 256], strides = [1, 1]} : vector<16x256xf32> to vector<1x256xf32>
    %1682 = vector.broadcast %1681 : vector<1x256xf32> to vector<16x256xf32>
    %1683 = arith.cmpf oge, %1682, %1543 : vector<16x256xf32>
    %1684 = arith.extui %1683 : vector<16x256xi1> to vector<16x256xi32>
    %1685 = arith.sitofp %1684 : vector<16x256xi32> to vector<16x256xf32>
    %1686 = arith.addf %1677, %1685 : vector<16x256xf32>
    %1687 = vector.broadcast %1681 : vector<1x256xf32> to vector<16x256xf32>
    %1688 = arith.mulf %1685, %1687 : vector<16x256xf32>
    %1689 = arith.addf %1680, %1688 : vector<16x256xf32>
    %1690 = arith.mulf %1686, %1543 : vector<16x256xf32>
    %cst_379 = arith.constant 1.000000e+00 : f32
    %1691 = vector.broadcast %cst_379 : f32 to vector<16x256xf32>
    %1692 = arith.addf %1691, %1690 : vector<16x256xf32>
    %1693 = arith.subf %1692, %1689 : vector<16x256xf32>
    %cst_380 = arith.constant 0.000000e+00 : f32
    %1694 = vector.broadcast %cst_380 : f32 to vector<16x256xf32>
    %1695 = arith.cmpf ogt, %1693, %1694 : vector<16x256xf32>
    %1696 = arith.extui %1695 : vector<16x256xi1> to vector<16x256xi32>
    %1697 = arith.sitofp %1696 : vector<16x256xi32> to vector<16x256xf32>
    %cst_381 = arith.constant dense<0.000000e+00> : vector<256xf32>
    %1698 = vector.multi_reduction <add>, %1697, %cst_381 [0] : vector<16x256xf32> to vector<256xf32>
    %1699 = vector.shape_cast %1698 : vector<256xf32> to vector<1x256xf32>
    %1700 = arith.mulf %1543, %1697 : vector<16x256xf32>
    %cst_382 = arith.constant dense<0.000000e+00> : vector<256xf32>
    %1701 = vector.multi_reduction <add>, %1700, %cst_382 [0] : vector<16x256xf32> to vector<256xf32>
    %1702 = vector.shape_cast %1701 : vector<256xf32> to vector<1x256xf32>
    %cst_383 = arith.constant 1.000000e+00 : f32
    %1703 = vector.broadcast %cst_383 : f32 to vector<1x256xf32>
    %1704 = arith.subf %1702, %1703 : vector<1x256xf32>
    %1705 = arith.divf %1704, %1699 : vector<1x256xf32>
    %1706 = vector.broadcast %1705 : vector<1x256xf32> to vector<16x256xf32>
    %1707 = arith.subf %1543, %1706 : vector<16x256xf32>
    %cst_384 = arith.constant 0.000000e+00 : f32
    %1708 = vector.broadcast %cst_384 : f32 to vector<16x256xf32>
    %1709 = arith.maximumf %1707, %1708 : vector<16x256xf32>
    %cst_385 = arith.constant 1.000000e-15 : f32
    %1710 = vector.broadcast %cst_385 : f32 to vector<16x256xf32>
    %1711 = arith.addf %1709, %1710 : vector<16x256xf32>
    %1712 = math.log %1711 : vector<16x256xf32>
    %1713 = arith.mulf %1709, %1712 : vector<16x256xf32>
    %cst_386 = arith.constant dense<0.000000e+00> : vector<256xf32>
    %1714 = vector.multi_reduction <add>, %1713, %cst_386 [0] : vector<16x256xf32> to vector<256xf32>
    %1715 = vector.shape_cast %1714 : vector<256xf32> to vector<1x256xf32>
    %cst_387 = arith.constant dense<0.000000e+00> : vector<1xf32>
    %1716 = vector.multi_reduction <add>, %1715, %cst_387 [1] : vector<1x256xf32> to vector<1xf32>
    %1717 = vector.shape_cast %1716 : vector<1xf32> to vector<1x1xf32>
    %1718 = vector.extract %1717[0, 0] : f32 from vector<1x1xf32>
    %cst_388 = arith.constant 2.560000e+02 : f32
    %1719 = arith.divf %1718, %cst_388 : f32
    %1720 = arith.addf %1258, %1719 : f32
    %1721 = arith.mulf %1709, %340 : vector<16x256xf32>
    %c0_389 = arith.constant 0 : index
    %c12 = arith.constant 12 : index
    %c0_390 = arith.constant 0 : index
    %c0_391 = arith.constant 0 : index
    %1722 = vector.load %arg6[%c0_389, %c12, %c0_390, %c0_391] : memref<2x16x32x1xf32, #tpu.memory_space<vmem>>, vector<1x1x32x1xf32>
    %1723 = vector.shape_cast %1722 : vector<1x1x32x1xf32> to vector<32x1xf32>
    %c1_392 = arith.constant 1 : index
    %c12_393 = arith.constant 12 : index
    %c0_394 = arith.constant 0 : index
    %c0_395 = arith.constant 0 : index
    %1724 = vector.load %arg6[%c1_392, %c12_393, %c0_394, %c0_395] : memref<2x16x32x1xf32, #tpu.memory_space<vmem>>, vector<1x1x32x1xf32>
    %1725 = vector.shape_cast %1724 : vector<1x1x32x1xf32> to vector<32x1xf32>
    %1726 = arith.truncf %1721 : vector<16x256xf32> to vector<16x256xbf16>
    %cst_396 = arith.constant dense<0.000000e+00> : vector<32x256xf32>
    %1727 = tpu.matmul %2, %1726, %cst_396 {dimension_numbers = #tpu.dot_dimension_numbers<[1], [0], [0], [1], [0, 0, 1, 1], [], []>} : vector<32x16xbf16>, vector<16x256xbf16>, vector<32x256xf32> -> vector<32x256xf32>
    %1728 = vector.extract_strided_slice %1727 {offsets = [0, 0], sizes = [32, 128], strides = [1, 1]} : vector<32x256xf32> to vector<32x128xf32>
    %cst_397 = arith.constant dense<0.000000e+00> : vector<32xf32>
    %1729 = vector.multi_reduction <add>, %1728, %cst_397 [1] : vector<32x128xf32> to vector<32xf32>
    %1730 = vector.shape_cast %1729 : vector<32xf32> to vector<32x1xf32>
    %cst_398 = arith.constant 1.280000e+02 : f32
    %1731 = vector.broadcast %cst_398 : f32 to vector<32x1xf32>
    %1732 = arith.divf %1730, %1731 : vector<32x1xf32>
    %1733 = vector.broadcast %1732 : vector<32x1xf32> to vector<32x128xf32>
    %1734 = arith.subf %1728, %1733 : vector<32x128xf32>
    %1735 = arith.mulf %1734, %1734 : vector<32x128xf32>
    %cst_399 = arith.constant dense<0.000000e+00> : vector<32xf32>
    %1736 = vector.multi_reduction <add>, %1735, %cst_399 [1] : vector<32x128xf32> to vector<32xf32>
    %1737 = vector.shape_cast %1736 : vector<32xf32> to vector<32x1xf32>
    %cst_400 = arith.constant 1.280000e+02 : f32
    %1738 = vector.broadcast %cst_400 : f32 to vector<32x1xf32>
    %1739 = arith.divf %1737, %1738 : vector<32x1xf32>
    %cst_401 = arith.constant 9.99999974E-6 : f32
    %1740 = vector.broadcast %cst_401 : f32 to vector<32x1xf32>
    %1741 = arith.addf %1739, %1740 : vector<32x1xf32>
    %1742 = math.rsqrt %1741 : vector<32x1xf32>
    %1743 = vector.broadcast %1742 : vector<32x1xf32> to vector<32x128xf32>
    %1744 = arith.mulf %1734, %1743 : vector<32x128xf32>
    %1745 = vector.extract_strided_slice %1727 {offsets = [0, 128], sizes = [32, 128], strides = [1, 1]} : vector<32x256xf32> to vector<32x128xf32>
    %cst_402 = arith.constant dense<0.000000e+00> : vector<32xf32>
    %1746 = vector.multi_reduction <add>, %1745, %cst_402 [1] : vector<32x128xf32> to vector<32xf32>
    %1747 = vector.shape_cast %1746 : vector<32xf32> to vector<32x1xf32>
    %cst_403 = arith.constant 1.280000e+02 : f32
    %1748 = vector.broadcast %cst_403 : f32 to vector<32x1xf32>
    %1749 = arith.divf %1747, %1748 : vector<32x1xf32>
    %1750 = vector.broadcast %1749 : vector<32x1xf32> to vector<32x128xf32>
    %1751 = arith.subf %1745, %1750 : vector<32x128xf32>
    %1752 = arith.mulf %1751, %1751 : vector<32x128xf32>
    %cst_404 = arith.constant dense<0.000000e+00> : vector<32xf32>
    %1753 = vector.multi_reduction <add>, %1752, %cst_404 [1] : vector<32x128xf32> to vector<32xf32>
    %1754 = vector.shape_cast %1753 : vector<32xf32> to vector<32x1xf32>
    %cst_405 = arith.constant 1.280000e+02 : f32
    %1755 = vector.broadcast %cst_405 : f32 to vector<32x1xf32>
    %1756 = arith.divf %1754, %1755 : vector<32x1xf32>
    %cst_406 = arith.constant 9.99999974E-6 : f32
    %1757 = vector.broadcast %cst_406 : f32 to vector<32x1xf32>
    %1758 = arith.addf %1756, %1757 : vector<32x1xf32>
    %1759 = math.rsqrt %1758 : vector<32x1xf32>
    %1760 = vector.broadcast %1759 : vector<32x1xf32> to vector<32x128xf32>
    %1761 = arith.mulf %1751, %1760 : vector<32x128xf32>
    %1762 = tpu.concatenate %1744, %1761 in 1 : vector<32x128xf32>, vector<32x128xf32> -> vector<32x256xf32>
    %1763 = vector.broadcast %1723 : vector<32x1xf32> to vector<32x256xf32>
    %1764 = arith.mulf %1762, %1763 : vector<32x256xf32>
    %1765 = vector.broadcast %1725 : vector<32x1xf32> to vector<32x256xf32>
    %1766 = arith.addf %1764, %1765 : vector<32x256xf32>
    %1767 = vector.extract_strided_slice %1766 {offsets = [0, 0], sizes = [16, 256], strides = [1, 1]} : vector<32x256xf32> to vector<16x256xf32>
    %1768 = vector.extract_strided_slice %1766 {offsets = [16, 0], sizes = [16, 256], strides = [1, 1]} : vector<32x256xf32> to vector<16x256xf32>
    %1769 = arith.negf %1768 : vector<16x256xf32>
    %1770 = math.exp %1769 : vector<16x256xf32>
    %cst_407 = arith.constant 1.000000e+00 : f32
    %1771 = vector.broadcast %cst_407 : f32 to vector<16x256xf32>
    %1772 = arith.addf %1771, %1770 : vector<16x256xf32>
    %1773 = arith.divf %1771, %1772 : vector<16x256xf32>
    %1774 = arith.mulf %1767, %1773 : vector<16x256xf32>
    %c0_408 = arith.constant 0 : index
    %c13 = arith.constant 13 : index
    %c0_409 = arith.constant 0 : index
    %c0_410 = arith.constant 0 : index
    %1775 = vector.load %arg6[%c0_408, %c13, %c0_409, %c0_410] : memref<2x16x32x1xf32, #tpu.memory_space<vmem>>, vector<1x1x32x1xf32>
    %1776 = vector.shape_cast %1775 : vector<1x1x32x1xf32> to vector<32x1xf32>
    %c1_411 = arith.constant 1 : index
    %c13_412 = arith.constant 13 : index
    %c0_413 = arith.constant 0 : index
    %c0_414 = arith.constant 0 : index
    %1777 = vector.load %arg6[%c1_411, %c13_412, %c0_413, %c0_414] : memref<2x16x32x1xf32, #tpu.memory_space<vmem>>, vector<1x1x32x1xf32>
    %1778 = vector.shape_cast %1777 : vector<1x1x32x1xf32> to vector<32x1xf32>
    %1779 = arith.truncf %1774 : vector<16x256xf32> to vector<16x256xbf16>
    %cst_415 = arith.constant dense<0.000000e+00> : vector<32x256xf32>
    %1780 = tpu.matmul %4, %1779, %cst_415 {dimension_numbers = #tpu.dot_dimension_numbers<[1], [0], [0], [1], [0, 0, 1, 1], [], []>} : vector<32x16xbf16>, vector<16x256xbf16>, vector<32x256xf32> -> vector<32x256xf32>
    %1781 = vector.extract_strided_slice %1780 {offsets = [0, 0], sizes = [32, 128], strides = [1, 1]} : vector<32x256xf32> to vector<32x128xf32>
    %cst_416 = arith.constant dense<0.000000e+00> : vector<32xf32>
    %1782 = vector.multi_reduction <add>, %1781, %cst_416 [1] : vector<32x128xf32> to vector<32xf32>
    %1783 = vector.shape_cast %1782 : vector<32xf32> to vector<32x1xf32>
    %cst_417 = arith.constant 1.280000e+02 : f32
    %1784 = vector.broadcast %cst_417 : f32 to vector<32x1xf32>
    %1785 = arith.divf %1783, %1784 : vector<32x1xf32>
    %1786 = vector.broadcast %1785 : vector<32x1xf32> to vector<32x128xf32>
    %1787 = arith.subf %1781, %1786 : vector<32x128xf32>
    %1788 = arith.mulf %1787, %1787 : vector<32x128xf32>
    %cst_418 = arith.constant dense<0.000000e+00> : vector<32xf32>
    %1789 = vector.multi_reduction <add>, %1788, %cst_418 [1] : vector<32x128xf32> to vector<32xf32>
    %1790 = vector.shape_cast %1789 : vector<32xf32> to vector<32x1xf32>
    %cst_419 = arith.constant 1.280000e+02 : f32
    %1791 = vector.broadcast %cst_419 : f32 to vector<32x1xf32>
    %1792 = arith.divf %1790, %1791 : vector<32x1xf32>
    %cst_420 = arith.constant 9.99999974E-6 : f32
    %1793 = vector.broadcast %cst_420 : f32 to vector<32x1xf32>
    %1794 = arith.addf %1792, %1793 : vector<32x1xf32>
    %1795 = math.rsqrt %1794 : vector<32x1xf32>
    %1796 = vector.broadcast %1795 : vector<32x1xf32> to vector<32x128xf32>
    %1797 = arith.mulf %1787, %1796 : vector<32x128xf32>
    %1798 = vector.extract_strided_slice %1780 {offsets = [0, 128], sizes = [32, 128], strides = [1, 1]} : vector<32x256xf32> to vector<32x128xf32>
    %cst_421 = arith.constant dense<0.000000e+00> : vector<32xf32>
    %1799 = vector.multi_reduction <add>, %1798, %cst_421 [1] : vector<32x128xf32> to vector<32xf32>
    %1800 = vector.shape_cast %1799 : vector<32xf32> to vector<32x1xf32>
    %cst_422 = arith.constant 1.280000e+02 : f32
    %1801 = vector.broadcast %cst_422 : f32 to vector<32x1xf32>
    %1802 = arith.divf %1800, %1801 : vector<32x1xf32>
    %1803 = vector.broadcast %1802 : vector<32x1xf32> to vector<32x128xf32>
    %1804 = arith.subf %1798, %1803 : vector<32x128xf32>
    %1805 = arith.mulf %1804, %1804 : vector<32x128xf32>
    %cst_423 = arith.constant dense<0.000000e+00> : vector<32xf32>
    %1806 = vector.multi_reduction <add>, %1805, %cst_423 [1] : vector<32x128xf32> to vector<32xf32>
    %1807 = vector.shape_cast %1806 : vector<32xf32> to vector<32x1xf32>
    %cst_424 = arith.constant 1.280000e+02 : f32
    %1808 = vector.broadcast %cst_424 : f32 to vector<32x1xf32>
    %1809 = arith.divf %1807, %1808 : vector<32x1xf32>
    %cst_425 = arith.constant 9.99999974E-6 : f32
    %1810 = vector.broadcast %cst_425 : f32 to vector<32x1xf32>
    %1811 = arith.addf %1809, %1810 : vector<32x1xf32>
    %1812 = math.rsqrt %1811 : vector<32x1xf32>
    %1813 = vector.broadcast %1812 : vector<32x1xf32> to vector<32x128xf32>
    %1814 = arith.mulf %1804, %1813 : vector<32x128xf32>
    %1815 = tpu.concatenate %1797, %1814 in 1 : vector<32x128xf32>, vector<32x128xf32> -> vector<32x256xf32>
    %1816 = vector.broadcast %1776 : vector<32x1xf32> to vector<32x256xf32>
    %1817 = arith.mulf %1815, %1816 : vector<32x256xf32>
    %1818 = vector.broadcast %1778 : vector<32x1xf32> to vector<32x256xf32>
    %1819 = arith.addf %1817, %1818 : vector<32x256xf32>
    %1820 = vector.extract_strided_slice %1819 {offsets = [0, 0], sizes = [16, 256], strides = [1, 1]} : vector<32x256xf32> to vector<16x256xf32>
    %1821 = vector.extract_strided_slice %1819 {offsets = [16, 0], sizes = [16, 256], strides = [1, 1]} : vector<32x256xf32> to vector<16x256xf32>
    %1822 = arith.negf %1821 : vector<16x256xf32>
    %1823 = math.exp %1822 : vector<16x256xf32>
    %cst_426 = arith.constant 1.000000e+00 : f32
    %1824 = vector.broadcast %cst_426 : f32 to vector<16x256xf32>
    %1825 = arith.addf %1824, %1823 : vector<16x256xf32>
    %1826 = arith.divf %1824, %1825 : vector<16x256xf32>
    %1827 = arith.mulf %1820, %1826 : vector<16x256xf32>
    %1828 = arith.addf %1774, %1827 : vector<16x256xf32>
    %cst_427 = arith.constant 0.707106769 : f32
    %1829 = vector.broadcast %cst_427 : f32 to vector<16x256xf32>
    %1830 = arith.mulf %1828, %1829 : vector<16x256xf32>
    %c6_428 = arith.constant 6 : index
    %c0_429 = arith.constant 0 : index
    %c0_430 = arith.constant 0 : index
    %1831 = vector.load %arg5[%c6_428, %c0_429, %c0_430] : memref<8x32x16xf32, #tpu.memory_space<vmem>>, vector<1x32x16xf32>
    %1832 = vector.shape_cast %1831 : vector<1x32x16xf32> to vector<32x16xf32>
    %1833 = arith.truncf %1832 : vector<32x16xf32> to vector<32x16xbf16>
    %c0_431 = arith.constant 0 : index
    %c14 = arith.constant 14 : index
    %c0_432 = arith.constant 0 : index
    %c0_433 = arith.constant 0 : index
    %1834 = vector.load %arg6[%c0_431, %c14, %c0_432, %c0_433] : memref<2x16x32x1xf32, #tpu.memory_space<vmem>>, vector<1x1x32x1xf32>
    %1835 = vector.shape_cast %1834 : vector<1x1x32x1xf32> to vector<32x1xf32>
    %c1_434 = arith.constant 1 : index
    %c14_435 = arith.constant 14 : index
    %c0_436 = arith.constant 0 : index
    %c0_437 = arith.constant 0 : index
    %1836 = vector.load %arg6[%c1_434, %c14_435, %c0_436, %c0_437] : memref<2x16x32x1xf32, #tpu.memory_space<vmem>>, vector<1x1x32x1xf32>
    %1837 = vector.shape_cast %1836 : vector<1x1x32x1xf32> to vector<32x1xf32>
    %1838 = arith.truncf %1830 : vector<16x256xf32> to vector<16x256xbf16>
    %cst_438 = arith.constant dense<0.000000e+00> : vector<32x256xf32>
    %1839 = tpu.matmul %1833, %1838, %cst_438 {dimension_numbers = #tpu.dot_dimension_numbers<[1], [0], [0], [1], [0, 0, 1, 1], [], []>} : vector<32x16xbf16>, vector<16x256xbf16>, vector<32x256xf32> -> vector<32x256xf32>
    %1840 = vector.extract_strided_slice %1839 {offsets = [0, 0], sizes = [32, 128], strides = [1, 1]} : vector<32x256xf32> to vector<32x128xf32>
    %cst_439 = arith.constant dense<0.000000e+00> : vector<32xf32>
    %1841 = vector.multi_reduction <add>, %1840, %cst_439 [1] : vector<32x128xf32> to vector<32xf32>
    %1842 = vector.shape_cast %1841 : vector<32xf32> to vector<32x1xf32>
    %cst_440 = arith.constant 1.280000e+02 : f32
    %1843 = vector.broadcast %cst_440 : f32 to vector<32x1xf32>
    %1844 = arith.divf %1842, %1843 : vector<32x1xf32>
    %1845 = vector.broadcast %1844 : vector<32x1xf32> to vector<32x128xf32>
    %1846 = arith.subf %1840, %1845 : vector<32x128xf32>
    %1847 = arith.mulf %1846, %1846 : vector<32x128xf32>
    %cst_441 = arith.constant dense<0.000000e+00> : vector<32xf32>
    %1848 = vector.multi_reduction <add>, %1847, %cst_441 [1] : vector<32x128xf32> to vector<32xf32>
    %1849 = vector.shape_cast %1848 : vector<32xf32> to vector<32x1xf32>
    %cst_442 = arith.constant 1.280000e+02 : f32
    %1850 = vector.broadcast %cst_442 : f32 to vector<32x1xf32>
    %1851 = arith.divf %1849, %1850 : vector<32x1xf32>
    %cst_443 = arith.constant 9.99999974E-6 : f32
    %1852 = vector.broadcast %cst_443 : f32 to vector<32x1xf32>
    %1853 = arith.addf %1851, %1852 : vector<32x1xf32>
    %1854 = math.rsqrt %1853 : vector<32x1xf32>
    %1855 = vector.broadcast %1854 : vector<32x1xf32> to vector<32x128xf32>
    %1856 = arith.mulf %1846, %1855 : vector<32x128xf32>
    %1857 = vector.extract_strided_slice %1839 {offsets = [0, 128], sizes = [32, 128], strides = [1, 1]} : vector<32x256xf32> to vector<32x128xf32>
    %cst_444 = arith.constant dense<0.000000e+00> : vector<32xf32>
    %1858 = vector.multi_reduction <add>, %1857, %cst_444 [1] : vector<32x128xf32> to vector<32xf32>
    %1859 = vector.shape_cast %1858 : vector<32xf32> to vector<32x1xf32>
    %cst_445 = arith.constant 1.280000e+02 : f32
    %1860 = vector.broadcast %cst_445 : f32 to vector<32x1xf32>
    %1861 = arith.divf %1859, %1860 : vector<32x1xf32>
    %1862 = vector.broadcast %1861 : vector<32x1xf32> to vector<32x128xf32>
    %1863 = arith.subf %1857, %1862 : vector<32x128xf32>
    %1864 = arith.mulf %1863, %1863 : vector<32x128xf32>
    %cst_446 = arith.constant dense<0.000000e+00> : vector<32xf32>
    %1865 = vector.multi_reduction <add>, %1864, %cst_446 [1] : vector<32x128xf32> to vector<32xf32>
    %1866 = vector.shape_cast %1865 : vector<32xf32> to vector<32x1xf32>
    %cst_447 = arith.constant 1.280000e+02 : f32
    %1867 = vector.broadcast %cst_447 : f32 to vector<32x1xf32>
    %1868 = arith.divf %1866, %1867 : vector<32x1xf32>
    %cst_448 = arith.constant 9.99999974E-6 : f32
    %1869 = vector.broadcast %cst_448 : f32 to vector<32x1xf32>
    %1870 = arith.addf %1868, %1869 : vector<32x1xf32>
    %1871 = math.rsqrt %1870 : vector<32x1xf32>
    %1872 = vector.broadcast %1871 : vector<32x1xf32> to vector<32x128xf32>
    %1873 = arith.mulf %1863, %1872 : vector<32x128xf32>
    %1874 = tpu.concatenate %1856, %1873 in 1 : vector<32x128xf32>, vector<32x128xf32> -> vector<32x256xf32>
    %1875 = vector.broadcast %1835 : vector<32x1xf32> to vector<32x256xf32>
    %1876 = arith.mulf %1874, %1875 : vector<32x256xf32>
    %1877 = vector.broadcast %1837 : vector<32x1xf32> to vector<32x256xf32>
    %1878 = arith.addf %1876, %1877 : vector<32x256xf32>
    %1879 = vector.extract_strided_slice %1878 {offsets = [0, 0], sizes = [16, 256], strides = [1, 1]} : vector<32x256xf32> to vector<16x256xf32>
    %1880 = vector.extract_strided_slice %1878 {offsets = [16, 0], sizes = [16, 256], strides = [1, 1]} : vector<32x256xf32> to vector<16x256xf32>
    %1881 = arith.negf %1880 : vector<16x256xf32>
    %1882 = math.exp %1881 : vector<16x256xf32>
    %cst_449 = arith.constant 1.000000e+00 : f32
    %1883 = vector.broadcast %cst_449 : f32 to vector<16x256xf32>
    %1884 = arith.addf %1883, %1882 : vector<16x256xf32>
    %1885 = arith.divf %1883, %1884 : vector<16x256xf32>
    %1886 = arith.mulf %1879, %1885 : vector<16x256xf32>
    %1887 = arith.addf %1830, %1886 : vector<16x256xf32>
    %cst_450 = arith.constant 0.707106769 : f32
    %1888 = vector.broadcast %cst_450 : f32 to vector<16x256xf32>
    %1889 = arith.mulf %1887, %1888 : vector<16x256xf32>
    %c7_451 = arith.constant 7 : index
    %c0_452 = arith.constant 0 : index
    %c0_453 = arith.constant 0 : index
    %1890 = vector.load %arg5[%c7_451, %c0_452, %c0_453] : memref<8x32x16xf32, #tpu.memory_space<vmem>>, vector<1x32x16xf32>
    %1891 = vector.shape_cast %1890 : vector<1x32x16xf32> to vector<32x16xf32>
    %1892 = arith.truncf %1891 : vector<32x16xf32> to vector<32x16xbf16>
    %c0_454 = arith.constant 0 : index
    %c15 = arith.constant 15 : index
    %c0_455 = arith.constant 0 : index
    %c0_456 = arith.constant 0 : index
    %1893 = vector.load %arg6[%c0_454, %c15, %c0_455, %c0_456] : memref<2x16x32x1xf32, #tpu.memory_space<vmem>>, vector<1x1x32x1xf32>
    %1894 = vector.shape_cast %1893 : vector<1x1x32x1xf32> to vector<32x1xf32>
    %c1_457 = arith.constant 1 : index
    %c15_458 = arith.constant 15 : index
    %c0_459 = arith.constant 0 : index
    %c0_460 = arith.constant 0 : index
    %1895 = vector.load %arg6[%c1_457, %c15_458, %c0_459, %c0_460] : memref<2x16x32x1xf32, #tpu.memory_space<vmem>>, vector<1x1x32x1xf32>
    %1896 = vector.shape_cast %1895 : vector<1x1x32x1xf32> to vector<32x1xf32>
    %1897 = arith.truncf %1889 : vector<16x256xf32> to vector<16x256xbf16>
    %cst_461 = arith.constant dense<0.000000e+00> : vector<32x256xf32>
    %1898 = tpu.matmul %1892, %1897, %cst_461 {dimension_numbers = #tpu.dot_dimension_numbers<[1], [0], [0], [1], [0, 0, 1, 1], [], []>} : vector<32x16xbf16>, vector<16x256xbf16>, vector<32x256xf32> -> vector<32x256xf32>
    %1899 = vector.extract_strided_slice %1898 {offsets = [0, 0], sizes = [32, 128], strides = [1, 1]} : vector<32x256xf32> to vector<32x128xf32>
    %cst_462 = arith.constant dense<0.000000e+00> : vector<32xf32>
    %1900 = vector.multi_reduction <add>, %1899, %cst_462 [1] : vector<32x128xf32> to vector<32xf32>
    %1901 = vector.shape_cast %1900 : vector<32xf32> to vector<32x1xf32>
    %cst_463 = arith.constant 1.280000e+02 : f32
    %1902 = vector.broadcast %cst_463 : f32 to vector<32x1xf32>
    %1903 = arith.divf %1901, %1902 : vector<32x1xf32>
    %1904 = vector.broadcast %1903 : vector<32x1xf32> to vector<32x128xf32>
    %1905 = arith.subf %1899, %1904 : vector<32x128xf32>
    %1906 = arith.mulf %1905, %1905 : vector<32x128xf32>
    %cst_464 = arith.constant dense<0.000000e+00> : vector<32xf32>
    %1907 = vector.multi_reduction <add>, %1906, %cst_464 [1] : vector<32x128xf32> to vector<32xf32>
    %1908 = vector.shape_cast %1907 : vector<32xf32> to vector<32x1xf32>
    %cst_465 = arith.constant 1.280000e+02 : f32
    %1909 = vector.broadcast %cst_465 : f32 to vector<32x1xf32>
    %1910 = arith.divf %1908, %1909 : vector<32x1xf32>
    %cst_466 = arith.constant 9.99999974E-6 : f32
    %1911 = vector.broadcast %cst_466 : f32 to vector<32x1xf32>
    %1912 = arith.addf %1910, %1911 : vector<32x1xf32>
    %1913 = math.rsqrt %1912 : vector<32x1xf32>
    %1914 = vector.broadcast %1913 : vector<32x1xf32> to vector<32x128xf32>
    %1915 = arith.mulf %1905, %1914 : vector<32x128xf32>
    %1916 = vector.extract_strided_slice %1898 {offsets = [0, 128], sizes = [32, 128], strides = [1, 1]} : vector<32x256xf32> to vector<32x128xf32>
    %cst_467 = arith.constant dense<0.000000e+00> : vector<32xf32>
    %1917 = vector.multi_reduction <add>, %1916, %cst_467 [1] : vector<32x128xf32> to vector<32xf32>
    %1918 = vector.shape_cast %1917 : vector<32xf32> to vector<32x1xf32>
    %cst_468 = arith.constant 1.280000e+02 : f32
    %1919 = vector.broadcast %cst_468 : f32 to vector<32x1xf32>
    %1920 = arith.divf %1918, %1919 : vector<32x1xf32>
    %1921 = vector.broadcast %1920 : vector<32x1xf32> to vector<32x128xf32>
    %1922 = arith.subf %1916, %1921 : vector<32x128xf32>
    %1923 = arith.mulf %1922, %1922 : vector<32x128xf32>
    %cst_469 = arith.constant dense<0.000000e+00> : vector<32xf32>
    %1924 = vector.multi_reduction <add>, %1923, %cst_469 [1] : vector<32x128xf32> to vector<32xf32>
    %1925 = vector.shape_cast %1924 : vector<32xf32> to vector<32x1xf32>
    %cst_470 = arith.constant 1.280000e+02 : f32
    %1926 = vector.broadcast %cst_470 : f32 to vector<32x1xf32>
    %1927 = arith.divf %1925, %1926 : vector<32x1xf32>
    %cst_471 = arith.constant 9.99999974E-6 : f32
    %1928 = vector.broadcast %cst_471 : f32 to vector<32x1xf32>
    %1929 = arith.addf %1927, %1928 : vector<32x1xf32>
    %1930 = math.rsqrt %1929 : vector<32x1xf32>
    %1931 = vector.broadcast %1930 : vector<32x1xf32> to vector<32x128xf32>
    %1932 = arith.mulf %1922, %1931 : vector<32x128xf32>
    %1933 = tpu.concatenate %1915, %1932 in 1 : vector<32x128xf32>, vector<32x128xf32> -> vector<32x256xf32>
    %1934 = vector.broadcast %1894 : vector<32x1xf32> to vector<32x256xf32>
    %1935 = arith.mulf %1933, %1934 : vector<32x256xf32>
    %1936 = vector.broadcast %1896 : vector<32x1xf32> to vector<32x256xf32>
    %1937 = arith.addf %1935, %1936 : vector<32x256xf32>
    %1938 = vector.extract_strided_slice %1937 {offsets = [0, 0], sizes = [16, 256], strides = [1, 1]} : vector<32x256xf32> to vector<16x256xf32>
    %1939 = vector.extract_strided_slice %1937 {offsets = [16, 0], sizes = [16, 256], strides = [1, 1]} : vector<32x256xf32> to vector<16x256xf32>
    %1940 = arith.negf %1939 : vector<16x256xf32>
    %1941 = math.exp %1940 : vector<16x256xf32>
    %cst_472 = arith.constant 1.000000e+00 : f32
    %1942 = vector.broadcast %cst_472 : f32 to vector<16x256xf32>
    %1943 = arith.addf %1942, %1941 : vector<16x256xf32>
    %1944 = arith.divf %1942, %1943 : vector<16x256xf32>
    %1945 = arith.mulf %1938, %1944 : vector<16x256xf32>
    %1946 = arith.addf %1889, %1945 : vector<16x256xf32>
    %cst_473 = arith.constant 0.707106769 : f32
    %1947 = vector.broadcast %cst_473 : f32 to vector<16x256xf32>
    %1948 = arith.mulf %1946, %1947 : vector<16x256xf32>
    %1949 = vector.extract_strided_slice %1948 {offsets = [0, 0], sizes = [8, 256], strides = [1, 1]} : vector<16x256xf32> to vector<8x256xf32>
    %cst_474 = arith.constant 0.000000e+00 : f32
    %1950 = vector.broadcast %cst_474 : f32 to vector<8x256xf32>
    %1951 = arith.maximumf %1949, %1950 : vector<8x256xf32>
    %1952 = arith.addf %1493, %1951 : vector<8x256xf32>
    %cst_475 = arith.constant 3.000000e+00 : f32
    %1953 = arith.divf %1720, %cst_475 : f32
    %1954 = arith.truncf %1952 : vector<8x256xf32> to vector<8x256xbf16>
    %cst_476 = arith.constant dense<0.000000e+00> : vector<8x256xf32>
    %1955 = tpu.matmul %6, %1954, %cst_476 {dimension_numbers = #tpu.dot_dimension_numbers<[1], [0], [0], [1], [0, 0, 1, 1], [], []>} : vector<8x8xbf16>, vector<8x256xbf16>, vector<8x256xf32> -> vector<8x256xf32>
    %c0_477 = arith.constant 0 : index
    %c0_478 = arith.constant 0 : index
    %1956 = vector.load %arg10[%c0_477, %c0_478] : memref<8x256xf32, #tpu.memory_space<vmem>>, vector<8x256xf32>
    tpu.vector_store %arg10[%c0_477, %c0_478], %1955 {strides = array<i32>} : memref<8x256xf32, #tpu.memory_space<vmem>>, vector<8x256xf32>,
    %1957 = vector.broadcast %1953 : f32 to vector<1x1x128xf32>
    %c0_479 = arith.constant 0 : index
    %c0_480 = arith.constant 0 : index
    %c0_481 = arith.constant 0 : index
    %1958 = vector.load %arg11[%c0_479, %c0_480, %c0_481] : memref<1x1x128xf32, #tpu.memory_space<vmem>>, vector<1x1x128xf32>
    tpu.vector_store %arg11[%c0_479, %c0_480, %c0_481], %1957 {strides = array<i32>} : memref<1x1x128xf32, #tpu.memory_space<vmem>>, vector<1x1x128xf32>,
    return
  }
  func.func @transform_0(%arg0: i32) -> (i32, i32) {
    %c0_i32 = arith.constant 0 : i32
    %c0_i32_0 = arith.constant 0 : i32
    return %c0_i32, %arg0 : i32, i32
  }
  func.func @transform_1(%arg0: i32) -> (i32, i32, i32) {
    %c0_i32 = arith.constant 0 : i32
    %c0_i32_0 = arith.constant 0 : i32
    %c0_i32_1 = arith.constant 0 : i32
    %c0_i32_2 = arith.constant 0 : i32
    return %c0_i32, %c0_i32_0, %c0_i32_1 : i32, i32, i32
  }
  func.func @transform_2(%arg0: i32) -> (i32, i32) {
    %c0_i32 = arith.constant 0 : i32
    %c0_i32_0 = arith.constant 0 : i32
    %c0_i32_1 = arith.constant 0 : i32
    return %c0_i32, %c0_i32_0 : i32, i32
  }
  func.func @transform_3(%arg0: i32) -> (i32, i32) {
    %c0_i32 = arith.constant 0 : i32
    %c0_i32_0 = arith.constant 0 : i32
    %c0_i32_1 = arith.constant 0 : i32
    return %c0_i32, %c0_i32_0 : i32, i32
  }
  func.func @transform_4(%arg0: i32) -> (i32, i32, i32) {
    %c0_i32 = arith.constant 0 : i32
    %c0_i32_0 = arith.constant 0 : i32
    %c0_i32_1 = arith.constant 0 : i32
    %c0_i32_2 = arith.constant 0 : i32
    return %c0_i32, %c0_i32_0, %c0_i32_1 : i32, i32, i32
  }
  func.func @transform_5(%arg0: i32) -> (i32, i32, i32, i32) {
    %c0_i32 = arith.constant 0 : i32
    %c0_i32_0 = arith.constant 0 : i32
    %c0_i32_1 = arith.constant 0 : i32
    %c0_i32_2 = arith.constant 0 : i32
    %c0_i32_3 = arith.constant 0 : i32
    return %c0_i32, %c0_i32_0, %c0_i32_1, %c0_i32_2 : i32, i32, i32, i32
  }
  func.func @transform_6(%arg0: i32) -> (i32, i32, i32) {
    %c0_i32 = arith.constant 0 : i32
    %c0_i32_0 = arith.constant 0 : i32
    %c0_i32_1 = arith.constant 0 : i32
    %c0_i32_2 = arith.constant 0 : i32
    return %c0_i32, %c0_i32_0, %c0_i32_1 : i32, i32, i32
  }
  func.func @transform_7(%arg0: i32) -> (i32, i32, i32, i32) {
    %c0_i32 = arith.constant 0 : i32
    %c0_i32_0 = arith.constant 0 : i32
    %c0_i32_1 = arith.constant 0 : i32
    %c0_i32_2 = arith.constant 0 : i32
    %c0_i32_3 = arith.constant 0 : i32
    return %c0_i32, %c0_i32_0, %c0_i32_1, %c0_i32_2 : i32, i32, i32, i32
  }
  func.func @transform_8(%arg0: i32) -> (i32, i32) {
    %c0_i32 = arith.constant 0 : i32
    %c0_i32_0 = arith.constant 0 : i32
    %c0_i32_1 = arith.constant 0 : i32
    return %c0_i32, %c0_i32_0 : i32, i32
  }
  func.func @transform_9(%arg0: i32) -> (i32, i32) {
    %c0_i32 = arith.constant 0 : i32
    %c0_i32_0 = arith.constant 0 : i32
    return %c0_i32, %arg0 : i32, i32
  }
  func.func @transform_10(%arg0: i32) -> (i32, i32, i32) {
    %c0_i32 = arith.constant 0 : i32
    %c0_i32_0 = arith.constant 0 : i32
    %c0_i32_1 = arith.constant 0 : i32
    return %arg0, %c0_i32, %c0_i32_0 : i32, i32, i32
  }
}

</mosaic_0001>

<llo_original>
// kernel: tsp_tabnet_forward.1
$region0: #{tsp_tabnet_forward.1}
  #allocation0 [shape = 'u32[]', space=smem, size = 0x4, offset = 0x4, fixed_abs, tag = 'smem constant byte address 0x4 - core index']
  #allocation1 [shape = 'u32[144,128]{1,0:T(1,128)}', space=vmem, size = 0x12000, scoped, tag = 'internal scratch']
  %s0 = inlined_call_operand.vmem [shape: f32[16,512], index: 0, kind: input, shape index: {}]
  %s1 = inlined_call_operand.vmem [shape: f32[2,16,1], index: 1, kind: input, shape index: {}]
  %s2 = inlined_call_operand.vmem [shape: f32[32,16], index: 2, kind: input, shape index: {}]
  %s3 = inlined_call_operand.vmem [shape: f32[32,16], index: 3, kind: input, shape index: {}]
  %s4 = inlined_call_operand.vmem [shape: f32[8,32,16], index: 4, kind: input, shape index: {}]
  %s5 = inlined_call_operand.vmem [shape: f32[2,16,32,1], index: 5, kind: input, shape index: {}]
  %s6 = inlined_call_operand.vmem [shape: f32[3,16,8], index: 6, kind: input, shape index: {}]
  %s7 = inlined_call_operand.vmem [shape: f32[2,3,16,1], index: 7, kind: input, shape index: {}]
  %s8 = inlined_call_operand.vmem [shape: f32[8,8], index: 8, kind: input, shape index: {}]
  %s9 = inlined_call_operand.vmem [shape: f32[8,512], index: 9, kind: output, shape index: {0}]
  %s10 = inlined_call_operand.vmem [shape: f32[2,1,128], index: 10, kind: output, shape index: {1}]
  %11 = xla_tuple %s9, %s10
  %s12 = sld [smem:[#allocation0]]
  $region100: #{tsp_tabnet_forward.1} parent=0
    _
  %s14 = ssub.s32 1, %s12
  %s15 = scalar_select 0, %s14, %s12
  $region1: #{tsp_tabnet_forward.1} parent=0
    #allocation2 [shape = 'u8[32768]{0}', space=vmem, size = 0x8000, scoped, tag = 'input window, operand 0']
    loop: start=0, step=1, limit=4
    $region2: #{tsp_tabnet_forward.1} parent=1 // loop_pre_header
      _
    $region3: #{tsp_tabnet_forward.1} parent=1 // loop_header
      %s17 = sphi 0, %s21
      %p18 = scmp.ge.s32.totalorder %s17, 4
      %s27 = sphi 0, %s29
      %s30 = sphi 0, %s27
      %s31 = sphi 0, %s30
      %s47 = sphi 0, %s31
      %s51 = sphi 0, %s51
      %s53 = sphi 0, %s51
      %s54 = sphi 0, %s53
      %s68 = sphi 0, %s54
      %s72 = sphi 0, %s72
      %s74 = sphi 0, %s72
      %s75 = sphi 0, %s74
      %s89 = sphi 0, %s75
      %s93 = sphi 0, %s93
      %s95 = sphi 0, %s93
      %s96 = sphi 0, %s95
      %s110 = sphi 0, %s96
      %s114 = sphi 0, %s114
      %s116 = sphi 0, %s114
      %s117 = sphi 0, %s116
      %s131 = sphi 0, %s117
      %s135 = sphi 0, %s135
      %s137 = sphi 0, %s135
      %s138 = sphi 0, %s137
      %s152 = sphi 0, %s138
      %s156 = sphi 0, %s156
      %s158 = sphi 0, %s156
      %s159 = sphi 0, %s158
      %s173 = sphi 0, %s159
      %s177 = sphi 0, %s177
      %s179 = sphi 0, %s177
      %s180 = sphi 0, %s179
      %s194 = sphi 0, %s180
      %s198 = sphi 0, %s198
      %s200 = sphi 0, %s198
      %s201 = sphi 0, %s200
      %s215 = sphi 0, %s201
      %s221 = sphi 0, %s223
      %s224 = sphi 0, %s221
      %s225 = sphi 0, %s224
      %s241 = sphi 0, %s225
      %s247 = sphi 0, %s249
      %s250 = sphi 0, %s247
      %s251 = sphi 0, %s250
      %s267 = sphi 0, %s251
    $region4: #{tsp_tabnet_forward.1} parent=1 // loop_header_branch
      %20 = sbr.rel (%p18) target = $region8
    $region5: #{tsp_tabnet_forward.1} parent=1 // loop_body
      %s22 = ssub.s32 %s17, 1
      %s23 = ssub.s32 %s17, 2
      %s24 = sadd.s32 %s17, 1
      %s25 = ssub.s32 %s17, %s24
      %p26 = scmp.eq.s32.totalorder %s25, 0
      %s28 = sadd.s32 %s27, 1
      %s29 = scalar_select %p26, %s27, %s28
      %p32 = pneg %p26
      %p33 = scmp.eq.s32.totalorder %s17, 1
      %p34 = por %p32, %p33
      %p35 = scmp.ne.s32.totalorder %s27, %s30
      %p36 = scmp.eq.s32.totalorder %s17, 0
      %p37 = por %p35, %p36
      %p38 = scmp.ne.s32.totalorder %s27, %s30
      %p39 = scmp.eq.s32.totalorder %s22, 1
      %p40 = por %p38, %p39
      %p41 = scmp.ne.s32.totalorder %s30, %s31
      %p42 = scmp.eq.s32.totalorder %s22, 0
      %p43 = por %p41, %p42
      %p44 = scmp.ne.s32.totalorder %s30, %s31
      %p45 = scmp.eq.s32.totalorder %s23, 1
      %p46 = por %p44, %p45
      %p48 = scmp.ne.s32.totalorder %s31, %s47
      %p49 = scmp.eq.s32.totalorder %s23, 0
      %p50 = por %p48, %p49
      %s52 = sadd.s32 %s51, 1
      %p55 = scmp.eq.s32.totalorder %s17, 1
      %p56 = scmp.ne.s32.totalorder %s51, %s53
      %p57 = scmp.eq.s32.totalorder %s17, 0
      %p58 = por %p56, %p57
      %p59 = scmp.ne.s32.totalorder %s51, %s53
      %p60 = scmp.eq.s32.totalorder %s22, 1
      %p61 = por %p59, %p60
      %p62 = scmp.ne.s32.totalorder %s53, %s54
      %p63 = scmp.eq.s32.totalorder %s22, 0
      %p64 = por %p62, %p63
      %p65 = scmp.ne.s32.totalorder %s53, %s54
      %p66 = scmp.eq.s32.totalorder %s23, 1
      %p67 = por %p65, %p66
      %p69 = scmp.ne.s32.totalorder %s54, %s68
      %p70 = scmp.eq.s32.totalorder %s23, 0
      %p71 = por %p69, %p70
      %s73 = sadd.s32 %s72, 1
      %p76 = scmp.eq.s32.totalorder %s17, 1
      %p77 = scmp.ne.s32.totalorder %s72, %s74
      %p78 = scmp.eq.s32.totalorder %s17, 0
      %p79 = por %p77, %p78
      %p80 = scmp.ne.s32.totalorder %s72, %s74
      %p81 = scmp.eq.s32.totalorder %s22, 1
      %p82 = por %p80, %p81
      %p83 = scmp.ne.s32.totalorder %s74, %s75
      %p84 = scmp.eq.s32.totalorder %s22, 0
      %p85 = por %p83, %p84
      %p86 = scmp.ne.s32.totalorder %s74, %s75
      %p87 = scmp.eq.s32.totalorder %s23, 1
      %p88 = por %p86, %p87
      %p90 = scmp.ne.s32.totalorder %s75, %s89
      %p91 = scmp.eq.s32.totalorder %s23, 0
      %p92 = por %p90, %p91
      %s94 = sadd.s32 %s93, 1
      %p97 = scmp.eq.s32.totalorder %s17, 1
      %p98 = scmp.ne.s32.totalorder %s93, %s95
      %p99 = scmp.eq.s32.totalorder %s17, 0
      %p100 = por %p98, %p99
      %p101 = scmp.ne.s32.totalorder %s93, %s95
      %p102 = scmp.eq.s32.totalorder %s22, 1
      %p103 = por %p101, %p102
      %p104 = scmp.ne.s32.totalorder %s95, %s96
      %p105 = scmp.eq.s32.totalorder %s22, 0
      %p106 = por %p104, %p105
      %p107 = scmp.ne.s32.totalorder %s95, %s96
      %p108 = scmp.eq.s32.totalorder %s23, 1
      %p109 = por %p107, %p108
      %p111 = scmp.ne.s32.totalorder %s96, %s110
      %p112 = scmp.eq.s32.totalorder %s23, 0
      %p113 = por %p111, %p112
      %s115 = sadd.s32 %s114, 1
      %p118 = scmp.eq.s32.totalorder %s17, 1
      %p119 = scmp.ne.s32.totalorder %s114, %s116
      %p120 = scmp.eq.s32.totalorder %s17, 0
      %p121 = por %p119, %p120
      %p122 = scmp.ne.s32.totalorder %s114, %s116
      %p123 = scmp.eq.s32.totalorder %s22, 1
      %p124 = por %p122, %p123
      %p125 = scmp.ne.s32.totalorder %s116, %s117
      %p126 = scmp.eq.s32.totalorder %s22, 0
      %p127 = por %p125, %p126
      %p128 = scmp.ne.s32.totalorder %s116, %s117
      %p129 = scmp.eq.s32.totalorder %s23, 1
      %p130 = por %p128, %p129
      %p132 = scmp.ne.s32.totalorder %s117, %s131
      %p133 = scmp.eq.s32.totalorder %s23, 0
      %p134 = por %p132, %p133
      %s136 = sadd.s32 %s135, 1
      %p139 = scmp.eq.s32.totalorder %s17, 1
      %p140 = scmp.ne.s32.totalorder %s135, %s137
      %p141 = scmp.eq.s32.totalorder %s17, 0
      %p142 = por %p140, %p141
      %p143 = scmp.ne.s32.totalorder %s135, %s137
      %p144 = scmp.eq.s32.totalorder %s22, 1
      %p145 = por %p143, %p144
      %p146 = scmp.ne.s32.totalorder %s137, %s138
      %p147 = scmp.eq.s32.totalorder %s22, 0
      %p148 = por %p146, %p147
      %p149 = scmp.ne.s32.totalorder %s137, %s138
      %p150 = scmp.eq.s32.totalorder %s23, 1
      %p151 = por %p149, %p150
      %p153 = scmp.ne.s32.totalorder %s138, %s152
      %p154 = scmp.eq.s32.totalorder %s23, 0
      %p155 = por %p153, %p154
      %s157 = sadd.s32 %s156, 1
      %p160 = scmp.eq.s32.totalorder %s17, 1
      %p161 = scmp.ne.s32.totalorder %s156, %s158
      %p162 = scmp.eq.s32.totalorder %s17, 0
      %p163 = por %p161, %p162
      %p164 = scmp.ne.s32.totalorder %s156, %s158
      %p165 = scmp.eq.s32.totalorder %s22, 1
      %p166 = por %p164, %p165
      %p167 = scmp.ne.s32.totalorder %s158, %s159
      %p168 = scmp.eq.s32.totalorder %s22, 0
      %p169 = por %p167, %p168
      %p170 = scmp.ne.s32.totalorder %s158, %s159
      %p171 = scmp.eq.s32.totalorder %s23, 1
      %p172 = por %p170, %p171
      %p174 = scmp.ne.s32.totalorder %s159, %s173
      %p175 = scmp.eq.s32.totalorder %s23, 0
      %p176 = por %p174, %p175
      %s178 = sadd.s32 %s177, 1
      %p181 = scmp.eq.s32.totalorder %s17, 1
      %p182 = scmp.ne.s32.totalorder %s177, %s179
      %p183 = scmp.eq.s32.totalorder %s17, 0
      %p184 = por %p182, %p183
      %p185 = scmp.ne.s32.totalorder %s177, %s179
      %p186 = scmp.eq.s32.totalorder %s22, 1
      %p187 = por %p185, %p186
      %p188 = scmp.ne.s32.totalorder %s179, %s180
      %p189 = scmp.eq.s32.totalorder %s22, 0
      %p190 = por %p188, %p189
      %p191 = scmp.ne.s32.totalorder %s179, %s180
      %p192 = scmp.eq.s32.totalorder %s23, 1
      %p193 = por %p191, %p192
      %p195 = scmp.ne.s32.totalorder %s180, %s194
      %p196 = scmp.eq.s32.totalorder %s23, 0
      %p197 = por %p195, %p196
      %s199 = sadd.s32 %s198, 1
      %p202 = scmp.eq.s32.totalorder %s17, 1
      %p203 = scmp.ne.s32.totalorder %s198, %s200
      %p204 = scmp.eq.s32.totalorder %s17, 0
      %p205 = por %p203, %p204
      %p206 = scmp.ne.s32.totalorder %s198, %s200
      %p207 = scmp.eq.s32.totalorder %s22, 1
      %p208 = por %p206, %p207
      %p209 = scmp.ne.s32.totalorder %s200, %s201
      %p210 = scmp.eq.s32.totalorder %s22, 0
      %p211 = por %p209, %p210
      %p212 = scmp.ne.s32.totalorder %s200, %s201
      %p213 = scmp.eq.s32.totalorder %s23, 1
      %p214 = por %p212, %p213
      %p216 = scmp.ne.s32.totalorder %s201, %s215
      %p217 = scmp.eq.s32.totalorder %s23, 0
      %p218 = por %p216, %p217
      %s219 = ssub.s32 %s17, %s24
      %p220 = scmp.eq.s32.totalorder %s219, 0
      %s222 = sadd.s32 %s221, 1
      %s223 = scalar_select %p220, %s221, %s222
      %p226 = pneg %p220
      %p227 = scmp.eq.s32.totalorder %s17, 1
      %p228 = por %p226, %p227
      %p229 = scmp.ne.s32.totalorder %s221, %s224
      %p230 = scmp.eq.s32.totalorder %s17, 0
      %p231 = por %p229, %p230
      %p232 = scmp.ne.s32.totalorder %s221, %s224
      %p233 = scmp.eq.s32.totalorder %s22, 1
      %p234 = por %p232, %p233
      %p235 = scmp.ne.s32.totalorder %s224, %s225
      %p236 = scmp.eq.s32.totalorder %s22, 0
      %p237 = por %p235, %p236
      %p238 = scmp.ne.s32.totalorder %s224, %s225
      %p239 = scmp.eq.s32.totalorder %s23, 1
      %p240 = por %p238, %p239
      %p242 = scmp.ne.s32.totalorder %s225, %s241
      %p243 = scmp.eq.s32.totalorder %s23, 0
      %p244 = por %p242, %p243
      %s245 = ssub.s32 %s17, %s24
      %p246 = scmp.eq.s32.totalorder %s245, 0
      %s248 = sadd.s32 %s247, 1
      %s249 = scalar_select %p246, %s247, %s248
      %p252 = pneg %p246
      %p253 = scmp.eq.s32.totalorder %s17, 1
      %p254 = por %p252, %p253
      %p255 = scmp.ne.s32.totalorder %s247, %s250
      %p256 = scmp.eq.s32.totalorder %s17, 0
      %p257 = por %p255, %p256
      %p258 = scmp.ne.s32.totalorder %s247, %s250
      %p259 = scmp.eq.s32.totalorder %s22, 1
      %p260 = por %p258, %p259
      %p261 = scmp.ne.s32.totalorder %s250, %s251
      %p262 = scmp.eq.s32.totalorder %s22, 0
      %p263 = por %p261, %p262
      %p264 = scmp.ne.s32.totalorder %s250, %s251
      %p265 = scmp.eq.s32.totalorder %s23, 1
      %p266 = por %p264, %p265
      %p268 = scmp.ne.s32.totalorder %s251, %s267
      %p269 = scmp.eq.s32.totalorder %s23, 0
      %p270 = por %p268, %p269
      %p271 = scmp.le.s32.totalorder 1, %s17
      %p272 = scmp.lt.s32.totalorder %s17, 3
      %p273 = pnand %p271, %p272
      %p274 = pneg %p273
      // Predicated region
      $region9: #{tsp_tabnet_forward.1} parent=5 // pred_check
        _
      $region10: #{tsp_tabnet_forward.1} parent=5 // pred_check_branch
        %276 = sbr.rel (%p273) target = $region12
      $region11: #{tsp_tabnet_forward.1} parent=5 // pred_region
        %s277 = ssub.s32 %s17, 1
        // Predicated region
        $region13: #{tsp_tabnet_forward.1} parent=11 // pred_check
          %p278 = pneg %p64
        $region14: #{tsp_tabnet_forward.1} parent=11 // pred_check_branch
          %280 = sbr.rel (%p278) target = $region16
        $region15: #{tsp_tabnet_forward.1} parent=11 // pred_region
          _
        $region16: #{tsp_tabnet_forward.1} parent=11 // pred_fallthru
          _
        // Predicated region
        $region17: #{tsp_tabnet_forward.1} parent=11 // pred_check
          %p281 = pneg %p85
        $region18: #{tsp_tabnet_forward.1} parent=11 // pred_check_branch
          %283 = sbr.rel (%p281) target = $region20
        $region19: #{tsp_tabnet_forward.1} parent=11 // pred_region
          _
        $region20: #{tsp_tabnet_forward.1} parent=11 // pred_fallthru
          _
        // Predicated region
        $region21: #{tsp_tabnet_forward.1} parent=11 // pred_check
          %p284 = pneg %p106
        $region22: #{tsp_tabnet_forward.1} parent=11 // pred_check_branch
          %286 = sbr.rel (%p284) target = $region24
        $region23: #{tsp_tabnet_forward.1} parent=11 // pred_region
          _
        $region24: #{tsp_tabnet_forward.1} parent=11 // pred_fallthru
          _
        // Predicated region
        $region25: #{tsp_tabnet_forward.1} parent=11 // pred_check
          %p287 = pneg %p127
        $region26: #{tsp_tabnet_forward.1} parent=11 // pred_check_branch
          %289 = sbr.rel (%p287) target = $region28
        $region27: #{tsp_tabnet_forward.1} parent=11 // pred_region
          _
        $region28: #{tsp_tabnet_forward.1} parent=11 // pred_fallthru
          _
        // Predicated region
        $region29: #{tsp_tabnet_forward.1} parent=11 // pred_check
          %p290 = pneg %p148
        $region30: #{tsp_tabnet_forward.1} parent=11 // pred_check_branch
          %292 = sbr.rel (%p290) target = $region32
        $region31: #{tsp_tabnet_forward.1} parent=11 // pred_region
          _
        $region32: #{tsp_tabnet_forward.1} parent=11 // pred_fallthru
          _
        // Predicated region
        $region33: #{tsp_tabnet_forward.1} parent=11 // pred_check
          %p293 = pneg %p169
        $region34: #{tsp_tabnet_forward.1} parent=11 // pred_check_branch
          %295 = sbr.rel (%p293) target = $region36
        $region35: #{tsp_tabnet_forward.1} parent=11 // pred_region
          _
        $region36: #{tsp_tabnet_forward.1} parent=11 // pred_fallthru
          _
        // Predicated region
        $region37: #{tsp_tabnet_forward.1} parent=11 // pred_check
          %p296 = pneg %p190
        $region38: #{tsp_tabnet_forward.1} parent=11 // pred_check_branch
          %298 = sbr.rel (%p296) target = $region40
        $region39: #{tsp_tabnet_forward.1} parent=11 // pred_region
          _
        $region40: #{tsp_tabnet_forward.1} parent=11 // pred_fallthru
          _
        // Predicated region
        $region41: #{tsp_tabnet_forward.1} parent=11 // pred_check
          %p299 = pneg %p211
        $region42: #{tsp_tabnet_forward.1} parent=11 // pred_check_branch
          %301 = sbr.rel (%p299) target = $region44
        $region43: #{tsp_tabnet_forward.1} parent=11 // pred_region
          _
        $region44: #{tsp_tabnet_forward.1} parent=11 // pred_fallthru
          _
      $region12: #{tsp_tabnet_forward.1} parent=5 // pred_fallthru
        _
      %p302 = scmp.lt.s32.totalorder %s17, 2
      // Predicated region
      $region45: #{tsp_tabnet_forward.1} parent=5 // pred_check
        %p303 = pneg %p302
      $region46: #{tsp_tabnet_forward.1} parent=5 // pred_check_branch
        %305 = sbr.rel (%p303) target = $region48
      $region47: #{tsp_tabnet_forward.1} parent=5 // pred_region
        // Predicated region
        $region49: #{tsp_tabnet_forward.1} parent=47 // pred_check
          %p306 = pneg %p37
        $region50: #{tsp_tabnet_forward.1} parent=47 // pred_check_branch
          %308 = sbr.rel (%p306) target = $region52
        $region51: #{tsp_tabnet_forward.1} parent=47 // pred_region
          %s309 = sand.u32 %s27, 1
          %s310 = sand.u32 %s27, 1
          %s311 = smul.addr %s310, 32
          %s312 = scalar_lea.vmem [#allocation2], %s311
          %s313 = smul.u32 2, %s17
          %s314 = smul.addr %s313, 8
          %s315 = scalar_lea.vmem %s0, %s314
          // Predicated region
          $region53: #{tsp_tabnet_forward.1} parent=51 // pred_check
            _
          $region54: #{tsp_tabnet_forward.1} parent=51 // pred_check_branch
            %317 = sbr.rel (0) target = $region56
          $region55: #{tsp_tabnet_forward.1} parent=51 // pred_region
            // Predicated region
            $region57: #{tsp_tabnet_forward.1} parent=55 // pred_check
              _
            $region58: #{tsp_tabnet_forward.1} parent=55 // pred_check_branch
              %319 = sbr.rel (0) target = $region60
            $region59: #{tsp_tabnet_forward.1} parent=55 // pred_region
              loop: start=0, step=1, limit=1
              $region61: #{tsp_tabnet_forward.1} parent=59 // loop_pre_header
                _
              $region62: #{tsp_tabnet_forward.1} parent=59 // loop_header
                %s321 = sphi 0, %s325
                %p322 = scmp.ge.s32.totalorder %s321, 1
                %s326 = sphi %s315, %s315
                %s327 = sphi %s312, %s312
              $region63: #{tsp_tabnet_forward.1} parent=59 // loop_header_branch
                %324 = sbr.rel (%p322) target = $region67
              $region64: #{tsp_tabnet_forward.1} parent=59 // loop_body
                %v328 = vld [vmem:[%s326] sm:$0xff]
                %329 = vst [vmem:[%s327] sm:$0xff] %v328
                %v330 = vld [vmem:[%s326 + $0x8] sm:$0xff]
                %331 = vst [vmem:[%s327 + $0x8] sm:$0xff] %v330
                %v332 = vld [vmem:[%s326 + $0x20] sm:$0xff]
                %333 = vst [vmem:[%s327 + $0x10] sm:$0xff] %v332
                %v334 = vld [vmem:[%s326 + $0x28] sm:$0xff]
                %335 = vst [vmem:[%s327 + $0x18] sm:$0xff] %v334
              $region65: #{tsp_tabnet_forward.1} parent=59 // loop_footer
                %s325 = sadd.s32 1, %s321
              $region66: #{tsp_tabnet_forward.1} parent=59 // loop_footer_branch
                %320 = sbr.rel target = $region62
              $region67: #{tsp_tabnet_forward.1} parent=59 // loop_exit
                _
            $region60: #{tsp_tabnet_forward.1} parent=55 // pred_fallthru
              _
            // Predicated region
            $region68: #{tsp_tabnet_forward.1} parent=55 // pred_check
              _
            $region69: #{tsp_tabnet_forward.1} parent=55 // pred_check_branch
              %337 = sbr.rel target = $region71
            $region70: #{tsp_tabnet_forward.1} parent=55 // pred_region
              _
            $region71: #{tsp_tabnet_forward.1} parent=55 // pred_fallthru
              _
          $region56: #{tsp_tabnet_forward.1} parent=51 // pred_fallthru
            _
          %338 = vnop
        $region52: #{tsp_tabnet_forward.1} parent=47 // pred_fallthru
          _
      $region48: #{tsp_tabnet_forward.1} parent=5 // pred_fallthru
        _
      %p339 = scmp.le.s32.totalorder 1, %s17
      %p340 = scmp.lt.s32.totalorder %s17, 3
      %p341 = pnand %p339, %p340
      %p342 = pneg %p341
      // Predicated region
      $region72: #{tsp_tabnet_forward.1} parent=5 // pred_check
        _
      $region73: #{tsp_tabnet_forward.1} parent=5 // pred_check_branch
        %344 = sbr.rel (%p341) target = $region75
      $region74: #{tsp_tabnet_forward.1} parent=5 // pred_region
        %s345 = ssub.s32 %s17, 1
        %s346 = sand.u32 %s30, 1
        %s347 = sand.u32 %s30, 1
        %s348 = smul.addr %s347, 32
        %s349 = scalar_lea.vmem [#allocation2], %s348
        // Predicated region
        $region76: #{tsp_tabnet_forward.1} parent=74 // pred_check
          %p350 = pneg %p43
        $region77: #{tsp_tabnet_forward.1} parent=74 // pred_check_branch
          %352 = sbr.rel (%p350) target = $region79
        $region78: #{tsp_tabnet_forward.1} parent=74 // pred_region
          _
        $region79: #{tsp_tabnet_forward.1} parent=74 // pred_fallthru
          _
        %s353 = sand.u32 %s30, 1
        %s354 = sand.u32 %s30, 1
        %s355 = smul.addr %s354, 32
        %s356 = scalar_lea.vmem [#allocation2], %s355
        %p357 = pneg %p43
        %p358 = pneg %p40
        %p359 = pneg %p64
        %p360 = pneg %p61
        %p361 = pneg %p85
        %p362 = pneg %p82
        %p363 = pneg %p106
        %p364 = pneg %p103
        %p365 = pneg %p127
        %p366 = pneg %p124
        %p367 = pneg %p148
        %p368 = pneg %p145
        %p369 = pneg %p169
        %p370 = pneg %p166
        %p371 = pneg %p190
        %p372 = pneg %p187
        %p373 = pneg %p211
        %p374 = pneg %p208
        %p375 = pneg %p237
        %p376 = pneg %p234
        %s377 = smul.u32 2, %s22
        %p378 = scmp.lt.s32.totalorder %s377, 3
        %s379 = scalar_select %p378, %s377, 3
        %s380 = smul.addr %s379, 8
        %s381 = scalar_lea.vmem %s9, %s380
        %p382 = pneg %p263
        %p383 = pneg %p260
        %p384 = scmp.lt.s32.totalorder %s22, 1
        %s385 = scalar_select %p384, %s22, 1
        %s386 = scalar_lea.vmem %s10, %s385
        %s387 = smul.u32 2, %s22
        %s388 = smul.u32 2, %s22
        %p389 = scmp.lt.s32.totalorder %s388, 3
        %s390 = scalar_select %p389, %s388, 3
        %s391 = smul.addr %s390, 8
        %s392 = scalar_lea.vmem %s9, %s391
        %s393 = smul.u32 2, %s22
        %p394 = scmp.lt.s32.totalorder %s22, 1
        %s395 = scalar_select %p394, %s22, 1
        %s396 = scalar_lea.vmem %s10, %s395
        %v398 = vld [vmem:[%s349] sm:$0xff]
        %v399 = vld [vmem:[%s349 + $0x8] sm:$0xff]
        %v400 = vld [vmem:[%s349 + $0x10] sm:$0xff]
        %v401 = vld [vmem:[%s349 + $0x18] sm:$0xff]
        %v402 = vld [vmem:[%s2] sm:$0xff]
        %v403 = vld [vmem:[%s2 + $0x8] sm:$0xff]
        %v404 = vld [vmem:[%s2 + $0x10] sm:$0xff]
        %v405 = vld [vmem:[%s2 + $0x18] sm:$0xff]
        %v406 = vpack.c.bf16 %v403, %v402
        %v407 = vpack.c.bf16 %v405, %v404
        %v408 = vld [vmem:[%s3] sm:$0xff]
        %v409 = vld [vmem:[%s3 + $0x8] sm:$0xff]
        %v410 = vld [vmem:[%s3 + $0x10] sm:$0xff]
        %v411 = vld [vmem:[%s3 + $0x18] sm:$0xff]
        %v412 = vpack.c.bf16 %v409, %v408
        %v413 = vpack.c.bf16 %v411, %v410
        %v414 = vld [vmem:[%s8] sm:$0xff]
        %v415 = vpack.c.bf16 %v414, %v414
        %v416 = vlaneseq
        %v417 = vshrl.u32 %v416, 7
        %v418 = vadd.s32 %v417, 8
        %v419 = vlaneseq
        %v420 = vshrl.u32 %v419, 7
        %v421 = vsub.s32 0, %v420
        %v422 = vrot.slane %v398, %v421
        %v423 = vlaneseq
        %v424 = vshrl.u32 %v423, 7
        %v425 = vsub.s32 0, %v424
        %v426 = vrot.slane %v399, %v425
        %vm427 = vcmp.gt.f32.partialorder %v422, %v398
        %vm428 = vcmp.gt.f32.partialorder %v426, %v399
        %vm429 = vcmp.gt.f32.partialorder %v422, %v400
        %vm430 = vcmp.gt.f32.partialorder %v426, %v401
        %vm431 = vcmp.eq.f32.partialorder %v422, %v398
        %vm432 = vcmp.eq.f32.partialorder %v426, %v399
        %vm433 = vcmp.eq.f32.partialorder %v422, %v400
        %vm434 = vcmp.eq.f32.partialorder %v426, %v401
        %vm435 = vcmp.gt.s32.totalorder %v417, 0
        %vm436 = vcmp.gt.s32.totalorder %v418, 0
        %vm437 = vmand %vm431, %vm435
        %vm438 = vmand %vm432, %vm435
        %vm439 = vmand %vm433, %vm436
        %vm440 = vmand %vm434, %vm436
        %vm441 = vmor %vm427, %vm437
        %vm442 = vmor %vm428, %vm438
        %vm443 = vmor %vm429, %vm439
        %vm444 = vmor %vm430, %vm440
        %v445 = vsel %vm441, 1, 0
        %v446 = vsel %vm442, 1, 0
        %v447 = vsel %vm443, 1, 0
        %v448 = vsel %vm444, 1, 0
        %v449 = vlaneseq
        %v450 = vshrl.u32 %v449, 7
        %v451 = vsub.s32 1, %v450
        %v452 = vrot.slane %v398, %v451
        %v453 = vlaneseq
        %v454 = vshrl.u32 %v453, 7
        %v455 = vsub.s32 1, %v454
        %v456 = vrot.slane %v399, %v455
        %vm457 = vcmp.gt.f32.partialorder %v452, %v398
        %vm458 = vcmp.gt.f32.partialorder %v456, %v399
        %vm459 = vcmp.gt.f32.partialorder %v452, %v400
        %vm460 = vcmp.gt.f32.partialorder %v456, %v401
        %vm461 = vcmp.eq.f32.partialorder %v452, %v398
        %vm462 = vcmp.eq.f32.partialorder %v456, %v399
        %vm463 = vcmp.eq.f32.partialorder %v452, %v400
        %vm464 = vcmp.eq.f32.partialorder %v456, %v401
        %vm465 = vcmp.gt.s32.totalorder %v417, 1
        %vm466 = vcmp.gt.s32.totalorder %v418, 1
        %vm467 = vmand %vm461, %vm465
        %vm468 = vmand %vm462, %vm465
        %vm469 = vmand %vm463, %vm466
        %vm470 = vmand %vm464, %vm466
        %vm471 = vmor %vm457, %vm467
        %vm472 = vmor %vm458, %vm468
        %vm473 = vmor %vm459, %vm469
        %vm474 = vmor %vm460, %vm470
        %v475 = vsel %vm471, 1, 0
        %v476 = vsel %vm472, 1, 0
        %v477 = vsel %vm473, 1, 0
        %v478 = vsel %vm474, 1, 0
        %v479 = vadd.s32 %v445, %v475
        %v480 = vadd.s32 %v446, %v476
        %v481 = vadd.s32 %v447, %v477
        %v482 = vadd.s32 %v448, %v478
        %v483 = vlaneseq
        %v484 = vshrl.u32 %v483, 7
        %v485 = vsub.s32 2, %v484
        %v486 = vrot.slane %v398, %v485
        %v487 = vlaneseq
        %v488 = vshrl.u32 %v487, 7
        %v489 = vsub.s32 2, %v488
        %v490 = vrot.slane %v399, %v489
        %vm491 = vcmp.gt.f32.partialorder %v486, %v398
        %vm492 = vcmp.gt.f32.partialorder %v490, %v399
        %vm493 = vcmp.gt.f32.partialorder %v486, %v400
        %vm494 = vcmp.gt.f32.partialorder %v490, %v401
        %vm495 = vcmp.eq.f32.partialorder %v486, %v398
        %vm496 = vcmp.eq.f32.partialorder %v490, %v399
        %vm497 = vcmp.eq.f32.partialorder %v486, %v400
        %vm498 = vcmp.eq.f32.partialorder %v490, %v401
        %vm499 = vcmp.gt.s32.totalorder %v417, 2
        %vm500 = vcmp.gt.s32.totalorder %v418, 2
        %vm501 = vmand %vm495, %vm499
        %vm502 = vmand %vm496, %vm499
        %vm503 = vmand %vm497, %vm500
        %vm504 = vmand %vm498, %vm500
        %vm505 = vmor %vm491, %vm501
        %vm506 = vmor %vm492, %vm502
        %vm507 = vmor %vm493, %vm503
        %vm508 = vmor %vm494, %vm504
        %v509 = vsel %vm505, 1, 0
        %v510 = vsel %vm506, 1, 0
        %v511 = vsel %vm507, 1, 0
        %v512 = vsel %vm508, 1, 0
        %v513 = vadd.s32 %v479, %v509
        %v514 = vadd.s32 %v480, %v510
        %v515 = vadd.s32 %v481, %v511
        %v516 = vadd.s32 %v482, %v512
        %v517 = vlaneseq
        %v518 = vshrl.u32 %v517, 7
        %v519 = vsub.s32 3, %v518
        %v520 = vrot.slane %v398, %v519
        %v521 = vlaneseq
        %v522 = vshrl.u32 %v521, 7
        %v523 = vsub.s32 3, %v522
        %v524 = vrot.slane %v399, %v523
        %vm525 = vcmp.gt.f32.partialorder %v520, %v398
        %vm526 = vcmp.gt.f32.partialorder %v524, %v399
        %vm527 = vcmp.gt.f32.partialorder %v520, %v400
        %vm528 = vcmp.gt.f32.partialorder %v524, %v401
        %vm529 = vcmp.eq.f32.partialorder %v520, %v398
        %vm530 = vcmp.eq.f32.partialorder %v524, %v399
        %vm531 = vcmp.eq.f32.partialorder %v520, %v400
        %vm532 = vcmp.eq.f32.partialorder %v524, %v401
        %vm533 = vcmp.gt.s32.totalorder %v417, 3
        %vm534 = vcmp.gt.s32.totalorder %v418, 3
        %vm535 = vmand %vm529, %vm533
        %vm536 = vmand %vm530, %vm533
        %vm537 = vmand %vm531, %vm534
        %vm538 = vmand %vm532, %vm534
        %vm539 = vmor %vm525, %vm535
        %vm540 = vmor %vm526, %vm536
        %vm541 = vmor %vm527, %vm537
        %vm542 = vmor %vm528, %vm538
        %v543 = vsel %vm539, 1, 0
        %v544 = vsel %vm540, 1, 0
        %v545 = vsel %vm541, 1, 0
        %v546 = vsel %vm542, 1, 0
        %v547 = vadd.s32 %v513, %v543
        %v548 = vadd.s32 %v514, %v544
        %v549 = vadd.s32 %v515, %v545
        %v550 = vadd.s32 %v516, %v546
        %v551 = vlaneseq
        %v552 = vshrl.u32 %v551, 7
        %v553 = vsub.s32 4, %v552
        %v554 = vrot.slane %v398, %v553
        %v555 = vlaneseq
        %v556 = vshrl.u32 %v555, 7
        %v557 = vsub.s32 4, %v556
        %v558 = vrot.slane %v399, %v557
        %vm559 = vcmp.gt.f32.partialorder %v554, %v398
        %vm560 = vcmp.gt.f32.partialorder %v558, %v399
        %vm561 = vcmp.gt.f32.partialorder %v554, %v400
        %vm562 = vcmp.gt.f32.partialorder %v558, %v401
        %vm563 = vcmp.eq.f32.partialorder %v554, %v398
        %vm564 = vcmp.eq.f32.partialorder %v558, %v399
        %vm565 = vcmp.eq.f32.partialorder %v554, %v400
        %vm566 = vcmp.eq.f32.partialorder %v558, %v401
        %vm567 = vcmp.gt.s32.totalorder %v417, 4
        %vm568 = vcmp.gt.s32.totalorder %v418, 4
        %vm569 = vmand %vm563, %vm567
        %vm570 = vmand %vm564, %vm567
        %vm571 = vmand %vm565, %vm568
        %vm572 = vmand %vm566, %vm568
        %vm573 = vmor %vm559, %vm569
        %vm574 = vmor %vm560, %vm570
        %vm575 = vmor %vm561, %vm571
        %vm576 = vmor %vm562, %vm572
        %v577 = vsel %vm573, 1, 0
        %v578 = vsel %vm574, 1, 0
        %v579 = vsel %vm575, 1, 0
        %v580 = vsel %vm576, 1, 0
        %v581 = vadd.s32 %v547, %v577
        %v582 = vadd.s32 %v548, %v578
        %v583 = vadd.s32 %v549, %v579
        %v584 = vadd.s32 %v550, %v580
        %v585 = vlaneseq
        %v586 = vshrl.u32 %v585, 7
        %v587 = vsub.s32 5, %v586
        %v588 = vrot.slane %v398, %v587
        %v589 = vlaneseq
        %v590 = vshrl.u32 %v589, 7
        %v591 = vsub.s32 5, %v590
        %v592 = vrot.slane %v399, %v591
        %vm593 = vcmp.gt.f32.partialorder %v588, %v398
        %vm594 = vcmp.gt.f32.partialorder %v592, %v399
        %vm595 = vcmp.gt.f32.partialorder %v588, %v400
        %vm596 = vcmp.gt.f32.partialorder %v592, %v401
        %vm597 = vcmp.eq.f32.partialorder %v588, %v398
        %vm598 = vcmp.eq.f32.partialorder %v592, %v399
        %vm599 = vcmp.eq.f32.partialorder %v588, %v400
        %vm600 = vcmp.eq.f32.partialorder %v592, %v401
        %vm601 = vcmp.gt.s32.totalorder %v417, 5
        %vm602 = vcmp.gt.s32.totalorder %v418, 5
        %vm603 = vmand %vm597, %vm601
        %vm604 = vmand %vm598, %vm601
        %vm605 = vmand %vm599, %vm602
        %vm606 = vmand %vm600, %vm602
        %vm607 = vmor %vm593, %vm603
        %vm608 = vmor %vm594, %vm604
        %vm609 = vmor %vm595, %vm605
        %vm610 = vmor %vm596, %vm606
        %v611 = vsel %vm607, 1, 0
        %v612 = vsel %vm608, 1, 0
        %v613 = vsel %vm609, 1, 0
        %v614 = vsel %vm610, 1, 0
        %v615 = vadd.s32 %v581, %v611
        %v616 = vadd.s32 %v582, %v612
        %v617 = vadd.s32 %v583, %v613
        %v618 = vadd.s32 %v584, %v614
        %v619 = vlaneseq
        %v620 = vshrl.u32 %v619, 7
        %v621 = vsub.s32 6, %v620
        %v622 = vrot.slane %v398, %v621
        %v623 = vlaneseq
        %v624 = vshrl.u32 %v623, 7
        %v625 = vsub.s32 6, %v624
        %v626 = vrot.slane %v399, %v625
        %vm627 = vcmp.gt.f32.partialorder %v622, %v398
        %vm628 = vcmp.gt.f32.partialorder %v626, %v399
        %vm629 = vcmp.gt.f32.partialorder %v622, %v400
        %vm630 = vcmp.gt.f32.partialorder %v626, %v401
        %vm631 = vcmp.eq.f32.partialorder %v622, %v398
        %vm632 = vcmp.eq.f32.partialorder %v626, %v399
        %vm633 = vcmp.eq.f32.partialorder %v622, %v400
        %vm634 = vcmp.eq.f32.partialorder %v626, %v401
        %vm635 = vcmp.gt.s32.totalorder %v417, 6
        %vm636 = vcmp.gt.s32.totalorder %v418, 6
        %vm637 = vmand %vm631, %vm635
        %vm638 = vmand %vm632, %vm635
        %vm639 = vmand %vm633, %vm636
        %vm640 = vmand %vm634, %vm636
        %vm641 = vmor %vm627, %vm637
        %vm642 = vmor %vm628, %vm638
        %vm643 = vmor %vm629, %vm639
        %vm644 = vmor %vm630, %vm640
        %v645 = vsel %vm641, 1, 0
        %v646 = vsel %vm642, 1, 0
        %v647 = vsel %vm643, 1, 0
        %v648 = vsel %vm644, 1, 0
        %v649 = vadd.s32 %v615, %v645
        %v650 = vadd.s32 %v616, %v646
        %v651 = vadd.s32 %v617, %v647
        %v652 = vadd.s32 %v618, %v648
        %v653 = vlaneseq
        %v654 = vshrl.u32 %v653, 7
        %v655 = vsub.s32 7, %v654
        %v656 = vrot.slane %v398, %v655
        %v657 = vlaneseq
        %v658 = vshrl.u32 %v657, 7
        %v659 = vsub.s32 7, %v658
        %v660 = vrot.slane %v399, %v659
        %vm661 = vcmp.gt.f32.partialorder %v656, %v398
        %vm662 = vcmp.gt.f32.partialorder %v660, %v399
        %vm663 = vcmp.gt.f32.partialorder %v656, %v400
        %vm664 = vcmp.gt.f32.partialorder %v660, %v401
        %vm665 = vcmp.eq.f32.partialorder %v656, %v398
        %vm666 = vcmp.eq.f32.partialorder %v660, %v399
        %vm667 = vcmp.eq.f32.partialorder %v656, %v400
        %vm668 = vcmp.eq.f32.partialorder %v660, %v401
        %vm669 = vcmp.gt.s32.totalorder %v417, 7
        %vm670 = vcmp.gt.s32.totalorder %v418, 7
        %vm671 = vmand %vm665, %vm669
        %vm672 = vmand %vm666, %vm669
        %vm673 = vmand %vm667, %vm670
        %vm674 = vmand %vm668, %vm670
        %vm675 = vmor %vm661, %vm671
        %vm676 = vmor %vm662, %vm672
        %vm677 = vmor %vm663, %vm673
        %vm678 = vmor %vm664, %vm674
        %v679 = vsel %vm675, 1, 0
        %v680 = vsel %vm676, 1, 0
        %v681 = vsel %vm677, 1, 0
        %v682 = vsel %vm678, 1, 0
        %v683 = vadd.s32 %v649, %v679
        %v684 = vadd.s32 %v650, %v680
        %v685 = vadd.s32 %v651, %v681
        %v686 = vadd.s32 %v652, %v682
        %v687 = vlaneseq
        %v688 = vshrl.u32 %v687, 7
        %v689 = vsub.s32 0, %v688
        %v690 = vrot.slane %v400, %v689
        %v691 = vlaneseq
        %v692 = vshrl.u32 %v691, 7
        %v693 = vsub.s32 0, %v692
        %v694 = vrot.slane %v401, %v693
        %vm695 = vcmp.gt.f32.partialorder %v690, %v398
        %vm696 = vcmp.gt.f32.partialorder %v694, %v399
        %vm697 = vcmp.gt.f32.partialorder %v690, %v400
        %vm698 = vcmp.gt.f32.partialorder %v694, %v401
        %vm699 = vcmp.eq.f32.partialorder %v690, %v398
        %vm700 = vcmp.eq.f32.partialorder %v694, %v399
        %vm701 = vcmp.eq.f32.partialorder %v690, %v400
        %vm702 = vcmp.eq.f32.partialorder %v694, %v401
        %vm703 = vcmp.gt.s32.totalorder %v417, 8
        %vm704 = vcmp.gt.s32.totalorder %v418, 8
        %vm705 = vmand %vm699, %vm703
        %vm706 = vmand %vm700, %vm703
        %vm707 = vmand %vm701, %vm704
        %vm708 = vmand %vm702, %vm704
        %vm709 = vmor %vm695, %vm705
        %vm710 = vmor %vm696, %vm706
        %vm711 = vmor %vm697, %vm707
        %vm712 = vmor %vm698, %vm708
        %v713 = vsel %vm709, 1, 0
        %v714 = vsel %vm710, 1, 0
        %v715 = vsel %vm711, 1, 0
        %v716 = vsel %vm712, 1, 0
        %v717 = vadd.s32 %v683, %v713
        %v718 = vadd.s32 %v684, %v714
        %v719 = vadd.s32 %v685, %v715
        %v720 = vadd.s32 %v686, %v716
        %v721 = vlaneseq
        %v722 = vshrl.u32 %v721, 7
        %v723 = vsub.s32 1, %v722
        %v724 = vrot.slane %v400, %v723
        %v725 = vlaneseq
        %v726 = vshrl.u32 %v725, 7
        %v727 = vsub.s32 1, %v726
        %v728 = vrot.slane %v401, %v727
        %vm729 = vcmp.gt.f32.partialorder %v724, %v398
        %vm730 = vcmp.gt.f32.partialorder %v728, %v399
        %vm731 = vcmp.gt.f32.partialorder %v724, %v400
        %vm732 = vcmp.gt.f32.partialorder %v728, %v401
        %vm733 = vcmp.eq.f32.partialorder %v724, %v398
        %vm734 = vcmp.eq.f32.partialorder %v728, %v399
        %vm735 = vcmp.eq.f32.partialorder %v724, %v400
        %vm736 = vcmp.eq.f32.partialorder %v728, %v401
        %vm737 = vcmp.gt.s32.totalorder %v417, 9
        %vm738 = vcmp.gt.s32.totalorder %v418, 9
        %vm739 = vmand %vm733, %vm737
        %vm740 = vmand %vm734, %vm737
        %vm741 = vmand %vm735, %vm738
        %vm742 = vmand %vm736, %vm738
        %vm743 = vmor %vm729, %vm739
        %vm744 = vmor %vm730, %vm740
        %vm745 = vmor %vm731, %vm741
        %vm746 = vmor %vm732, %vm742
        %v747 = vsel %vm743, 1, 0
        %v748 = vsel %vm744, 1, 0
        %v749 = vsel %vm745, 1, 0
        %v750 = vsel %vm746, 1, 0
        %v751 = vadd.s32 %v717, %v747
        %v752 = vadd.s32 %v718, %v748
        %v753 = vadd.s32 %v719, %v749
        %v754 = vadd.s32 %v720, %v750
        %v755 = vlaneseq
        %v756 = vshrl.u32 %v755, 7
        %v757 = vsub.s32 2, %v756
        %v758 = vrot.slane %v400, %v757
        %v759 = vlaneseq
        %v760 = vshrl.u32 %v759, 7
        %v761 = vsub.s32 2, %v760
        %v762 = vrot.slane %v401, %v761
        %vm763 = vcmp.gt.f32.partialorder %v758, %v398
        %vm764 = vcmp.gt.f32.partialorder %v762, %v399
        %vm765 = vcmp.gt.f32.partialorder %v758, %v400
        %vm766 = vcmp.gt.f32.partialorder %v762, %v401
        %vm767 = vcmp.eq.f32.partialorder %v758, %v398
        %vm768 = vcmp.eq.f32.partialorder %v762, %v399
        %vm769 = vcmp.eq.f32.partialorder %v758, %v400
        %vm770 = vcmp.eq.f32.partialorder %v762, %v401
        %vm771 = vcmp.gt.s32.totalorder %v417, 10
        %vm772 = vcmp.gt.s32.totalorder %v418, 10
        %vm773 = vmand %vm767, %vm771
        %vm774 = vmand %vm768, %vm771
        %vm775 = vmand %vm769, %vm772
        %vm776 = vmand %vm770, %vm772
        %vm777 = vmor %vm763, %vm773
        %vm778 = vmor %vm764, %vm774
        %vm779 = vmor %vm765, %vm775
        %vm780 = vmor %vm766, %vm776
        %v781 = vsel %vm777, 1, 0
        %v782 = vsel %vm778, 1, 0
        %v783 = vsel %vm779, 1, 0
        %v784 = vsel %vm780, 1, 0
        %v785 = vadd.s32 %v751, %v781
        %v786 = vadd.s32 %v752, %v782
        %v787 = vadd.s32 %v753, %v783
        %v788 = vadd.s32 %v754, %v784
        %v789 = vlaneseq
        %v790 = vshrl.u32 %v789, 7
        %v791 = vsub.s32 3, %v790
        %v792 = vrot.slane %v400, %v791
        %v793 = vlaneseq
        %v794 = vshrl.u32 %v793, 7
        %v795 = vsub.s32 3, %v794
        %v796 = vrot.slane %v401, %v795
        %vm797 = vcmp.gt.f32.partialorder %v792, %v398
        %vm798 = vcmp.gt.f32.partialorder %v796, %v399
        %vm799 = vcmp.gt.f32.partialorder %v792, %v400
        %vm800 = vcmp.gt.f32.partialorder %v796, %v401
        %vm801 = vcmp.eq.f32.partialorder %v792, %v398
        %vm802 = vcmp.eq.f32.partialorder %v796, %v399
        %vm803 = vcmp.eq.f32.partialorder %v792, %v400
        %vm804 = vcmp.eq.f32.partialorder %v796, %v401
        %vm805 = vcmp.gt.s32.totalorder %v417, 11
        %vm806 = vcmp.gt.s32.totalorder %v418, 11
        %vm807 = vmand %vm801, %vm805
        %vm808 = vmand %vm802, %vm805
        %vm809 = vmand %vm803, %vm806
        %vm810 = vmand %vm804, %vm806
        %vm811 = vmor %vm797, %vm807
        %vm812 = vmor %vm798, %vm808
        %vm813 = vmor %vm799, %vm809
        %vm814 = vmor %vm800, %vm810
        %v815 = vsel %vm811, 1, 0
        %v816 = vsel %vm812, 1, 0
        %v817 = vsel %vm813, 1, 0
        %v818 = vsel %vm814, 1, 0
        %v819 = vadd.s32 %v785, %v815
        %v820 = vadd.s32 %v786, %v816
        %v821 = vadd.s32 %v787, %v817
        %v822 = vadd.s32 %v788, %v818
        %v823 = vlaneseq
        %v824 = vshrl.u32 %v823, 7
        %v825 = vsub.s32 4, %v824
        %v826 = vrot.slane %v400, %v825
        %v827 = vlaneseq
        %v828 = vshrl.u32 %v827, 7
        %v829 = vsub.s32 4, %v828
        %v830 = vrot.slane %v401, %v829
        %vm831 = vcmp.gt.f32.partialorder %v826, %v398
        %vm832 = vcmp.gt.f32.partialorder %v830, %v399
        %vm833 = vcmp.gt.f32.partialorder %v826, %v400
        %vm834 = vcmp.gt.f32.partialorder %v830, %v401
        %vm835 = vcmp.eq.f32.partialorder %v826, %v398
        %vm836 = vcmp.eq.f32.partialorder %v830, %v399
        %vm837 = vcmp.eq.f32.partialorder %v826, %v400
        %vm838 = vcmp.eq.f32.partialorder %v830, %v401
        %vm839 = vcmp.gt.s32.totalorder %v417, 12
        %vm840 = vcmp.gt.s32.totalorder %v418, 12
        %vm841 = vmand %vm835, %vm839
        %vm842 = vmand %vm836, %vm839
        %vm843 = vmand %vm837, %vm840
        %vm844 = vmand %vm838, %vm840
        %vm845 = vmor %vm831, %vm841
        %vm846 = vmor %vm832, %vm842
        %vm847 = vmor %vm833, %vm843
        %vm848 = vmor %vm834, %vm844
        %v849 = vsel %vm845, 1, 0
        %v850 = vsel %vm846, 1, 0
        %v851 = vsel %vm847, 1, 0
        %v852 = vsel %vm848, 1, 0
        %v853 = vadd.s32 %v819, %v849
        %v854 = vadd.s32 %v820, %v850
        %v855 = vadd.s32 %v821, %v851
        %v856 = vadd.s32 %v822, %v852
        %v857 = vlaneseq
        %v858 = vshrl.u32 %v857, 7
        %v859 = vsub.s32 5, %v858
        %v860 = vrot.slane %v400, %v859
        %v861 = vlaneseq
        %v862 = vshrl.u32 %v861, 7
        %v863 = vsub.s32 5, %v862
        %v864 = vrot.slane %v401, %v863
        %vm865 = vcmp.gt.f32.partialorder %v860, %v398
        %vm866 = vcmp.gt.f32.partialorder %v864, %v399
        %vm867 = vcmp.gt.f32.partialorder %v860, %v400
        %vm868 = vcmp.gt.f32.partialorder %v864, %v401
        %vm869 = vcmp.eq.f32.partialorder %v860, %v398
        %vm870 = vcmp.eq.f32.partialorder %v864, %v399
        %vm871 = vcmp.eq.f32.partialorder %v860, %v400
        %vm872 = vcmp.eq.f32.partialorder %v864, %v401
        %vm873 = vcmp.gt.s32.totalorder %v417, 13
        %vm874 = vcmp.gt.s32.totalorder %v418, 13
        %vm875 = vmand %vm869, %vm873
        %vm876 = vmand %vm870, %vm873
        %vm877 = vmand %vm871, %vm874
        %vm878 = vmand %vm872, %vm874
        %vm879 = vmor %vm865, %vm875
        %vm880 = vmor %vm866, %vm876
        %vm881 = vmor %vm867, %vm877
        %vm882 = vmor %vm868, %vm878
        %v883 = vsel %vm879, 1, 0
        %v884 = vsel %vm880, 1, 0
        %v885 = vsel %vm881, 1, 0
        %v886 = vsel %vm882, 1, 0
        %v887 = vadd.s32 %v853, %v883
        %v888 = vadd.s32 %v854, %v884
        %v889 = vadd.s32 %v855, %v885
        %v890 = vadd.s32 %v856, %v886
        %v891 = vlaneseq
        %v892 = vshrl.u32 %v891, 7
        %v893 = vsub.s32 6, %v892
        %v894 = vrot.slane %v400, %v893
        %v895 = vlaneseq
        %v896 = vshrl.u32 %v895, 7
        %v897 = vsub.s32 6, %v896
        %v898 = vrot.slane %v401, %v897
        %vm899 = vcmp.gt.f32.partialorder %v894, %v398
        %vm900 = vcmp.gt.f32.partialorder %v898, %v399
        %vm901 = vcmp.gt.f32.partialorder %v894, %v400
        %vm902 = vcmp.gt.f32.partialorder %v898, %v401
        %vm903 = vcmp.eq.f32.partialorder %v894, %v398
        %vm904 = vcmp.eq.f32.partialorder %v898, %v399
        %vm905 = vcmp.eq.f32.partialorder %v894, %v400
        %vm906 = vcmp.eq.f32.partialorder %v898, %v401
        %vm907 = vcmp.gt.s32.totalorder %v417, 14
        %vm908 = vcmp.gt.s32.totalorder %v418, 14
        %vm909 = vmand %vm903, %vm907
        %vm910 = vmand %vm904, %vm907
        %vm911 = vmand %vm905, %vm908
        %vm912 = vmand %vm906, %vm908
        %vm913 = vmor %vm899, %vm909
        %vm914 = vmor %vm900, %vm910
        %vm915 = vmor %vm901, %vm911
        %vm916 = vmor %vm902, %vm912
        %v917 = vsel %vm913, 1, 0
        %v918 = vsel %vm914, 1, 0
        %v919 = vsel %vm915, 1, 0
        %v920 = vsel %vm916, 1, 0
        %v921 = vadd.s32 %v887, %v917
        %v922 = vadd.s32 %v888, %v918
        %v923 = vadd.s32 %v889, %v919
        %v924 = vadd.s32 %v890, %v920
        %v925 = vlaneseq
        %v926 = vshrl.u32 %v925, 7
        %v927 = vsub.s32 7, %v926
        %v928 = vrot.slane %v400, %v927
        %v929 = vlaneseq
        %v930 = vshrl.u32 %v929, 7
        %v931 = vsub.s32 7, %v930
        %v932 = vrot.slane %v401, %v931
        %vm933 = vcmp.gt.f32.partialorder %v928, %v398
        %vm934 = vcmp.gt.f32.partialorder %v932, %v399
        %vm935 = vcmp.gt.f32.partialorder %v928, %v400
        %vm936 = vcmp.gt.f32.partialorder %v932, %v401
        %vm937 = vcmp.eq.f32.partialorder %v928, %v398
        %vm938 = vcmp.eq.f32.partialorder %v932, %v399
        %vm939 = vcmp.eq.f32.partialorder %v928, %v400
        %vm940 = vcmp.eq.f32.partialorder %v932, %v401
        %vm941 = vcmp.gt.s32.totalorder %v417, 15
        %vm942 = vcmp.gt.s32.totalorder %v418, 15
        %vm943 = vmand %vm937, %vm941
        %vm944 = vmand %vm938, %vm941
        %vm945 = vmand %vm939, %vm942
        %vm946 = vmand %vm940, %vm942
        %vm947 = vmor %vm933, %vm943
        %vm948 = vmor %vm934, %vm944
        %vm949 = vmor %vm935, %vm945
        %vm950 = vmor %vm936, %vm946
        %v951 = vsel %vm947, 1, 0
        %v952 = vsel %vm948, 1, 0
        %v953 = vsel %vm949, 1, 0
        %v954 = vsel %vm950, 1, 0
        %v955 = vadd.s32 %v921, %v951
        %v956 = vadd.s32 %v922, %v952
        %v957 = vadd.s32 %v923, %v953
        %v958 = vadd.s32 %v924, %v954
        %v959 = vlaneseq
        %v960 = vshrl.u32 %v959, 7
        %v961 = vsub.s32 0, %v960
        %v962 = vrot.slane %v955, %v961
        %v963 = vlaneseq
        %v964 = vshrl.u32 %v963, 7
        %v965 = vsub.s32 0, %v964
        %v966 = vrot.slane %v956, %v965
        %vm967 = vcmp.eq.s32.totalorder %v417, %v962
        %vm968 = vcmp.eq.s32.totalorder %v417, %v966
        %vm969 = vcmp.eq.s32.totalorder %v418, %v962
        %vm970 = vcmp.eq.s32.totalorder %v418, %v966
        %v971 = vsel %vm967, %v422, 0.0
        %v972 = vsel %vm968, %v426, 0.0
        %v973 = vsel %vm969, %v422, 0.0
        %v974 = vsel %vm970, %v426, 0.0
        %v975 = vlaneseq
        %v976 = vshrl.u32 %v975, 7
        %v977 = vsub.s32 1, %v976
        %v978 = vrot.slane %v955, %v977
        %v979 = vlaneseq
        %v980 = vshrl.u32 %v979, 7
        %v981 = vsub.s32 1, %v980
        %v982 = vrot.slane %v956, %v981
        %vm983 = vcmp.eq.s32.totalorder %v417, %v978
        %vm984 = vcmp.eq.s32.totalorder %v417, %v982
        %vm985 = vcmp.eq.s32.totalorder %v418, %v978
        %vm986 = vcmp.eq.s32.totalorder %v418, %v982
        %v987 = vsel %vm983, %v452, %v971
        %v988 = vsel %vm984, %v456, %v972
        %v989 = vsel %vm985, %v452, %v973
        %v990 = vsel %vm986, %v456, %v974
        %v991 = vlaneseq
        %v992 = vshrl.u32 %v991, 7
        %v993 = vsub.s32 2, %v992
        %v994 = vrot.slane %v955, %v993
        %v995 = vlaneseq
        %v996 = vshrl.u32 %v995, 7
        %v997 = vsub.s32 2, %v996
        %v998 = vrot.slane %v956, %v997
        %vm999 = vcmp.eq.s32.totalorder %v417, %v994
        %vm1000 = vcmp.eq.s32.totalorder %v417, %v998
        %vm1001 = vcmp.eq.s32.totalorder %v418, %v994
        %vm1002 = vcmp.eq.s32.totalorder %v418, %v998
        %v1003 = vsel %vm999, %v486, %v987
        %v1004 = vsel %vm1000, %v490, %v988
        %v1005 = vsel %vm1001, %v486, %v989
        %v1006 = vsel %vm1002, %v490, %v990
        %v1007 = vlaneseq
        %v1008 = vshrl.u32 %v1007, 7
        %v1009 = vsub.s32 3, %v1008
        %v1010 = vrot.slane %v955, %v1009
        %v1011 = vlaneseq
        %v1012 = vshrl.u32 %v1011, 7
        %v1013 = vsub.s32 3, %v1012
        %v1014 = vrot.slane %v956, %v1013
        %vm1015 = vcmp.eq.s32.totalorder %v417, %v1010
        %vm1016 = vcmp.eq.s32.totalorder %v417, %v1014
        %vm1017 = vcmp.eq.s32.totalorder %v418, %v1010
        %vm1018 = vcmp.eq.s32.totalorder %v418, %v1014
        %v1019 = vsel %vm1015, %v520, %v1003
        %v1020 = vsel %vm1016, %v524, %v1004
        %v1021 = vsel %vm1017, %v520, %v1005
        %v1022 = vsel %vm1018, %v524, %v1006
        %v1023 = vlaneseq
        %v1024 = vshrl.u32 %v1023, 7
        %v1025 = vsub.s32 4, %v1024
        %v1026 = vrot.slane %v955, %v1025
        %v1027 = vlaneseq
        %v1028 = vshrl.u32 %v1027, 7
        %v1029 = vsub.s32 4, %v1028
        %v1030 = vrot.slane %v956, %v1029
        %vm1031 = vcmp.eq.s32.totalorder %v417, %v1026
        %vm1032 = vcmp.eq.s32.totalorder %v417, %v1030
        %vm1033 = vcmp.eq.s32.totalorder %v418, %v1026
        %vm1034 = vcmp.eq.s32.totalorder %v418, %v1030
        %v1035 = vsel %vm1031, %v554, %v1019
        %v1036 = vsel %vm1032, %v558, %v1020
        %v1037 = vsel %vm1033, %v554, %v1021
        %v1038 = vsel %vm1034, %v558, %v1022
        %v1039 = vlaneseq
        %v1040 = vshrl.u32 %v1039, 7
        %v1041 = vsub.s32 5, %v1040
        %v1042 = vrot.slane %v955, %v1041
        %v1043 = vlaneseq
        %v1044 = vshrl.u32 %v1043, 7
        %v1045 = vsub.s32 5, %v1044
        %v1046 = vrot.slane %v956, %v1045
        %vm1047 = vcmp.eq.s32.totalorder %v417, %v1042
        %vm1048 = vcmp.eq.s32.totalorder %v417, %v1046
        %vm1049 = vcmp.eq.s32.totalorder %v418, %v1042
        %vm1050 = vcmp.eq.s32.totalorder %v418, %v1046
        %v1051 = vsel %vm1047, %v588, %v1035
        %v1052 = vsel %vm1048, %v592, %v1036
        %v1053 = vsel %vm1049, %v588, %v1037
        %v1054 = vsel %vm1050, %v592, %v1038
        %v1055 = vlaneseq
        %v1056 = vshrl.u32 %v1055, 7
        %v1057 = vsub.s32 6, %v1056
        %v1058 = vrot.slane %v955, %v1057
        %v1059 = vlaneseq
        %v1060 = vshrl.u32 %v1059, 7
        %v1061 = vsub.s32 6, %v1060
        %v1062 = vrot.slane %v956, %v1061
        %vm1063 = vcmp.eq.s32.totalorder %v417, %v1058
        %vm1064 = vcmp.eq.s32.totalorder %v417, %v1062
        %vm1065 = vcmp.eq.s32.totalorder %v418, %v1058
        %vm1066 = vcmp.eq.s32.totalorder %v418, %v1062
        %v1067 = vsel %vm1063, %v622, %v1051
        %v1068 = vsel %vm1064, %v626, %v1052
        %v1069 = vsel %vm1065, %v622, %v1053
        %v1070 = vsel %vm1066, %v626, %v1054
        %v1071 = vlaneseq
        %v1072 = vshrl.u32 %v1071, 7
        %v1073 = vsub.s32 7, %v1072
        %v1074 = vrot.slane %v955, %v1073
        %v1075 = vlaneseq
        %v1076 = vshrl.u32 %v1075, 7
        %v1077 = vsub.s32 7, %v1076
        %v1078 = vrot.slane %v956, %v1077
        %vm1079 = vcmp.eq.s32.totalorder %v417, %v1074
        %vm1080 = vcmp.eq.s32.totalorder %v417, %v1078
        %vm1081 = vcmp.eq.s32.totalorder %v418, %v1074
        %vm1082 = vcmp.eq.s32.totalorder %v418, %v1078
        %v1083 = vsel %vm1079, %v656, %v1067
        %v1084 = vsel %vm1080, %v660, %v1068
        %v1085 = vsel %vm1081, %v656, %v1069
        %v1086 = vsel %vm1082, %v660, %v1070
        %v1087 = vlaneseq
        %v1088 = vshrl.u32 %v1087, 7
        %v1089 = vsub.s32 0, %v1088
        %v1090 = vrot.slane %v957, %v1089
        %v1091 = vlaneseq
        %v1092 = vshrl.u32 %v1091, 7
        %v1093 = vsub.s32 0, %v1092
        %v1094 = vrot.slane %v958, %v1093
        %vm1095 = vcmp.eq.s32.totalorder %v417, %v1090
        %vm1096 = vcmp.eq.s32.totalorder %v417, %v1094
        %vm1097 = vcmp.eq.s32.totalorder %v418, %v1090
        %vm1098 = vcmp.eq.s32.totalorder %v418, %v1094
        %v1099 = vsel %vm1095, %v690, %v1083
        %v1100 = vsel %vm1096, %v694, %v1084
        %v1101 = vsel %vm1097, %v690, %v1085
        %v1102 = vsel %vm1098, %v694, %v1086
        %v1103 = vlaneseq
        %v1104 = vshrl.u32 %v1103, 7
        %v1105 = vsub.s32 1, %v1104
        %v1106 = vrot.slane %v957, %v1105
        %v1107 = vlaneseq
        %v1108 = vshrl.u32 %v1107, 7
        %v1109 = vsub.s32 1, %v1108
        %v1110 = vrot.slane %v958, %v1109
        %vm1111 = vcmp.eq.s32.totalorder %v417, %v1106
        %vm1112 = vcmp.eq.s32.totalorder %v417, %v1110
        %vm1113 = vcmp.eq.s32.totalorder %v418, %v1106
        %vm1114 = vcmp.eq.s32.totalorder %v418, %v1110
        %v1115 = vsel %vm1111, %v724, %v1099
        %v1116 = vsel %vm1112, %v728, %v1100
        %v1117 = vsel %vm1113, %v724, %v1101
        %v1118 = vsel %vm1114, %v728, %v1102
        %v1119 = vlaneseq
        %v1120 = vshrl.u32 %v1119, 7
        %v1121 = vsub.s32 2, %v1120
        %v1122 = vrot.slane %v957, %v1121
        %v1123 = vlaneseq
        %v1124 = vshrl.u32 %v1123, 7
        %v1125 = vsub.s32 2, %v1124
        %v1126 = vrot.slane %v958, %v1125
        %vm1127 = vcmp.eq.s32.totalorder %v417, %v1122
        %vm1128 = vcmp.eq.s32.totalorder %v417, %v1126
        %vm1129 = vcmp.eq.s32.totalorder %v418, %v1122
        %vm1130 = vcmp.eq.s32.totalorder %v418, %v1126
        %v1131 = vsel %vm1127, %v758, %v1115
        %v1132 = vsel %vm1128, %v762, %v1116
        %v1133 = vsel %vm1129, %v758, %v1117
        %v1134 = vsel %vm1130, %v762, %v1118
        %v1135 = vlaneseq
        %v1136 = vshrl.u32 %v1135, 7
        %v1137 = vsub.s32 3, %v1136
        %v1138 = vrot.slane %v957, %v1137
        %v1139 = vlaneseq
        %v1140 = vshrl.u32 %v1139, 7
        %v1141 = vsub.s32 3, %v1140
        %v1142 = vrot.slane %v958, %v1141
        %vm1143 = vcmp.eq.s32.totalorder %v417, %v1138
        %vm1144 = vcmp.eq.s32.totalorder %v417, %v1142
        %vm1145 = vcmp.eq.s32.totalorder %v418, %v1138
        %vm1146 = vcmp.eq.s32.totalorder %v418, %v1142
        %v1147 = vsel %vm1143, %v792, %v1131
        %v1148 = vsel %vm1144, %v796, %v1132
        %v1149 = vsel %vm1145, %v792, %v1133
        %v1150 = vsel %vm1146, %v796, %v1134
        %v1151 = vlaneseq
        %v1152 = vshrl.u32 %v1151, 7
        %v1153 = vsub.s32 4, %v1152
        %v1154 = vrot.slane %v957, %v1153
        %v1155 = vlaneseq
        %v1156 = vshrl.u32 %v1155, 7
        %v1157 = vsub.s32 4, %v1156
        %v1158 = vrot.slane %v958, %v1157
        %vm1159 = vcmp.eq.s32.totalorder %v417, %v1154
        %vm1160 = vcmp.eq.s32.totalorder %v417, %v1158
        %vm1161 = vcmp.eq.s32.totalorder %v418, %v1154
        %vm1162 = vcmp.eq.s32.totalorder %v418, %v1158
        %v1163 = vsel %vm1159, %v826, %v1147
        %v1164 = vsel %vm1160, %v830, %v1148
        %v1165 = vsel %vm1161, %v826, %v1149
        %v1166 = vsel %vm1162, %v830, %v1150
        %v1167 = vlaneseq
        %v1168 = vshrl.u32 %v1167, 7
        %v1169 = vsub.s32 5, %v1168
        %v1170 = vrot.slane %v957, %v1169
        %v1171 = vlaneseq
        %v1172 = vshrl.u32 %v1171, 7
        %v1173 = vsub.s32 5, %v1172
        %v1174 = vrot.slane %v958, %v1173
        %vm1175 = vcmp.eq.s32.totalorder %v417, %v1170
        %vm1176 = vcmp.eq.s32.totalorder %v417, %v1174
        %vm1177 = vcmp.eq.s32.totalorder %v418, %v1170
        %vm1178 = vcmp.eq.s32.totalorder %v418, %v1174
        %v1179 = vsel %vm1175, %v860, %v1163
        %v1180 = vsel %vm1176, %v864, %v1164
        %v1181 = vsel %vm1177, %v860, %v1165
        %v1182 = vsel %vm1178, %v864, %v1166
        %v1183 = vlaneseq
        %v1184 = vshrl.u32 %v1183, 7
        %v1185 = vsub.s32 6, %v1184
        %v1186 = vrot.slane %v957, %v1185
        %v1187 = vlaneseq
        %v1188 = vshrl.u32 %v1187, 7
        %v1189 = vsub.s32 6, %v1188
        %v1190 = vrot.slane %v958, %v1189
        %vm1191 = vcmp.eq.s32.totalorder %v417, %v1186
        %vm1192 = vcmp.eq.s32.totalorder %v417, %v1190
        %vm1193 = vcmp.eq.s32.totalorder %v418, %v1186
        %vm1194 = vcmp.eq.s32.totalorder %v418, %v1190
        %v1195 = vsel %vm1191, %v894, %v1179
        %v1196 = vsel %vm1192, %v898, %v1180
        %v1197 = vsel %vm1193, %v894, %v1181
        %v1198 = vsel %vm1194, %v898, %v1182
        %v1199 = vlaneseq
        %v1200 = vshrl.u32 %v1199, 7
        %v1201 = vsub.s32 7, %v1200
        %v1202 = vrot.slane %v957, %v1201
        %v1203 = vlaneseq
        %v1204 = vshrl.u32 %v1203, 7
        %v1205 = vsub.s32 7, %v1204
        %v1206 = vrot.slane %v958, %v1205
        %vm1207 = vcmp.eq.s32.totalorder %v417, %v1202
        %vm1208 = vcmp.eq.s32.totalorder %v417, %v1206
        %vm1209 = vcmp.eq.s32.totalorder %v418, %v1202
        %vm1210 = vcmp.eq.s32.totalorder %v418, %v1206
        %v1211 = vsel %vm1207, %v928, %v1195
        %v1212 = vsel %vm1208, %v932, %v1196
        %v1213 = vsel %vm1209, %v928, %v1197
        %v1214 = vsel %vm1210, %v932, %v1198
        %v1215 = vld [vmem:[%s1] sm:$0xff]
        %v1216 = vld [vmem:[%s1 + $0x8] sm:$0xff]
        %s1217 = scalar_lea.vmem %s1, 16
        %v1218 = vld [vmem:[%s1217] sm:$0xff]
        %v1219 = vld [vmem:[%s1217 + $0x8] sm:$0xff]
        %1220 = vadd.xlane.f32.xlu0 %v1211
        %v1221 = vpop.xlane.xlu0 %1220
        %1222 = vadd.xlane.f32.xlu0 %v1213
        %v1223 = vpop.xlane.xlu0 %1222
        %v1224 = vrcp.pop 128.0
        %v1225 = vmul.f32 %v1221, %v1224
        %v1226 = vmul.f32 %v1223, %v1224
        %v1227 = vsub.f32 %v1211, %v1225
        %v1228 = vsub.f32 %v1213, %v1226
        %v1229 = vmul.f32 %v1227, %v1227
        %v1230 = vmul.f32 %v1228, %v1228
        %1231 = vadd.xlane.f32.xlu0 %v1229
        %v1232 = vpop.xlane.xlu0 %1231
        %1233 = vadd.xlane.f32.xlu0 %v1230
        %v1234 = vpop.xlane.xlu0 %1233
        %v1235 = vmul.f32 %v1232, %v1224
        %v1236 = vmul.f32 %v1234, %v1224
        %v1237 = vadd.f32 %v1235, 1e-05
        %v1238 = vadd.f32 %v1236, 1e-05
        %v1239 = vrsqrt.pop %v1237
        %v1240 = vrsqrt.pop %v1238
        %v1241 = vmul.f32 %v1227, %v1239
        %v1242 = vmul.f32 %v1228, %v1240
        %1243 = vadd.xlane.f32.xlu0 %v1212
        %v1244 = vpop.xlane.xlu0 %1243
        %1245 = vadd.xlane.f32.xlu0 %v1214
        %v1246 = vpop.xlane.xlu0 %1245
        %v1247 = vmul.f32 %v1244, %v1224
        %v1248 = vmul.f32 %v1246, %v1224
        %v1249 = vsub.f32 %v1212, %v1247
        %v1250 = vsub.f32 %v1214, %v1248
        %v1251 = vmul.f32 %v1249, %v1249
        %v1252 = vmul.f32 %v1250, %v1250
        %1253 = vadd.xlane.f32.xlu0 %v1251
        %v1254 = vpop.xlane.xlu0 %1253
        %1255 = vadd.xlane.f32.xlu0 %v1252
        %v1256 = vpop.xlane.xlu0 %1255
        %v1257 = vmul.f32 %v1254, %v1224
        %v1258 = vmul.f32 %v1256, %v1224
        %v1259 = vadd.f32 %v1257, 1e-05
        %v1260 = vadd.f32 %v1258, 1e-05
        %v1261 = vrsqrt.pop %v1259
        %v1262 = vrsqrt.pop %v1260
        %v1263 = vmul.f32 %v1249, %v1261
        %v1264 = vmul.f32 %v1250, %v1262
        %1266 = vset.pattern.permute.xlu0 0
        %1267 = vperm.xlu0 %1266, %v1215
        %v1268 = vpop.permute.xlu0 %1267
        %1271 = vset.pattern.permute.xlu0 0
        %1272 = vperm.xlu0 %1271, %v1216
        %v1273 = vpop.permute.xlu0 %1272
        %v1275 = vmul.f32 %v1241, %v1268
        %v1276 = vmul.f32 %v1263, %v1268
        %v1277 = vmul.f32 %v1242, %v1273
        %v1278 = vmul.f32 %v1264, %v1273
        %1280 = vset.pattern.permute.xlu0 0
        %1281 = vperm.xlu0 %1280, %v1218
        %v1282 = vpop.permute.xlu0 %1281
        %1285 = vset.pattern.permute.xlu0 0
        %1286 = vperm.xlu0 %1285, %v1219
        %v1287 = vpop.permute.xlu0 %1286
        %v1289 = vadd.f32 %v1275, %v1282
        %v1290 = vadd.f32 %v1276, %v1282
        %v1291 = vadd.f32 %v1277, %v1287
        %v1292 = vadd.f32 %v1278, %v1287
        %v1293 = vld [vmem:[%s5] sm:$0xff]
        %v1294 = vld [vmem:[%s5 + $0x8] sm:$0xff]
        %v1295 = vld [vmem:[%s5 + $0x10] sm:$0xff]
        %v1296 = vld [vmem:[%s5 + $0x18] sm:$0xff]
        %s1297 = scalar_lea.vmem %s5, 512
        %v1298 = vld [vmem:[%s1297] sm:$0xff]
        %v1299 = vld [vmem:[%s1297 + $0x8] sm:$0xff]
        %v1300 = vld [vmem:[%s1297 + $0x10] sm:$0xff]
        %v1301 = vld [vmem:[%s1297 + $0x18] sm:$0xff]
        %v1302 = vpack.c.bf16 %v1291, %v1289
        %v1303 = vpack.c.bf16 %v1292, %v1290
        %vm1304 = vcmask 130048
        %v1306 = vsel %vm1304, %v406, 0
        %v1309 = vsel %vm1304, %v407, 0
        %1311 = vmatprep.subr.bf16.mxu0 %v1303
        %1312 = vmatpush1.bf16.msra.mxu0 %v1302
        %1313 = vmatprep.subr.bf16.mxu0 0
        %1314 = vmatpush1.bf16.msra.mxu0 0
        %1315 = vmatprep.subr.bf16.mxu0 0
        %1316 = vmatpush1.bf16.msra.mxu0 0
        %1317 = vmatprep.subr.bf16.mxu0 0
        %1318 = vmatpush1.bf16.msra.mxu0 0
        %1319 = vmatprep.subr.bf16.mxu0 0
        %1320 = vmatpush1.bf16.msra.mxu0 0
        %1321 = vmatprep.subr.bf16.mxu0 0
        %1322 = vmatpush1.bf16.msra.mxu0 0
        %1323 = vmatprep.subr.bf16.mxu0 0
        %1324 = vmatpush1.bf16.msra.mxu0 0
        %1325 = vmatprep.subr.bf16.mxu0 0
        %1326 = vmatpush1.bf16.msra.mxu0 0
        %1327 = vmatprep.subr.bf16.mxu0 0
        %1328 = vmatpush1.bf16.msra.mxu0 0
        %1329 = vmatprep.subr.bf16.mxu0 0
        %1330 = vmatpush1.bf16.msra.mxu0 0
        %1331 = vmatprep.subr.bf16.mxu0 0
        %1332 = vmatpush1.bf16.msra.mxu0 0
        %1333 = vmatprep.subr.bf16.mxu0 0
        %1334 = vmatpush1.bf16.msra.mxu0 0
        %1335 = vmatprep.subr.bf16.mxu0 0
        %1336 = vmatpush1.bf16.msra.mxu0 0
        %1337 = vmatprep.subr.bf16.mxu0 0
        %1338 = vmatpush1.bf16.msra.mxu0 0
        %1339 = vmatprep.subr.bf16.mxu0 0
        %1340 = vmatpush1.bf16.msra.mxu0 0
        %1341 = vmatprep.subr.bf16.mxu0 0
        %1342 = vmatpush1.bf16.msra.mxu0 0
        %1343 = vmatprep.mubr.bf16.mxu0 0
        %1344 = vmatmul.mubr.bf16.gmra.mrb[0].mxu0 %v1306
        %v1345 = vpop.f32.mrb[0].mxu0
        %v1346 = vadd.f32 0.0, %v1345
        %v1347 = vpop.f32.mrb[0].mxu0
        %v1348 = vadd.f32 0.0, %v1347
        %v1349 = vpop.f32.mrb[0].mxu0
        %v1350 = vadd.f32 0.0, %v1349
        %v1351 = vpop.f32.mrb[0].mxu0
        %v1352 = vadd.f32 0.0, %v1351
        %1353 = vmatprep.mubr.bf16.mxu0 0
        %1354 = vmatmul.mubr.bf16.gmra.mrb[0].mxu0 %v1309
        %v1355 = vpop.f32.mrb[0].mxu0
        %v1356 = vadd.f32 0.0, %v1355
        %v1357 = vpop.f32.mrb[0].mxu0
        %v1358 = vadd.f32 0.0, %v1357
        %v1359 = vpop.f32.mrb[0].mxu0
        %v1360 = vadd.f32 0.0, %v1359
        %v1361 = vpop.f32.mrb[0].mxu0
        %v1362 = vadd.f32 0.0, %v1361
        %1363 = vdwg.mxu0
        %1364 = vadd.xlane.f32.xlu0 %v1346
        %v1365 = vpop.xlane.xlu0 %1364
        %1366 = vadd.xlane.f32.xlu0 %v1350
        %v1367 = vpop.xlane.xlu0 %1366
        %1368 = vadd.xlane.f32.xlu0 %v1356
        %v1369 = vpop.xlane.xlu0 %1368
        %1370 = vadd.xlane.f32.xlu0 %v1360
        %v1371 = vpop.xlane.xlu0 %1370
        %v1372 = vmul.f32 %v1365, %v1224
        %v1373 = vmul.f32 %v1367, %v1224
        %v1374 = vmul.f32 %v1369, %v1224
        %v1375 = vmul.f32 %v1371, %v1224
        %v1376 = vsub.f32 %v1346, %v1372
        %v1377 = vsub.f32 %v1350, %v1373
        %v1378 = vsub.f32 %v1356, %v1374
        %v1379 = vsub.f32 %v1360, %v1375
        %v1380 = vmul.f32 %v1376, %v1376
        %v1381 = vmul.f32 %v1377, %v1377
        %v1382 = vmul.f32 %v1378, %v1378
        %v1383 = vmul.f32 %v1379, %v1379
        %1384 = vadd.xlane.f32.xlu0 %v1380
        %v1385 = vpop.xlane.xlu0 %1384
        %1386 = vadd.xlane.f32.xlu0 %v1381
        %v1387 = vpop.xlane.xlu0 %1386
        %1388 = vadd.xlane.f32.xlu0 %v1382
        %v1389 = vpop.xlane.xlu0 %1388
        %1390 = vadd.xlane.f32.xlu0 %v1383
        %v1391 = vpop.xlane.xlu0 %1390
        %v1392 = vmul.f32 %v1385, %v1224
        %v1393 = vmul.f32 %v1387, %v1224
        %v1394 = vmul.f32 %v1389, %v1224
        %v1395 = vmul.f32 %v1391, %v1224
        %v1396 = vadd.f32 %v1392, 1e-05
        %v1397 = vadd.f32 %v1393, 1e-05
        %v1398 = vadd.f32 %v1394, 1e-05
        %v1399 = vadd.f32 %v1395, 1e-05
        %v1400 = vrsqrt.pop %v1396
        %v1401 = vrsqrt.pop %v1397
        %v1402 = vrsqrt.pop %v1398
        %v1403 = vrsqrt.pop %v1399
        %v1404 = vmul.f32 %v1376, %v1400
        %v1405 = vmul.f32 %v1377, %v1401
        %v1406 = vmul.f32 %v1378, %v1402
        %v1407 = vmul.f32 %v1379, %v1403
        %1408 = vadd.xlane.f32.xlu0 %v1348
        %v1409 = vpop.xlane.xlu0 %1408
        %1410 = vadd.xlane.f32.xlu0 %v1352
        %v1411 = vpop.xlane.xlu0 %1410
        %1412 = vadd.xlane.f32.xlu0 %v1358
        %v1413 = vpop.xlane.xlu0 %1412
        %1414 = vadd.xlane.f32.xlu0 %v1362
        %v1415 = vpop.xlane.xlu0 %1414
        %v1416 = vmul.f32 %v1409, %v1224
        %v1417 = vmul.f32 %v1411, %v1224
        %v1418 = vmul.f32 %v1413, %v1224
        %v1419 = vmul.f32 %v1415, %v1224
        %v1420 = vsub.f32 %v1348, %v1416
        %v1421 = vsub.f32 %v1352, %v1417
        %v1422 = vsub.f32 %v1358, %v1418
        %v1423 = vsub.f32 %v1362, %v1419
        %v1424 = vmul.f32 %v1420, %v1420
        %v1425 = vmul.f32 %v1421, %v1421
        %v1426 = vmul.f32 %v1422, %v1422
        %v1427 = vmul.f32 %v1423, %v1423
        %1428 = vadd.xlane.f32.xlu0 %v1424
        %v1429 = vpop.xlane.xlu0 %1428
        %1430 = vadd.xlane.f32.xlu0 %v1425
        %v1431 = vpop.xlane.xlu0 %1430
        %1432 = vadd.xlane.f32.xlu0 %v1426
        %v1433 = vpop.xlane.xlu0 %1432
        %1434 = vadd.xlane.f32.xlu0 %v1427
        %v1435 = vpop.xlane.xlu0 %1434
        %v1436 = vmul.f32 %v1429, %v1224
        %v1437 = vmul.f32 %v1431, %v1224
        %v1438 = vmul.f32 %v1433, %v1224
        %v1439 = vmul.f32 %v1435, %v1224
        %v1440 = vadd.f32 %v1436, 1e-05
        %v1441 = vadd.f32 %v1437, 1e-05
        %v1442 = vadd.f32 %v1438, 1e-05
        %v1443 = vadd.f32 %v1439, 1e-05
        %v1444 = vrsqrt.pop %v1440
        %v1445 = vrsqrt.pop %v1441
        %v1446 = vrsqrt.pop %v1442
        %v1447 = vrsqrt.pop %v1443
        %v1448 = vmul.f32 %v1420, %v1444
        %v1449 = vmul.f32 %v1421, %v1445
        %v1450 = vmul.f32 %v1422, %v1446
        %v1451 = vmul.f32 %v1423, %v1447
        %1453 = vset.pattern.permute.xlu0 0
        %1454 = vperm.xlu0 %1453, %v1293
        %v1455 = vpop.permute.xlu0 %1454
        %1458 = vset.pattern.permute.xlu0 0
        %1459 = vperm.xlu0 %1458, %v1294
        %v1460 = vpop.permute.xlu0 %1459
        %1463 = vset.pattern.permute.xlu0 0
        %1464 = vperm.xlu0 %1463, %v1295
        %v1465 = vpop.permute.xlu0 %1464
        %1468 = vset.pattern.permute.xlu0 0
        %1469 = vperm.xlu0 %1468, %v1296
        %v1470 = vpop.permute.xlu0 %1469
        %v1472 = vmul.f32 %v1404, %v1455
        %v1473 = vmul.f32 %v1448, %v1455
        %v1474 = vmul.f32 %v1405, %v1460
        %v1475 = vmul.f32 %v1449, %v1460
        %v1476 = vmul.f32 %v1406, %v1465
        %v1477 = vmul.f32 %v1450, %v1465
        %v1478 = vmul.f32 %v1407, %v1470
        %v1479 = vmul.f32 %v1451, %v1470
        %1481 = vset.pattern.permute.xlu0 0
        %1482 = vperm.xlu0 %1481, %v1298
        %v1483 = vpop.permute.xlu0 %1482
        %1486 = vset.pattern.permute.xlu0 0
        %1487 = vperm.xlu0 %1486, %v1299
        %v1488 = vpop.permute.xlu0 %1487
        %1491 = vset.pattern.permute.xlu0 0
        %1492 = vperm.xlu0 %1491, %v1300
        %v1493 = vpop.permute.xlu0 %1492
        %1496 = vset.pattern.permute.xlu0 0
        %1497 = vperm.xlu0 %1496, %v1301
        %v1498 = vpop.permute.xlu0 %1497
        %v1500 = vadd.f32 %v1472, %v1483
        %v1501 = vadd.f32 %v1473, %v1483
        %v1502 = vadd.f32 %v1474, %v1488
        %v1503 = vadd.f32 %v1475, %v1488
        %v1504 = vadd.f32 %v1476, %v1493
        %v1505 = vadd.f32 %v1477, %v1493
        %v1506 = vadd.f32 %v1478, %v1498
        %v1507 = vadd.f32 %v1479, %v1498
        %v1508 = vxor.u32 %v1504, 2147483648
        %v1509 = vxor.u32 %v1505, 2147483648
        %v1510 = vxor.u32 %v1506, 2147483648
        %v1511 = vxor.u32 %v1507, 2147483648
        %v1512 = vmul.f32 %v1508, 1.442695
        %v1513 = vpow.pop %v1512
        %v1514 = vmul.f32 %v1509, 1.442695
        %v1515 = vpow.pop %v1514
        %v1516 = vmul.f32 %v1510, 1.442695
        %v1517 = vpow.pop %v1516
        %v1518 = vmul.f32 %v1511, 1.442695
        %v1519 = vpow.pop %v1518
        %v1520 = vadd.f32 %v1513, 1.0
        %v1521 = vadd.f32 %v1515, 1.0
        %v1522 = vadd.f32 %v1517, 1.0
        %v1523 = vadd.f32 %v1519, 1.0
        %v1524 = vrcp.pop %v1520
        %v1525 = vmul.f32 1.0, %v1524
        %v1526 = vrcp.pop %v1521
        %v1527 = vmul.f32 1.0, %v1526
        %v1528 = vrcp.pop %v1522
        %v1529 = vmul.f32 1.0, %v1528
        %v1530 = vrcp.pop %v1523
        %v1531 = vmul.f32 1.0, %v1530
        %v1532 = vmul.f32 %v1500, %v1525
        %v1533 = vmul.f32 %v1501, %v1527
        %v1534 = vmul.f32 %v1502, %v1529
        %v1535 = vmul.f32 %v1503, %v1531
        %s1536 = scalar_lea.vmem %s5, 32
        %v1537 = vld [vmem:[%s1536] sm:$0xff]
        %v1538 = vld [vmem:[%s1536 + $0x8] sm:$0xff]
        %v1539 = vld [vmem:[%s1536 + $0x10] sm:$0xff]
        %v1540 = vld [vmem:[%s1536 + $0x18] sm:$0xff]
        %s1541 = scalar_lea.vmem %s5, 544
        %v1542 = vld [vmem:[%s1541] sm:$0xff]
        %v1543 = vld [vmem:[%s1541 + $0x8] sm:$0xff]
        %v1544 = vld [vmem:[%s1541 + $0x10] sm:$0xff]
        %v1545 = vld [vmem:[%s1541 + $0x18] sm:$0xff]
        %v1546 = vpack.c.bf16 %v1534, %v1532
        %v1547 = vpack.c.bf16 %v1535, %v1533
        %v1549 = vsel %vm1304, %v412, 0
        %v1552 = vsel %vm1304, %v413, 0
        %1554 = vmatprep.subr.bf16.mxu0 %v1547
        %1555 = vmatpush1.bf16.msra.mxu0 %v1546
        %1556 = vmatprep.subr.bf16.mxu0 0
        %1557 = vmatpush1.bf16.msra.mxu0 0
        %1558 = vmatprep.subr.bf16.mxu0 0
        %1559 = vmatpush1.bf16.msra.mxu0 0
        %1560 = vmatprep.subr.bf16.mxu0 0
        %1561 = vmatpush1.bf16.msra.mxu0 0
        %1562 = vmatprep.subr.bf16.mxu0 0
        %1563 = vmatpush1.bf16.msra.mxu0 0
        %1564 = vmatprep.subr.bf16.mxu0 0
        %1565 = vmatpush1.bf16.msra.mxu0 0
        %1566 = vmatprep.subr.bf16.mxu0 0
        %1567 = vmatpush1.bf16.msra.mxu0 0
        %1568 = vmatprep.subr.bf16.mxu0 0
        %1569 = vmatpush1.bf16.msra.mxu0 0
        %1570 = vmatprep.subr.bf16.mxu0 0
        %1571 = vmatpush1.bf16.msra.mxu0 0
        %1572 = vmatprep.subr.bf16.mxu0 0
        %1573 = vmatpush1.bf16.msra.mxu0 0
        %1574 = vmatprep.subr.bf16.mxu0 0
        %1575 = vmatpush1.bf16.msra.mxu0 0
        %1576 = vmatprep.subr.bf16.mxu0 0
        %1577 = vmatpush1.bf16.msra.mxu0 0
        %1578 = vmatprep.subr.bf16.mxu0 0
        %1579 = vmatpush1.bf16.msra.mxu0 0
        %1580 = vmatprep.subr.bf16.mxu0 0
        %1581 = vmatpush1.bf16.msra.mxu0 0
        %1582 = vmatprep.subr.bf16.mxu0 0
        %1583 = vmatpush1.bf16.msra.mxu0 0
        %1584 = vmatprep.subr.bf16.mxu0 0
        %1585 = vmatpush1.bf16.msra.mxu0 0
        %1586 = vmatprep.mubr.bf16.mxu0 0
        %1587 = vmatmul.mubr.bf16.gmra.mrb[0].mxu0 %v1549
        %v1588 = vpop.f32.mrb[0].mxu0
        %v1589 = vadd.f32 0.0, %v1588
        %v1590 = vpop.f32.mrb[0].mxu0
        %v1591 = vadd.f32 0.0, %v1590
        %v1592 = vpop.f32.mrb[0].mxu0
        %v1593 = vadd.f32 0.0, %v1592
        %v1594 = vpop.f32.mrb[0].mxu0
        %v1595 = vadd.f32 0.0, %v1594
        %1596 = vmatprep.mubr.bf16.mxu0 0
        %1597 = vmatmul.mubr.bf16.gmra.mrb[0].mxu0 %v1552
        %v1598 = vpop.f32.mrb[0].mxu0
        %v1599 = vadd.f32 0.0, %v1598
        %v1600 = vpop.f32.mrb[0].mxu0
        %v1601 = vadd.f32 0.0, %v1600
        %v1602 = vpop.f32.mrb[0].mxu0
        %v1603 = vadd.f32 0.0, %v1602
        %v1604 = vpop.f32.mrb[0].mxu0
        %v1605 = vadd.f32 0.0, %v1604
        %1606 = vdwg.mxu0
        %1607 = vadd.xlane.f32.xlu0 %v1589
        %v1608 = vpop.xlane.xlu0 %1607
        %1609 = vadd.xlane.f32.xlu0 %v1593
        %v1610 = vpop.xlane.xlu0 %1609
        %1611 = vadd.xlane.f32.xlu0 %v1599
        %v1612 = vpop.xlane.xlu0 %1611
        %1613 = vadd.xlane.f32.xlu0 %v1603
        %v1614 = vpop.xlane.xlu0 %1613
        %v1615 = vmul.f32 %v1608, %v1224
        %v1616 = vmul.f32 %v1610, %v1224
        %v1617 = vmul.f32 %v1612, %v1224
        %v1618 = vmul.f32 %v1614, %v1224
        %v1619 = vsub.f32 %v1589, %v1615
        %v1620 = vsub.f32 %v1593, %v1616
        %v1621 = vsub.f32 %v1599, %v1617
        %v1622 = vsub.f32 %v1603, %v1618
        %v1623 = vmul.f32 %v1619, %v1619
        %v1624 = vmul.f32 %v1620, %v1620
        %v1625 = vmul.f32 %v1621, %v1621
        %v1626 = vmul.f32 %v1622, %v1622
        %1627 = vadd.xlane.f32.xlu0 %v1623
        %v1628 = vpop.xlane.xlu0 %1627
        %1629 = vadd.xlane.f32.xlu0 %v1624
        %v1630 = vpop.xlane.xlu0 %1629
        %1631 = vadd.xlane.f32.xlu0 %v1625
        %v1632 = vpop.xlane.xlu0 %1631
        %1633 = vadd.xlane.f32.xlu0 %v1626
        %v1634 = vpop.xlane.xlu0 %1633
        %v1635 = vmul.f32 %v1628, %v1224
        %v1636 = vmul.f32 %v1630, %v1224
        %v1637 = vmul.f32 %v1632, %v1224
        %v1638 = vmul.f32 %v1634, %v1224
        %v1639 = vadd.f32 %v1635, 1e-05
        %v1640 = vadd.f32 %v1636, 1e-05
        %v1641 = vadd.f32 %v1637, 1e-05
        %v1642 = vadd.f32 %v1638, 1e-05
        %v1643 = vrsqrt.pop %v1639
        %v1644 = vrsqrt.pop %v1640
        %v1645 = vrsqrt.pop %v1641
        %v1646 = vrsqrt.pop %v1642
        %v1647 = vmul.f32 %v1619, %v1643
        %v1648 = vmul.f32 %v1620, %v1644
        %v1649 = vmul.f32 %v1621, %v1645
        %v1650 = vmul.f32 %v1622, %v1646
        %1651 = vadd.xlane.f32.xlu0 %v1591
        %v1652 = vpop.xlane.xlu0 %1651
        %1653 = vadd.xlane.f32.xlu0 %v1595
        %v1654 = vpop.xlane.xlu0 %1653
        %1655 = vadd.xlane.f32.xlu0 %v1601
        %v1656 = vpop.xlane.xlu0 %1655
        %1657 = vadd.xlane.f32.xlu0 %v1605
        %v1658 = vpop.xlane.xlu0 %1657
        %v1659 = vmul.f32 %v1652, %v1224
        %v1660 = vmul.f32 %v1654, %v1224
        %v1661 = vmul.f32 %v1656, %v1224
        %v1662 = vmul.f32 %v1658, %v1224
        %v1663 = vsub.f32 %v1591, %v1659
        %v1664 = vsub.f32 %v1595, %v1660
        %v1665 = vsub.f32 %v1601, %v1661
        %v1666 = vsub.f32 %v1605, %v1662
        %v1667 = vmul.f32 %v1663, %v1663
        %v1668 = vmul.f32 %v1664, %v1664
        %v1669 = vmul.f32 %v1665, %v1665
        %v1670 = vmul.f32 %v1666, %v1666
        %1671 = vadd.xlane.f32.xlu0 %v1667
        %v1672 = vpop.xlane.xlu0 %1671
        %1673 = vadd.xlane.f32.xlu0 %v1668
        %v1674 = vpop.xlane.xlu0 %1673
        %1675 = vadd.xlane.f32.xlu0 %v1669
        %v1676 = vpop.xlane.xlu0 %1675
        %1677 = vadd.xlane.f32.xlu0 %v1670
        %v1678 = vpop.xlane.xlu0 %1677
        %v1679 = vmul.f32 %v1672, %v1224
        %v1680 = vmul.f32 %v1674, %v1224
        %v1681 = vmul.f32 %v1676, %v1224
        %v1682 = vmul.f32 %v1678, %v1224
        %v1683 = vadd.f32 %v1679, 1e-05
        %v1684 = vadd.f32 %v1680, 1e-05
        %v1685 = vadd.f32 %v1681, 1e-05
        %v1686 = vadd.f32 %v1682, 1e-05
        %v1687 = vrsqrt.pop %v1683
        %v1688 = vrsqrt.pop %v1684
        %v1689 = vrsqrt.pop %v1685
        %v1690 = vrsqrt.pop %v1686
        %v1691 = vmul.f32 %v1663, %v1687
        %v1692 = vmul.f32 %v1664, %v1688
        %v1693 = vmul.f32 %v1665, %v1689
        %v1694 = vmul.f32 %v1666, %v1690
        %1696 = vset.pattern.permute.xlu0 0
        %1697 = vperm.xlu0 %1696, %v1537
        %v1698 = vpop.permute.xlu0 %1697
        %1701 = vset.pattern.permute.xlu0 0
        %1702 = vperm.xlu0 %1701, %v1538
        %v1703 = vpop.permute.xlu0 %1702
        %1706 = vset.pattern.permute.xlu0 0
        %1707 = vperm.xlu0 %1706, %v1539
        %v1708 = vpop.permute.xlu0 %1707
        %1711 = vset.pattern.permute.xlu0 0
        %1712 = vperm.xlu0 %1711, %v1540
        %v1713 = vpop.permute.xlu0 %1712
        %v1715 = vmul.f32 %v1647, %v1698
        %v1716 = vmul.f32 %v1691, %v1698
        %v1717 = vmul.f32 %v1648, %v1703
        %v1718 = vmul.f32 %v1692, %v1703
        %v1719 = vmul.f32 %v1649, %v1708
        %v1720 = vmul.f32 %v1693, %v1708
        %v1721 = vmul.f32 %v1650, %v1713
        %v1722 = vmul.f32 %v1694, %v1713
        %1724 = vset.pattern.permute.xlu0 0
        %1725 = vperm.xlu0 %1724, %v1542
        %v1726 = vpop.permute.xlu0 %1725
        %1729 = vset.pattern.permute.xlu0 0
        %1730 = vperm.xlu0 %1729, %v1543
        %v1731 = vpop.permute.xlu0 %1730
        %1734 = vset.pattern.permute.xlu0 0
        %1735 = vperm.xlu0 %1734, %v1544
        %v1736 = vpop.permute.xlu0 %1735
        %1739 = vset.pattern.permute.xlu0 0
        %1740 = vperm.xlu0 %1739, %v1545
        %v1741 = vpop.permute.xlu0 %1740
        %v1743 = vadd.f32 %v1715, %v1726
        %v1744 = vadd.f32 %v1716, %v1726
        %v1745 = vadd.f32 %v1717, %v1731
        %v1746 = vadd.f32 %v1718, %v1731
        %v1747 = vadd.f32 %v1719, %v1736
        %v1748 = vadd.f32 %v1720, %v1736
        %v1749 = vadd.f32 %v1721, %v1741
        %v1750 = vadd.f32 %v1722, %v1741
        %v1751 = vxor.u32 %v1747, 2147483648
        %v1752 = vxor.u32 %v1748, 2147483648
        %v1753 = vxor.u32 %v1749, 2147483648
        %v1754 = vxor.u32 %v1750, 2147483648
        %v1755 = vmul.f32 %v1751, 1.442695
        %v1756 = vpow.pop %v1755
        %v1757 = vmul.f32 %v1752, 1.442695
        %v1758 = vpow.pop %v1757
        %v1759 = vmul.f32 %v1753, 1.442695
        %v1760 = vpow.pop %v1759
        %v1761 = vmul.f32 %v1754, 1.442695
        %v1762 = vpow.pop %v1761
        %v1763 = vadd.f32 %v1756, 1.0
        %v1764 = vadd.f32 %v1758, 1.0
        %v1765 = vadd.f32 %v1760, 1.0
        %v1766 = vadd.f32 %v1762, 1.0
        %v1767 = vrcp.pop %v1763
        %v1768 = vmul.f32 1.0, %v1767
        %v1769 = vrcp.pop %v1764
        %v1770 = vmul.f32 1.0, %v1769
        %v1771 = vrcp.pop %v1765
        %v1772 = vmul.f32 1.0, %v1771
        %v1773 = vrcp.pop %v1766
        %v1774 = vmul.f32 1.0, %v1773
        %v1775 = vmul.f32 %v1743, %v1768
        %v1776 = vmul.f32 %v1744, %v1770
        %v1777 = vmul.f32 %v1745, %v1772
        %v1778 = vmul.f32 %v1746, %v1774
        %v1779 = vadd.f32 %v1532, %v1775
        %v1780 = vadd.f32 %v1533, %v1776
        %v1781 = vadd.f32 %v1534, %v1777
        %v1782 = vadd.f32 %v1535, %v1778
        %v1783 = vmul.f32 %v1779, 0.70710677
        %v1784 = vmul.f32 %v1780, 0.70710677
        %v1785 = vmul.f32 %v1781, 0.70710677
        %v1786 = vmul.f32 %v1782, 0.70710677
        %v1787 = vld [vmem:[%s4] sm:$0xff]
        %v1788 = vld [vmem:[%s4 + $0x8] sm:$0xff]
        %v1789 = vld [vmem:[%s4 + $0x10] sm:$0xff]
        %v1790 = vld [vmem:[%s4 + $0x18] sm:$0xff]
        %v1791 = vpack.c.bf16 %v1788, %v1787
        %v1792 = vpack.c.bf16 %v1790, %v1789
        %s1793 = scalar_lea.vmem %s5, 64
        %v1794 = vld [vmem:[%s1793] sm:$0xff]
        %v1795 = vld [vmem:[%s1793 + $0x8] sm:$0xff]
        %v1796 = vld [vmem:[%s1793 + $0x10] sm:$0xff]
        %v1797 = vld [vmem:[%s1793 + $0x18] sm:$0xff]
        %s1798 = scalar_lea.vmem %s5, 576
        %v1799 = vld [vmem:[%s1798] sm:$0xff]
        %v1800 = vld [vmem:[%s1798 + $0x8] sm:$0xff]
        %v1801 = vld [vmem:[%s1798 + $0x10] sm:$0xff]
        %v1802 = vld [vmem:[%s1798 + $0x18] sm:$0xff]
        %v1803 = vpack.c.bf16 %v1785, %v1783
        %v1804 = vpack.c.bf16 %v1786, %v1784
        %v1806 = vsel %vm1304, %v1791, 0
        %v1809 = vsel %vm1304, %v1792, 0
        %1811 = vmatprep.subr.bf16.mxu0 %v1804
        %1812 = vmatpush1.bf16.msra.mxu0 %v1803
        %1813 = vmatprep.subr.bf16.mxu0 0
        %1814 = vmatpush1.bf16.msra.mxu0 0
        %1815 = vmatprep.subr.bf16.mxu0 0
        %1816 = vmatpush1.bf16.msra.mxu0 0
        %1817 = vmatprep.subr.bf16.mxu0 0
        %1818 = vmatpush1.bf16.msra.mxu0 0
        %1819 = vmatprep.subr.bf16.mxu0 0
        %1820 = vmatpush1.bf16.msra.mxu0 0
        %1821 = vmatprep.subr.bf16.mxu0 0
        %1822 = vmatpush1.bf16.msra.mxu0 0
        %1823 = vmatprep.subr.bf16.mxu0 0
        %1824 = vmatpush1.bf16.msra.mxu0 0
        %1825 = vmatprep.subr.bf16.mxu0 0
        %1826 = vmatpush1.bf16.msra.mxu0 0
        %1827 = vmatprep.subr.bf16.mxu0 0
        %1828 = vmatpush1.bf16.msra.mxu0 0
        %1829 = vmatprep.subr.bf16.mxu0 0
        %1830 = vmatpush1.bf16.msra.mxu0 0
        %1831 = vmatprep.subr.bf16.mxu0 0
        %1832 = vmatpush1.bf16.msra.mxu0 0
        %1833 = vmatprep.subr.bf16.mxu0 0
        %1834 = vmatpush1.bf16.msra.mxu0 0
        %1835 = vmatprep.subr.bf16.mxu0 0
        %1836 = vmatpush1.bf16.msra.mxu0 0
        %1837 = vmatprep.subr.bf16.mxu0 0
        %1838 = vmatpush1.bf16.msra.mxu0 0
        %1839 = vmatprep.subr.bf16.mxu0 0
        %1840 = vmatpush1.bf16.msra.mxu0 0
        %1841 = vmatprep.subr.bf16.mxu0 0
        %1842 = vmatpush1.bf16.msra.mxu0 0
        %1843 = vmatprep.mubr.bf16.mxu0 0
        %1844 = vmatmul.mubr.bf16.gmra.mrb[0].mxu0 %v1806
        %v1845 = vpop.f32.mrb[0].mxu0
        %v1846 = vadd.f32 0.0, %v1845
        %v1847 = vpop.f32.mrb[0].mxu0
        %v1848 = vadd.f32 0.0, %v1847
        %v1849 = vpop.f32.mrb[0].mxu0
        %v1850 = vadd.f32 0.0, %v1849
        %v1851 = vpop.f32.mrb[0].mxu0
        %v1852 = vadd.f32 0.0, %v1851
        %1853 = vmatprep.mubr.bf16.mxu0 0
        %1854 = vmatmul.mubr.bf16.gmra.mrb[0].mxu0 %v1809
        %v1855 = vpop.f32.mrb[0].mxu0
        %v1856 = vadd.f32 0.0, %v1855
        %v1857 = vpop.f32.mrb[0].mxu0
        %v1858 = vadd.f32 0.0, %v1857
        %v1859 = vpop.f32.mrb[0].mxu0
        %v1860 = vadd.f32 0.0, %v1859
        %v1861 = vpop.f32.mrb[0].mxu0
        %v1862 = vadd.f32 0.0, %v1861
        %1863 = vdwg.mxu0
        %1864 = vadd.xlane.f32.xlu0 %v1846
        %v1865 = vpop.xlane.xlu0 %1864
        %1866 = vadd.xlane.f32.xlu0 %v1850
        %v1867 = vpop.xlane.xlu0 %1866
        %1868 = vadd.xlane.f32.xlu0 %v1856
        %v1869 = vpop.xlane.xlu0 %1868
        %1870 = vadd.xlane.f32.xlu0 %v1860
        %v1871 = vpop.xlane.xlu0 %1870
        %v1872 = vmul.f32 %v1865, %v1224
        %v1873 = vmul.f32 %v1867, %v1224
        %v1874 = vmul.f32 %v1869, %v1224
        %v1875 = vmul.f32 %v1871, %v1224
        %v1876 = vsub.f32 %v1846, %v1872
        %v1877 = vsub.f32 %v1850, %v1873
        %v1878 = vsub.f32 %v1856, %v1874
        %v1879 = vsub.f32 %v1860, %v1875
        %v1880 = vmul.f32 %v1876, %v1876
        %v1881 = vmul.f32 %v1877, %v1877
        %v1882 = vmul.f32 %v1878, %v1878
        %v1883 = vmul.f32 %v1879, %v1879
        %1884 = vadd.xlane.f32.xlu0 %v1880
        %v1885 = vpop.xlane.xlu0 %1884
        %1886 = vadd.xlane.f32.xlu0 %v1881
        %v1887 = vpop.xlane.xlu0 %1886
        %1888 = vadd.xlane.f32.xlu0 %v1882
        %v1889 = vpop.xlane.xlu0 %1888
        %1890 = vadd.xlane.f32.xlu0 %v1883
        %v1891 = vpop.xlane.xlu0 %1890
        %v1892 = vmul.f32 %v1885, %v1224
        %v1893 = vmul.f32 %v1887, %v1224
        %v1894 = vmul.f32 %v1889, %v1224
        %v1895 = vmul.f32 %v1891, %v1224
        %v1896 = vadd.f32 %v1892, 1e-05
        %v1897 = vadd.f32 %v1893, 1e-05
        %v1898 = vadd.f32 %v1894, 1e-05
        %v1899 = vadd.f32 %v1895, 1e-05
        %v1900 = vrsqrt.pop %v1896
        %v1901 = vrsqrt.pop %v1897
        %v1902 = vrsqrt.pop %v1898
        %v1903 = vrsqrt.pop %v1899
        %v1904 = vmul.f32 %v1876, %v1900
        %v1905 = vmul.f32 %v1877, %v1901
        %v1906 = vmul.f32 %v1878, %v1902
        %v1907 = vmul.f32 %v1879, %v1903
        %1908 = vadd.xlane.f32.xlu0 %v1848
        %v1909 = vpop.xlane.xlu0 %1908
        %1910 = vadd.xlane.f32.xlu0 %v1852
        %v1911 = vpop.xlane.xlu0 %1910
        %1912 = vadd.xlane.f32.xlu0 %v1858
        %v1913 = vpop.xlane.xlu0 %1912
        %1914 = vadd.xlane.f32.xlu0 %v1862
        %v1915 = vpop.xlane.xlu0 %1914
        %v1916 = vmul.f32 %v1909, %v1224
        %v1917 = vmul.f32 %v1911, %v1224
        %v1918 = vmul.f32 %v1913, %v1224
        %v1919 = vmul.f32 %v1915, %v1224
        %v1920 = vsub.f32 %v1848, %v1916
        %v1921 = vsub.f32 %v1852, %v1917
        %v1922 = vsub.f32 %v1858, %v1918
        %v1923 = vsub.f32 %v1862, %v1919
        %v1924 = vmul.f32 %v1920, %v1920
        %v1925 = vmul.f32 %v1921, %v1921
        %v1926 = vmul.f32 %v1922, %v1922
        %v1927 = vmul.f32 %v1923, %v1923
        %1928 = vadd.xlane.f32.xlu0 %v1924
        %v1929 = vpop.xlane.xlu0 %1928
        %1930 = vadd.xlane.f32.xlu0 %v1925
        %v1931 = vpop.xlane.xlu0 %1930
        %1932 = vadd.xlane.f32.xlu0 %v1926
        %v1933 = vpop.xlane.xlu0 %1932
        %1934 = vadd.xlane.f32.xlu0 %v1927
        %v1935 = vpop.xlane.xlu0 %1934
        %v1936 = vmul.f32 %v1929, %v1224
        %v1937 = vmul.f32 %v1931, %v1224
        %v1938 = vmul.f32 %v1933, %v1224
        %v1939 = vmul.f32 %v1935, %v1224
        %v1940 = vadd.f32 %v1936, 1e-05
        %v1941 = vadd.f32 %v1937, 1e-05
        %v1942 = vadd.f32 %v1938, 1e-05
        %v1943 = vadd.f32 %v1939, 1e-05
        %v1944 = vrsqrt.pop %v1940
        %v1945 = vrsqrt.pop %v1941
        %v1946 = vrsqrt.pop %v1942
        %v1947 = vrsqrt.pop %v1943
        %v1948 = vmul.f32 %v1920, %v1944
        %v1949 = vmul.f32 %v1921, %v1945
        %v1950 = vmul.f32 %v1922, %v1946
        %v1951 = vmul.f32 %v1923, %v1947
        %1953 = vset.pattern.permute.xlu0 0
        %1954 = vperm.xlu0 %1953, %v1794
        %v1955 = vpop.permute.xlu0 %1954
        %1958 = vset.pattern.permute.xlu0 0
        %1959 = vperm.xlu0 %1958, %v1795
        %v1960 = vpop.permute.xlu0 %1959
        %1963 = vset.pattern.permute.xlu0 0
        %1964 = vperm.xlu0 %1963, %v1796
        %v1965 = vpop.permute.xlu0 %1964
        %1968 = vset.pattern.permute.xlu0 0
        %1969 = vperm.xlu0 %1968, %v1797
        %v1970 = vpop.permute.xlu0 %1969
        %v1972 = vmul.f32 %v1904, %v1955
        %v1973 = vmul.f32 %v1948, %v1955
        %v1974 = vmul.f32 %v1905, %v1960
        %v1975 = vmul.f32 %v1949, %v1960
        %v1976 = vmul.f32 %v1906, %v1965
        %v1977 = vmul.f32 %v1950, %v1965
        %v1978 = vmul.f32 %v1907, %v1970
        %v1979 = vmul.f32 %v1951, %v1970
        %1981 = vset.pattern.permute.xlu0 0
        %1982 = vperm.xlu0 %1981, %v1799
        %v1983 = vpop.permute.xlu0 %1982
        %1986 = vset.pattern.permute.xlu0 0
        %1987 = vperm.xlu0 %1986, %v1800
        %v1988 = vpop.permute.xlu0 %1987
        %1991 = vset.pattern.permute.xlu0 0
        %1992 = vperm.xlu0 %1991, %v1801
        %v1993 = vpop.permute.xlu0 %1992
        %1996 = vset.pattern.permute.xlu0 0
        %1997 = vperm.xlu0 %1996, %v1802
        %v1998 = vpop.permute.xlu0 %1997
        %v2000 = vadd.f32 %v1972, %v1983
        %v2001 = vadd.f32 %v1973, %v1983
        %v2002 = vadd.f32 %v1974, %v1988
        %v2003 = vadd.f32 %v1975, %v1988
        %v2004 = vadd.f32 %v1976, %v1993
        %v2005 = vadd.f32 %v1977, %v1993
        %v2006 = vadd.f32 %v1978, %v1998
        %v2007 = vadd.f32 %v1979, %v1998
        %v2008 = vxor.u32 %v2004, 2147483648
        %v2009 = vxor.u32 %v2005, 2147483648
        %v2010 = vxor.u32 %v2006, 2147483648
        %v2011 = vxor.u32 %v2007, 2147483648
        %v2012 = vmul.f32 %v2008, 1.442695
        %v2013 = vpow.pop %v2012
        %v2014 = vmul.f32 %v2009, 1.442695
        %v2015 = vpow.pop %v2014
        %v2016 = vmul.f32 %v2010, 1.442695
        %v2017 = vpow.pop %v2016
        %v2018 = vmul.f32 %v2011, 1.442695
        %v2019 = vpow.pop %v2018
        %v2020 = vadd.f32 %v2013, 1.0
        %v2021 = vadd.f32 %v2015, 1.0
        %v2022 = vadd.f32 %v2017, 1.0
        %v2023 = vadd.f32 %v2019, 1.0
        %v2024 = vrcp.pop %v2020
        %v2025 = vmul.f32 1.0, %v2024
        %v2026 = vrcp.pop %v2021
        %v2027 = vmul.f32 1.0, %v2026
        %v2028 = vrcp.pop %v2022
        %v2029 = vmul.f32 1.0, %v2028
        %v2030 = vrcp.pop %v2023
        %v2031 = vmul.f32 1.0, %v2030
        %v2032 = vmul.f32 %v2000, %v2025
        %v2033 = vmul.f32 %v2001, %v2027
        %v2034 = vmul.f32 %v2002, %v2029
        %v2035 = vmul.f32 %v2003, %v2031
        %v2036 = vadd.f32 %v1783, %v2032
        %v2037 = vadd.f32 %v1784, %v2033
        %v2038 = vadd.f32 %v1785, %v2034
        %v2039 = vadd.f32 %v1786, %v2035
        %v2040 = vmul.f32 %v2036, 0.70710677
        %v2041 = vmul.f32 %v2037, 0.70710677
        %v2042 = vmul.f32 %v2038, 0.70710677
        %v2043 = vmul.f32 %v2039, 0.70710677
        %s2044 = scalar_lea.vmem %s4, 32
        %v2045 = vld [vmem:[%s2044] sm:$0xff]
        %v2046 = vld [vmem:[%s2044 + $0x8] sm:$0xff]
        %v2047 = vld [vmem:[%s2044 + $0x10] sm:$0xff]
        %v2048 = vld [vmem:[%s2044 + $0x18] sm:$0xff]
        %v2049 = vpack.c.bf16 %v2046, %v2045
        %v2050 = vpack.c.bf16 %v2048, %v2047
        %s2051 = scalar_lea.vmem %s5, 96
        %v2052 = vld [vmem:[%s2051 + $0x8] sm:$0xff]
        %v2053 = vld [vmem:[%s2051 + $0x18] sm:$0xff]
        %s2054 = scalar_lea.vmem %s5, 608
        %v2055 = vld [vmem:[%s2054 + $0x8] sm:$0xff]
        %v2056 = vld [vmem:[%s2054 + $0x18] sm:$0xff]
        %v2057 = vpack.c.bf16 %v2042, %v2040
        %v2058 = vpack.c.bf16 %v2043, %v2041
        %v2060 = vsel %vm1304, %v2049, 0
        %v2063 = vsel %vm1304, %v2050, 0
        %2065 = vmatprep.subr.bf16.mxu0 %v2058
        %2066 = vmatpush1.bf16.msra.mxu0 %v2057
        %2067 = vmatprep.subr.bf16.mxu0 0
        %2068 = vmatpush1.bf16.msra.mxu0 0
        %2069 = vmatprep.subr.bf16.mxu0 0
        %2070 = vmatpush1.bf16.msra.mxu0 0
        %2071 = vmatprep.subr.bf16.mxu0 0
        %2072 = vmatpush1.bf16.msra.mxu0 0
        %2073 = vmatprep.subr.bf16.mxu0 0
        %2074 = vmatpush1.bf16.msra.mxu0 0
        %2075 = vmatprep.subr.bf16.mxu0 0
        %2076 = vmatpush1.bf16.msra.mxu0 0
        %2077 = vmatprep.subr.bf16.mxu0 0
        %2078 = vmatpush1.bf16.msra.mxu0 0
        %2079 = vmatprep.subr.bf16.mxu0 0
        %2080 = vmatpush1.bf16.msra.mxu0 0
        %2081 = vmatprep.subr.bf16.mxu0 0
        %2082 = vmatpush1.bf16.msra.mxu0 0
        %2083 = vmatprep.subr.bf16.mxu0 0
        %2084 = vmatpush1.bf16.msra.mxu0 0
        %2085 = vmatprep.subr.bf16.mxu0 0
        %2086 = vmatpush1.bf16.msra.mxu0 0
        %2087 = vmatprep.subr.bf16.mxu0 0
        %2088 = vmatpush1.bf16.msra.mxu0 0
        %2089 = vmatprep.subr.bf16.mxu0 0
        %2090 = vmatpush1.bf16.msra.mxu0 0
        %2091 = vmatprep.subr.bf16.mxu0 0
        %2092 = vmatpush1.bf16.msra.mxu0 0
        %2093 = vmatprep.subr.bf16.mxu0 0
        %2094 = vmatpush1.bf16.msra.mxu0 0
        %2095 = vmatprep.subr.bf16.mxu0 0
        %2096 = vmatpush1.bf16.msra.mxu0 0
        %2097 = vmatprep.mubr.bf16.mxu0 0
        %2098 = vmatmul.mubr.bf16.gmra.mrb[0].mxu0 %v2060
        %v2099 = vpop.f32.mrb[0].mxu0
        %v2100 = vpop.f32.mrb[0].mxu0
        %v2101 = vpop.f32.mrb[0].mxu0
        %v2102 = vadd.f32 0.0, %v2101
        %v2103 = vpop.f32.mrb[0].mxu0
        %v2104 = vadd.f32 0.0, %v2103
        %2105 = vmatprep.mubr.bf16.mxu0 0
        %2106 = vmatmul.mubr.bf16.gmra.mrb[0].mxu0 %v2063
        %v2107 = vpop.f32.mrb[0].mxu0
        %v2108 = vpop.f32.mrb[0].mxu0
        %v2109 = vpop.f32.mrb[0].mxu0
        %v2110 = vadd.f32 0.0, %v2109
        %v2111 = vpop.f32.mrb[0].mxu0
        %v2112 = vadd.f32 0.0, %v2111
        %2113 = vdwg.mxu0
        %2114 = vadd.xlane.f32.xlu0 %v2102
        %v2115 = vpop.xlane.xlu0 %2114
        %2116 = vadd.xlane.f32.xlu0 %v2110
        %v2117 = vpop.xlane.xlu0 %2116
        %v2118 = vmul.f32 %v2115, %v1224
        %v2119 = vmul.f32 %v2117, %v1224
        %v2120 = vsub.f32 %v2102, %v2118
        %v2121 = vsub.f32 %v2110, %v2119
        %v2122 = vmul.f32 %v2120, %v2120
        %v2123 = vmul.f32 %v2121, %v2121
        %2124 = vadd.xlane.f32.xlu0 %v2122
        %v2125 = vpop.xlane.xlu0 %2124
        %2126 = vadd.xlane.f32.xlu0 %v2123
        %v2127 = vpop.xlane.xlu0 %2126
        %v2128 = vmul.f32 %v2125, %v1224
        %v2129 = vmul.f32 %v2127, %v1224
        %v2130 = vadd.f32 %v2128, 1e-05
        %v2131 = vadd.f32 %v2129, 1e-05
        %v2132 = vrsqrt.pop %v2130
        %v2133 = vrsqrt.pop %v2131
        %v2134 = vmul.f32 %v2120, %v2132
        %v2135 = vmul.f32 %v2121, %v2133
        %2136 = vadd.xlane.f32.xlu0 %v2104
        %v2137 = vpop.xlane.xlu0 %2136
        %2138 = vadd.xlane.f32.xlu0 %v2112
        %v2139 = vpop.xlane.xlu0 %2138
        %v2140 = vmul.f32 %v2137, %v1224
        %v2141 = vmul.f32 %v2139, %v1224
        %v2142 = vsub.f32 %v2104, %v2140
        %v2143 = vsub.f32 %v2112, %v2141
        %v2144 = vmul.f32 %v2142, %v2142
        %v2145 = vmul.f32 %v2143, %v2143
        %2146 = vadd.xlane.f32.xlu0 %v2144
        %v2147 = vpop.xlane.xlu0 %2146
        %2148 = vadd.xlane.f32.xlu0 %v2145
        %v2149 = vpop.xlane.xlu0 %2148
        %v2150 = vmul.f32 %v2147, %v1224
        %v2151 = vmul.f32 %v2149, %v1224
        %v2152 = vadd.f32 %v2150, 1e-05
        %v2153 = vadd.f32 %v2151, 1e-05
        %v2154 = vrsqrt.pop %v2152
        %v2155 = vrsqrt.pop %v2153
        %v2156 = vmul.f32 %v2142, %v2154
        %v2157 = vmul.f32 %v2143, %v2155
        %2159 = vset.pattern.permute.xlu0 0
        %2160 = vperm.xlu0 %2159, %v2052
        %v2161 = vpop.permute.xlu0 %2160
        %2164 = vset.pattern.permute.xlu0 0
        %2165 = vperm.xlu0 %2164, %v2053
        %v2166 = vpop.permute.xlu0 %2165
        %v2168 = vmul.f32 %v2134, %v2161
        %v2169 = vmul.f32 %v2156, %v2161
        %v2170 = vmul.f32 %v2135, %v2166
        %v2171 = vmul.f32 %v2157, %v2166
        %2173 = vset.pattern.permute.xlu0 0
        %2174 = vperm.xlu0 %2173, %v2055
        %v2175 = vpop.permute.xlu0 %2174
        %2178 = vset.pattern.permute.xlu0 0
        %2179 = vperm.xlu0 %2178, %v2056
        %v2180 = vpop.permute.xlu0 %2179
        %v2182 = vadd.f32 %v2168, %v2175
        %v2183 = vadd.f32 %v2169, %v2175
        %v2184 = vadd.f32 %v2170, %v2180
        %v2185 = vadd.f32 %v2171, %v2180
        %v2186 = vxor.u32 %v2184, 2147483648
        %v2187 = vxor.u32 %v2185, 2147483648
        %v2188 = vmul.f32 %v2186, 1.442695
        %v2189 = vpow.pop %v2188
        %v2190 = vmul.f32 %v2187, 1.442695
        %v2191 = vpow.pop %v2190
        %v2192 = vadd.f32 %v2189, 1.0
        %v2193 = vadd.f32 %v2191, 1.0
        %v2194 = vrcp.pop %v2192
        %v2195 = vmul.f32 1.0, %v2194
        %v2196 = vrcp.pop %v2193
        %v2197 = vmul.f32 1.0, %v2196
        %v2198 = vmul.f32 %v2182, %v2195
        %v2199 = vmul.f32 %v2183, %v2197
        %v2200 = vadd.f32 %v2042, %v2198
        %v2201 = vadd.f32 %v2043, %v2199
        %v2202 = vmul.f32 %v2200, 0.70710677
        %v2203 = vmul.f32 %v2201, 0.70710677
        %v2204 = vld [vmem:[%s6] sm:$0xff]
        %v2205 = vld [vmem:[%s6 + $0x8] sm:$0xff]
        %v2206 = vpack.c.bf16 %v2205, %v2204
        %v2207 = vpack.c.bf16 %v2202, %v2202
        %v2208 = vpack.c.bf16 %v2203, %v2203
        %vm2209 = vcmask 64512
        %v2211 = vsel %vm2209, %v2206, 0
        %vm2213 = vcmask 1043456
        %v2215 = vsel %vm2213, %v2207, 0
        %v2218 = vsel %vm2213, %v2208, 0
        %2220 = vmatprep.subr.bf16.mxu0 %v2218
        %2221 = vmatpush1.bf16.msra.mxu0 %v2215
        %2222 = vmatprep.subr.bf16.mxu0 0
        %2223 = vmatpush1.bf16.msra.mxu0 0
        %2224 = vmatprep.subr.bf16.mxu0 0
        %2225 = vmatpush1.bf16.msra.mxu0 0
        %2226 = vmatprep.subr.bf16.mxu0 0
        %2227 = vmatpush1.bf16.msra.mxu0 0
        %2228 = vmatprep.subr.bf16.mxu0 0
        %2229 = vmatpush1.bf16.msra.mxu0 0
        %2230 = vmatprep.subr.bf16.mxu0 0
        %2231 = vmatpush1.bf16.msra.mxu0 0
        %2232 = vmatprep.subr.bf16.mxu0 0
        %2233 = vmatpush1.bf16.msra.mxu0 0
        %2234 = vmatprep.subr.bf16.mxu0 0
        %2235 = vmatpush1.bf16.msra.mxu0 0
        %2236 = vmatprep.subr.bf16.mxu0 0
        %2237 = vmatpush1.bf16.msra.mxu0 0
        %2238 = vmatprep.subr.bf16.mxu0 0
        %2239 = vmatpush1.bf16.msra.mxu0 0
        %2240 = vmatprep.subr.bf16.mxu0 0
        %2241 = vmatpush1.bf16.msra.mxu0 0
        %2242 = vmatprep.subr.bf16.mxu0 0
        %2243 = vmatpush1.bf16.msra.mxu0 0
        %2244 = vmatprep.subr.bf16.mxu0 0
        %2245 = vmatpush1.bf16.msra.mxu0 0
        %2246 = vmatprep.subr.bf16.mxu0 0
        %2247 = vmatpush1.bf16.msra.mxu0 0
        %2248 = vmatprep.subr.bf16.mxu0 0
        %2249 = vmatpush1.bf16.msra.mxu0 0
        %2250 = vmatprep.subr.bf16.mxu0 0
        %2251 = vmatpush1.bf16.msra.mxu0 0
        %2252 = vmatprep.mubr.bf16.mxu0 0
        %2253 = vmatmul.mubr.bf16.gmra.mrb[0].mxu0 %v2211
        %v2254 = vpop.f32.mrb[0].mxu0
        %v2255 = vadd.f32 0.0, %v2254
        %v2256 = vpop.f32.mrb[0].mxu0
        %v2257 = vadd.f32 0.0, %v2256
        %v2258 = vpop.f32.mrb[0].mxu0
        %v2259 = vadd.f32 0.0, %v2258
        %v2260 = vpop.f32.mrb[0].mxu0
        %v2261 = vadd.f32 0.0, %v2260
        %2262 = vdwg.mxu0
        %v2263 = vld [vmem:[%s7] sm:$0xff]
        %v2264 = vld [vmem:[%s7 + $0x8] sm:$0xff]
        %s2265 = scalar_lea.vmem %s7, 48
        %v2266 = vld [vmem:[%s2265] sm:$0xff]
        %v2267 = vld [vmem:[%s2265 + $0x8] sm:$0xff]
        %2268 = vadd.xlane.f32.xlu0 %v2255
        %v2269 = vpop.xlane.xlu0 %2268
        %2270 = vadd.xlane.f32.xlu0 %v2259
        %v2271 = vpop.xlane.xlu0 %2270
        %v2272 = vmul.f32 %v2269, %v1224
        %v2273 = vmul.f32 %v2271, %v1224
        %v2274 = vsub.f32 %v2255, %v2272
        %v2275 = vsub.f32 %v2259, %v2273
        %v2276 = vmul.f32 %v2274, %v2274
        %v2277 = vmul.f32 %v2275, %v2275
        %2278 = vadd.xlane.f32.xlu0 %v2276
        %v2279 = vpop.xlane.xlu0 %2278
        %2280 = vadd.xlane.f32.xlu0 %v2277
        %v2281 = vpop.xlane.xlu0 %2280
        %v2282 = vmul.f32 %v2279, %v1224
        %v2283 = vmul.f32 %v2281, %v1224
        %v2284 = vadd.f32 %v2282, 1e-05
        %v2285 = vadd.f32 %v2283, 1e-05
        %v2286 = vrsqrt.pop %v2284
        %v2287 = vrsqrt.pop %v2285
        %v2288 = vmul.f32 %v2274, %v2286
        %v2289 = vmul.f32 %v2275, %v2287
        %2290 = vadd.xlane.f32.xlu0 %v2257
        %v2291 = vpop.xlane.xlu0 %2290
        %2292 = vadd.xlane.f32.xlu0 %v2261
        %v2293 = vpop.xlane.xlu0 %2292
        %v2294 = vmul.f32 %v2291, %v1224
        %v2295 = vmul.f32 %v2293, %v1224
        %v2296 = vsub.f32 %v2257, %v2294
        %v2297 = vsub.f32 %v2261, %v2295
        %v2298 = vmul.f32 %v2296, %v2296
        %v2299 = vmul.f32 %v2297, %v2297
        %2300 = vadd.xlane.f32.xlu0 %v2298
        %v2301 = vpop.xlane.xlu0 %2300
        %2302 = vadd.xlane.f32.xlu0 %v2299
        %v2303 = vpop.xlane.xlu0 %2302
        %v2304 = vmul.f32 %v2301, %v1224
        %v2305 = vmul.f32 %v2303, %v1224
        %v2306 = vadd.f32 %v2304, 1e-05
        %v2307 = vadd.f32 %v2305, 1e-05
        %v2308 = vrsqrt.pop %v2306
        %v2309 = vrsqrt.pop %v2307
        %v2310 = vmul.f32 %v2296, %v2308
        %v2311 = vmul.f32 %v2297, %v2309
        %2313 = vset.pattern.permute.xlu0 0
        %2314 = vperm.xlu0 %2313, %v2263
        %v2315 = vpop.permute.xlu0 %2314
        %2318 = vset.pattern.permute.xlu0 0
        %2319 = vperm.xlu0 %2318, %v2264
        %v2320 = vpop.permute.xlu0 %2319
        %v2322 = vmul.f32 %v2288, %v2315
        %v2323 = vmul.f32 %v2310, %v2315
        %v2324 = vmul.f32 %v2289, %v2320
        %v2325 = vmul.f32 %v2311, %v2320
        %2327 = vset.pattern.permute.xlu0 0
        %2328 = vperm.xlu0 %2327, %v2266
        %v2329 = vpop.permute.xlu0 %2328
        %2332 = vset.pattern.permute.xlu0 0
        %2333 = vperm.xlu0 %2332, %v2267
        %v2334 = vpop.permute.xlu0 %2333
        %v2336 = vadd.f32 %v2322, %v2329
        %v2337 = vadd.f32 %v2323, %v2329
        %v2338 = vadd.f32 %v2324, %v2334
        %v2339 = vadd.f32 %v2325, %v2334
        %v2340 = vlaneseq
        %v2341 = vshrl.u32 %v2340, 7
        %v2342 = vsub.s32 0, %v2341
        %v2343 = vrot.slane %v2336, %v2342
        %v2344 = vlaneseq
        %v2345 = vshrl.u32 %v2344, 7
        %v2346 = vsub.s32 0, %v2345
        %v2347 = vrot.slane %v2337, %v2346
        %vm2348 = vcmp.ge.f32.partialorder %v2343, %v2336
        %vm2349 = vcmp.ge.f32.partialorder %v2347, %v2337
        %vm2350 = vcmp.ge.f32.partialorder %v2343, %v2338
        %vm2351 = vcmp.ge.f32.partialorder %v2347, %v2339
        %v2352 = vsel %vm2348, 1, 0
        %v2353 = vsel %vm2349, 1, 0
        %v2354 = vsel %vm2350, 1, 0
        %v2355 = vsel %vm2351, 1, 0
        %v2356 = vcvt.s32.f32 %v2352
        %v2357 = vcvt.s32.f32 %v2353
        %v2358 = vcvt.s32.f32 %v2354
        %v2359 = vcvt.s32.f32 %v2355
        %v2360 = vadd.f32 %v2356, 0.0
        %v2361 = vadd.f32 %v2357, 0.0
        %v2362 = vadd.f32 %v2358, 0.0
        %v2363 = vadd.f32 %v2359, 0.0
        %v2364 = vmul.f32 %v2356, %v2343
        %v2365 = vmul.f32 %v2357, %v2347
        %v2366 = vmul.f32 %v2358, %v2343
        %v2367 = vmul.f32 %v2359, %v2347
        %v2368 = vadd.f32 %v2364, 0.0
        %v2369 = vadd.f32 %v2365, 0.0
        %v2370 = vadd.f32 %v2366, 0.0
        %v2371 = vadd.f32 %v2367, 0.0
        %v2372 = vlaneseq
        %v2373 = vshrl.u32 %v2372, 7
        %v2374 = vsub.s32 1, %v2373
        %v2375 = vrot.slane %v2336, %v2374
        %v2376 = vlaneseq
        %v2377 = vshrl.u32 %v2376, 7
        %v2378 = vsub.s32 1, %v2377
        %v2379 = vrot.slane %v2337, %v2378
        %vm2380 = vcmp.ge.f32.partialorder %v2375, %v2336
        %vm2381 = vcmp.ge.f32.partialorder %v2379, %v2337
        %vm2382 = vcmp.ge.f32.partialorder %v2375, %v2338
        %vm2383 = vcmp.ge.f32.partialorder %v2379, %v2339
        %v2384 = vsel %vm2380, 1, 0
        %v2385 = vsel %vm2381, 1, 0
        %v2386 = vsel %vm2382, 1, 0
        %v2387 = vsel %vm2383, 1, 0
        %v2388 = vcvt.s32.f32 %v2384
        %v2389 = vcvt.s32.f32 %v2385
        %v2390 = vcvt.s32.f32 %v2386
        %v2391 = vcvt.s32.f32 %v2387
        %v2392 = vadd.f32 %v2360, %v2388
        %v2393 = vadd.f32 %v2361, %v2389
        %v2394 = vadd.f32 %v2362, %v2390
        %v2395 = vadd.f32 %v2363, %v2391
        %v2396 = vmul.f32 %v2388, %v2375
        %v2397 = vmul.f32 %v2389, %v2379
        %v2398 = vmul.f32 %v2390, %v2375
        %v2399 = vmul.f32 %v2391, %v2379
        %v2400 = vadd.f32 %v2368, %v2396
        %v2401 = vadd.f32 %v2369, %v2397
        %v2402 = vadd.f32 %v2370, %v2398
        %v2403 = vadd.f32 %v2371, %v2399
        %v2404 = vlaneseq
        %v2405 = vshrl.u32 %v2404, 7
        %v2406 = vsub.s32 2, %v2405
        %v2407 = vrot.slane %v2336, %v2406
        %v2408 = vlaneseq
        %v2409 = vshrl.u32 %v2408, 7
        %v2410 = vsub.s32 2, %v2409
        %v2411 = vrot.slane %v2337, %v2410
        %vm2412 = vcmp.ge.f32.partialorder %v2407, %v2336
        %vm2413 = vcmp.ge.f32.partialorder %v2411, %v2337
        %vm2414 = vcmp.ge.f32.partialorder %v2407, %v2338
        %vm2415 = vcmp.ge.f32.partialorder %v2411, %v2339
        %v2416 = vsel %vm2412, 1, 0
        %v2417 = vsel %vm2413, 1, 0
        %v2418 = vsel %vm2414, 1, 0
        %v2419 = vsel %vm2415, 1, 0
        %v2420 = vcvt.s32.f32 %v2416
        %v2421 = vcvt.s32.f32 %v2417
        %v2422 = vcvt.s32.f32 %v2418
        %v2423 = vcvt.s32.f32 %v2419
        %v2424 = vadd.f32 %v2392, %v2420
        %v2425 = vadd.f32 %v2393, %v2421
        %v2426 = vadd.f32 %v2394, %v2422
        %v2427 = vadd.f32 %v2395, %v2423
        %v2428 = vmul.f32 %v2420, %v2407
        %v2429 = vmul.f32 %v2421, %v2411
        %v2430 = vmul.f32 %v2422, %v2407
        %v2431 = vmul.f32 %v2423, %v2411
        %v2432 = vadd.f32 %v2400, %v2428
        %v2433 = vadd.f32 %v2401, %v2429
        %v2434 = vadd.f32 %v2402, %v2430
        %v2435 = vadd.f32 %v2403, %v2431
        %v2436 = vlaneseq
        %v2437 = vshrl.u32 %v2436, 7
        %v2438 = vsub.s32 3, %v2437
        %v2439 = vrot.slane %v2336, %v2438
        %v2440 = vlaneseq
        %v2441 = vshrl.u32 %v2440, 7
        %v2442 = vsub.s32 3, %v2441
        %v2443 = vrot.slane %v2337, %v2442
        %vm2444 = vcmp.ge.f32.partialorder %v2439, %v2336
        %vm2445 = vcmp.ge.f32.partialorder %v2443, %v2337
        %vm2446 = vcmp.ge.f32.partialorder %v2439, %v2338
        %vm2447 = vcmp.ge.f32.partialorder %v2443, %v2339
        %v2448 = vsel %vm2444, 1, 0
        %v2449 = vsel %vm2445, 1, 0
        %v2450 = vsel %vm2446, 1, 0
        %v2451 = vsel %vm2447, 1, 0
        %v2452 = vcvt.s32.f32 %v2448
        %v2453 = vcvt.s32.f32 %v2449
        %v2454 = vcvt.s32.f32 %v2450
        %v2455 = vcvt.s32.f32 %v2451
        %v2456 = vadd.f32 %v2424, %v2452
        %v2457 = vadd.f32 %v2425, %v2453
        %v2458 = vadd.f32 %v2426, %v2454
        %v2459 = vadd.f32 %v2427, %v2455
        %v2460 = vmul.f32 %v2452, %v2439
        %v2461 = vmul.f32 %v2453, %v2443
        %v2462 = vmul.f32 %v2454, %v2439
        %v2463 = vmul.f32 %v2455, %v2443
        %v2464 = vadd.f32 %v2432, %v2460
        %v2465 = vadd.f32 %v2433, %v2461
        %v2466 = vadd.f32 %v2434, %v2462
        %v2467 = vadd.f32 %v2435, %v2463
        %v2468 = vlaneseq
        %v2469 = vshrl.u32 %v2468, 7
        %v2470 = vsub.s32 4, %v2469
        %v2471 = vrot.slane %v2336, %v2470
        %v2472 = vlaneseq
        %v2473 = vshrl.u32 %v2472, 7
        %v2474 = vsub.s32 4, %v2473
        %v2475 = vrot.slane %v2337, %v2474
        %vm2476 = vcmp.ge.f32.partialorder %v2471, %v2336
        %vm2477 = vcmp.ge.f32.partialorder %v2475, %v2337
        %vm2478 = vcmp.ge.f32.partialorder %v2471, %v2338
        %vm2479 = vcmp.ge.f32.partialorder %v2475, %v2339
        %v2480 = vsel %vm2476, 1, 0
        %v2481 = vsel %vm2477, 1, 0
        %v2482 = vsel %vm2478, 1, 0
        %v2483 = vsel %vm2479, 1, 0
        %v2484 = vcvt.s32.f32 %v2480
        %v2485 = vcvt.s32.f32 %v2481
        %v2486 = vcvt.s32.f32 %v2482
        %v2487 = vcvt.s32.f32 %v2483
        %v2488 = vadd.f32 %v2456, %v2484
        %v2489 = vadd.f32 %v2457, %v2485
        %v2490 = vadd.f32 %v2458, %v2486
        %v2491 = vadd.f32 %v2459, %v2487
        %v2492 = vmul.f32 %v2484, %v2471
        %v2493 = vmul.f32 %v2485, %v2475
        %v2494 = vmul.f32 %v2486, %v2471
        %v2495 = vmul.f32 %v2487, %v2475
        %v2496 = vadd.f32 %v2464, %v2492
        %v2497 = vadd.f32 %v2465, %v2493
        %v2498 = vadd.f32 %v2466, %v2494
        %v2499 = vadd.f32 %v2467, %v2495
        %v2500 = vlaneseq
        %v2501 = vshrl.u32 %v2500, 7
        %v2502 = vsub.s32 5, %v2501
        %v2503 = vrot.slane %v2336, %v2502
        %v2504 = vlaneseq
        %v2505 = vshrl.u32 %v2504, 7
        %v2506 = vsub.s32 5, %v2505
        %v2507 = vrot.slane %v2337, %v2506
        %vm2508 = vcmp.ge.f32.partialorder %v2503, %v2336
        %vm2509 = vcmp.ge.f32.partialorder %v2507, %v2337
        %vm2510 = vcmp.ge.f32.partialorder %v2503, %v2338
        %vm2511 = vcmp.ge.f32.partialorder %v2507, %v2339
        %v2512 = vsel %vm2508, 1, 0
        %v2513 = vsel %vm2509, 1, 0
        %v2514 = vsel %vm2510, 1, 0
        %v2515 = vsel %vm2511, 1, 0
        %v2516 = vcvt.s32.f32 %v2512
        %v2517 = vcvt.s32.f32 %v2513
        %v2518 = vcvt.s32.f32 %v2514
        %v2519 = vcvt.s32.f32 %v2515
        %v2520 = vadd.f32 %v2488, %v2516
        %v2521 = vadd.f32 %v2489, %v2517
        %v2522 = vadd.f32 %v2490, %v2518
        %v2523 = vadd.f32 %v2491, %v2519
        %v2524 = vmul.f32 %v2516, %v2503
        %v2525 = vmul.f32 %v2517, %v2507
        %v2526 = vmul.f32 %v2518, %v2503
        %v2527 = vmul.f32 %v2519, %v2507
        %v2528 = vadd.f32 %v2496, %v2524
        %v2529 = vadd.f32 %v2497, %v2525
        %v2530 = vadd.f32 %v2498, %v2526
        %v2531 = vadd.f32 %v2499, %v2527
        %v2532 = vlaneseq
        %v2533 = vshrl.u32 %v2532, 7
        %v2534 = vsub.s32 6, %v2533
        %v2535 = vrot.slane %v2336, %v2534
        %v2536 = vlaneseq
        %v2537 = vshrl.u32 %v2536, 7
        %v2538 = vsub.s32 6, %v2537
        %v2539 = vrot.slane %v2337, %v2538
        %vm2540 = vcmp.ge.f32.partialorder %v2535, %v2336
        %vm2541 = vcmp.ge.f32.partialorder %v2539, %v2337
        %vm2542 = vcmp.ge.f32.partialorder %v2535, %v2338
        %vm2543 = vcmp.ge.f32.partialorder %v2539, %v2339
        %v2544 = vsel %vm2540, 1, 0
        %v2545 = vsel %vm2541, 1, 0
        %v2546 = vsel %vm2542, 1, 0
        %v2547 = vsel %vm2543, 1, 0
        %v2548 = vcvt.s32.f32 %v2544
        %v2549 = vcvt.s32.f32 %v2545
        %v2550 = vcvt.s32.f32 %v2546
        %v2551 = vcvt.s32.f32 %v2547
        %v2552 = vadd.f32 %v2520, %v2548
        %v2553 = vadd.f32 %v2521, %v2549
        %v2554 = vadd.f32 %v2522, %v2550
        %v2555 = vadd.f32 %v2523, %v2551
        %v2556 = vmul.f32 %v2548, %v2535
        %v2557 = vmul.f32 %v2549, %v2539
        %v2558 = vmul.f32 %v2550, %v2535
        %v2559 = vmul.f32 %v2551, %v2539
        %v2560 = vadd.f32 %v2528, %v2556
        %v2561 = vadd.f32 %v2529, %v2557
        %v2562 = vadd.f32 %v2530, %v2558
        %v2563 = vadd.f32 %v2531, %v2559
        %v2564 = vlaneseq
        %v2565 = vshrl.u32 %v2564, 7
        %v2566 = vsub.s32 7, %v2565
        %v2567 = vrot.slane %v2336, %v2566
        %v2568 = vlaneseq
        %v2569 = vshrl.u32 %v2568, 7
        %v2570 = vsub.s32 7, %v2569
        %v2571 = vrot.slane %v2337, %v2570
        %vm2572 = vcmp.ge.f32.partialorder %v2567, %v2336
        %vm2573 = vcmp.ge.f32.partialorder %v2571, %v2337
        %vm2574 = vcmp.ge.f32.partialorder %v2567, %v2338
        %vm2575 = vcmp.ge.f32.partialorder %v2571, %v2339
        %v2576 = vsel %vm2572, 1, 0
        %v2577 = vsel %vm2573, 1, 0
        %v2578 = vsel %vm2574, 1, 0
        %v2579 = vsel %vm2575, 1, 0
        %v2580 = vcvt.s32.f32 %v2576
        %v2581 = vcvt.s32.f32 %v2577
        %v2582 = vcvt.s32.f32 %v2578
        %v2583 = vcvt.s32.f32 %v2579
        %v2584 = vadd.f32 %v2552, %v2580
        %v2585 = vadd.f32 %v2553, %v2581
        %v2586 = vadd.f32 %v2554, %v2582
        %v2587 = vadd.f32 %v2555, %v2583
        %v2588 = vmul.f32 %v2580, %v2567
        %v2589 = vmul.f32 %v2581, %v2571
        %v2590 = vmul.f32 %v2582, %v2567
        %v2591 = vmul.f32 %v2583, %v2571
        %v2592 = vadd.f32 %v2560, %v2588
        %v2593 = vadd.f32 %v2561, %v2589
        %v2594 = vadd.f32 %v2562, %v2590
        %v2595 = vadd.f32 %v2563, %v2591
        %v2596 = vlaneseq
        %v2597 = vshrl.u32 %v2596, 7
        %v2598 = vsub.s32 0, %v2597
        %v2599 = vrot.slane %v2338, %v2598
        %v2600 = vlaneseq
        %v2601 = vshrl.u32 %v2600, 7
        %v2602 = vsub.s32 0, %v2601
        %v2603 = vrot.slane %v2339, %v2602
        %vm2604 = vcmp.ge.f32.partialorder %v2599, %v2336
        %vm2605 = vcmp.ge.f32.partialorder %v2603, %v2337
        %vm2606 = vcmp.ge.f32.partialorder %v2599, %v2338
        %vm2607 = vcmp.ge.f32.partialorder %v2603, %v2339
        %v2608 = vsel %vm2604, 1, 0
        %v2609 = vsel %vm2605, 1, 0
        %v2610 = vsel %vm2606, 1, 0
        %v2611 = vsel %vm2607, 1, 0
        %v2612 = vcvt.s32.f32 %v2608
        %v2613 = vcvt.s32.f32 %v2609
        %v2614 = vcvt.s32.f32 %v2610
        %v2615 = vcvt.s32.f32 %v2611
        %v2616 = vadd.f32 %v2584, %v2612
        %v2617 = vadd.f32 %v2585, %v2613
        %v2618 = vadd.f32 %v2586, %v2614
        %v2619 = vadd.f32 %v2587, %v2615
        %v2620 = vmul.f32 %v2612, %v2599
        %v2621 = vmul.f32 %v2613, %v2603
        %v2622 = vmul.f32 %v2614, %v2599
        %v2623 = vmul.f32 %v2615, %v2603
        %v2624 = vadd.f32 %v2592, %v2620
        %v2625 = vadd.f32 %v2593, %v2621
        %v2626 = vadd.f32 %v2594, %v2622
        %v2627 = vadd.f32 %v2595, %v2623
        %v2628 = vlaneseq
        %v2629 = vshrl.u32 %v2628, 7
        %v2630 = vsub.s32 1, %v2629
        %v2631 = vrot.slane %v2338, %v2630
        %v2632 = vlaneseq
        %v2633 = vshrl.u32 %v2632, 7
        %v2634 = vsub.s32 1, %v2633
        %v2635 = vrot.slane %v2339, %v2634
        %vm2636 = vcmp.ge.f32.partialorder %v2631, %v2336
        %vm2637 = vcmp.ge.f32.partialorder %v2635, %v2337
        %vm2638 = vcmp.ge.f32.partialorder %v2631, %v2338
        %vm2639 = vcmp.ge.f32.partialorder %v2635, %v2339
        %v2640 = vsel %vm2636, 1, 0
        %v2641 = vsel %vm2637, 1, 0
        %v2642 = vsel %vm2638, 1, 0
        %v2643 = vsel %vm2639, 1, 0
        %v2644 = vcvt.s32.f32 %v2640
        %v2645 = vcvt.s32.f32 %v2641
        %v2646 = vcvt.s32.f32 %v2642
        %v2647 = vcvt.s32.f32 %v2643
        %v2648 = vadd.f32 %v2616, %v2644
        %v2649 = vadd.f32 %v2617, %v2645
        %v2650 = vadd.f32 %v2618, %v2646
        %v2651 = vadd.f32 %v2619, %v2647
        %v2652 = vmul.f32 %v2644, %v2631
        %v2653 = vmul.f32 %v2645, %v2635
        %v2654 = vmul.f32 %v2646, %v2631
        %v2655 = vmul.f32 %v2647, %v2635
        %v2656 = vadd.f32 %v2624, %v2652
        %v2657 = vadd.f32 %v2625, %v2653
        %v2658 = vadd.f32 %v2626, %v2654
        %v2659 = vadd.f32 %v2627, %v2655
        %v2660 = vlaneseq
        %v2661 = vshrl.u32 %v2660, 7
        %v2662 = vsub.s32 2, %v2661
        %v2663 = vrot.slane %v2338, %v2662
        %v2664 = vlaneseq
        %v2665 = vshrl.u32 %v2664, 7
        %v2666 = vsub.s32 2, %v2665
        %v2667 = vrot.slane %v2339, %v2666
        %vm2668 = vcmp.ge.f32.partialorder %v2663, %v2336
        %vm2669 = vcmp.ge.f32.partialorder %v2667, %v2337
        %vm2670 = vcmp.ge.f32.partialorder %v2663, %v2338
        %vm2671 = vcmp.ge.f32.partialorder %v2667, %v2339
        %v2672 = vsel %vm2668, 1, 0
        %v2673 = vsel %vm2669, 1, 0
        %v2674 = vsel %vm2670, 1, 0
        %v2675 = vsel %vm2671, 1, 0
        %v2676 = vcvt.s32.f32 %v2672
        %v2677 = vcvt.s32.f32 %v2673
        %v2678 = vcvt.s32.f32 %v2674
        %v2679 = vcvt.s32.f32 %v2675
        %v2680 = vadd.f32 %v2648, %v2676
        %v2681 = vadd.f32 %v2649, %v2677
        %v2682 = vadd.f32 %v2650, %v2678
        %v2683 = vadd.f32 %v2651, %v2679
        %v2684 = vmul.f32 %v2676, %v2663
        %v2685 = vmul.f32 %v2677, %v2667
        %v2686 = vmul.f32 %v2678, %v2663
        %v2687 = vmul.f32 %v2679, %v2667
        %v2688 = vadd.f32 %v2656, %v2684
        %v2689 = vadd.f32 %v2657, %v2685
        %v2690 = vadd.f32 %v2658, %v2686
        %v2691 = vadd.f32 %v2659, %v2687
        %v2692 = vlaneseq
        %v2693 = vshrl.u32 %v2692, 7
        %v2694 = vsub.s32 3, %v2693
        %v2695 = vrot.slane %v2338, %v2694
        %v2696 = vlaneseq
        %v2697 = vshrl.u32 %v2696, 7
        %v2698 = vsub.s32 3, %v2697
        %v2699 = vrot.slane %v2339, %v2698
        %vm2700 = vcmp.ge.f32.partialorder %v2695, %v2336
        %vm2701 = vcmp.ge.f32.partialorder %v2699, %v2337
        %vm2702 = vcmp.ge.f32.partialorder %v2695, %v2338
        %vm2703 = vcmp.ge.f32.partialorder %v2699, %v2339
        %v2704 = vsel %vm2700, 1, 0
        %v2705 = vsel %vm2701, 1, 0
        %v2706 = vsel %vm2702, 1, 0
        %v2707 = vsel %vm2703, 1, 0
        %v2708 = vcvt.s32.f32 %v2704
        %v2709 = vcvt.s32.f32 %v2705
        %v2710 = vcvt.s32.f32 %v2706
        %v2711 = vcvt.s32.f32 %v2707
        %v2712 = vadd.f32 %v2680, %v2708
        %v2713 = vadd.f32 %v2681, %v2709
        %v2714 = vadd.f32 %v2682, %v2710
        %v2715 = vadd.f32 %v2683, %v2711
        %v2716 = vmul.f32 %v2708, %v2695
        %v2717 = vmul.f32 %v2709, %v2699
        %v2718 = vmul.f32 %v2710, %v2695
        %v2719 = vmul.f32 %v2711, %v2699
        %v2720 = vadd.f32 %v2688, %v2716
        %v2721 = vadd.f32 %v2689, %v2717
        %v2722 = vadd.f32 %v2690, %v2718
        %v2723 = vadd.f32 %v2691, %v2719
        %v2724 = vlaneseq
        %v2725 = vshrl.u32 %v2724, 7
        %v2726 = vsub.s32 4, %v2725
        %v2727 = vrot.slane %v2338, %v2726
        %v2728 = vlaneseq
        %v2729 = vshrl.u32 %v2728, 7
        %v2730 = vsub.s32 4, %v2729
        %v2731 = vrot.slane %v2339, %v2730
        %vm2732 = vcmp.ge.f32.partialorder %v2727, %v2336
        %vm2733 = vcmp.ge.f32.partialorder %v2731, %v2337
        %vm2734 = vcmp.ge.f32.partialorder %v2727, %v2338
        %vm2735 = vcmp.ge.f32.partialorder %v2731, %v2339
        %v2736 = vsel %vm2732, 1, 0
        %v2737 = vsel %vm2733, 1, 0
        %v2738 = vsel %vm2734, 1, 0
        %v2739 = vsel %vm2735, 1, 0
        %v2740 = vcvt.s32.f32 %v2736
        %v2741 = vcvt.s32.f32 %v2737
        %v2742 = vcvt.s32.f32 %v2738
        %v2743 = vcvt.s32.f32 %v2739
        %v2744 = vadd.f32 %v2712, %v2740
        %v2745 = vadd.f32 %v2713, %v2741
        %v2746 = vadd.f32 %v2714, %v2742
        %v2747 = vadd.f32 %v2715, %v2743
        %v2748 = vmul.f32 %v2740, %v2727
        %v2749 = vmul.f32 %v2741, %v2731
        %v2750 = vmul.f32 %v2742, %v2727
        %v2751 = vmul.f32 %v2743, %v2731
        %v2752 = vadd.f32 %v2720, %v2748
        %v2753 = vadd.f32 %v2721, %v2749
        %v2754 = vadd.f32 %v2722, %v2750
        %v2755 = vadd.f32 %v2723, %v2751
        %v2756 = vlaneseq
        %v2757 = vshrl.u32 %v2756, 7
        %v2758 = vsub.s32 5, %v2757
        %v2759 = vrot.slane %v2338, %v2758
        %v2760 = vlaneseq
        %v2761 = vshrl.u32 %v2760, 7
        %v2762 = vsub.s32 5, %v2761
        %v2763 = vrot.slane %v2339, %v2762
        %vm2764 = vcmp.ge.f32.partialorder %v2759, %v2336
        %vm2765 = vcmp.ge.f32.partialorder %v2763, %v2337
        %vm2766 = vcmp.ge.f32.partialorder %v2759, %v2338
        %vm2767 = vcmp.ge.f32.partialorder %v2763, %v2339
        %v2768 = vsel %vm2764, 1, 0
        %v2769 = vsel %vm2765, 1, 0
        %v2770 = vsel %vm2766, 1, 0
        %v2771 = vsel %vm2767, 1, 0
        %v2772 = vcvt.s32.f32 %v2768
        %v2773 = vcvt.s32.f32 %v2769
        %v2774 = vcvt.s32.f32 %v2770
        %v2775 = vcvt.s32.f32 %v2771
        %v2776 = vadd.f32 %v2744, %v2772
        %v2777 = vadd.f32 %v2745, %v2773
        %v2778 = vadd.f32 %v2746, %v2774
        %v2779 = vadd.f32 %v2747, %v2775
        %v2780 = vmul.f32 %v2772, %v2759
        %v2781 = vmul.f32 %v2773, %v2763
        %v2782 = vmul.f32 %v2774, %v2759
        %v2783 = vmul.f32 %v2775, %v2763
        %v2784 = vadd.f32 %v2752, %v2780
        %v2785 = vadd.f32 %v2753, %v2781
        %v2786 = vadd.f32 %v2754, %v2782
        %v2787 = vadd.f32 %v2755, %v2783
        %v2788 = vlaneseq
        %v2789 = vshrl.u32 %v2788, 7
        %v2790 = vsub.s32 6, %v2789
        %v2791 = vrot.slane %v2338, %v2790
        %v2792 = vlaneseq
        %v2793 = vshrl.u32 %v2792, 7
        %v2794 = vsub.s32 6, %v2793
        %v2795 = vrot.slane %v2339, %v2794
        %vm2796 = vcmp.ge.f32.partialorder %v2791, %v2336
        %vm2797 = vcmp.ge.f32.partialorder %v2795, %v2337
        %vm2798 = vcmp.ge.f32.partialorder %v2791, %v2338
        %vm2799 = vcmp.ge.f32.partialorder %v2795, %v2339
        %v2800 = vsel %vm2796, 1, 0
        %v2801 = vsel %vm2797, 1, 0
        %v2802 = vsel %vm2798, 1, 0
        %v2803 = vsel %vm2799, 1, 0
        %v2804 = vcvt.s32.f32 %v2800
        %v2805 = vcvt.s32.f32 %v2801
        %v2806 = vcvt.s32.f32 %v2802
        %v2807 = vcvt.s32.f32 %v2803
        %v2808 = vadd.f32 %v2776, %v2804
        %v2809 = vadd.f32 %v2777, %v2805
        %v2810 = vadd.f32 %v2778, %v2806
        %v2811 = vadd.f32 %v2779, %v2807
        %v2812 = vmul.f32 %v2804, %v2791
        %v2813 = vmul.f32 %v2805, %v2795
        %v2814 = vmul.f32 %v2806, %v2791
        %v2815 = vmul.f32 %v2807, %v2795
        %v2816 = vadd.f32 %v2784, %v2812
        %v2817 = vadd.f32 %v2785, %v2813
        %v2818 = vadd.f32 %v2786, %v2814
        %v2819 = vadd.f32 %v2787, %v2815
        %v2820 = vlaneseq
        %v2821 = vshrl.u32 %v2820, 7
        %v2822 = vsub.s32 7, %v2821
        %v2823 = vrot.slane %v2338, %v2822
        %v2824 = vlaneseq
        %v2825 = vshrl.u32 %v2824, 7
        %v2826 = vsub.s32 7, %v2825
        %v2827 = vrot.slane %v2339, %v2826
        %vm2828 = vcmp.ge.f32.partialorder %v2823, %v2336
        %vm2829 = vcmp.ge.f32.partialorder %v2827, %v2337
        %vm2830 = vcmp.ge.f32.partialorder %v2823, %v2338
        %vm2831 = vcmp.ge.f32.partialorder %v2827, %v2339
        %v2832 = vsel %vm2828, 1, 0
        %v2833 = vsel %vm2829, 1, 0
        %v2834 = vsel %vm2830, 1, 0
        %v2835 = vsel %vm2831, 1, 0
        %v2836 = vcvt.s32.f32 %v2832
        %v2837 = vcvt.s32.f32 %v2833
        %v2838 = vcvt.s32.f32 %v2834
        %v2839 = vcvt.s32.f32 %v2835
        %v2840 = vadd.f32 %v2808, %v2836
        %v2841 = vadd.f32 %v2809, %v2837
        %v2842 = vadd.f32 %v2810, %v2838
        %v2843 = vadd.f32 %v2811, %v2839
        %v2844 = vmul.f32 %v2836, %v2823
        %v2845 = vmul.f32 %v2837, %v2827
        %v2846 = vmul.f32 %v2838, %v2823
        %v2847 = vmul.f32 %v2839, %v2827
        %v2848 = vadd.f32 %v2816, %v2844
        %v2849 = vadd.f32 %v2817, %v2845
        %v2850 = vadd.f32 %v2818, %v2846
        %v2851 = vadd.f32 %v2819, %v2847
        %v2852 = vmul.f32 %v2840, %v2336
        %v2853 = vmul.f32 %v2841, %v2337
        %v2854 = vmul.f32 %v2842, %v2338
        %v2855 = vmul.f32 %v2843, %v2339
        %v2856 = vadd.f32 %v2852, 1.0
        %v2857 = vadd.f32 %v2853, 1.0
        %v2858 = vadd.f32 %v2854, 1.0
        %v2859 = vadd.f32 %v2855, 1.0
        %v2860 = vsub.f32 %v2856, %v2848
        %v2861 = vsub.f32 %v2857, %v2849
        %v2862 = vsub.f32 %v2858, %v2850
        %v2863 = vsub.f32 %v2859, %v2851
        %vm2864 = vcmp.gt.f32.partialorder %v2860, 0.0
        %vm2865 = vcmp.gt.f32.partialorder %v2861, 0.0
        %vm2866 = vcmp.gt.f32.partialorder %v2862, 0.0
        %vm2867 = vcmp.gt.f32.partialorder %v2863, 0.0
        %v2868 = vsel %vm2864, 1, 0
        %v2869 = vsel %vm2865, 1, 0
        %v2870 = vsel %vm2866, 1, 0
        %v2871 = vsel %vm2867, 1, 0
        %v2872 = vcvt.s32.f32 %v2868
        %v2873 = vcvt.s32.f32 %v2869
        %v2874 = vcvt.s32.f32 %v2870
        %v2875 = vcvt.s32.f32 %v2871
        %v2876 = vadd.f32 %v2872, %v2874
        %v2877 = vrot.slane %v2876, 4
        %v2878 = vadd.f32 %v2876, %v2877
        %v2879 = vrot.slane %v2878, 2
        %v2880 = vadd.f32 %v2878, %v2879
        %v2881 = vrot.slane %v2880, 1
        %v2882 = vadd.f32 %v2880, %v2881
        %v2883 = vadd.f32 %v2873, %v2875
        %v2884 = vrot.slane %v2883, 4
        %v2885 = vadd.f32 %v2883, %v2884
        %v2886 = vrot.slane %v2885, 2
        %v2887 = vadd.f32 %v2885, %v2886
        %v2888 = vrot.slane %v2887, 1
        %v2889 = vadd.f32 %v2887, %v2888
        %v2890 = vmul.f32 %v2336, %v2872
        %v2891 = vmul.f32 %v2337, %v2873
        %v2892 = vmul.f32 %v2338, %v2874
        %v2893 = vmul.f32 %v2339, %v2875
        %v2894 = vadd.f32 %v2890, %v2892
        %v2895 = vrot.slane %v2894, 4
        %v2896 = vadd.f32 %v2894, %v2895
        %v2897 = vrot.slane %v2896, 2
        %v2898 = vadd.f32 %v2896, %v2897
        %v2899 = vrot.slane %v2898, 1
        %v2900 = vadd.f32 %v2898, %v2899
        %v2901 = vadd.f32 %v2891, %v2893
        %v2902 = vrot.slane %v2901, 4
        %v2903 = vadd.f32 %v2901, %v2902
        %v2904 = vrot.slane %v2903, 2
        %v2905 = vadd.f32 %v2903, %v2904
        %v2906 = vrot.slane %v2905, 1
        %v2907 = vadd.f32 %v2905, %v2906
        %v2908 = vsub.f32 %v2900, 1.0
        %v2909 = vsub.f32 %v2907, 1.0
        %v2910 = vrcp.pop %v2882
        %v2911 = vmul.f32 %v2908, %v2910
        %v2912 = vrcp.pop %v2889
        %v2913 = vmul.f32 %v2909, %v2912
        %v2914 = vsub.f32 %v2336, %v2911
        %v2915 = vsub.f32 %v2337, %v2913
        %v2916 = vsub.f32 %v2338, %v2911
        %v2917 = vsub.f32 %v2339, %v2913
        %v2918 = vmax.f32 %v2914, 0.0
        %v2919 = vmax.f32 %v2915, 0.0
        %v2920 = vmax.f32 %v2916, 0.0
        %v2921 = vmax.f32 %v2917, 0.0
        %v2922 = vadd.f32 %v2918, 1e-15
        %v2923 = vadd.f32 %v2919, 1e-15
        %v2924 = vadd.f32 %v2920, 1e-15
        %v2925 = vadd.f32 %v2921, 1e-15
        %v2926 = vlog2.pop %v2922
        %v2927 = vmul.f32 %v2926, 0.6931472
        %v2928 = vlog2.pop %v2923
        %v2929 = vmul.f32 %v2928, 0.6931472
        %v2930 = vlog2.pop %v2924
        %v2931 = vmul.f32 %v2930, 0.6931472
        %v2932 = vlog2.pop %v2925
        %v2933 = vmul.f32 %v2932, 0.6931472
        %v2934 = vmul.f32 %v2918, %v2927
        %v2935 = vmul.f32 %v2919, %v2929
        %v2936 = vmul.f32 %v2920, %v2931
        %v2937 = vmul.f32 %v2921, %v2933
        %v2938 = vadd.f32 %v2934, %v2936
        %v2939 = vrot.slane %v2938, 4
        %v2940 = vadd.f32 %v2938, %v2939
        %v2941 = vrot.slane %v2940, 2
        %v2942 = vadd.f32 %v2940, %v2941
        %v2943 = vrot.slane %v2942, 1
        %v2944 = vadd.f32 %v2942, %v2943
        %v2945 = vadd.f32 %v2935, %v2937
        %v2946 = vrot.slane %v2945, 4
        %v2947 = vadd.f32 %v2945, %v2946
        %v2948 = vrot.slane %v2947, 2
        %v2949 = vadd.f32 %v2947, %v2948
        %v2950 = vrot.slane %v2949, 1
        %v2951 = vadd.f32 %v2949, %v2950
        %v2952 = vadd.f32 %v2944, %v2951
        %2953 = vadd.xlane.f32.xlu0 %v2952
        %v2954 = vpop.xlane.xlu0 %2953
        %s2955 = vtos %v2954
        %v2956 = vrcp.pop 256.0
        %s2957 = vtos %v2956
        %s2958 = smul.f32 %s2955, %s2957
        %s2959 = sadd.f32 %s2958, 0.0
        %v2960 = vsub.f32 1.3, %v2918
        %v2961 = vsub.f32 1.3, %v2919
        %v2962 = vsub.f32 1.3, %v2920
        %v2963 = vsub.f32 1.3, %v2921
        %v2964 = vmul.f32 %v2918, %v1289
        %v2965 = vmul.f32 %v2919, %v1290
        %v2966 = vmul.f32 %v2920, %v1291
        %v2967 = vmul.f32 %v2921, %v1292
        %s2968 = scalar_lea.vmem %s5, 128
        %v2969 = vld [vmem:[%s2968] sm:$0xff]
        %v2970 = vld [vmem:[%s2968 + $0x8] sm:$0xff]
        %v2971 = vld [vmem:[%s2968 + $0x10] sm:$0xff]
        %v2972 = vld [vmem:[%s2968 + $0x18] sm:$0xff]
        %s2973 = scalar_lea.vmem %s5, 640
        %v2974 = vld [vmem:[%s2973] sm:$0xff]
        %v2975 = vld [vmem:[%s2973 + $0x8] sm:$0xff]
        %v2976 = vld [vmem:[%s2973 + $0x10] sm:$0xff]
        %v2977 = vld [vmem:[%s2973 + $0x18] sm:$0xff]
        %v2978 = vpack.c.bf16 %v2966, %v2964
        %v2979 = vpack.c.bf16 %v2967, %v2965
        %2980 = vmatprep.subr.bf16.mxu0 %v2979
        %2981 = vmatpush1.bf16.msra.mxu0 %v2978
        %2982 = vmatprep.subr.bf16.mxu0 0
        %2983 = vmatpush1.bf16.msra.mxu0 0
        %2984 = vmatprep.subr.bf16.mxu0 0
        %2985 = vmatpush1.bf16.msra.mxu0 0
        %2986 = vmatprep.subr.bf16.mxu0 0
        %2987 = vmatpush1.bf16.msra.mxu0 0
        %2988 = vmatprep.subr.bf16.mxu0 0
        %2989 = vmatpush1.bf16.msra.mxu0 0
        %2990 = vmatprep.subr.bf16.mxu0 0
        %2991 = vmatpush1.bf16.msra.mxu0 0
        %2992 = vmatprep.subr.bf16.mxu0 0
        %2993 = vmatpush1.bf16.msra.mxu0 0
        %2994 = vmatprep.subr.bf16.mxu0 0
        %2995 = vmatpush1.bf16.msra.mxu0 0
        %2996 = vmatprep.subr.bf16.mxu0 0
        %2997 = vmatpush1.bf16.msra.mxu0 0
        %2998 = vmatprep.subr.bf16.mxu0 0
        %2999 = vmatpush1.bf16.msra.mxu0 0
        %3000 = vmatprep.subr.bf16.mxu0 0
        %3001 = vmatpush1.bf16.msra.mxu0 0
        %3002 = vmatprep.subr.bf16.mxu0 0
        %3003 = vmatpush1.bf16.msra.mxu0 0
        %3004 = vmatprep.subr.bf16.mxu0 0
        %3005 = vmatpush1.bf16.msra.mxu0 0
        %3006 = vmatprep.subr.bf16.mxu0 0
        %3007 = vmatpush1.bf16.msra.mxu0 0
        %3008 = vmatprep.subr.bf16.mxu0 0
        %3009 = vmatpush1.bf16.msra.mxu0 0
        %3010 = vmatprep.subr.bf16.mxu0 0
        %3011 = vmatpush1.bf16.msra.mxu0 0
        %3012 = vmatprep.mubr.bf16.mxu0 0
        %3013 = vmatmul.mubr.bf16.gmra.mrb[0].mxu0 %v1306
        %v3014 = vpop.f32.mrb[0].mxu0
        %v3015 = vadd.f32 0.0, %v3014
        %v3016 = vpop.f32.mrb[0].mxu0
        %v3017 = vadd.f32 0.0, %v3016
        %v3018 = vpop.f32.mrb[0].mxu0
        %v3019 = vadd.f32 0.0, %v3018
        %v3020 = vpop.f32.mrb[0].mxu0
        %v3021 = vadd.f32 0.0, %v3020
        %3022 = vmatprep.mubr.bf16.mxu0 0
        %3023 = vmatmul.mubr.bf16.gmra.mrb[0].mxu0 %v1309
        %v3024 = vpop.f32.mrb[0].mxu0
        %v3025 = vadd.f32 0.0, %v3024
        %v3026 = vpop.f32.mrb[0].mxu0
        %v3027 = vadd.f32 0.0, %v3026
        %v3028 = vpop.f32.mrb[0].mxu0
        %v3029 = vadd.f32 0.0, %v3028
        %v3030 = vpop.f32.mrb[0].mxu0
        %v3031 = vadd.f32 0.0, %v3030
        %3032 = vdwg.mxu0
        %3033 = vadd.xlane.f32.xlu0 %v3015
        %v3034 = vpop.xlane.xlu0 %3033
        %3035 = vadd.xlane.f32.xlu0 %v3019
        %v3036 = vpop.xlane.xlu0 %3035
        %3037 = vadd.xlane.f32.xlu0 %v3025
        %v3038 = vpop.xlane.xlu0 %3037
        %3039 = vadd.xlane.f32.xlu0 %v3029
        %v3040 = vpop.xlane.xlu0 %3039
        %v3041 = vmul.f32 %v3034, %v1224
        %v3042 = vmul.f32 %v3036, %v1224
        %v3043 = vmul.f32 %v3038, %v1224
        %v3044 = vmul.f32 %v3040, %v1224
        %v3045 = vsub.f32 %v3015, %v3041
        %v3046 = vsub.f32 %v3019, %v3042
        %v3047 = vsub.f32 %v3025, %v3043
        %v3048 = vsub.f32 %v3029, %v3044
        %v3049 = vmul.f32 %v3045, %v3045
        %v3050 = vmul.f32 %v3046, %v3046
        %v3051 = vmul.f32 %v3047, %v3047
        %v3052 = vmul.f32 %v3048, %v3048
        %3053 = vadd.xlane.f32.xlu0 %v3049
        %v3054 = vpop.xlane.xlu0 %3053
        %3055 = vadd.xlane.f32.xlu0 %v3050
        %v3056 = vpop.xlane.xlu0 %3055
        %3057 = vadd.xlane.f32.xlu0 %v3051
        %v3058 = vpop.xlane.xlu0 %3057
        %3059 = vadd.xlane.f32.xlu0 %v3052
        %v3060 = vpop.xlane.xlu0 %3059
        %v3061 = vmul.f32 %v3054, %v1224
        %v3062 = vmul.f32 %v3056, %v1224
        %v3063 = vmul.f32 %v3058, %v1224
        %v3064 = vmul.f32 %v3060, %v1224
        %v3065 = vadd.f32 %v3061, 1e-05
        %v3066 = vadd.f32 %v3062, 1e-05
        %v3067 = vadd.f32 %v3063, 1e-05
        %v3068 = vadd.f32 %v3064, 1e-05
        %v3069 = vrsqrt.pop %v3065
        %v3070 = vrsqrt.pop %v3066
        %v3071 = vrsqrt.pop %v3067
        %v3072 = vrsqrt.pop %v3068
        %v3073 = vmul.f32 %v3045, %v3069
        %v3074 = vmul.f32 %v3046, %v3070
        %v3075 = vmul.f32 %v3047, %v3071
        %v3076 = vmul.f32 %v3048, %v3072
        %3077 = vadd.xlane.f32.xlu0 %v3017
        %v3078 = vpop.xlane.xlu0 %3077
        %3079 = vadd.xlane.f32.xlu0 %v3021
        %v3080 = vpop.xlane.xlu0 %3079
        %3081 = vadd.xlane.f32.xlu0 %v3027
        %v3082 = vpop.xlane.xlu0 %3081
        %3083 = vadd.xlane.f32.xlu0 %v3031
        %v3084 = vpop.xlane.xlu0 %3083
        %v3085 = vmul.f32 %v3078, %v1224
        %v3086 = vmul.f32 %v3080, %v1224
        %v3087 = vmul.f32 %v3082, %v1224
        %v3088 = vmul.f32 %v3084, %v1224
        %v3089 = vsub.f32 %v3017, %v3085
        %v3090 = vsub.f32 %v3021, %v3086
        %v3091 = vsub.f32 %v3027, %v3087
        %v3092 = vsub.f32 %v3031, %v3088
        %v3093 = vmul.f32 %v3089, %v3089
        %v3094 = vmul.f32 %v3090, %v3090
        %v3095 = vmul.f32 %v3091, %v3091
        %v3096 = vmul.f32 %v3092, %v3092
        %3097 = vadd.xlane.f32.xlu0 %v3093
        %v3098 = vpop.xlane.xlu0 %3097
        %3099 = vadd.xlane.f32.xlu0 %v3094
        %v3100 = vpop.xlane.xlu0 %3099
        %3101 = vadd.xlane.f32.xlu0 %v3095
        %v3102 = vpop.xlane.xlu0 %3101
        %3103 = vadd.xlane.f32.xlu0 %v3096
        %v3104 = vpop.xlane.xlu0 %3103
        %v3105 = vmul.f32 %v3098, %v1224
        %v3106 = vmul.f32 %v3100, %v1224
        %v3107 = vmul.f32 %v3102, %v1224
        %v3108 = vmul.f32 %v3104, %v1224
        %v3109 = vadd.f32 %v3105, 1e-05
        %v3110 = vadd.f32 %v3106, 1e-05
        %v3111 = vadd.f32 %v3107, 1e-05
        %v3112 = vadd.f32 %v3108, 1e-05
        %v3113 = vrsqrt.pop %v3109
        %v3114 = vrsqrt.pop %v3110
        %v3115 = vrsqrt.pop %v3111
        %v3116 = vrsqrt.pop %v3112
        %v3117 = vmul.f32 %v3089, %v3113
        %v3118 = vmul.f32 %v3090, %v3114
        %v3119 = vmul.f32 %v3091, %v3115
        %v3120 = vmul.f32 %v3092, %v3116
        %3122 = vset.pattern.permute.xlu0 0
        %3123 = vperm.xlu0 %3122, %v2969
        %v3124 = vpop.permute.xlu0 %3123
        %3127 = vset.pattern.permute.xlu0 0
        %3128 = vperm.xlu0 %3127, %v2970
        %v3129 = vpop.permute.xlu0 %3128
        %3132 = vset.pattern.permute.xlu0 0
        %3133 = vperm.xlu0 %3132, %v2971
        %v3134 = vpop.permute.xlu0 %3133
        %3137 = vset.pattern.permute.xlu0 0
        %3138 = vperm.xlu0 %3137, %v2972
        %v3139 = vpop.permute.xlu0 %3138
        %v3141 = vmul.f32 %v3073, %v3124
        %v3142 = vmul.f32 %v3117, %v3124
        %v3143 = vmul.f32 %v3074, %v3129
        %v3144 = vmul.f32 %v3118, %v3129
        %v3145 = vmul.f32 %v3075, %v3134
        %v3146 = vmul.f32 %v3119, %v3134
        %v3147 = vmul.f32 %v3076, %v3139
        %v3148 = vmul.f32 %v3120, %v3139
        %3150 = vset.pattern.permute.xlu0 0
        %3151 = vperm.xlu0 %3150, %v2974
        %v3152 = vpop.permute.xlu0 %3151
        %3155 = vset.pattern.permute.xlu0 0
        %3156 = vperm.xlu0 %3155, %v2975
        %v3157 = vpop.permute.xlu0 %3156
        %3160 = vset.pattern.permute.xlu0 0
        %3161 = vperm.xlu0 %3160, %v2976
        %v3162 = vpop.permute.xlu0 %3161
        %3165 = vset.pattern.permute.xlu0 0
        %3166 = vperm.xlu0 %3165, %v2977
        %v3167 = vpop.permute.xlu0 %3166
        %v3169 = vadd.f32 %v3141, %v3152
        %v3170 = vadd.f32 %v3142, %v3152
        %v3171 = vadd.f32 %v3143, %v3157
        %v3172 = vadd.f32 %v3144, %v3157
        %v3173 = vadd.f32 %v3145, %v3162
        %v3174 = vadd.f32 %v3146, %v3162
        %v3175 = vadd.f32 %v3147, %v3167
        %v3176 = vadd.f32 %v3148, %v3167
        %v3177 = vxor.u32 %v3173, 2147483648
        %v3178 = vxor.u32 %v3174, 2147483648
        %v3179 = vxor.u32 %v3175, 2147483648
        %v3180 = vxor.u32 %v3176, 2147483648
        %v3181 = vmul.f32 %v3177, 1.442695
        %v3182 = vpow.pop %v3181
        %v3183 = vmul.f32 %v3178, 1.442695
        %v3184 = vpow.pop %v3183
        %v3185 = vmul.f32 %v3179, 1.442695
        %v3186 = vpow.pop %v3185
        %v3187 = vmul.f32 %v3180, 1.442695
        %v3188 = vpow.pop %v3187
        %v3189 = vadd.f32 %v3182, 1.0
        %v3190 = vadd.f32 %v3184, 1.0
        %v3191 = vadd.f32 %v3186, 1.0
        %v3192 = vadd.f32 %v3188, 1.0
        %v3193 = vrcp.pop %v3189
        %v3194 = vmul.f32 1.0, %v3193
        %v3195 = vrcp.pop %v3190
        %v3196 = vmul.f32 1.0, %v3195
        %v3197 = vrcp.pop %v3191
        %v3198 = vmul.f32 1.0, %v3197
        %v3199 = vrcp.pop %v3192
        %v3200 = vmul.f32 1.0, %v3199
        %v3201 = vmul.f32 %v3169, %v3194
        %v3202 = vmul.f32 %v3170, %v3196
        %v3203 = vmul.f32 %v3171, %v3198
        %v3204 = vmul.f32 %v3172, %v3200
        %s3205 = scalar_lea.vmem %s5, 160
        %v3206 = vld [vmem:[%s3205] sm:$0xff]
        %v3207 = vld [vmem:[%s3205 + $0x8] sm:$0xff]
        %v3208 = vld [vmem:[%s3205 + $0x10] sm:$0xff]
        %v3209 = vld [vmem:[%s3205 + $0x18] sm:$0xff]
        %s3210 = scalar_lea.vmem %s5, 672
        %v3211 = vld [vmem:[%s3210] sm:$0xff]
        %v3212 = vld [vmem:[%s3210 + $0x8] sm:$0xff]
        %v3213 = vld [vmem:[%s3210 + $0x10] sm:$0xff]
        %v3214 = vld [vmem:[%s3210 + $0x18] sm:$0xff]
        %v3215 = vpack.c.bf16 %v3203, %v3201
        %v3216 = vpack.c.bf16 %v3204, %v3202
        %3217 = vmatprep.subr.bf16.mxu0 %v3216
        %3218 = vmatpush1.bf16.msra.mxu0 %v3215
        %3219 = vmatprep.subr.bf16.mxu0 0
        %3220 = vmatpush1.bf16.msra.mxu0 0
        %3221 = vmatprep.subr.bf16.mxu0 0
        %3222 = vmatpush1.bf16.msra.mxu0 0
        %3223 = vmatprep.subr.bf16.mxu0 0
        %3224 = vmatpush1.bf16.msra.mxu0 0
        %3225 = vmatprep.subr.bf16.mxu0 0
        %3226 = vmatpush1.bf16.msra.mxu0 0
        %3227 = vmatprep.subr.bf16.mxu0 0
        %3228 = vmatpush1.bf16.msra.mxu0 0
        %3229 = vmatprep.subr.bf16.mxu0 0
        %3230 = vmatpush1.bf16.msra.mxu0 0
        %3231 = vmatprep.subr.bf16.mxu0 0
        %3232 = vmatpush1.bf16.msra.mxu0 0
        %3233 = vmatprep.subr.bf16.mxu0 0
        %3234 = vmatpush1.bf16.msra.mxu0 0
        %3235 = vmatprep.subr.bf16.mxu0 0
        %3236 = vmatpush1.bf16.msra.mxu0 0
        %3237 = vmatprep.subr.bf16.mxu0 0
        %3238 = vmatpush1.bf16.msra.mxu0 0
        %3239 = vmatprep.subr.bf16.mxu0 0
        %3240 = vmatpush1.bf16.msra.mxu0 0
        %3241 = vmatprep.subr.bf16.mxu0 0
        %3242 = vmatpush1.bf16.msra.mxu0 0
        %3243 = vmatprep.subr.bf16.mxu0 0
        %3244 = vmatpush1.bf16.msra.mxu0 0
        %3245 = vmatprep.subr.bf16.mxu0 0
        %3246 = vmatpush1.bf16.msra.mxu0 0
        %3247 = vmatprep.subr.bf16.mxu0 0
        %3248 = vmatpush1.bf16.msra.mxu0 0
        %3249 = vmatprep.mubr.bf16.mxu0 0
        %3250 = vmatmul.mubr.bf16.gmra.mrb[0].mxu0 %v1549
        %v3251 = vpop.f32.mrb[0].mxu0
        %v3252 = vadd.f32 0.0, %v3251
        %v3253 = vpop.f32.mrb[0].mxu0
        %v3254 = vadd.f32 0.0, %v3253
        %v3255 = vpop.f32.mrb[0].mxu0
        %v3256 = vadd.f32 0.0, %v3255
        %v3257 = vpop.f32.mrb[0].mxu0
        %v3258 = vadd.f32 0.0, %v3257
        %3259 = vmatprep.mubr.bf16.mxu0 0
        %3260 = vmatmul.mubr.bf16.gmra.mrb[0].mxu0 %v1552
        %v3261 = vpop.f32.mrb[0].mxu0
        %v3262 = vadd.f32 0.0, %v3261
        %v3263 = vpop.f32.mrb[0].mxu0
        %v3264 = vadd.f32 0.0, %v3263
        %v3265 = vpop.f32.mrb[0].mxu0
        %v3266 = vadd.f32 0.0, %v3265
        %v3267 = vpop.f32.mrb[0].mxu0
        %v3268 = vadd.f32 0.0, %v3267
        %3269 = vdwg.mxu0
        %3270 = vadd.xlane.f32.xlu0 %v3252
        %v3271 = vpop.xlane.xlu0 %3270
        %3272 = vadd.xlane.f32.xlu0 %v3256
        %v3273 = vpop.xlane.xlu0 %3272
        %3274 = vadd.xlane.f32.xlu0 %v3262
        %v3275 = vpop.xlane.xlu0 %3274
        %3276 = vadd.xlane.f32.xlu0 %v3266
        %v3277 = vpop.xlane.xlu0 %3276
        %v3278 = vmul.f32 %v3271, %v1224
        %v3279 = vmul.f32 %v3273, %v1224
        %v3280 = vmul.f32 %v3275, %v1224
        %v3281 = vmul.f32 %v3277, %v1224
        %v3282 = vsub.f32 %v3252, %v3278
        %v3283 = vsub.f32 %v3256, %v3279
        %v3284 = vsub.f32 %v3262, %v3280
        %v3285 = vsub.f32 %v3266, %v3281
        %v3286 = vmul.f32 %v3282, %v3282
        %v3287 = vmul.f32 %v3283, %v3283
        %v3288 = vmul.f32 %v3284, %v3284
        %v3289 = vmul.f32 %v3285, %v3285
        %3290 = vadd.xlane.f32.xlu0 %v3286
        %v3291 = vpop.xlane.xlu0 %3290
        %3292 = vadd.xlane.f32.xlu0 %v3287
        %v3293 = vpop.xlane.xlu0 %3292
        %3294 = vadd.xlane.f32.xlu0 %v3288
        %v3295 = vpop.xlane.xlu0 %3294
        %3296 = vadd.xlane.f32.xlu0 %v3289
        %v3297 = vpop.xlane.xlu0 %3296
        %v3298 = vmul.f32 %v3291, %v1224
        %v3299 = vmul.f32 %v3293, %v1224
        %v3300 = vmul.f32 %v3295, %v1224
        %v3301 = vmul.f32 %v3297, %v1224
        %v3302 = vadd.f32 %v3298, 1e-05
        %v3303 = vadd.f32 %v3299, 1e-05
        %v3304 = vadd.f32 %v3300, 1e-05
        %v3305 = vadd.f32 %v3301, 1e-05
        %v3306 = vrsqrt.pop %v3302
        %v3307 = vrsqrt.pop %v3303
        %v3308 = vrsqrt.pop %v3304
        %v3309 = vrsqrt.pop %v3305
        %v3310 = vmul.f32 %v3282, %v3306
        %v3311 = vmul.f32 %v3283, %v3307
        %v3312 = vmul.f32 %v3284, %v3308
        %v3313 = vmul.f32 %v3285, %v3309
        %3314 = vadd.xlane.f32.xlu0 %v3254
        %v3315 = vpop.xlane.xlu0 %3314
        %3316 = vadd.xlane.f32.xlu0 %v3258
        %v3317 = vpop.xlane.xlu0 %3316
        %3318 = vadd.xlane.f32.xlu0 %v3264
        %v3319 = vpop.xlane.xlu0 %3318
        %3320 = vadd.xlane.f32.xlu0 %v3268
        %v3321 = vpop.xlane.xlu0 %3320
        %v3322 = vmul.f32 %v3315, %v1224
        %v3323 = vmul.f32 %v3317, %v1224
        %v3324 = vmul.f32 %v3319, %v1224
        %v3325 = vmul.f32 %v3321, %v1224
        %v3326 = vsub.f32 %v3254, %v3322
        %v3327 = vsub.f32 %v3258, %v3323
        %v3328 = vsub.f32 %v3264, %v3324
        %v3329 = vsub.f32 %v3268, %v3325
        %v3330 = vmul.f32 %v3326, %v3326
        %v3331 = vmul.f32 %v3327, %v3327
        %v3332 = vmul.f32 %v3328, %v3328
        %v3333 = vmul.f32 %v3329, %v3329
        %3334 = vadd.xlane.f32.xlu0 %v3330
        %v3335 = vpop.xlane.xlu0 %3334
        %3336 = vadd.xlane.f32.xlu0 %v3331
        %v3337 = vpop.xlane.xlu0 %3336
        %3338 = vadd.xlane.f32.xlu0 %v3332
        %v3339 = vpop.xlane.xlu0 %3338
        %3340 = vadd.xlane.f32.xlu0 %v3333
        %v3341 = vpop.xlane.xlu0 %3340
        %v3342 = vmul.f32 %v3335, %v1224
        %v3343 = vmul.f32 %v3337, %v1224
        %v3344 = vmul.f32 %v3339, %v1224
        %v3345 = vmul.f32 %v3341, %v1224
        %v3346 = vadd.f32 %v3342, 1e-05
        %v3347 = vadd.f32 %v3343, 1e-05
        %v3348 = vadd.f32 %v3344, 1e-05
        %v3349 = vadd.f32 %v3345, 1e-05
        %v3350 = vrsqrt.pop %v3346
        %v3351 = vrsqrt.pop %v3347
        %v3352 = vrsqrt.pop %v3348
        %v3353 = vrsqrt.pop %v3349
        %v3354 = vmul.f32 %v3326, %v3350
        %v3355 = vmul.f32 %v3327, %v3351
        %v3356 = vmul.f32 %v3328, %v3352
        %v3357 = vmul.f32 %v3329, %v3353
        %3359 = vset.pattern.permute.xlu0 0
        %3360 = vperm.xlu0 %3359, %v3206
        %v3361 = vpop.permute.xlu0 %3360
        %3364 = vset.pattern.permute.xlu0 0
        %3365 = vperm.xlu0 %3364, %v3207
        %v3366 = vpop.permute.xlu0 %3365
        %3369 = vset.pattern.permute.xlu0 0
        %3370 = vperm.xlu0 %3369, %v3208
        %v3371 = vpop.permute.xlu0 %3370
        %3374 = vset.pattern.permute.xlu0 0
        %3375 = vperm.xlu0 %3374, %v3209
        %v3376 = vpop.permute.xlu0 %3375
        %v3378 = vmul.f32 %v3310, %v3361
        %v3379 = vmul.f32 %v3354, %v3361
        %v3380 = vmul.f32 %v3311, %v3366
        %v3381 = vmul.f32 %v3355, %v3366
        %v3382 = vmul.f32 %v3312, %v3371
        %v3383 = vmul.f32 %v3356, %v3371
        %v3384 = vmul.f32 %v3313, %v3376
        %v3385 = vmul.f32 %v3357, %v3376
        %3387 = vset.pattern.permute.xlu0 0
        %3388 = vperm.xlu0 %3387, %v3211
        %v3389 = vpop.permute.xlu0 %3388
        %3392 = vset.pattern.permute.xlu0 0
        %3393 = vperm.xlu0 %3392, %v3212
        %v3394 = vpop.permute.xlu0 %3393
        %3397 = vset.pattern.permute.xlu0 0
        %3398 = vperm.xlu0 %3397, %v3213
        %v3399 = vpop.permute.xlu0 %3398
        %3402 = vset.pattern.permute.xlu0 0
        %3403 = vperm.xlu0 %3402, %v3214
        %v3404 = vpop.permute.xlu0 %3403
        %v3406 = vadd.f32 %v3378, %v3389
        %v3407 = vadd.f32 %v3379, %v3389
        %v3408 = vadd.f32 %v3380, %v3394
        %v3409 = vadd.f32 %v3381, %v3394
        %v3410 = vadd.f32 %v3382, %v3399
        %v3411 = vadd.f32 %v3383, %v3399
        %v3412 = vadd.f32 %v3384, %v3404
        %v3413 = vadd.f32 %v3385, %v3404
        %v3414 = vxor.u32 %v3410, 2147483648
        %v3415 = vxor.u32 %v3411, 2147483648
        %v3416 = vxor.u32 %v3412, 2147483648
        %v3417 = vxor.u32 %v3413, 2147483648
        %v3418 = vmul.f32 %v3414, 1.442695
        %v3419 = vpow.pop %v3418
        %v3420 = vmul.f32 %v3415, 1.442695
        %v3421 = vpow.pop %v3420
        %v3422 = vmul.f32 %v3416, 1.442695
        %v3423 = vpow.pop %v3422
        %v3424 = vmul.f32 %v3417, 1.442695
        %v3425 = vpow.pop %v3424
        %v3426 = vadd.f32 %v3419, 1.0
        %v3427 = vadd.f32 %v3421, 1.0
        %v3428 = vadd.f32 %v3423, 1.0
        %v3429 = vadd.f32 %v3425, 1.0
        %v3430 = vrcp.pop %v3426
        %v3431 = vmul.f32 1.0, %v3430
        %v3432 = vrcp.pop %v3427
        %v3433 = vmul.f32 1.0, %v3432
        %v3434 = vrcp.pop %v3428
        %v3435 = vmul.f32 1.0, %v3434
        %v3436 = vrcp.pop %v3429
        %v3437 = vmul.f32 1.0, %v3436
        %v3438 = vmul.f32 %v3406, %v3431
        %v3439 = vmul.f32 %v3407, %v3433
        %v3440 = vmul.f32 %v3408, %v3435
        %v3441 = vmul.f32 %v3409, %v3437
        %v3442 = vadd.f32 %v3201, %v3438
        %v3443 = vadd.f32 %v3202, %v3439
        %v3444 = vadd.f32 %v3203, %v3440
        %v3445 = vadd.f32 %v3204, %v3441
        %v3446 = vmul.f32 %v3442, 0.70710677
        %v3447 = vmul.f32 %v3443, 0.70710677
        %v3448 = vmul.f32 %v3444, 0.70710677
        %v3449 = vmul.f32 %v3445, 0.70710677
        %s3450 = scalar_lea.vmem %s4, 64
        %v3451 = vld [vmem:[%s3450] sm:$0xff]
        %v3452 = vld [vmem:[%s3450 + $0x8] sm:$0xff]
        %v3453 = vld [vmem:[%s3450 + $0x10] sm:$0xff]
        %v3454 = vld [vmem:[%s3450 + $0x18] sm:$0xff]
        %v3455 = vpack.c.bf16 %v3452, %v3451
        %v3456 = vpack.c.bf16 %v3454, %v3453
        %s3457 = scalar_lea.vmem %s5, 192
        %v3458 = vld [vmem:[%s3457] sm:$0xff]
        %v3459 = vld [vmem:[%s3457 + $0x8] sm:$0xff]
        %v3460 = vld [vmem:[%s3457 + $0x10] sm:$0xff]
        %v3461 = vld [vmem:[%s3457 + $0x18] sm:$0xff]
        %s3462 = scalar_lea.vmem %s5, 704
        %v3463 = vld [vmem:[%s3462] sm:$0xff]
        %v3464 = vld [vmem:[%s3462 + $0x8] sm:$0xff]
        %v3465 = vld [vmem:[%s3462 + $0x10] sm:$0xff]
        %v3466 = vld [vmem:[%s3462 + $0x18] sm:$0xff]
        %v3467 = vpack.c.bf16 %v3448, %v3446
        %v3468 = vpack.c.bf16 %v3449, %v3447
        %v3470 = vsel %vm1304, %v3455, 0
        %v3473 = vsel %vm1304, %v3456, 0
        %3475 = vmatprep.subr.bf16.mxu0 %v3468
        %3476 = vmatpush1.bf16.msra.mxu0 %v3467
        %3477 = vmatprep.subr.bf16.mxu0 0
        %3478 = vmatpush1.bf16.msra.mxu0 0
        %3479 = vmatprep.subr.bf16.mxu0 0
        %3480 = vmatpush1.bf16.msra.mxu0 0
        %3481 = vmatprep.subr.bf16.mxu0 0
        %3482 = vmatpush1.bf16.msra.mxu0 0
        %3483 = vmatprep.subr.bf16.mxu0 0
        %3484 = vmatpush1.bf16.msra.mxu0 0
        %3485 = vmatprep.subr.bf16.mxu0 0
        %3486 = vmatpush1.bf16.msra.mxu0 0
        %3487 = vmatprep.subr.bf16.mxu0 0
        %3488 = vmatpush1.bf16.msra.mxu0 0
        %3489 = vmatprep.subr.bf16.mxu0 0
        %3490 = vmatpush1.bf16.msra.mxu0 0
        %3491 = vmatprep.subr.bf16.mxu0 0
        %3492 = vmatpush1.bf16.msra.mxu0 0
        %3493 = vmatprep.subr.bf16.mxu0 0
        %3494 = vmatpush1.bf16.msra.mxu0 0
        %3495 = vmatprep.subr.bf16.mxu0 0
        %3496 = vmatpush1.bf16.msra.mxu0 0
        %3497 = vmatprep.subr.bf16.mxu0 0
        %3498 = vmatpush1.bf16.msra.mxu0 0
        %3499 = vmatprep.subr.bf16.mxu0 0
        %3500 = vmatpush1.bf16.msra.mxu0 0
        %3501 = vmatprep.subr.bf16.mxu0 0
        %3502 = vmatpush1.bf16.msra.mxu0 0
        %3503 = vmatprep.subr.bf16.mxu0 0
        %3504 = vmatpush1.bf16.msra.mxu0 0
        %3505 = vmatprep.subr.bf16.mxu0 0
        %3506 = vmatpush1.bf16.msra.mxu0 0
        %3507 = vmatprep.mubr.bf16.mxu0 0
        %3508 = vmatmul.mubr.bf16.gmra.mrb[0].mxu0 %v3470
        %v3509 = vpop.f32.mrb[0].mxu0
        %v3510 = vadd.f32 0.0, %v3509
        %v3511 = vpop.f32.mrb[0].mxu0
        %v3512 = vadd.f32 0.0, %v3511
        %v3513 = vpop.f32.mrb[0].mxu0
        %v3514 = vadd.f32 0.0, %v3513
        %v3515 = vpop.f32.mrb[0].mxu0
        %v3516 = vadd.f32 0.0, %v3515
        %3517 = vmatprep.mubr.bf16.mxu0 0
        %3518 = vmatmul.mubr.bf16.gmra.mrb[0].mxu0 %v3473
        %v3519 = vpop.f32.mrb[0].mxu0
        %v3520 = vadd.f32 0.0, %v3519
        %v3521 = vpop.f32.mrb[0].mxu0
        %v3522 = vadd.f32 0.0, %v3521
        %v3523 = vpop.f32.mrb[0].mxu0
        %v3524 = vadd.f32 0.0, %v3523
        %v3525 = vpop.f32.mrb[0].mxu0
        %v3526 = vadd.f32 0.0, %v3525
        %3527 = vdwg.mxu0
        %3528 = vadd.xlane.f32.xlu0 %v3510
        %v3529 = vpop.xlane.xlu0 %3528
        %3530 = vadd.xlane.f32.xlu0 %v3514
        %v3531 = vpop.xlane.xlu0 %3530
        %3532 = vadd.xlane.f32.xlu0 %v3520
        %v3533 = vpop.xlane.xlu0 %3532
        %3534 = vadd.xlane.f32.xlu0 %v3524
        %v3535 = vpop.xlane.xlu0 %3534
        %v3536 = vmul.f32 %v3529, %v1224
        %v3537 = vmul.f32 %v3531, %v1224
        %v3538 = vmul.f32 %v3533, %v1224
        %v3539 = vmul.f32 %v3535, %v1224
        %v3540 = vsub.f32 %v3510, %v3536
        %v3541 = vsub.f32 %v3514, %v3537
        %v3542 = vsub.f32 %v3520, %v3538
        %v3543 = vsub.f32 %v3524, %v3539
        %v3544 = vmul.f32 %v3540, %v3540
        %v3545 = vmul.f32 %v3541, %v3541
        %v3546 = vmul.f32 %v3542, %v3542
        %v3547 = vmul.f32 %v3543, %v3543
        %3548 = vadd.xlane.f32.xlu0 %v3544
        %v3549 = vpop.xlane.xlu0 %3548
        %3550 = vadd.xlane.f32.xlu0 %v3545
        %v3551 = vpop.xlane.xlu0 %3550
        %3552 = vadd.xlane.f32.xlu0 %v3546
        %v3553 = vpop.xlane.xlu0 %3552
        %3554 = vadd.xlane.f32.xlu0 %v3547
        %v3555 = vpop.xlane.xlu0 %3554
        %v3556 = vmul.f32 %v3549, %v1224
        %v3557 = vmul.f32 %v3551, %v1224
        %v3558 = vmul.f32 %v3553, %v1224
        %v3559 = vmul.f32 %v3555, %v1224
        %v3560 = vadd.f32 %v3556, 1e-05
        %v3561 = vadd.f32 %v3557, 1e-05
        %v3562 = vadd.f32 %v3558, 1e-05
        %v3563 = vadd.f32 %v3559, 1e-05
        %v3564 = vrsqrt.pop %v3560
        %v3565 = vrsqrt.pop %v3561
        %v3566 = vrsqrt.pop %v3562
        %v3567 = vrsqrt.pop %v3563
        %v3568 = vmul.f32 %v3540, %v3564
        %v3569 = vmul.f32 %v3541, %v3565
        %v3570 = vmul.f32 %v3542, %v3566
        %v3571 = vmul.f32 %v3543, %v3567
        %3572 = vadd.xlane.f32.xlu0 %v3512
        %v3573 = vpop.xlane.xlu0 %3572
        %3574 = vadd.xlane.f32.xlu0 %v3516
        %v3575 = vpop.xlane.xlu0 %3574
        %3576 = vadd.xlane.f32.xlu0 %v3522
        %v3577 = vpop.xlane.xlu0 %3576
        %3578 = vadd.xlane.f32.xlu0 %v3526
        %v3579 = vpop.xlane.xlu0 %3578
        %v3580 = vmul.f32 %v3573, %v1224
        %v3581 = vmul.f32 %v3575, %v1224
        %v3582 = vmul.f32 %v3577, %v1224
        %v3583 = vmul.f32 %v3579, %v1224
        %v3584 = vsub.f32 %v3512, %v3580
        %v3585 = vsub.f32 %v3516, %v3581
        %v3586 = vsub.f32 %v3522, %v3582
        %v3587 = vsub.f32 %v3526, %v3583
        %v3588 = vmul.f32 %v3584, %v3584
        %v3589 = vmul.f32 %v3585, %v3585
        %v3590 = vmul.f32 %v3586, %v3586
        %v3591 = vmul.f32 %v3587, %v3587
        %3592 = vadd.xlane.f32.xlu0 %v3588
        %v3593 = vpop.xlane.xlu0 %3592
        %3594 = vadd.xlane.f32.xlu0 %v3589
        %v3595 = vpop.xlane.xlu0 %3594
        %3596 = vadd.xlane.f32.xlu0 %v3590
        %v3597 = vpop.xlane.xlu0 %3596
        %3598 = vadd.xlane.f32.xlu0 %v3591
        %v3599 = vpop.xlane.xlu0 %3598
        %v3600 = vmul.f32 %v3593, %v1224
        %v3601 = vmul.f32 %v3595, %v1224
        %v3602 = vmul.f32 %v3597, %v1224
        %v3603 = vmul.f32 %v3599, %v1224
        %v3604 = vadd.f32 %v3600, 1e-05
        %v3605 = vadd.f32 %v3601, 1e-05
        %v3606 = vadd.f32 %v3602, 1e-05
        %v3607 = vadd.f32 %v3603, 1e-05
        %v3608 = vrsqrt.pop %v3604
        %v3609 = vrsqrt.pop %v3605
        %v3610 = vrsqrt.pop %v3606
        %v3611 = vrsqrt.pop %v3607
        %v3612 = vmul.f32 %v3584, %v3608
        %v3613 = vmul.f32 %v3585, %v3609
        %v3614 = vmul.f32 %v3586, %v3610
        %v3615 = vmul.f32 %v3587, %v3611
        %3617 = vset.pattern.permute.xlu0 0
        %3618 = vperm.xlu0 %3617, %v3458
        %v3619 = vpop.permute.xlu0 %3618
        %3622 = vset.pattern.permute.xlu0 0
        %3623 = vperm.xlu0 %3622, %v3459
        %v3624 = vpop.permute.xlu0 %3623
        %3627 = vset.pattern.permute.xlu0 0
        %3628 = vperm.xlu0 %3627, %v3460
        %v3629 = vpop.permute.xlu0 %3628
        %3632 = vset.pattern.permute.xlu0 0
        %3633 = vperm.xlu0 %3632, %v3461
        %v3634 = vpop.permute.xlu0 %3633
        %v3636 = vmul.f32 %v3568, %v3619
        %v3637 = vmul.f32 %v3612, %v3619
        %v3638 = vmul.f32 %v3569, %v3624
        %v3639 = vmul.f32 %v3613, %v3624
        %v3640 = vmul.f32 %v3570, %v3629
        %v3641 = vmul.f32 %v3614, %v3629
        %v3642 = vmul.f32 %v3571, %v3634
        %v3643 = vmul.f32 %v3615, %v3634
        %3645 = vset.pattern.permute.xlu0 0
        %3646 = vperm.xlu0 %3645, %v3463
        %v3647 = vpop.permute.xlu0 %3646
        %3650 = vset.pattern.permute.xlu0 0
        %3651 = vperm.xlu0 %3650, %v3464
        %v3652 = vpop.permute.xlu0 %3651
        %3655 = vset.pattern.permute.xlu0 0
        %3656 = vperm.xlu0 %3655, %v3465
        %v3657 = vpop.permute.xlu0 %3656
        %3660 = vset.pattern.permute.xlu0 0
        %3661 = vperm.xlu0 %3660, %v3466
        %v3662 = vpop.permute.xlu0 %3661
        %v3664 = vadd.f32 %v3636, %v3647
        %v3665 = vadd.f32 %v3637, %v3647
        %v3666 = vadd.f32 %v3638, %v3652
        %v3667 = vadd.f32 %v3639, %v3652
        %v3668 = vadd.f32 %v3640, %v3657
        %v3669 = vadd.f32 %v3641, %v3657
        %v3670 = vadd.f32 %v3642, %v3662
        %v3671 = vadd.f32 %v3643, %v3662
        %v3672 = vxor.u32 %v3668, 2147483648
        %v3673 = vxor.u32 %v3669, 2147483648
        %v3674 = vxor.u32 %v3670, 2147483648
        %v3675 = vxor.u32 %v3671, 2147483648
        %v3676 = vmul.f32 %v3672, 1.442695
        %v3677 = vpow.pop %v3676
        %v3678 = vmul.f32 %v3673, 1.442695
        %v3679 = vpow.pop %v3678
        %v3680 = vmul.f32 %v3674, 1.442695
        %v3681 = vpow.pop %v3680
        %v3682 = vmul.f32 %v3675, 1.442695
        %v3683 = vpow.pop %v3682
        %v3684 = vadd.f32 %v3677, 1.0
        %v3685 = vadd.f32 %v3679, 1.0
        %v3686 = vadd.f32 %v3681, 1.0
        %v3687 = vadd.f32 %v3683, 1.0
        %v3688 = vrcp.pop %v3684
        %v3689 = vmul.f32 1.0, %v3688
        %v3690 = vrcp.pop %v3685
        %v3691 = vmul.f32 1.0, %v3690
        %v3692 = vrcp.pop %v3686
        %v3693 = vmul.f32 1.0, %v3692
        %v3694 = vrcp.pop %v3687
        %v3695 = vmul.f32 1.0, %v3694
        %v3696 = vmul.f32 %v3664, %v3689
        %v3697 = vmul.f32 %v3665, %v3691
        %v3698 = vmul.f32 %v3666, %v3693
        %v3699 = vmul.f32 %v3667, %v3695
        %v3700 = vadd.f32 %v3446, %v3696
        %v3701 = vadd.f32 %v3447, %v3697
        %v3702 = vadd.f32 %v3448, %v3698
        %v3703 = vadd.f32 %v3449, %v3699
        %v3704 = vmul.f32 %v3700, 0.70710677
        %v3705 = vmul.f32 %v3701, 0.70710677
        %v3706 = vmul.f32 %v3702, 0.70710677
        %v3707 = vmul.f32 %v3703, 0.70710677
        %s3708 = scalar_lea.vmem %s4, 96
        %v3709 = vld [vmem:[%s3708] sm:$0xff]
        %v3710 = vld [vmem:[%s3708 + $0x8] sm:$0xff]
        %v3711 = vld [vmem:[%s3708 + $0x10] sm:$0xff]
        %v3712 = vld [vmem:[%s3708 + $0x18] sm:$0xff]
        %v3713 = vpack.c.bf16 %v3710, %v3709
        %v3714 = vpack.c.bf16 %v3712, %v3711
        %s3715 = scalar_lea.vmem %s5, 224
        %v3716 = vld [vmem:[%s3715] sm:$0xff]
        %v3717 = vld [vmem:[%s3715 + $0x8] sm:$0xff]
        %v3718 = vld [vmem:[%s3715 + $0x10] sm:$0xff]
        %v3719 = vld [vmem:[%s3715 + $0x18] sm:$0xff]
        %s3720 = scalar_lea.vmem %s5, 736
        %v3721 = vld [vmem:[%s3720] sm:$0xff]
        %v3722 = vld [vmem:[%s3720 + $0x8] sm:$0xff]
        %v3723 = vld [vmem:[%s3720 + $0x10] sm:$0xff]
        %v3724 = vld [vmem:[%s3720 + $0x18] sm:$0xff]
        %v3725 = vpack.c.bf16 %v3706, %v3704
        %v3726 = vpack.c.bf16 %v3707, %v3705
        %v3728 = vsel %vm1304, %v3713, 0
        %v3731 = vsel %vm1304, %v3714, 0
        %3733 = vmatprep.subr.bf16.mxu0 %v3726
        %3734 = vmatpush1.bf16.msra.mxu0 %v3725
        %3735 = vmatprep.subr.bf16.mxu0 0
        %3736 = vmatpush1.bf16.msra.mxu0 0
        %3737 = vmatprep.subr.bf16.mxu0 0
        %3738 = vmatpush1.bf16.msra.mxu0 0
        %3739 = vmatprep.subr.bf16.mxu0 0
        %3740 = vmatpush1.bf16.msra.mxu0 0
        %3741 = vmatprep.subr.bf16.mxu0 0
        %3742 = vmatpush1.bf16.msra.mxu0 0
        %3743 = vmatprep.subr.bf16.mxu0 0
        %3744 = vmatpush1.bf16.msra.mxu0 0
        %3745 = vmatprep.subr.bf16.mxu0 0
        %3746 = vmatpush1.bf16.msra.mxu0 0
        %3747 = vmatprep.subr.bf16.mxu0 0
        %3748 = vmatpush1.bf16.msra.mxu0 0
        %3749 = vmatprep.subr.bf16.mxu0 0
        %3750 = vmatpush1.bf16.msra.mxu0 0
        %3751 = vmatprep.subr.bf16.mxu0 0
        %3752 = vmatpush1.bf16.msra.mxu0 0
        %3753 = vmatprep.subr.bf16.mxu0 0
        %3754 = vmatpush1.bf16.msra.mxu0 0
        %3755 = vmatprep.subr.bf16.mxu0 0
        %3756 = vmatpush1.bf16.msra.mxu0 0
        %3757 = vmatprep.subr.bf16.mxu0 0
        %3758 = vmatpush1.bf16.msra.mxu0 0
        %3759 = vmatprep.subr.bf16.mxu0 0
        %3760 = vmatpush1.bf16.msra.mxu0 0
        %3761 = vmatprep.subr.bf16.mxu0 0
        %3762 = vmatpush1.bf16.msra.mxu0 0
        %3763 = vmatprep.subr.bf16.mxu0 0
        %3764 = vmatpush1.bf16.msra.mxu0 0
        %3765 = vmatprep.mubr.bf16.mxu0 0
        %3766 = vmatmul.mubr.bf16.gmra.mrb[0].mxu0 %v3728
        %v3767 = vpop.f32.mrb[0].mxu0
        %v3768 = vadd.f32 0.0, %v3767
        %v3769 = vpop.f32.mrb[0].mxu0
        %v3770 = vadd.f32 0.0, %v3769
        %v3771 = vpop.f32.mrb[0].mxu0
        %v3772 = vadd.f32 0.0, %v3771
        %v3773 = vpop.f32.mrb[0].mxu0
        %v3774 = vadd.f32 0.0, %v3773
        %3775 = vmatprep.mubr.bf16.mxu0 0
        %3776 = vmatmul.mubr.bf16.gmra.mrb[0].mxu0 %v3731
        %v3777 = vpop.f32.mrb[0].mxu0
        %v3778 = vadd.f32 0.0, %v3777
        %v3779 = vpop.f32.mrb[0].mxu0
        %v3780 = vadd.f32 0.0, %v3779
        %v3781 = vpop.f32.mrb[0].mxu0
        %v3782 = vadd.f32 0.0, %v3781
        %v3783 = vpop.f32.mrb[0].mxu0
        %v3784 = vadd.f32 0.0, %v3783
        %3785 = vdwg.mxu0
        %3786 = vadd.xlane.f32.xlu0 %v3768
        %v3787 = vpop.xlane.xlu0 %3786
        %3788 = vadd.xlane.f32.xlu0 %v3772
        %v3789 = vpop.xlane.xlu0 %3788
        %3790 = vadd.xlane.f32.xlu0 %v3778
        %v3791 = vpop.xlane.xlu0 %3790
        %3792 = vadd.xlane.f32.xlu0 %v3782
        %v3793 = vpop.xlane.xlu0 %3792
        %v3794 = vmul.f32 %v3787, %v1224
        %v3795 = vmul.f32 %v3789, %v1224
        %v3796 = vmul.f32 %v3791, %v1224
        %v3797 = vmul.f32 %v3793, %v1224
        %v3798 = vsub.f32 %v3768, %v3794
        %v3799 = vsub.f32 %v3772, %v3795
        %v3800 = vsub.f32 %v3778, %v3796
        %v3801 = vsub.f32 %v3782, %v3797
        %v3802 = vmul.f32 %v3798, %v3798
        %v3803 = vmul.f32 %v3799, %v3799
        %v3804 = vmul.f32 %v3800, %v3800
        %v3805 = vmul.f32 %v3801, %v3801
        %3806 = vadd.xlane.f32.xlu0 %v3802
        %v3807 = vpop.xlane.xlu0 %3806
        %3808 = vadd.xlane.f32.xlu0 %v3803
        %v3809 = vpop.xlane.xlu0 %3808
        %3810 = vadd.xlane.f32.xlu0 %v3804
        %v3811 = vpop.xlane.xlu0 %3810
        %3812 = vadd.xlane.f32.xlu0 %v3805
        %v3813 = vpop.xlane.xlu0 %3812
        %v3814 = vmul.f32 %v3807, %v1224
        %v3815 = vmul.f32 %v3809, %v1224
        %v3816 = vmul.f32 %v3811, %v1224
        %v3817 = vmul.f32 %v3813, %v1224
        %v3818 = vadd.f32 %v3814, 1e-05
        %v3819 = vadd.f32 %v3815, 1e-05
        %v3820 = vadd.f32 %v3816, 1e-05
        %v3821 = vadd.f32 %v3817, 1e-05
        %v3822 = vrsqrt.pop %v3818
        %v3823 = vrsqrt.pop %v3819
        %v3824 = vrsqrt.pop %v3820
        %v3825 = vrsqrt.pop %v3821
        %v3826 = vmul.f32 %v3798, %v3822
        %v3827 = vmul.f32 %v3799, %v3823
        %v3828 = vmul.f32 %v3800, %v3824
        %v3829 = vmul.f32 %v3801, %v3825
        %3830 = vadd.xlane.f32.xlu0 %v3770
        %v3831 = vpop.xlane.xlu0 %3830
        %3832 = vadd.xlane.f32.xlu0 %v3774
        %v3833 = vpop.xlane.xlu0 %3832
        %3834 = vadd.xlane.f32.xlu0 %v3780
        %v3835 = vpop.xlane.xlu0 %3834
        %3836 = vadd.xlane.f32.xlu0 %v3784
        %v3837 = vpop.xlane.xlu0 %3836
        %v3838 = vmul.f32 %v3831, %v1224
        %v3839 = vmul.f32 %v3833, %v1224
        %v3840 = vmul.f32 %v3835, %v1224
        %v3841 = vmul.f32 %v3837, %v1224
        %v3842 = vsub.f32 %v3770, %v3838
        %v3843 = vsub.f32 %v3774, %v3839
        %v3844 = vsub.f32 %v3780, %v3840
        %v3845 = vsub.f32 %v3784, %v3841
        %v3846 = vmul.f32 %v3842, %v3842
        %v3847 = vmul.f32 %v3843, %v3843
        %v3848 = vmul.f32 %v3844, %v3844
        %v3849 = vmul.f32 %v3845, %v3845
        %3850 = vadd.xlane.f32.xlu0 %v3846
        %v3851 = vpop.xlane.xlu0 %3850
        %3852 = vadd.xlane.f32.xlu0 %v3847
        %v3853 = vpop.xlane.xlu0 %3852
        %3854 = vadd.xlane.f32.xlu0 %v3848
        %v3855 = vpop.xlane.xlu0 %3854
        %3856 = vadd.xlane.f32.xlu0 %v3849
        %v3857 = vpop.xlane.xlu0 %3856
        %v3858 = vmul.f32 %v3851, %v1224
        %v3859 = vmul.f32 %v3853, %v1224
        %v3860 = vmul.f32 %v3855, %v1224
        %v3861 = vmul.f32 %v3857, %v1224
        %v3862 = vadd.f32 %v3858, 1e-05
        %v3863 = vadd.f32 %v3859, 1e-05
        %v3864 = vadd.f32 %v3860, 1e-05
        %v3865 = vadd.f32 %v3861, 1e-05
        %v3866 = vrsqrt.pop %v3862
        %v3867 = vrsqrt.pop %v3863
        %v3868 = vrsqrt.pop %v3864
        %v3869 = vrsqrt.pop %v3865
        %v3870 = vmul.f32 %v3842, %v3866
        %v3871 = vmul.f32 %v3843, %v3867
        %v3872 = vmul.f32 %v3844, %v3868
        %v3873 = vmul.f32 %v3845, %v3869
        %3875 = vset.pattern.permute.xlu0 0
        %3876 = vperm.xlu0 %3875, %v3716
        %v3877 = vpop.permute.xlu0 %3876
        %3880 = vset.pattern.permute.xlu0 0
        %3881 = vperm.xlu0 %3880, %v3717
        %v3882 = vpop.permute.xlu0 %3881
        %3885 = vset.pattern.permute.xlu0 0
        %3886 = vperm.xlu0 %3885, %v3718
        %v3887 = vpop.permute.xlu0 %3886
        %3890 = vset.pattern.permute.xlu0 0
        %3891 = vperm.xlu0 %3890, %v3719
        %v3892 = vpop.permute.xlu0 %3891
        %v3894 = vmul.f32 %v3826, %v3877
        %v3895 = vmul.f32 %v3870, %v3877
        %v3896 = vmul.f32 %v3827, %v3882
        %v3897 = vmul.f32 %v3871, %v3882
        %v3898 = vmul.f32 %v3828, %v3887
        %v3899 = vmul.f32 %v3872, %v3887
        %v3900 = vmul.f32 %v3829, %v3892
        %v3901 = vmul.f32 %v3873, %v3892
        %3903 = vset.pattern.permute.xlu0 0
        %3904 = vperm.xlu0 %3903, %v3721
        %v3905 = vpop.permute.xlu0 %3904
        %3908 = vset.pattern.permute.xlu0 0
        %3909 = vperm.xlu0 %3908, %v3722
        %v3910 = vpop.permute.xlu0 %3909
        %3913 = vset.pattern.permute.xlu0 0
        %3914 = vperm.xlu0 %3913, %v3723
        %v3915 = vpop.permute.xlu0 %3914
        %3918 = vset.pattern.permute.xlu0 0
        %3919 = vperm.xlu0 %3918, %v3724
        %v3920 = vpop.permute.xlu0 %3919
        %v3922 = vadd.f32 %v3894, %v3905
        %v3923 = vadd.f32 %v3895, %v3905
        %v3924 = vadd.f32 %v3896, %v3910
        %v3925 = vadd.f32 %v3897, %v3910
        %v3926 = vadd.f32 %v3898, %v3915
        %v3927 = vadd.f32 %v3899, %v3915
        %v3928 = vadd.f32 %v3900, %v3920
        %v3929 = vadd.f32 %v3901, %v3920
        %v3930 = vxor.u32 %v3926, 2147483648
        %v3931 = vxor.u32 %v3927, 2147483648
        %v3932 = vxor.u32 %v3928, 2147483648
        %v3933 = vxor.u32 %v3929, 2147483648
        %v3934 = vmul.f32 %v3930, 1.442695
        %v3935 = vpow.pop %v3934
        %v3936 = vmul.f32 %v3931, 1.442695
        %v3937 = vpow.pop %v3936
        %v3938 = vmul.f32 %v3932, 1.442695
        %v3939 = vpow.pop %v3938
        %v3940 = vmul.f32 %v3933, 1.442695
        %v3941 = vpow.pop %v3940
        %v3942 = vadd.f32 %v3935, 1.0
        %v3943 = vadd.f32 %v3937, 1.0
        %v3944 = vadd.f32 %v3939, 1.0
        %v3945 = vadd.f32 %v3941, 1.0
        %v3946 = vrcp.pop %v3942
        %v3947 = vmul.f32 1.0, %v3946
        %v3948 = vrcp.pop %v3943
        %v3949 = vmul.f32 1.0, %v3948
        %v3950 = vrcp.pop %v3944
        %v3951 = vmul.f32 1.0, %v3950
        %v3952 = vrcp.pop %v3945
        %v3953 = vmul.f32 1.0, %v3952
        %v3954 = vmul.f32 %v3922, %v3947
        %v3955 = vmul.f32 %v3923, %v3949
        %v3956 = vmul.f32 %v3924, %v3951
        %v3957 = vmul.f32 %v3925, %v3953
        %v3958 = vadd.f32 %v3704, %v3954
        %v3959 = vadd.f32 %v3705, %v3955
        %v3960 = vadd.f32 %v3706, %v3956
        %v3961 = vadd.f32 %v3707, %v3957
        %v3962 = vmul.f32 %v3958, 0.70710677
        %v3963 = vmul.f32 %v3959, 0.70710677
        %v3964 = vmul.f32 %v3960, 0.70710677
        %v3965 = vmul.f32 %v3961, 0.70710677
        %v3966 = vmax.f32 %v3962, 0.0
        %v3967 = vmax.f32 %v3963, 0.0
        %v3968 = vadd.f32 %v3966, 0.0
        %v3969 = vadd.f32 %v3967, 0.0
        %s3970 = scalar_lea.vmem %s6, 16
        %v3971 = vld [vmem:[%s3970] sm:$0xff]
        %v3972 = vld [vmem:[%s3970 + $0x8] sm:$0xff]
        %v3973 = vpack.c.bf16 %v3972, %v3971
        %v3974 = vpack.c.bf16 %v3964, %v3964
        %v3975 = vpack.c.bf16 %v3965, %v3965
        %v3977 = vsel %vm2209, %v3973, 0
        %v3980 = vsel %vm2213, %v3974, 0
        %v3983 = vsel %vm2213, %v3975, 0
        %3985 = vmatprep.subr.bf16.mxu0 %v3983
        %3986 = vmatpush1.bf16.msra.mxu0 %v3980
        %3987 = vmatprep.subr.bf16.mxu0 0
        %3988 = vmatpush1.bf16.msra.mxu0 0
        %3989 = vmatprep.subr.bf16.mxu0 0
        %3990 = vmatpush1.bf16.msra.mxu0 0
        %3991 = vmatprep.subr.bf16.mxu0 0
        %3992 = vmatpush1.bf16.msra.mxu0 0
        %3993 = vmatprep.subr.bf16.mxu0 0
        %3994 = vmatpush1.bf16.msra.mxu0 0
        %3995 = vmatprep.subr.bf16.mxu0 0
        %3996 = vmatpush1.bf16.msra.mxu0 0
        %3997 = vmatprep.subr.bf16.mxu0 0
        %3998 = vmatpush1.bf16.msra.mxu0 0
        %3999 = vmatprep.subr.bf16.mxu0 0
        %4000 = vmatpush1.bf16.msra.mxu0 0
        %4001 = vmatprep.subr.bf16.mxu0 0
        %4002 = vmatpush1.bf16.msra.mxu0 0
        %4003 = vmatprep.subr.bf16.mxu0 0
        %4004 = vmatpush1.bf16.msra.mxu0 0
        %4005 = vmatprep.subr.bf16.mxu0 0
        %4006 = vmatpush1.bf16.msra.mxu0 0
        %4007 = vmatprep.subr.bf16.mxu0 0
        %4008 = vmatpush1.bf16.msra.mxu0 0
        %4009 = vmatprep.subr.bf16.mxu0 0
        %4010 = vmatpush1.bf16.msra.mxu0 0
        %4011 = vmatprep.subr.bf16.mxu0 0
        %4012 = vmatpush1.bf16.msra.mxu0 0
        %4013 = vmatprep.subr.bf16.mxu0 0
        %4014 = vmatpush1.bf16.msra.mxu0 0
        %4015 = vmatprep.subr.bf16.mxu0 0
        %4016 = vmatpush1.bf16.msra.mxu0 0
        %4017 = vmatprep.mubr.bf16.mxu0 0
        %4018 = vmatmul.mubr.bf16.gmra.mrb[0].mxu0 %v3977
        %v4019 = vpop.f32.mrb[0].mxu0
        %v4020 = vadd.f32 0.0, %v4019
        %v4021 = vpop.f32.mrb[0].mxu0
        %v4022 = vadd.f32 0.0, %v4021
        %v4023 = vpop.f32.mrb[0].mxu0
        %v4024 = vadd.f32 0.0, %v4023
        %v4025 = vpop.f32.mrb[0].mxu0
        %v4026 = vadd.f32 0.0, %v4025
        %4027 = vdwg.mxu0
        %s4028 = scalar_lea.vmem %s7, 16
        %v4029 = vld [vmem:[%s4028] sm:$0xff]
        %v4030 = vld [vmem:[%s4028 + $0x8] sm:$0xff]
        %s4031 = scalar_lea.vmem %s7, 64
        %v4032 = vld [vmem:[%s4031] sm:$0xff]
        %v4033 = vld [vmem:[%s4031 + $0x8] sm:$0xff]
        %4034 = vadd.xlane.f32.xlu0 %v4020
        %v4035 = vpop.xlane.xlu0 %4034
        %4036 = vadd.xlane.f32.xlu0 %v4024
        %v4037 = vpop.xlane.xlu0 %4036
        %v4038 = vmul.f32 %v4035, %v1224
        %v4039 = vmul.f32 %v4037, %v1224
        %v4040 = vsub.f32 %v4020, %v4038
        %v4041 = vsub.f32 %v4024, %v4039
        %v4042 = vmul.f32 %v4040, %v4040
        %v4043 = vmul.f32 %v4041, %v4041
        %4044 = vadd.xlane.f32.xlu0 %v4042
        %v4045 = vpop.xlane.xlu0 %4044
        %4046 = vadd.xlane.f32.xlu0 %v4043
        %v4047 = vpop.xlane.xlu0 %4046
        %v4048 = vmul.f32 %v4045, %v1224
        %v4049 = vmul.f32 %v4047, %v1224
        %v4050 = vadd.f32 %v4048, 1e-05
        %v4051 = vadd.f32 %v4049, 1e-05
        %v4052 = vrsqrt.pop %v4050
        %v4053 = vrsqrt.pop %v4051
        %v4054 = vmul.f32 %v4040, %v4052
        %v4055 = vmul.f32 %v4041, %v4053
        %4056 = vadd.xlane.f32.xlu0 %v4022
        %v4057 = vpop.xlane.xlu0 %4056
        %4058 = vadd.xlane.f32.xlu0 %v4026
        %v4059 = vpop.xlane.xlu0 %4058
        %v4060 = vmul.f32 %v4057, %v1224
        %v4061 = vmul.f32 %v4059, %v1224
        %v4062 = vsub.f32 %v4022, %v4060
        %v4063 = vsub.f32 %v4026, %v4061
        %v4064 = vmul.f32 %v4062, %v4062
        %v4065 = vmul.f32 %v4063, %v4063
        %4066 = vadd.xlane.f32.xlu0 %v4064
        %v4067 = vpop.xlane.xlu0 %4066
        %4068 = vadd.xlane.f32.xlu0 %v4065
        %v4069 = vpop.xlane.xlu0 %4068
        %v4070 = vmul.f32 %v4067, %v1224
        %v4071 = vmul.f32 %v4069, %v1224
        %v4072 = vadd.f32 %v4070, 1e-05
        %v4073 = vadd.f32 %v4071, 1e-05
        %v4074 = vrsqrt.pop %v4072
        %v4075 = vrsqrt.pop %v4073
        %v4076 = vmul.f32 %v4062, %v4074
        %v4077 = vmul.f32 %v4063, %v4075
        %4079 = vset.pattern.permute.xlu0 0
        %4080 = vperm.xlu0 %4079, %v4029
        %v4081 = vpop.permute.xlu0 %4080
        %4084 = vset.pattern.permute.xlu0 0
        %4085 = vperm.xlu0 %4084, %v4030
        %v4086 = vpop.permute.xlu0 %4085
        %v4088 = vmul.f32 %v4054, %v4081
        %v4089 = vmul.f32 %v4076, %v4081
        %v4090 = vmul.f32 %v4055, %v4086
        %v4091 = vmul.f32 %v4077, %v4086
        %4093 = vset.pattern.permute.xlu0 0
        %4094 = vperm.xlu0 %4093, %v4032
        %v4095 = vpop.permute.xlu0 %4094
        %4098 = vset.pattern.permute.xlu0 0
        %4099 = vperm.xlu0 %4098, %v4033
        %v4100 = vpop.permute.xlu0 %4099
        %v4102 = vadd.f32 %v4088, %v4095
        %v4103 = vadd.f32 %v4089, %v4095
        %v4104 = vadd.f32 %v4090, %v4100
        %v4105 = vadd.f32 %v4091, %v4100
        %v4106 = vmul.f32 %v4102, %v2960
        %v4107 = vmul.f32 %v4103, %v2961
        %v4108 = vmul.f32 %v4104, %v2962
        %v4109 = vmul.f32 %v4105, %v2963
        %v4110 = vlaneseq
        %v4111 = vshrl.u32 %v4110, 7
        %v4112 = vsub.s32 0, %v4111
        %v4113 = vrot.slane %v4106, %v4112
        %v4114 = vlaneseq
        %v4115 = vshrl.u32 %v4114, 7
        %v4116 = vsub.s32 0, %v4115
        %v4117 = vrot.slane %v4107, %v4116
        %vm4118 = vcmp.ge.f32.partialorder %v4113, %v4106
        %vm4119 = vcmp.ge.f32.partialorder %v4117, %v4107
        %vm4120 = vcmp.ge.f32.partialorder %v4113, %v4108
        %vm4121 = vcmp.ge.f32.partialorder %v4117, %v4109
        %v4122 = vsel %vm4118, 1, 0
        %v4123 = vsel %vm4119, 1, 0
        %v4124 = vsel %vm4120, 1, 0
        %v4125 = vsel %vm4121, 1, 0
        %v4126 = vcvt.s32.f32 %v4122
        %v4127 = vcvt.s32.f32 %v4123
        %v4128 = vcvt.s32.f32 %v4124
        %v4129 = vcvt.s32.f32 %v4125
        %v4130 = vadd.f32 %v4126, 0.0
        %v4131 = vadd.f32 %v4127, 0.0
        %v4132 = vadd.f32 %v4128, 0.0
        %v4133 = vadd.f32 %v4129, 0.0
        %v4134 = vmul.f32 %v4126, %v4113
        %v4135 = vmul.f32 %v4127, %v4117
        %v4136 = vmul.f32 %v4128, %v4113
        %v4137 = vmul.f32 %v4129, %v4117
        %v4138 = vadd.f32 %v4134, 0.0
        %v4139 = vadd.f32 %v4135, 0.0
        %v4140 = vadd.f32 %v4136, 0.0
        %v4141 = vadd.f32 %v4137, 0.0
        %v4142 = vlaneseq
        %v4143 = vshrl.u32 %v4142, 7
        %v4144 = vsub.s32 1, %v4143
        %v4145 = vrot.slane %v4106, %v4144
        %v4146 = vlaneseq
        %v4147 = vshrl.u32 %v4146, 7
        %v4148 = vsub.s32 1, %v4147
        %v4149 = vrot.slane %v4107, %v4148
        %vm4150 = vcmp.ge.f32.partialorder %v4145, %v4106
        %vm4151 = vcmp.ge.f32.partialorder %v4149, %v4107
        %vm4152 = vcmp.ge.f32.partialorder %v4145, %v4108
        %vm4153 = vcmp.ge.f32.partialorder %v4149, %v4109
        %v4154 = vsel %vm4150, 1, 0
        %v4155 = vsel %vm4151, 1, 0
        %v4156 = vsel %vm4152, 1, 0
        %v4157 = vsel %vm4153, 1, 0
        %v4158 = vcvt.s32.f32 %v4154
        %v4159 = vcvt.s32.f32 %v4155
        %v4160 = vcvt.s32.f32 %v4156
        %v4161 = vcvt.s32.f32 %v4157
        %v4162 = vadd.f32 %v4130, %v4158
        %v4163 = vadd.f32 %v4131, %v4159
        %v4164 = vadd.f32 %v4132, %v4160
        %v4165 = vadd.f32 %v4133, %v4161
        %v4166 = vmul.f32 %v4158, %v4145
        %v4167 = vmul.f32 %v4159, %v4149
        %v4168 = vmul.f32 %v4160, %v4145
        %v4169 = vmul.f32 %v4161, %v4149
        %v4170 = vadd.f32 %v4138, %v4166
        %v4171 = vadd.f32 %v4139, %v4167
        %v4172 = vadd.f32 %v4140, %v4168
        %v4173 = vadd.f32 %v4141, %v4169
        %v4174 = vlaneseq
        %v4175 = vshrl.u32 %v4174, 7
        %v4176 = vsub.s32 2, %v4175
        %v4177 = vrot.slane %v4106, %v4176
        %v4178 = vlaneseq
        %v4179 = vshrl.u32 %v4178, 7
        %v4180 = vsub.s32 2, %v4179
        %v4181 = vrot.slane %v4107, %v4180
        %vm4182 = vcmp.ge.f32.partialorder %v4177, %v4106
        %vm4183 = vcmp.ge.f32.partialorder %v4181, %v4107
        %vm4184 = vcmp.ge.f32.partialorder %v4177, %v4108
        %vm4185 = vcmp.ge.f32.partialorder %v4181, %v4109
        %v4186 = vsel %vm4182, 1, 0
        %v4187 = vsel %vm4183, 1, 0
        %v4188 = vsel %vm4184, 1, 0
        %v4189 = vsel %vm4185, 1, 0
        %v4190 = vcvt.s32.f32 %v4186
        %v4191 = vcvt.s32.f32 %v4187
        %v4192 = vcvt.s32.f32 %v4188
        %v4193 = vcvt.s32.f32 %v4189
        %v4194 = vadd.f32 %v4162, %v4190
        %v4195 = vadd.f32 %v4163, %v4191
        %v4196 = vadd.f32 %v4164, %v4192
        %v4197 = vadd.f32 %v4165, %v4193
        %v4198 = vmul.f32 %v4190, %v4177
        %v4199 = vmul.f32 %v4191, %v4181
        %v4200 = vmul.f32 %v4192, %v4177
        %v4201 = vmul.f32 %v4193, %v4181
        %v4202 = vadd.f32 %v4170, %v4198
        %v4203 = vadd.f32 %v4171, %v4199
        %v4204 = vadd.f32 %v4172, %v4200
        %v4205 = vadd.f32 %v4173, %v4201
        %v4206 = vlaneseq
        %v4207 = vshrl.u32 %v4206, 7
        %v4208 = vsub.s32 3, %v4207
        %v4209 = vrot.slane %v4106, %v4208
        %v4210 = vlaneseq
        %v4211 = vshrl.u32 %v4210, 7
        %v4212 = vsub.s32 3, %v4211
        %v4213 = vrot.slane %v4107, %v4212
        %vm4214 = vcmp.ge.f32.partialorder %v4209, %v4106
        %vm4215 = vcmp.ge.f32.partialorder %v4213, %v4107
        %vm4216 = vcmp.ge.f32.partialorder %v4209, %v4108
        %vm4217 = vcmp.ge.f32.partialorder %v4213, %v4109
        %v4218 = vsel %vm4214, 1, 0
        %v4219 = vsel %vm4215, 1, 0
        %v4220 = vsel %vm4216, 1, 0
        %v4221 = vsel %vm4217, 1, 0
        %v4222 = vcvt.s32.f32 %v4218
        %v4223 = vcvt.s32.f32 %v4219
        %v4224 = vcvt.s32.f32 %v4220
        %v4225 = vcvt.s32.f32 %v4221
        %v4226 = vadd.f32 %v4194, %v4222
        %v4227 = vadd.f32 %v4195, %v4223
        %v4228 = vadd.f32 %v4196, %v4224
        %v4229 = vadd.f32 %v4197, %v4225
        %v4230 = vmul.f32 %v4222, %v4209
        %v4231 = vmul.f32 %v4223, %v4213
        %v4232 = vmul.f32 %v4224, %v4209
        %v4233 = vmul.f32 %v4225, %v4213
        %v4234 = vadd.f32 %v4202, %v4230
        %v4235 = vadd.f32 %v4203, %v4231
        %v4236 = vadd.f32 %v4204, %v4232
        %v4237 = vadd.f32 %v4205, %v4233
        %v4238 = vlaneseq
        %v4239 = vshrl.u32 %v4238, 7
        %v4240 = vsub.s32 4, %v4239
        %v4241 = vrot.slane %v4106, %v4240
        %v4242 = vlaneseq
        %v4243 = vshrl.u32 %v4242, 7
        %v4244 = vsub.s32 4, %v4243
        %v4245 = vrot.slane %v4107, %v4244
        %vm4246 = vcmp.ge.f32.partialorder %v4241, %v4106
        %vm4247 = vcmp.ge.f32.partialorder %v4245, %v4107
        %vm4248 = vcmp.ge.f32.partialorder %v4241, %v4108
        %vm4249 = vcmp.ge.f32.partialorder %v4245, %v4109
        %v4250 = vsel %vm4246, 1, 0
        %v4251 = vsel %vm4247, 1, 0
        %v4252 = vsel %vm4248, 1, 0
        %v4253 = vsel %vm4249, 1, 0
        %v4254 = vcvt.s32.f32 %v4250
        %v4255 = vcvt.s32.f32 %v4251
        %v4256 = vcvt.s32.f32 %v4252
        %v4257 = vcvt.s32.f32 %v4253
        %v4258 = vadd.f32 %v4226, %v4254
        %v4259 = vadd.f32 %v4227, %v4255
        %v4260 = vadd.f32 %v4228, %v4256
        %v4261 = vadd.f32 %v4229, %v4257
        %v4262 = vmul.f32 %v4254, %v4241
        %v4263 = vmul.f32 %v4255, %v4245
        %v4264 = vmul.f32 %v4256, %v4241
        %v4265 = vmul.f32 %v4257, %v4245
        %v4266 = vadd.f32 %v4234, %v4262
        %v4267 = vadd.f32 %v4235, %v4263
        %v4268 = vadd.f32 %v4236, %v4264
        %v4269 = vadd.f32 %v4237, %v4265
        %v4270 = vlaneseq
        %v4271 = vshrl.u32 %v4270, 7
        %v4272 = vsub.s32 5, %v4271
        %v4273 = vrot.slane %v4106, %v4272
        %v4274 = vlaneseq
        %v4275 = vshrl.u32 %v4274, 7
        %v4276 = vsub.s32 5, %v4275
        %v4277 = vrot.slane %v4107, %v4276
        %vm4278 = vcmp.ge.f32.partialorder %v4273, %v4106
        %vm4279 = vcmp.ge.f32.partialorder %v4277, %v4107
        %vm4280 = vcmp.ge.f32.partialorder %v4273, %v4108
        %vm4281 = vcmp.ge.f32.partialorder %v4277, %v4109
        %v4282 = vsel %vm4278, 1, 0
        %v4283 = vsel %vm4279, 1, 0
        %v4284 = vsel %vm4280, 1, 0
        %v4285 = vsel %vm4281, 1, 0
        %v4286 = vcvt.s32.f32 %v4282
        %v4287 = vcvt.s32.f32 %v4283
        %v4288 = vcvt.s32.f32 %v4284
        %v4289 = vcvt.s32.f32 %v4285
        %v4290 = vadd.f32 %v4258, %v4286
        %v4291 = vadd.f32 %v4259, %v4287
        %v4292 = vadd.f32 %v4260, %v4288
        %v4293 = vadd.f32 %v4261, %v4289
        %v4294 = vmul.f32 %v4286, %v4273
        %v4295 = vmul.f32 %v4287, %v4277
        %v4296 = vmul.f32 %v4288, %v4273
        %v4297 = vmul.f32 %v4289, %v4277
        %v4298 = vadd.f32 %v4266, %v4294
        %v4299 = vadd.f32 %v4267, %v4295
        %v4300 = vadd.f32 %v4268, %v4296
        %v4301 = vadd.f32 %v4269, %v4297
        %v4302 = vlaneseq
        %v4303 = vshrl.u32 %v4302, 7
        %v4304 = vsub.s32 6, %v4303
        %v4305 = vrot.slane %v4106, %v4304
        %v4306 = vlaneseq
        %v4307 = vshrl.u32 %v4306, 7
        %v4308 = vsub.s32 6, %v4307
        %v4309 = vrot.slane %v4107, %v4308
        %vm4310 = vcmp.ge.f32.partialorder %v4305, %v4106
        %vm4311 = vcmp.ge.f32.partialorder %v4309, %v4107
        %vm4312 = vcmp.ge.f32.partialorder %v4305, %v4108
        %vm4313 = vcmp.ge.f32.partialorder %v4309, %v4109
        %v4314 = vsel %vm4310, 1, 0
        %v4315 = vsel %vm4311, 1, 0
        %v4316 = vsel %vm4312, 1, 0
        %v4317 = vsel %vm4313, 1, 0
        %v4318 = vcvt.s32.f32 %v4314
        %v4319 = vcvt.s32.f32 %v4315
        %v4320 = vcvt.s32.f32 %v4316
        %v4321 = vcvt.s32.f32 %v4317
        %v4322 = vadd.f32 %v4290, %v4318
        %v4323 = vadd.f32 %v4291, %v4319
        %v4324 = vadd.f32 %v4292, %v4320
        %v4325 = vadd.f32 %v4293, %v4321
        %v4326 = vmul.f32 %v4318, %v4305
        %v4327 = vmul.f32 %v4319, %v4309
        %v4328 = vmul.f32 %v4320, %v4305
        %v4329 = vmul.f32 %v4321, %v4309
        %v4330 = vadd.f32 %v4298, %v4326
        %v4331 = vadd.f32 %v4299, %v4327
        %v4332 = vadd.f32 %v4300, %v4328
        %v4333 = vadd.f32 %v4301, %v4329
        %v4334 = vlaneseq
        %v4335 = vshrl.u32 %v4334, 7
        %v4336 = vsub.s32 7, %v4335
        %v4337 = vrot.slane %v4106, %v4336
        %v4338 = vlaneseq
        %v4339 = vshrl.u32 %v4338, 7
        %v4340 = vsub.s32 7, %v4339
        %v4341 = vrot.slane %v4107, %v4340
        %vm4342 = vcmp.ge.f32.partialorder %v4337, %v4106
        %vm4343 = vcmp.ge.f32.partialorder %v4341, %v4107
        %vm4344 = vcmp.ge.f32.partialorder %v4337, %v4108
        %vm4345 = vcmp.ge.f32.partialorder %v4341, %v4109
        %v4346 = vsel %vm4342, 1, 0
        %v4347 = vsel %vm4343, 1, 0
        %v4348 = vsel %vm4344, 1, 0
        %v4349 = vsel %vm4345, 1, 0
        %v4350 = vcvt.s32.f32 %v4346
        %v4351 = vcvt.s32.f32 %v4347
        %v4352 = vcvt.s32.f32 %v4348
        %v4353 = vcvt.s32.f32 %v4349
        %v4354 = vadd.f32 %v4322, %v4350
        %v4355 = vadd.f32 %v4323, %v4351
        %v4356 = vadd.f32 %v4324, %v4352
        %v4357 = vadd.f32 %v4325, %v4353
        %v4358 = vmul.f32 %v4350, %v4337
        %v4359 = vmul.f32 %v4351, %v4341
        %v4360 = vmul.f32 %v4352, %v4337
        %v4361 = vmul.f32 %v4353, %v4341
        %v4362 = vadd.f32 %v4330, %v4358
        %v4363 = vadd.f32 %v4331, %v4359
        %v4364 = vadd.f32 %v4332, %v4360
        %v4365 = vadd.f32 %v4333, %v4361
        %v4366 = vlaneseq
        %v4367 = vshrl.u32 %v4366, 7
        %v4368 = vsub.s32 0, %v4367
        %v4369 = vrot.slane %v4108, %v4368
        %v4370 = vlaneseq
        %v4371 = vshrl.u32 %v4370, 7
        %v4372 = vsub.s32 0, %v4371
        %v4373 = vrot.slane %v4109, %v4372
        %vm4374 = vcmp.ge.f32.partialorder %v4369, %v4106
        %vm4375 = vcmp.ge.f32.partialorder %v4373, %v4107
        %vm4376 = vcmp.ge.f32.partialorder %v4369, %v4108
        %vm4377 = vcmp.ge.f32.partialorder %v4373, %v4109
        %v4378 = vsel %vm4374, 1, 0
        %v4379 = vsel %vm4375, 1, 0
        %v4380 = vsel %vm4376, 1, 0
        %v4381 = vsel %vm4377, 1, 0
        %v4382 = vcvt.s32.f32 %v4378
        %v4383 = vcvt.s32.f32 %v4379
        %v4384 = vcvt.s32.f32 %v4380
        %v4385 = vcvt.s32.f32 %v4381
        %v4386 = vadd.f32 %v4354, %v4382
        %v4387 = vadd.f32 %v4355, %v4383
        %v4388 = vadd.f32 %v4356, %v4384
        %v4389 = vadd.f32 %v4357, %v4385
        %v4390 = vmul.f32 %v4382, %v4369
        %v4391 = vmul.f32 %v4383, %v4373
        %v4392 = vmul.f32 %v4384, %v4369
        %v4393 = vmul.f32 %v4385, %v4373
        %v4394 = vadd.f32 %v4362, %v4390
        %v4395 = vadd.f32 %v4363, %v4391
        %v4396 = vadd.f32 %v4364, %v4392
        %v4397 = vadd.f32 %v4365, %v4393
        %v4398 = vlaneseq
        %v4399 = vshrl.u32 %v4398, 7
        %v4400 = vsub.s32 1, %v4399
        %v4401 = vrot.slane %v4108, %v4400
        %v4402 = vlaneseq
        %v4403 = vshrl.u32 %v4402, 7
        %v4404 = vsub.s32 1, %v4403
        %v4405 = vrot.slane %v4109, %v4404
        %vm4406 = vcmp.ge.f32.partialorder %v4401, %v4106
        %vm4407 = vcmp.ge.f32.partialorder %v4405, %v4107
        %vm4408 = vcmp.ge.f32.partialorder %v4401, %v4108
        %vm4409 = vcmp.ge.f32.partialorder %v4405, %v4109
        %v4410 = vsel %vm4406, 1, 0
        %v4411 = vsel %vm4407, 1, 0
        %v4412 = vsel %vm4408, 1, 0
        %v4413 = vsel %vm4409, 1, 0
        %v4414 = vcvt.s32.f32 %v4410
        %v4415 = vcvt.s32.f32 %v4411
        %v4416 = vcvt.s32.f32 %v4412
        %v4417 = vcvt.s32.f32 %v4413
        %v4418 = vadd.f32 %v4386, %v4414
        %v4419 = vadd.f32 %v4387, %v4415
        %v4420 = vadd.f32 %v4388, %v4416
        %v4421 = vadd.f32 %v4389, %v4417
        %v4422 = vmul.f32 %v4414, %v4401
        %v4423 = vmul.f32 %v4415, %v4405
        %v4424 = vmul.f32 %v4416, %v4401
        %v4425 = vmul.f32 %v4417, %v4405
        %v4426 = vadd.f32 %v4394, %v4422
        %v4427 = vadd.f32 %v4395, %v4423
        %v4428 = vadd.f32 %v4396, %v4424
        %v4429 = vadd.f32 %v4397, %v4425
        %v4430 = vlaneseq
        %v4431 = vshrl.u32 %v4430, 7
        %v4432 = vsub.s32 2, %v4431
        %v4433 = vrot.slane %v4108, %v4432
        %v4434 = vlaneseq
        %v4435 = vshrl.u32 %v4434, 7
        %v4436 = vsub.s32 2, %v4435
        %v4437 = vrot.slane %v4109, %v4436
        %vm4438 = vcmp.ge.f32.partialorder %v4433, %v4106
        %vm4439 = vcmp.ge.f32.partialorder %v4437, %v4107
        %vm4440 = vcmp.ge.f32.partialorder %v4433, %v4108
        %vm4441 = vcmp.ge.f32.partialorder %v4437, %v4109
        %v4442 = vsel %vm4438, 1, 0
        %v4443 = vsel %vm4439, 1, 0
        %v4444 = vsel %vm4440, 1, 0
        %v4445 = vsel %vm4441, 1, 0
        %v4446 = vcvt.s32.f32 %v4442
        %v4447 = vcvt.s32.f32 %v4443
        %v4448 = vcvt.s32.f32 %v4444
        %v4449 = vcvt.s32.f32 %v4445
        %v4450 = vadd.f32 %v4418, %v4446
        %v4451 = vadd.f32 %v4419, %v4447
        %v4452 = vadd.f32 %v4420, %v4448
        %v4453 = vadd.f32 %v4421, %v4449
        %v4454 = vmul.f32 %v4446, %v4433
        %v4455 = vmul.f32 %v4447, %v4437
        %v4456 = vmul.f32 %v4448, %v4433
        %v4457 = vmul.f32 %v4449, %v4437
        %v4458 = vadd.f32 %v4426, %v4454
        %v4459 = vadd.f32 %v4427, %v4455
        %v4460 = vadd.f32 %v4428, %v4456
        %v4461 = vadd.f32 %v4429, %v4457
        %v4462 = vlaneseq
        %v4463 = vshrl.u32 %v4462, 7
        %v4464 = vsub.s32 3, %v4463
        %v4465 = vrot.slane %v4108, %v4464
        %v4466 = vlaneseq
        %v4467 = vshrl.u32 %v4466, 7
        %v4468 = vsub.s32 3, %v4467
        %v4469 = vrot.slane %v4109, %v4468
        %vm4470 = vcmp.ge.f32.partialorder %v4465, %v4106
        %vm4471 = vcmp.ge.f32.partialorder %v4469, %v4107
        %vm4472 = vcmp.ge.f32.partialorder %v4465, %v4108
        %vm4473 = vcmp.ge.f32.partialorder %v4469, %v4109
        %v4474 = vsel %vm4470, 1, 0
        %v4475 = vsel %vm4471, 1, 0
        %v4476 = vsel %vm4472, 1, 0
        %v4477 = vsel %vm4473, 1, 0
        %v4478 = vcvt.s32.f32 %v4474
        %v4479 = vcvt.s32.f32 %v4475
        %v4480 = vcvt.s32.f32 %v4476
        %v4481 = vcvt.s32.f32 %v4477
        %v4482 = vadd.f32 %v4450, %v4478
        %v4483 = vadd.f32 %v4451, %v4479
        %v4484 = vadd.f32 %v4452, %v4480
        %v4485 = vadd.f32 %v4453, %v4481
        %v4486 = vmul.f32 %v4478, %v4465
        %v4487 = vmul.f32 %v4479, %v4469
        %v4488 = vmul.f32 %v4480, %v4465
        %v4489 = vmul.f32 %v4481, %v4469
        %v4490 = vadd.f32 %v4458, %v4486
        %v4491 = vadd.f32 %v4459, %v4487
        %v4492 = vadd.f32 %v4460, %v4488
        %v4493 = vadd.f32 %v4461, %v4489
        %v4494 = vlaneseq
        %v4495 = vshrl.u32 %v4494, 7
        %v4496 = vsub.s32 4, %v4495
        %v4497 = vrot.slane %v4108, %v4496
        %v4498 = vlaneseq
        %v4499 = vshrl.u32 %v4498, 7
        %v4500 = vsub.s32 4, %v4499
        %v4501 = vrot.slane %v4109, %v4500
        %vm4502 = vcmp.ge.f32.partialorder %v4497, %v4106
        %vm4503 = vcmp.ge.f32.partialorder %v4501, %v4107
        %vm4504 = vcmp.ge.f32.partialorder %v4497, %v4108
        %vm4505 = vcmp.ge.f32.partialorder %v4501, %v4109
        %v4506 = vsel %vm4502, 1, 0
        %v4507 = vsel %vm4503, 1, 0
        %v4508 = vsel %vm4504, 1, 0
        %v4509 = vsel %vm4505, 1, 0
        %v4510 = vcvt.s32.f32 %v4506
        %v4511 = vcvt.s32.f32 %v4507
        %v4512 = vcvt.s32.f32 %v4508
        %v4513 = vcvt.s32.f32 %v4509
        %v4514 = vadd.f32 %v4482, %v4510
        %v4515 = vadd.f32 %v4483, %v4511
        %v4516 = vadd.f32 %v4484, %v4512
        %v4517 = vadd.f32 %v4485, %v4513
        %v4518 = vmul.f32 %v4510, %v4497
        %v4519 = vmul.f32 %v4511, %v4501
        %v4520 = vmul.f32 %v4512, %v4497
        %v4521 = vmul.f32 %v4513, %v4501
        %v4522 = vadd.f32 %v4490, %v4518
        %v4523 = vadd.f32 %v4491, %v4519
        %v4524 = vadd.f32 %v4492, %v4520
        %v4525 = vadd.f32 %v4493, %v4521
        %v4526 = vlaneseq
        %v4527 = vshrl.u32 %v4526, 7
        %v4528 = vsub.s32 5, %v4527
        %v4529 = vrot.slane %v4108, %v4528
        %v4530 = vlaneseq
        %v4531 = vshrl.u32 %v4530, 7
        %v4532 = vsub.s32 5, %v4531
        %v4533 = vrot.slane %v4109, %v4532
        %vm4534 = vcmp.ge.f32.partialorder %v4529, %v4106
        %vm4535 = vcmp.ge.f32.partialorder %v4533, %v4107
        %vm4536 = vcmp.ge.f32.partialorder %v4529, %v4108
        %vm4537 = vcmp.ge.f32.partialorder %v4533, %v4109
        %v4538 = vsel %vm4534, 1, 0
        %v4539 = vsel %vm4535, 1, 0
        %v4540 = vsel %vm4536, 1, 0
        %v4541 = vsel %vm4537, 1, 0
        %v4542 = vcvt.s32.f32 %v4538
        %v4543 = vcvt.s32.f32 %v4539
        %v4544 = vcvt.s32.f32 %v4540
        %v4545 = vcvt.s32.f32 %v4541
        %v4546 = vadd.f32 %v4514, %v4542
        %v4547 = vadd.f32 %v4515, %v4543
        %v4548 = vadd.f32 %v4516, %v4544
        %v4549 = vadd.f32 %v4517, %v4545
        %v4550 = vmul.f32 %v4542, %v4529
        %v4551 = vmul.f32 %v4543, %v4533
        %v4552 = vmul.f32 %v4544, %v4529
        %v4553 = vmul.f32 %v4545, %v4533
        %v4554 = vadd.f32 %v4522, %v4550
        %v4555 = vadd.f32 %v4523, %v4551
        %v4556 = vadd.f32 %v4524, %v4552
        %v4557 = vadd.f32 %v4525, %v4553
        %v4558 = vlaneseq
        %v4559 = vshrl.u32 %v4558, 7
        %v4560 = vsub.s32 6, %v4559
        %v4561 = vrot.slane %v4108, %v4560
        %v4562 = vlaneseq
        %v4563 = vshrl.u32 %v4562, 7
        %v4564 = vsub.s32 6, %v4563
        %v4565 = vrot.slane %v4109, %v4564
        %vm4566 = vcmp.ge.f32.partialorder %v4561, %v4106
        %vm4567 = vcmp.ge.f32.partialorder %v4565, %v4107
        %vm4568 = vcmp.ge.f32.partialorder %v4561, %v4108
        %vm4569 = vcmp.ge.f32.partialorder %v4565, %v4109
        %v4570 = vsel %vm4566, 1, 0
        %v4571 = vsel %vm4567, 1, 0
        %v4572 = vsel %vm4568, 1, 0
        %v4573 = vsel %vm4569, 1, 0
        %v4574 = vcvt.s32.f32 %v4570
        %v4575 = vcvt.s32.f32 %v4571
        %v4576 = vcvt.s32.f32 %v4572
        %v4577 = vcvt.s32.f32 %v4573
        %v4578 = vadd.f32 %v4546, %v4574
        %v4579 = vadd.f32 %v4547, %v4575
        %v4580 = vadd.f32 %v4548, %v4576
        %v4581 = vadd.f32 %v4549, %v4577
        %v4582 = vmul.f32 %v4574, %v4561
        %v4583 = vmul.f32 %v4575, %v4565
        %v4584 = vmul.f32 %v4576, %v4561
        %v4585 = vmul.f32 %v4577, %v4565
        %v4586 = vadd.f32 %v4554, %v4582
        %v4587 = vadd.f32 %v4555, %v4583
        %v4588 = vadd.f32 %v4556, %v4584
        %v4589 = vadd.f32 %v4557, %v4585
        %v4590 = vlaneseq
        %v4591 = vshrl.u32 %v4590, 7
        %v4592 = vsub.s32 7, %v4591
        %v4593 = vrot.slane %v4108, %v4592
        %v4594 = vlaneseq
        %v4595 = vshrl.u32 %v4594, 7
        %v4596 = vsub.s32 7, %v4595
        %v4597 = vrot.slane %v4109, %v4596
        %vm4598 = vcmp.ge.f32.partialorder %v4593, %v4106
        %vm4599 = vcmp.ge.f32.partialorder %v4597, %v4107
        %vm4600 = vcmp.ge.f32.partialorder %v4593, %v4108
        %vm4601 = vcmp.ge.f32.partialorder %v4597, %v4109
        %v4602 = vsel %vm4598, 1, 0
        %v4603 = vsel %vm4599, 1, 0
        %v4604 = vsel %vm4600, 1, 0
        %v4605 = vsel %vm4601, 1, 0
        %v4606 = vcvt.s32.f32 %v4602
        %v4607 = vcvt.s32.f32 %v4603
        %v4608 = vcvt.s32.f32 %v4604
        %v4609 = vcvt.s32.f32 %v4605
        %v4610 = vadd.f32 %v4578, %v4606
        %v4611 = vadd.f32 %v4579, %v4607
        %v4612 = vadd.f32 %v4580, %v4608
        %v4613 = vadd.f32 %v4581, %v4609
        %v4614 = vmul.f32 %v4606, %v4593
        %v4615 = vmul.f32 %v4607, %v4597
        %v4616 = vmul.f32 %v4608, %v4593
        %v4617 = vmul.f32 %v4609, %v4597
        %v4618 = vadd.f32 %v4586, %v4614
        %v4619 = vadd.f32 %v4587, %v4615
        %v4620 = vadd.f32 %v4588, %v4616
        %v4621 = vadd.f32 %v4589, %v4617
        %v4622 = vmul.f32 %v4610, %v4106
        %v4623 = vmul.f32 %v4611, %v4107
        %v4624 = vmul.f32 %v4612, %v4108
        %v4625 = vmul.f32 %v4613, %v4109
        %v4626 = vadd.f32 %v4622, 1.0
        %v4627 = vadd.f32 %v4623, 1.0
        %v4628 = vadd.f32 %v4624, 1.0
        %v4629 = vadd.f32 %v4625, 1.0
        %v4630 = vsub.f32 %v4626, %v4618
        %v4631 = vsub.f32 %v4627, %v4619
        %v4632 = vsub.f32 %v4628, %v4620
        %v4633 = vsub.f32 %v4629, %v4621
        %vm4634 = vcmp.gt.f32.partialorder %v4630, 0.0
        %vm4635 = vcmp.gt.f32.partialorder %v4631, 0.0
        %vm4636 = vcmp.gt.f32.partialorder %v4632, 0.0
        %vm4637 = vcmp.gt.f32.partialorder %v4633, 0.0
        %v4638 = vsel %vm4634, 1, 0
        %v4639 = vsel %vm4635, 1, 0
        %v4640 = vsel %vm4636, 1, 0
        %v4641 = vsel %vm4637, 1, 0
        %v4642 = vcvt.s32.f32 %v4638
        %v4643 = vcvt.s32.f32 %v4639
        %v4644 = vcvt.s32.f32 %v4640
        %v4645 = vcvt.s32.f32 %v4641
        %v4646 = vadd.f32 %v4642, %v4644
        %v4647 = vrot.slane %v4646, 4
        %v4648 = vadd.f32 %v4646, %v4647
        %v4649 = vrot.slane %v4648, 2
        %v4650 = vadd.f32 %v4648, %v4649
        %v4651 = vrot.slane %v4650, 1
        %v4652 = vadd.f32 %v4650, %v4651
        %v4653 = vadd.f32 %v4643, %v4645
        %v4654 = vrot.slane %v4653, 4
        %v4655 = vadd.f32 %v4653, %v4654
        %v4656 = vrot.slane %v4655, 2
        %v4657 = vadd.f32 %v4655, %v4656
        %v4658 = vrot.slane %v4657, 1
        %v4659 = vadd.f32 %v4657, %v4658
        %v4660 = vmul.f32 %v4106, %v4642
        %v4661 = vmul.f32 %v4107, %v4643
        %v4662 = vmul.f32 %v4108, %v4644
        %v4663 = vmul.f32 %v4109, %v4645
        %v4664 = vadd.f32 %v4660, %v4662
        %v4665 = vrot.slane %v4664, 4
        %v4666 = vadd.f32 %v4664, %v4665
        %v4667 = vrot.slane %v4666, 2
        %v4668 = vadd.f32 %v4666, %v4667
        %v4669 = vrot.slane %v4668, 1
        %v4670 = vadd.f32 %v4668, %v4669
        %v4671 = vadd.f32 %v4661, %v4663
        %v4672 = vrot.slane %v4671, 4
        %v4673 = vadd.f32 %v4671, %v4672
        %v4674 = vrot.slane %v4673, 2
        %v4675 = vadd.f32 %v4673, %v4674
        %v4676 = vrot.slane %v4675, 1
        %v4677 = vadd.f32 %v4675, %v4676
        %v4678 = vsub.f32 %v4670, 1.0
        %v4679 = vsub.f32 %v4677, 1.0
        %v4680 = vrcp.pop %v4652
        %v4681 = vmul.f32 %v4678, %v4680
        %v4682 = vrcp.pop %v4659
        %v4683 = vmul.f32 %v4679, %v4682
        %v4684 = vsub.f32 %v4106, %v4681
        %v4685 = vsub.f32 %v4107, %v4683
        %v4686 = vsub.f32 %v4108, %v4681
        %v4687 = vsub.f32 %v4109, %v4683
        %v4688 = vmax.f32 %v4684, 0.0
        %v4689 = vmax.f32 %v4685, 0.0
        %v4690 = vmax.f32 %v4686, 0.0
        %v4691 = vmax.f32 %v4687, 0.0
        %v4692 = vadd.f32 %v4688, 1e-15
        %v4693 = vadd.f32 %v4689, 1e-15
        %v4694 = vadd.f32 %v4690, 1e-15
        %v4695 = vadd.f32 %v4691, 1e-15
        %v4696 = vlog2.pop %v4692
        %v4697 = vmul.f32 %v4696, 0.6931472
        %v4698 = vlog2.pop %v4693
        %v4699 = vmul.f32 %v4698, 0.6931472
        %v4700 = vlog2.pop %v4694
        %v4701 = vmul.f32 %v4700, 0.6931472
        %v4702 = vlog2.pop %v4695
        %v4703 = vmul.f32 %v4702, 0.6931472
        %v4704 = vmul.f32 %v4688, %v4697
        %v4705 = vmul.f32 %v4689, %v4699
        %v4706 = vmul.f32 %v4690, %v4701
        %v4707 = vmul.f32 %v4691, %v4703
        %v4708 = vadd.f32 %v4704, %v4706
        %v4709 = vrot.slane %v4708, 4
        %v4710 = vadd.f32 %v4708, %v4709
        %v4711 = vrot.slane %v4710, 2
        %v4712 = vadd.f32 %v4710, %v4711
        %v4713 = vrot.slane %v4712, 1
        %v4714 = vadd.f32 %v4712, %v4713
        %v4715 = vadd.f32 %v4705, %v4707
        %v4716 = vrot.slane %v4715, 4
        %v4717 = vadd.f32 %v4715, %v4716
        %v4718 = vrot.slane %v4717, 2
        %v4719 = vadd.f32 %v4717, %v4718
        %v4720 = vrot.slane %v4719, 1
        %v4721 = vadd.f32 %v4719, %v4720
        %v4722 = vadd.f32 %v4714, %v4721
        %4723 = vadd.xlane.f32.xlu0 %v4722
        %v4724 = vpop.xlane.xlu0 %4723
        %s4725 = vtos %v4724
        %v4726 = vrcp.pop 256.0
        %s4727 = vtos %v4726
        %s4728 = smul.f32 %s4725, %s4727
        %s4729 = sadd.f32 %s2959, %s4728
        %v4730 = vsub.f32 1.3, %v4688
        %v4731 = vsub.f32 1.3, %v4689
        %v4732 = vsub.f32 1.3, %v4690
        %v4733 = vsub.f32 1.3, %v4691
        %v4734 = vmul.f32 %v4730, %v2960
        %v4735 = vmul.f32 %v4731, %v2961
        %v4736 = vmul.f32 %v4732, %v2962
        %v4737 = vmul.f32 %v4733, %v2963
        %v4738 = vmul.f32 %v4688, %v1289
        %v4739 = vmul.f32 %v4689, %v1290
        %v4740 = vmul.f32 %v4690, %v1291
        %v4741 = vmul.f32 %v4691, %v1292
        %s4742 = scalar_lea.vmem %s5, 256
        %v4743 = vld [vmem:[%s4742] sm:$0xff]
        %v4744 = vld [vmem:[%s4742 + $0x8] sm:$0xff]
        %v4745 = vld [vmem:[%s4742 + $0x10] sm:$0xff]
        %v4746 = vld [vmem:[%s4742 + $0x18] sm:$0xff]
        %s4747 = scalar_lea.vmem %s5, 768
        %v4748 = vld [vmem:[%s4747] sm:$0xff]
        %v4749 = vld [vmem:[%s4747 + $0x8] sm:$0xff]
        %v4750 = vld [vmem:[%s4747 + $0x10] sm:$0xff]
        %v4751 = vld [vmem:[%s4747 + $0x18] sm:$0xff]
        %v4752 = vpack.c.bf16 %v4740, %v4738
        %v4753 = vpack.c.bf16 %v4741, %v4739
        %4754 = vmatprep.subr.bf16.mxu0 %v4753
        %4755 = vmatpush1.bf16.msra.mxu0 %v4752
        %4756 = vmatprep.subr.bf16.mxu0 0
        %4757 = vmatpush1.bf16.msra.mxu0 0
        %4758 = vmatprep.subr.bf16.mxu0 0
        %4759 = vmatpush1.bf16.msra.mxu0 0
        %4760 = vmatprep.subr.bf16.mxu0 0
        %4761 = vmatpush1.bf16.msra.mxu0 0
        %4762 = vmatprep.subr.bf16.mxu0 0
        %4763 = vmatpush1.bf16.msra.mxu0 0
        %4764 = vmatprep.subr.bf16.mxu0 0
        %4765 = vmatpush1.bf16.msra.mxu0 0
        %4766 = vmatprep.subr.bf16.mxu0 0
        %4767 = vmatpush1.bf16.msra.mxu0 0
        %4768 = vmatprep.subr.bf16.mxu0 0
        %4769 = vmatpush1.bf16.msra.mxu0 0
        %4770 = vmatprep.subr.bf16.mxu0 0
        %4771 = vmatpush1.bf16.msra.mxu0 0
        %4772 = vmatprep.subr.bf16.mxu0 0
        %4773 = vmatpush1.bf16.msra.mxu0 0
        %4774 = vmatprep.subr.bf16.mxu0 0
        %4775 = vmatpush1.bf16.msra.mxu0 0
        %4776 = vmatprep.subr.bf16.mxu0 0
        %4777 = vmatpush1.bf16.msra.mxu0 0
        %4778 = vmatprep.subr.bf16.mxu0 0
        %4779 = vmatpush1.bf16.msra.mxu0 0
        %4780 = vmatprep.subr.bf16.mxu0 0
        %4781 = vmatpush1.bf16.msra.mxu0 0
        %4782 = vmatprep.subr.bf16.mxu0 0
        %4783 = vmatpush1.bf16.msra.mxu0 0
        %4784 = vmatprep.subr.bf16.mxu0 0
        %4785 = vmatpush1.bf16.msra.mxu0 0
        %4786 = vmatprep.mubr.bf16.mxu0 0
        %4787 = vmatmul.mubr.bf16.gmra.mrb[0].mxu0 %v1306
        %v4788 = vpop.f32.mrb[0].mxu0
        %v4789 = vadd.f32 0.0, %v4788
        %v4790 = vpop.f32.mrb[0].mxu0
        %v4791 = vadd.f32 0.0, %v4790
        %v4792 = vpop.f32.mrb[0].mxu0
        %v4793 = vadd.f32 0.0, %v4792
        %v4794 = vpop.f32.mrb[0].mxu0
        %v4795 = vadd.f32 0.0, %v4794
        %4796 = vmatprep.mubr.bf16.mxu0 0
        %4797 = vmatmul.mubr.bf16.gmra.mrb[0].mxu0 %v1309
        %v4798 = vpop.f32.mrb[0].mxu0
        %v4799 = vadd.f32 0.0, %v4798
        %v4800 = vpop.f32.mrb[0].mxu0
        %v4801 = vadd.f32 0.0, %v4800
        %v4802 = vpop.f32.mrb[0].mxu0
        %v4803 = vadd.f32 0.0, %v4802
        %v4804 = vpop.f32.mrb[0].mxu0
        %v4805 = vadd.f32 0.0, %v4804
        %4806 = vdwg.mxu0
        %4807 = vadd.xlane.f32.xlu0 %v4789
        %v4808 = vpop.xlane.xlu0 %4807
        %4809 = vadd.xlane.f32.xlu0 %v4793
        %v4810 = vpop.xlane.xlu0 %4809
        %4811 = vadd.xlane.f32.xlu0 %v4799
        %v4812 = vpop.xlane.xlu0 %4811
        %4813 = vadd.xlane.f32.xlu0 %v4803
        %v4814 = vpop.xlane.xlu0 %4813
        %v4815 = vmul.f32 %v4808, %v1224
        %v4816 = vmul.f32 %v4810, %v1224
        %v4817 = vmul.f32 %v4812, %v1224
        %v4818 = vmul.f32 %v4814, %v1224
        %v4819 = vsub.f32 %v4789, %v4815
        %v4820 = vsub.f32 %v4793, %v4816
        %v4821 = vsub.f32 %v4799, %v4817
        %v4822 = vsub.f32 %v4803, %v4818
        %v4823 = vmul.f32 %v4819, %v4819
        %v4824 = vmul.f32 %v4820, %v4820
        %v4825 = vmul.f32 %v4821, %v4821
        %v4826 = vmul.f32 %v4822, %v4822
        %4827 = vadd.xlane.f32.xlu0 %v4823
        %v4828 = vpop.xlane.xlu0 %4827
        %4829 = vadd.xlane.f32.xlu0 %v4824
        %v4830 = vpop.xlane.xlu0 %4829
        %4831 = vadd.xlane.f32.xlu0 %v4825
        %v4832 = vpop.xlane.xlu0 %4831
        %4833 = vadd.xlane.f32.xlu0 %v4826
        %v4834 = vpop.xlane.xlu0 %4833
        %v4835 = vmul.f32 %v4828, %v1224
        %v4836 = vmul.f32 %v4830, %v1224
        %v4837 = vmul.f32 %v4832, %v1224
        %v4838 = vmul.f32 %v4834, %v1224
        %v4839 = vadd.f32 %v4835, 1e-05
        %v4840 = vadd.f32 %v4836, 1e-05
        %v4841 = vadd.f32 %v4837, 1e-05
        %v4842 = vadd.f32 %v4838, 1e-05
        %v4843 = vrsqrt.pop %v4839
        %v4844 = vrsqrt.pop %v4840
        %v4845 = vrsqrt.pop %v4841
        %v4846 = vrsqrt.pop %v4842
        %v4847 = vmul.f32 %v4819, %v4843
        %v4848 = vmul.f32 %v4820, %v4844
        %v4849 = vmul.f32 %v4821, %v4845
        %v4850 = vmul.f32 %v4822, %v4846
        %4851 = vadd.xlane.f32.xlu0 %v4791
        %v4852 = vpop.xlane.xlu0 %4851
        %4853 = vadd.xlane.f32.xlu0 %v4795
        %v4854 = vpop.xlane.xlu0 %4853
        %4855 = vadd.xlane.f32.xlu0 %v4801
        %v4856 = vpop.xlane.xlu0 %4855
        %4857 = vadd.xlane.f32.xlu0 %v4805
        %v4858 = vpop.xlane.xlu0 %4857
        %v4859 = vmul.f32 %v4852, %v1224
        %v4860 = vmul.f32 %v4854, %v1224
        %v4861 = vmul.f32 %v4856, %v1224
        %v4862 = vmul.f32 %v4858, %v1224
        %v4863 = vsub.f32 %v4791, %v4859
        %v4864 = vsub.f32 %v4795, %v4860
        %v4865 = vsub.f32 %v4801, %v4861
        %v4866 = vsub.f32 %v4805, %v4862
        %v4867 = vmul.f32 %v4863, %v4863
        %v4868 = vmul.f32 %v4864, %v4864
        %v4869 = vmul.f32 %v4865, %v4865
        %v4870 = vmul.f32 %v4866, %v4866
        %4871 = vadd.xlane.f32.xlu0 %v4867
        %v4872 = vpop.xlane.xlu0 %4871
        %4873 = vadd.xlane.f32.xlu0 %v4868
        %v4874 = vpop.xlane.xlu0 %4873
        %4875 = vadd.xlane.f32.xlu0 %v4869
        %v4876 = vpop.xlane.xlu0 %4875
        %4877 = vadd.xlane.f32.xlu0 %v4870
        %v4878 = vpop.xlane.xlu0 %4877
        %v4879 = vmul.f32 %v4872, %v1224
        %v4880 = vmul.f32 %v4874, %v1224
        %v4881 = vmul.f32 %v4876, %v1224
        %v4882 = vmul.f32 %v4878, %v1224
        %v4883 = vadd.f32 %v4879, 1e-05
        %v4884 = vadd.f32 %v4880, 1e-05
        %v4885 = vadd.f32 %v4881, 1e-05
        %v4886 = vadd.f32 %v4882, 1e-05
        %v4887 = vrsqrt.pop %v4883
        %v4888 = vrsqrt.pop %v4884
        %v4889 = vrsqrt.pop %v4885
        %v4890 = vrsqrt.pop %v4886
        %v4891 = vmul.f32 %v4863, %v4887
        %v4892 = vmul.f32 %v4864, %v4888
        %v4893 = vmul.f32 %v4865, %v4889
        %v4894 = vmul.f32 %v4866, %v4890
        %4896 = vset.pattern.permute.xlu0 0
        %4897 = vperm.xlu0 %4896, %v4743
        %v4898 = vpop.permute.xlu0 %4897
        %4901 = vset.pattern.permute.xlu0 0
        %4902 = vperm.xlu0 %4901, %v4744
        %v4903 = vpop.permute.xlu0 %4902
        %4906 = vset.pattern.permute.xlu0 0
        %4907 = vperm.xlu0 %4906, %v4745
        %v4908 = vpop.permute.xlu0 %4907
        %4911 = vset.pattern.permute.xlu0 0
        %4912 = vperm.xlu0 %4911, %v4746
        %v4913 = vpop.permute.xlu0 %4912
        %v4915 = vmul.f32 %v4847, %v4898
        %v4916 = vmul.f32 %v4891, %v4898
        %v4917 = vmul.f32 %v4848, %v4903
        %v4918 = vmul.f32 %v4892, %v4903
        %v4919 = vmul.f32 %v4849, %v4908
        %v4920 = vmul.f32 %v4893, %v4908
        %v4921 = vmul.f32 %v4850, %v4913
        %v4922 = vmul.f32 %v4894, %v4913
        %4924 = vset.pattern.permute.xlu0 0
        %4925 = vperm.xlu0 %4924, %v4748
        %v4926 = vpop.permute.xlu0 %4925
        %4929 = vset.pattern.permute.xlu0 0
        %4930 = vperm.xlu0 %4929, %v4749
        %v4931 = vpop.permute.xlu0 %4930
        %4934 = vset.pattern.permute.xlu0 0
        %4935 = vperm.xlu0 %4934, %v4750
        %v4936 = vpop.permute.xlu0 %4935
        %4939 = vset.pattern.permute.xlu0 0
        %4940 = vperm.xlu0 %4939, %v4751
        %v4941 = vpop.permute.xlu0 %4940
        %v4943 = vadd.f32 %v4915, %v4926
        %v4944 = vadd.f32 %v4916, %v4926
        %v4945 = vadd.f32 %v4917, %v4931
        %v4946 = vadd.f32 %v4918, %v4931
        %v4947 = vadd.f32 %v4919, %v4936
        %v4948 = vadd.f32 %v4920, %v4936
        %v4949 = vadd.f32 %v4921, %v4941
        %v4950 = vadd.f32 %v4922, %v4941
        %v4951 = vxor.u32 %v4947, 2147483648
        %v4952 = vxor.u32 %v4948, 2147483648
        %v4953 = vxor.u32 %v4949, 2147483648
        %v4954 = vxor.u32 %v4950, 2147483648
        %v4955 = vmul.f32 %v4951, 1.442695
        %v4956 = vpow.pop %v4955
        %v4957 = vmul.f32 %v4952, 1.442695
        %v4958 = vpow.pop %v4957
        %v4959 = vmul.f32 %v4953, 1.442695
        %v4960 = vpow.pop %v4959
        %v4961 = vmul.f32 %v4954, 1.442695
        %v4962 = vpow.pop %v4961
        %v4963 = vadd.f32 %v4956, 1.0
        %v4964 = vadd.f32 %v4958, 1.0
        %v4965 = vadd.f32 %v4960, 1.0
        %v4966 = vadd.f32 %v4962, 1.0
        %v4967 = vrcp.pop %v4963
        %v4968 = vmul.f32 1.0, %v4967
        %v4969 = vrcp.pop %v4964
        %v4970 = vmul.f32 1.0, %v4969
        %v4971 = vrcp.pop %v4965
        %v4972 = vmul.f32 1.0, %v4971
        %v4973 = vrcp.pop %v4966
        %v4974 = vmul.f32 1.0, %v4973
        %v4975 = vmul.f32 %v4943, %v4968
        %v4976 = vmul.f32 %v4944, %v4970
        %v4977 = vmul.f32 %v4945, %v4972
        %v4978 = vmul.f32 %v4946, %v4974
        %s4979 = scalar_lea.vmem %s5, 288
        %v4980 = vld [vmem:[%s4979] sm:$0xff]
        %v4981 = vld [vmem:[%s4979 + $0x8] sm:$0xff]
        %v4982 = vld [vmem:[%s4979 + $0x10] sm:$0xff]
        %v4983 = vld [vmem:[%s4979 + $0x18] sm:$0xff]
        %s4984 = scalar_lea.vmem %s5, 800
        %v4985 = vld [vmem:[%s4984] sm:$0xff]
        %v4986 = vld [vmem:[%s4984 + $0x8] sm:$0xff]
        %v4987 = vld [vmem:[%s4984 + $0x10] sm:$0xff]
        %v4988 = vld [vmem:[%s4984 + $0x18] sm:$0xff]
        %v4989 = vpack.c.bf16 %v4977, %v4975
        %v4990 = vpack.c.bf16 %v4978, %v4976
        %4991 = vmatprep.subr.bf16.mxu0 %v4990
        %4992 = vmatpush1.bf16.msra.mxu0 %v4989
        %4993 = vmatprep.subr.bf16.mxu0 0
        %4994 = vmatpush1.bf16.msra.mxu0 0
        %4995 = vmatprep.subr.bf16.mxu0 0
        %4996 = vmatpush1.bf16.msra.mxu0 0
        %4997 = vmatprep.subr.bf16.mxu0 0
        %4998 = vmatpush1.bf16.msra.mxu0 0
        %4999 = vmatprep.subr.bf16.mxu0 0
        %5000 = vmatpush1.bf16.msra.mxu0 0
        %5001 = vmatprep.subr.bf16.mxu0 0
        %5002 = vmatpush1.bf16.msra.mxu0 0
        %5003 = vmatprep.subr.bf16.mxu0 0
        %5004 = vmatpush1.bf16.msra.mxu0 0
        %5005 = vmatprep.subr.bf16.mxu0 0
        %5006 = vmatpush1.bf16.msra.mxu0 0
        %5007 = vmatprep.subr.bf16.mxu0 0
        %5008 = vmatpush1.bf16.msra.mxu0 0
        %5009 = vmatprep.subr.bf16.mxu0 0
        %5010 = vmatpush1.bf16.msra.mxu0 0
        %5011 = vmatprep.subr.bf16.mxu0 0
        %5012 = vmatpush1.bf16.msra.mxu0 0
        %5013 = vmatprep.subr.bf16.mxu0 0
        %5014 = vmatpush1.bf16.msra.mxu0 0
        %5015 = vmatprep.subr.bf16.mxu0 0
        %5016 = vmatpush1.bf16.msra.mxu0 0
        %5017 = vmatprep.subr.bf16.mxu0 0
        %5018 = vmatpush1.bf16.msra.mxu0 0
        %5019 = vmatprep.subr.bf16.mxu0 0
        %5020 = vmatpush1.bf16.msra.mxu0 0
        %5021 = vmatprep.subr.bf16.mxu0 0
        %5022 = vmatpush1.bf16.msra.mxu0 0
        %5023 = vmatprep.mubr.bf16.mxu0 0
        %5024 = vmatmul.mubr.bf16.gmra.mrb[0].mxu0 %v1549
        %v5025 = vpop.f32.mrb[0].mxu0
        %v5026 = vadd.f32 0.0, %v5025
        %v5027 = vpop.f32.mrb[0].mxu0
        %v5028 = vadd.f32 0.0, %v5027
        %v5029 = vpop.f32.mrb[0].mxu0
        %v5030 = vadd.f32 0.0, %v5029
        %v5031 = vpop.f32.mrb[0].mxu0
        %v5032 = vadd.f32 0.0, %v5031
        %5033 = vmatprep.mubr.bf16.mxu0 0
        %5034 = vmatmul.mubr.bf16.gmra.mrb[0].mxu0 %v1552
        %v5035 = vpop.f32.mrb[0].mxu0
        %v5036 = vadd.f32 0.0, %v5035
        %v5037 = vpop.f32.mrb[0].mxu0
        %v5038 = vadd.f32 0.0, %v5037
        %v5039 = vpop.f32.mrb[0].mxu0
        %v5040 = vadd.f32 0.0, %v5039
        %v5041 = vpop.f32.mrb[0].mxu0
        %v5042 = vadd.f32 0.0, %v5041
        %5043 = vdwg.mxu0
        %5044 = vadd.xlane.f32.xlu0 %v5026
        %v5045 = vpop.xlane.xlu0 %5044
        %5046 = vadd.xlane.f32.xlu0 %v5030
        %v5047 = vpop.xlane.xlu0 %5046
        %5048 = vadd.xlane.f32.xlu0 %v5036
        %v5049 = vpop.xlane.xlu0 %5048
        %5050 = vadd.xlane.f32.xlu0 %v5040
        %v5051 = vpop.xlane.xlu0 %5050
        %v5052 = vmul.f32 %v5045, %v1224
        %v5053 = vmul.f32 %v5047, %v1224
        %v5054 = vmul.f32 %v5049, %v1224
        %v5055 = vmul.f32 %v5051, %v1224
        %v5056 = vsub.f32 %v5026, %v5052
        %v5057 = vsub.f32 %v5030, %v5053
        %v5058 = vsub.f32 %v5036, %v5054
        %v5059 = vsub.f32 %v5040, %v5055
        %v5060 = vmul.f32 %v5056, %v5056
        %v5061 = vmul.f32 %v5057, %v5057
        %v5062 = vmul.f32 %v5058, %v5058
        %v5063 = vmul.f32 %v5059, %v5059
        %5064 = vadd.xlane.f32.xlu0 %v5060
        %v5065 = vpop.xlane.xlu0 %5064
        %5066 = vadd.xlane.f32.xlu0 %v5061
        %v5067 = vpop.xlane.xlu0 %5066
        %5068 = vadd.xlane.f32.xlu0 %v5062
        %v5069 = vpop.xlane.xlu0 %5068
        %5070 = vadd.xlane.f32.xlu0 %v5063
        %v5071 = vpop.xlane.xlu0 %5070
        %v5072 = vmul.f32 %v5065, %v1224
        %v5073 = vmul.f32 %v5067, %v1224
        %v5074 = vmul.f32 %v5069, %v1224
        %v5075 = vmul.f32 %v5071, %v1224
        %v5076 = vadd.f32 %v5072, 1e-05
        %v5077 = vadd.f32 %v5073, 1e-05
        %v5078 = vadd.f32 %v5074, 1e-05
        %v5079 = vadd.f32 %v5075, 1e-05
        %v5080 = vrsqrt.pop %v5076
        %v5081 = vrsqrt.pop %v5077
        %v5082 = vrsqrt.pop %v5078
        %v5083 = vrsqrt.pop %v5079
        %v5084 = vmul.f32 %v5056, %v5080
        %v5085 = vmul.f32 %v5057, %v5081
        %v5086 = vmul.f32 %v5058, %v5082
        %v5087 = vmul.f32 %v5059, %v5083
        %5088 = vadd.xlane.f32.xlu0 %v5028
        %v5089 = vpop.xlane.xlu0 %5088
        %5090 = vadd.xlane.f32.xlu0 %v5032
        %v5091 = vpop.xlane.xlu0 %5090
        %5092 = vadd.xlane.f32.xlu0 %v5038
        %v5093 = vpop.xlane.xlu0 %5092
        %5094 = vadd.xlane.f32.xlu0 %v5042
        %v5095 = vpop.xlane.xlu0 %5094
        %v5096 = vmul.f32 %v5089, %v1224
        %v5097 = vmul.f32 %v5091, %v1224
        %v5098 = vmul.f32 %v5093, %v1224
        %v5099 = vmul.f32 %v5095, %v1224
        %v5100 = vsub.f32 %v5028, %v5096
        %v5101 = vsub.f32 %v5032, %v5097
        %v5102 = vsub.f32 %v5038, %v5098
        %v5103 = vsub.f32 %v5042, %v5099
        %v5104 = vmul.f32 %v5100, %v5100
        %v5105 = vmul.f32 %v5101, %v5101
        %v5106 = vmul.f32 %v5102, %v5102
        %v5107 = vmul.f32 %v5103, %v5103
        %5108 = vadd.xlane.f32.xlu0 %v5104
        %v5109 = vpop.xlane.xlu0 %5108
        %5110 = vadd.xlane.f32.xlu0 %v5105
        %v5111 = vpop.xlane.xlu0 %5110
        %5112 = vadd.xlane.f32.xlu0 %v5106
        %v5113 = vpop.xlane.xlu0 %5112
        %5114 = vadd.xlane.f32.xlu0 %v5107
        %v5115 = vpop.xlane.xlu0 %5114
        %v5116 = vmul.f32 %v5109, %v1224
        %v5117 = vmul.f32 %v5111, %v1224
        %v5118 = vmul.f32 %v5113, %v1224
        %v5119 = vmul.f32 %v5115, %v1224
        %v5120 = vadd.f32 %v5116, 1e-05
        %v5121 = vadd.f32 %v5117, 1e-05
        %v5122 = vadd.f32 %v5118, 1e-05
        %v5123 = vadd.f32 %v5119, 1e-05
        %v5124 = vrsqrt.pop %v5120
        %v5125 = vrsqrt.pop %v5121
        %v5126 = vrsqrt.pop %v5122
        %v5127 = vrsqrt.pop %v5123
        %v5128 = vmul.f32 %v5100, %v5124
        %v5129 = vmul.f32 %v5101, %v5125
        %v5130 = vmul.f32 %v5102, %v5126
        %v5131 = vmul.f32 %v5103, %v5127
        %5133 = vset.pattern.permute.xlu0 0
        %5134 = vperm.xlu0 %5133, %v4980
        %v5135 = vpop.permute.xlu0 %5134
        %5138 = vset.pattern.permute.xlu0 0
        %5139 = vperm.xlu0 %5138, %v4981
        %v5140 = vpop.permute.xlu0 %5139
        %5143 = vset.pattern.permute.xlu0 0
        %5144 = vperm.xlu0 %5143, %v4982
        %v5145 = vpop.permute.xlu0 %5144
        %5148 = vset.pattern.permute.xlu0 0
        %5149 = vperm.xlu0 %5148, %v4983
        %v5150 = vpop.permute.xlu0 %5149
        %v5152 = vmul.f32 %v5084, %v5135
        %v5153 = vmul.f32 %v5128, %v5135
        %v5154 = vmul.f32 %v5085, %v5140
        %v5155 = vmul.f32 %v5129, %v5140
        %v5156 = vmul.f32 %v5086, %v5145
        %v5157 = vmul.f32 %v5130, %v5145
        %v5158 = vmul.f32 %v5087, %v5150
        %v5159 = vmul.f32 %v5131, %v5150
        %5161 = vset.pattern.permute.xlu0 0
        %5162 = vperm.xlu0 %5161, %v4985
        %v5163 = vpop.permute.xlu0 %5162
        %5166 = vset.pattern.permute.xlu0 0
        %5167 = vperm.xlu0 %5166, %v4986
        %v5168 = vpop.permute.xlu0 %5167
        %5171 = vset.pattern.permute.xlu0 0
        %5172 = vperm.xlu0 %5171, %v4987
        %v5173 = vpop.permute.xlu0 %5172
        %5176 = vset.pattern.permute.xlu0 0
        %5177 = vperm.xlu0 %5176, %v4988
        %v5178 = vpop.permute.xlu0 %5177
        %v5180 = vadd.f32 %v5152, %v5163
        %v5181 = vadd.f32 %v5153, %v5163
        %v5182 = vadd.f32 %v5154, %v5168
        %v5183 = vadd.f32 %v5155, %v5168
        %v5184 = vadd.f32 %v5156, %v5173
        %v5185 = vadd.f32 %v5157, %v5173
        %v5186 = vadd.f32 %v5158, %v5178
        %v5187 = vadd.f32 %v5159, %v5178
        %v5188 = vxor.u32 %v5184, 2147483648
        %v5189 = vxor.u32 %v5185, 2147483648
        %v5190 = vxor.u32 %v5186, 2147483648
        %v5191 = vxor.u32 %v5187, 2147483648
        %v5192 = vmul.f32 %v5188, 1.442695
        %v5193 = vpow.pop %v5192
        %v5194 = vmul.f32 %v5189, 1.442695
        %v5195 = vpow.pop %v5194
        %v5196 = vmul.f32 %v5190, 1.442695
        %v5197 = vpow.pop %v5196
        %v5198 = vmul.f32 %v5191, 1.442695
        %v5199 = vpow.pop %v5198
        %v5200 = vadd.f32 %v5193, 1.0
        %v5201 = vadd.f32 %v5195, 1.0
        %v5202 = vadd.f32 %v5197, 1.0
        %v5203 = vadd.f32 %v5199, 1.0
        %v5204 = vrcp.pop %v5200
        %v5205 = vmul.f32 1.0, %v5204
        %v5206 = vrcp.pop %v5201
        %v5207 = vmul.f32 1.0, %v5206
        %v5208 = vrcp.pop %v5202
        %v5209 = vmul.f32 1.0, %v5208
        %v5210 = vrcp.pop %v5203
        %v5211 = vmul.f32 1.0, %v5210
        %v5212 = vmul.f32 %v5180, %v5205
        %v5213 = vmul.f32 %v5181, %v5207
        %v5214 = vmul.f32 %v5182, %v5209
        %v5215 = vmul.f32 %v5183, %v5211
        %v5216 = vadd.f32 %v4975, %v5212
        %v5217 = vadd.f32 %v4976, %v5213
        %v5218 = vadd.f32 %v4977, %v5214
        %v5219 = vadd.f32 %v4978, %v5215
        %v5220 = vmul.f32 %v5216, 0.70710677
        %v5221 = vmul.f32 %v5217, 0.70710677
        %v5222 = vmul.f32 %v5218, 0.70710677
        %v5223 = vmul.f32 %v5219, 0.70710677
        %s5224 = scalar_lea.vmem %s4, 128
        %v5225 = vld [vmem:[%s5224] sm:$0xff]
        %v5226 = vld [vmem:[%s5224 + $0x8] sm:$0xff]
        %v5227 = vld [vmem:[%s5224 + $0x10] sm:$0xff]
        %v5228 = vld [vmem:[%s5224 + $0x18] sm:$0xff]
        %v5229 = vpack.c.bf16 %v5226, %v5225
        %v5230 = vpack.c.bf16 %v5228, %v5227
        %s5231 = scalar_lea.vmem %s5, 320
        %v5232 = vld [vmem:[%s5231] sm:$0xff]
        %v5233 = vld [vmem:[%s5231 + $0x8] sm:$0xff]
        %v5234 = vld [vmem:[%s5231 + $0x10] sm:$0xff]
        %v5235 = vld [vmem:[%s5231 + $0x18] sm:$0xff]
        %s5236 = scalar_lea.vmem %s5, 832
        %v5237 = vld [vmem:[%s5236] sm:$0xff]
        %v5238 = vld [vmem:[%s5236 + $0x8] sm:$0xff]
        %v5239 = vld [vmem:[%s5236 + $0x10] sm:$0xff]
        %v5240 = vld [vmem:[%s5236 + $0x18] sm:$0xff]
        %v5241 = vpack.c.bf16 %v5222, %v5220
        %v5242 = vpack.c.bf16 %v5223, %v5221
        %v5244 = vsel %vm1304, %v5229, 0
        %v5247 = vsel %vm1304, %v5230, 0
        %5249 = vmatprep.subr.bf16.mxu0 %v5242
        %5250 = vmatpush1.bf16.msra.mxu0 %v5241
        %5251 = vmatprep.subr.bf16.mxu0 0
        %5252 = vmatpush1.bf16.msra.mxu0 0
        %5253 = vmatprep.subr.bf16.mxu0 0
        %5254 = vmatpush1.bf16.msra.mxu0 0
        %5255 = vmatprep.subr.bf16.mxu0 0
        %5256 = vmatpush1.bf16.msra.mxu0 0
        %5257 = vmatprep.subr.bf16.mxu0 0
        %5258 = vmatpush1.bf16.msra.mxu0 0
        %5259 = vmatprep.subr.bf16.mxu0 0
        %5260 = vmatpush1.bf16.msra.mxu0 0
        %5261 = vmatprep.subr.bf16.mxu0 0
        %5262 = vmatpush1.bf16.msra.mxu0 0
        %5263 = vmatprep.subr.bf16.mxu0 0
        %5264 = vmatpush1.bf16.msra.mxu0 0
        %5265 = vmatprep.subr.bf16.mxu0 0
        %5266 = vmatpush1.bf16.msra.mxu0 0
        %5267 = vmatprep.subr.bf16.mxu0 0
        %5268 = vmatpush1.bf16.msra.mxu0 0
        %5269 = vmatprep.subr.bf16.mxu0 0
        %5270 = vmatpush1.bf16.msra.mxu0 0
        %5271 = vmatprep.subr.bf16.mxu0 0
        %5272 = vmatpush1.bf16.msra.mxu0 0
        %5273 = vmatprep.subr.bf16.mxu0 0
        %5274 = vmatpush1.bf16.msra.mxu0 0
        %5275 = vmatprep.subr.bf16.mxu0 0
        %5276 = vmatpush1.bf16.msra.mxu0 0
        %5277 = vmatprep.subr.bf16.mxu0 0
        %5278 = vmatpush1.bf16.msra.mxu0 0
        %5279 = vmatprep.subr.bf16.mxu0 0
        %5280 = vmatpush1.bf16.msra.mxu0 0
        %5281 = vmatprep.mubr.bf16.mxu0 0
        %5282 = vmatmul.mubr.bf16.gmra.mrb[0].mxu0 %v5244
        %v5283 = vpop.f32.mrb[0].mxu0
        %v5284 = vadd.f32 0.0, %v5283
        %v5285 = vpop.f32.mrb[0].mxu0
        %v5286 = vadd.f32 0.0, %v5285
        %v5287 = vpop.f32.mrb[0].mxu0
        %v5288 = vadd.f32 0.0, %v5287
        %v5289 = vpop.f32.mrb[0].mxu0
        %v5290 = vadd.f32 0.0, %v5289
        %5291 = vmatprep.mubr.bf16.mxu0 0
        %5292 = vmatmul.mubr.bf16.gmra.mrb[0].mxu0 %v5247
        %v5293 = vpop.f32.mrb[0].mxu0
        %v5294 = vadd.f32 0.0, %v5293
        %v5295 = vpop.f32.mrb[0].mxu0
        %v5296 = vadd.f32 0.0, %v5295
        %v5297 = vpop.f32.mrb[0].mxu0
        %v5298 = vadd.f32 0.0, %v5297
        %v5299 = vpop.f32.mrb[0].mxu0
        %v5300 = vadd.f32 0.0, %v5299
        %5301 = vdwg.mxu0
        %5302 = vadd.xlane.f32.xlu0 %v5284
        %v5303 = vpop.xlane.xlu0 %5302
        %5304 = vadd.xlane.f32.xlu0 %v5288
        %v5305 = vpop.xlane.xlu0 %5304
        %5306 = vadd.xlane.f32.xlu0 %v5294
        %v5307 = vpop.xlane.xlu0 %5306
        %5308 = vadd.xlane.f32.xlu0 %v5298
        %v5309 = vpop.xlane.xlu0 %5308
        %v5310 = vmul.f32 %v5303, %v1224
        %v5311 = vmul.f32 %v5305, %v1224
        %v5312 = vmul.f32 %v5307, %v1224
        %v5313 = vmul.f32 %v5309, %v1224
        %v5314 = vsub.f32 %v5284, %v5310
        %v5315 = vsub.f32 %v5288, %v5311
        %v5316 = vsub.f32 %v5294, %v5312
        %v5317 = vsub.f32 %v5298, %v5313
        %v5318 = vmul.f32 %v5314, %v5314
        %v5319 = vmul.f32 %v5315, %v5315
        %v5320 = vmul.f32 %v5316, %v5316
        %v5321 = vmul.f32 %v5317, %v5317
        %5322 = vadd.xlane.f32.xlu0 %v5318
        %v5323 = vpop.xlane.xlu0 %5322
        %5324 = vadd.xlane.f32.xlu0 %v5319
        %v5325 = vpop.xlane.xlu0 %5324
        %5326 = vadd.xlane.f32.xlu0 %v5320
        %v5327 = vpop.xlane.xlu0 %5326
        %5328 = vadd.xlane.f32.xlu0 %v5321
        %v5329 = vpop.xlane.xlu0 %5328
        %v5330 = vmul.f32 %v5323, %v1224
        %v5331 = vmul.f32 %v5325, %v1224
        %v5332 = vmul.f32 %v5327, %v1224
        %v5333 = vmul.f32 %v5329, %v1224
        %v5334 = vadd.f32 %v5330, 1e-05
        %v5335 = vadd.f32 %v5331, 1e-05
        %v5336 = vadd.f32 %v5332, 1e-05
        %v5337 = vadd.f32 %v5333, 1e-05
        %v5338 = vrsqrt.pop %v5334
        %v5339 = vrsqrt.pop %v5335
        %v5340 = vrsqrt.pop %v5336
        %v5341 = vrsqrt.pop %v5337
        %v5342 = vmul.f32 %v5314, %v5338
        %v5343 = vmul.f32 %v5315, %v5339
        %v5344 = vmul.f32 %v5316, %v5340
        %v5345 = vmul.f32 %v5317, %v5341
        %5346 = vadd.xlane.f32.xlu0 %v5286
        %v5347 = vpop.xlane.xlu0 %5346
        %5348 = vadd.xlane.f32.xlu0 %v5290
        %v5349 = vpop.xlane.xlu0 %5348
        %5350 = vadd.xlane.f32.xlu0 %v5296
        %v5351 = vpop.xlane.xlu0 %5350
        %5352 = vadd.xlane.f32.xlu0 %v5300
        %v5353 = vpop.xlane.xlu0 %5352
        %v5354 = vmul.f32 %v5347, %v1224
        %v5355 = vmul.f32 %v5349, %v1224
        %v5356 = vmul.f32 %v5351, %v1224
        %v5357 = vmul.f32 %v5353, %v1224
        %v5358 = vsub.f32 %v5286, %v5354
        %v5359 = vsub.f32 %v5290, %v5355
        %v5360 = vsub.f32 %v5296, %v5356
        %v5361 = vsub.f32 %v5300, %v5357
        %v5362 = vmul.f32 %v5358, %v5358
        %v5363 = vmul.f32 %v5359, %v5359
        %v5364 = vmul.f32 %v5360, %v5360
        %v5365 = vmul.f32 %v5361, %v5361
        %5366 = vadd.xlane.f32.xlu0 %v5362
        %v5367 = vpop.xlane.xlu0 %5366
        %5368 = vadd.xlane.f32.xlu0 %v5363
        %v5369 = vpop.xlane.xlu0 %5368
        %5370 = vadd.xlane.f32.xlu0 %v5364
        %v5371 = vpop.xlane.xlu0 %5370
        %5372 = vadd.xlane.f32.xlu0 %v5365
        %v5373 = vpop.xlane.xlu0 %5372
        %v5374 = vmul.f32 %v5367, %v1224
        %v5375 = vmul.f32 %v5369, %v1224
        %v5376 = vmul.f32 %v5371, %v1224
        %v5377 = vmul.f32 %v5373, %v1224
        %v5378 = vadd.f32 %v5374, 1e-05
        %v5379 = vadd.f32 %v5375, 1e-05
        %v5380 = vadd.f32 %v5376, 1e-05
        %v5381 = vadd.f32 %v5377, 1e-05
        %v5382 = vrsqrt.pop %v5378
        %v5383 = vrsqrt.pop %v5379
        %v5384 = vrsqrt.pop %v5380
        %v5385 = vrsqrt.pop %v5381
        %v5386 = vmul.f32 %v5358, %v5382
        %v5387 = vmul.f32 %v5359, %v5383
        %v5388 = vmul.f32 %v5360, %v5384
        %v5389 = vmul.f32 %v5361, %v5385
        %5391 = vset.pattern.permute.xlu0 0
        %5392 = vperm.xlu0 %5391, %v5232
        %v5393 = vpop.permute.xlu0 %5392
        %5396 = vset.pattern.permute.xlu0 0
        %5397 = vperm.xlu0 %5396, %v5233
        %v5398 = vpop.permute.xlu0 %5397
        %5401 = vset.pattern.permute.xlu0 0
        %5402 = vperm.xlu0 %5401, %v5234
        %v5403 = vpop.permute.xlu0 %5402
        %5406 = vset.pattern.permute.xlu0 0
        %5407 = vperm.xlu0 %5406, %v5235
        %v5408 = vpop.permute.xlu0 %5407
        %v5410 = vmul.f32 %v5342, %v5393
        %v5411 = vmul.f32 %v5386, %v5393
        %v5412 = vmul.f32 %v5343, %v5398
        %v5413 = vmul.f32 %v5387, %v5398
        %v5414 = vmul.f32 %v5344, %v5403
        %v5415 = vmul.f32 %v5388, %v5403
        %v5416 = vmul.f32 %v5345, %v5408
        %v5417 = vmul.f32 %v5389, %v5408
        %5419 = vset.pattern.permute.xlu0 0
        %5420 = vperm.xlu0 %5419, %v5237
        %v5421 = vpop.permute.xlu0 %5420
        %5424 = vset.pattern.permute.xlu0 0
        %5425 = vperm.xlu0 %5424, %v5238
        %v5426 = vpop.permute.xlu0 %5425
        %5429 = vset.pattern.permute.xlu0 0
        %5430 = vperm.xlu0 %5429, %v5239
        %v5431 = vpop.permute.xlu0 %5430
        %5434 = vset.pattern.permute.xlu0 0
        %5435 = vperm.xlu0 %5434, %v5240
        %v5436 = vpop.permute.xlu0 %5435
        %v5438 = vadd.f32 %v5410, %v5421
        %v5439 = vadd.f32 %v5411, %v5421
        %v5440 = vadd.f32 %v5412, %v5426
        %v5441 = vadd.f32 %v5413, %v5426
        %v5442 = vadd.f32 %v5414, %v5431
        %v5443 = vadd.f32 %v5415, %v5431
        %v5444 = vadd.f32 %v5416, %v5436
        %v5445 = vadd.f32 %v5417, %v5436
        %v5446 = vxor.u32 %v5442, 2147483648
        %v5447 = vxor.u32 %v5443, 2147483648
        %v5448 = vxor.u32 %v5444, 2147483648
        %v5449 = vxor.u32 %v5445, 2147483648
        %v5450 = vmul.f32 %v5446, 1.442695
        %v5451 = vpow.pop %v5450
        %v5452 = vmul.f32 %v5447, 1.442695
        %v5453 = vpow.pop %v5452
        %v5454 = vmul.f32 %v5448, 1.442695
        %v5455 = vpow.pop %v5454
        %v5456 = vmul.f32 %v5449, 1.442695
        %v5457 = vpow.pop %v5456
        %v5458 = vadd.f32 %v5451, 1.0
        %v5459 = vadd.f32 %v5453, 1.0
        %v5460 = vadd.f32 %v5455, 1.0
        %v5461 = vadd.f32 %v5457, 1.0
        %v5462 = vrcp.pop %v5458
        %v5463 = vmul.f32 1.0, %v5462
        %v5464 = vrcp.pop %v5459
        %v5465 = vmul.f32 1.0, %v5464
        %v5466 = vrcp.pop %v5460
        %v5467 = vmul.f32 1.0, %v5466
        %v5468 = vrcp.pop %v5461
        %v5469 = vmul.f32 1.0, %v5468
        %v5470 = vmul.f32 %v5438, %v5463
        %v5471 = vmul.f32 %v5439, %v5465
        %v5472 = vmul.f32 %v5440, %v5467
        %v5473 = vmul.f32 %v5441, %v5469
        %v5474 = vadd.f32 %v5220, %v5470
        %v5475 = vadd.f32 %v5221, %v5471
        %v5476 = vadd.f32 %v5222, %v5472
        %v5477 = vadd.f32 %v5223, %v5473
        %v5478 = vmul.f32 %v5474, 0.70710677
        %v5479 = vmul.f32 %v5475, 0.70710677
        %v5480 = vmul.f32 %v5476, 0.70710677
        %v5481 = vmul.f32 %v5477, 0.70710677
        %s5482 = scalar_lea.vmem %s4, 160
        %v5483 = vld [vmem:[%s5482] sm:$0xff]
        %v5484 = vld [vmem:[%s5482 + $0x8] sm:$0xff]
        %v5485 = vld [vmem:[%s5482 + $0x10] sm:$0xff]
        %v5486 = vld [vmem:[%s5482 + $0x18] sm:$0xff]
        %v5487 = vpack.c.bf16 %v5484, %v5483
        %v5488 = vpack.c.bf16 %v5486, %v5485
        %s5489 = scalar_lea.vmem %s5, 352
        %v5490 = vld [vmem:[%s5489] sm:$0xff]
        %v5491 = vld [vmem:[%s5489 + $0x8] sm:$0xff]
        %v5492 = vld [vmem:[%s5489 + $0x10] sm:$0xff]
        %v5493 = vld [vmem:[%s5489 + $0x18] sm:$0xff]
        %s5494 = scalar_lea.vmem %s5, 864
        %v5495 = vld [vmem:[%s5494] sm:$0xff]
        %v5496 = vld [vmem:[%s5494 + $0x8] sm:$0xff]
        %v5497 = vld [vmem:[%s5494 + $0x10] sm:$0xff]
        %v5498 = vld [vmem:[%s5494 + $0x18] sm:$0xff]
        %v5499 = vpack.c.bf16 %v5480, %v5478
        %v5500 = vpack.c.bf16 %v5481, %v5479
        %v5502 = vsel %vm1304, %v5487, 0
        %v5505 = vsel %vm1304, %v5488, 0
        %5507 = vmatprep.subr.bf16.mxu0 %v5500
        %5508 = vmatpush1.bf16.msra.mxu0 %v5499
        %5509 = vmatprep.subr.bf16.mxu0 0
        %5510 = vmatpush1.bf16.msra.mxu0 0
        %5511 = vmatprep.subr.bf16.mxu0 0
        %5512 = vmatpush1.bf16.msra.mxu0 0
        %5513 = vmatprep.subr.bf16.mxu0 0
        %5514 = vmatpush1.bf16.msra.mxu0 0
        %5515 = vmatprep.subr.bf16.mxu0 0
        %5516 = vmatpush1.bf16.msra.mxu0 0
        %5517 = vmatprep.subr.bf16.mxu0 0
        %5518 = vmatpush1.bf16.msra.mxu0 0
        %5519 = vmatprep.subr.bf16.mxu0 0
        %5520 = vmatpush1.bf16.msra.mxu0 0
        %5521 = vmatprep.subr.bf16.mxu0 0
        %5522 = vmatpush1.bf16.msra.mxu0 0
        %5523 = vmatprep.subr.bf16.mxu0 0
        %5524 = vmatpush1.bf16.msra.mxu0 0
        %5525 = vmatprep.subr.bf16.mxu0 0
        %5526 = vmatpush1.bf16.msra.mxu0 0
        %5527 = vmatprep.subr.bf16.mxu0 0
        %5528 = vmatpush1.bf16.msra.mxu0 0
        %5529 = vmatprep.subr.bf16.mxu0 0
        %5530 = vmatpush1.bf16.msra.mxu0 0
        %5531 = vmatprep.subr.bf16.mxu0 0
        %5532 = vmatpush1.bf16.msra.mxu0 0
        %5533 = vmatprep.subr.bf16.mxu0 0
        %5534 = vmatpush1.bf16.msra.mxu0 0
        %5535 = vmatprep.subr.bf16.mxu0 0
        %5536 = vmatpush1.bf16.msra.mxu0 0
        %5537 = vmatprep.subr.bf16.mxu0 0
        %5538 = vmatpush1.bf16.msra.mxu0 0
        %5539 = vmatprep.mubr.bf16.mxu0 0
        %5540 = vmatmul.mubr.bf16.gmra.mrb[0].mxu0 %v5502
        %v5541 = vpop.f32.mrb[0].mxu0
        %v5542 = vadd.f32 0.0, %v5541
        %v5543 = vpop.f32.mrb[0].mxu0
        %v5544 = vadd.f32 0.0, %v5543
        %v5545 = vpop.f32.mrb[0].mxu0
        %v5546 = vadd.f32 0.0, %v5545
        %v5547 = vpop.f32.mrb[0].mxu0
        %v5548 = vadd.f32 0.0, %v5547
        %5549 = vmatprep.mubr.bf16.mxu0 0
        %5550 = vmatmul.mubr.bf16.gmra.mrb[0].mxu0 %v5505
        %v5551 = vpop.f32.mrb[0].mxu0
        %v5552 = vadd.f32 0.0, %v5551
        %v5553 = vpop.f32.mrb[0].mxu0
        %v5554 = vadd.f32 0.0, %v5553
        %v5555 = vpop.f32.mrb[0].mxu0
        %v5556 = vadd.f32 0.0, %v5555
        %v5557 = vpop.f32.mrb[0].mxu0
        %v5558 = vadd.f32 0.0, %v5557
        %5559 = vdwg.mxu0
        %5560 = vadd.xlane.f32.xlu0 %v5542
        %v5561 = vpop.xlane.xlu0 %5560
        %5562 = vadd.xlane.f32.xlu0 %v5546
        %v5563 = vpop.xlane.xlu0 %5562
        %5564 = vadd.xlane.f32.xlu0 %v5552
        %v5565 = vpop.xlane.xlu0 %5564
        %5566 = vadd.xlane.f32.xlu0 %v5556
        %v5567 = vpop.xlane.xlu0 %5566
        %v5568 = vmul.f32 %v5561, %v1224
        %v5569 = vmul.f32 %v5563, %v1224
        %v5570 = vmul.f32 %v5565, %v1224
        %v5571 = vmul.f32 %v5567, %v1224
        %v5572 = vsub.f32 %v5542, %v5568
        %v5573 = vsub.f32 %v5546, %v5569
        %v5574 = vsub.f32 %v5552, %v5570
        %v5575 = vsub.f32 %v5556, %v5571
        %v5576 = vmul.f32 %v5572, %v5572
        %v5577 = vmul.f32 %v5573, %v5573
        %v5578 = vmul.f32 %v5574, %v5574
        %v5579 = vmul.f32 %v5575, %v5575
        %5580 = vadd.xlane.f32.xlu0 %v5576
        %v5581 = vpop.xlane.xlu0 %5580
        %5582 = vadd.xlane.f32.xlu0 %v5577
        %v5583 = vpop.xlane.xlu0 %5582
        %5584 = vadd.xlane.f32.xlu0 %v5578
        %v5585 = vpop.xlane.xlu0 %5584
        %5586 = vadd.xlane.f32.xlu0 %v5579
        %v5587 = vpop.xlane.xlu0 %5586
        %v5588 = vmul.f32 %v5581, %v1224
        %v5589 = vmul.f32 %v5583, %v1224
        %v5590 = vmul.f32 %v5585, %v1224
        %v5591 = vmul.f32 %v5587, %v1224
        %v5592 = vadd.f32 %v5588, 1e-05
        %v5593 = vadd.f32 %v5589, 1e-05
        %v5594 = vadd.f32 %v5590, 1e-05
        %v5595 = vadd.f32 %v5591, 1e-05
        %v5596 = vrsqrt.pop %v5592
        %v5597 = vrsqrt.pop %v5593
        %v5598 = vrsqrt.pop %v5594
        %v5599 = vrsqrt.pop %v5595
        %v5600 = vmul.f32 %v5572, %v5596
        %v5601 = vmul.f32 %v5573, %v5597
        %v5602 = vmul.f32 %v5574, %v5598
        %v5603 = vmul.f32 %v5575, %v5599
        %5604 = vadd.xlane.f32.xlu0 %v5544
        %v5605 = vpop.xlane.xlu0 %5604
        %5606 = vadd.xlane.f32.xlu0 %v5548
        %v5607 = vpop.xlane.xlu0 %5606
        %5608 = vadd.xlane.f32.xlu0 %v5554
        %v5609 = vpop.xlane.xlu0 %5608
        %5610 = vadd.xlane.f32.xlu0 %v5558
        %v5611 = vpop.xlane.xlu0 %5610
        %v5612 = vmul.f32 %v5605, %v1224
        %v5613 = vmul.f32 %v5607, %v1224
        %v5614 = vmul.f32 %v5609, %v1224
        %v5615 = vmul.f32 %v5611, %v1224
        %v5616 = vsub.f32 %v5544, %v5612
        %v5617 = vsub.f32 %v5548, %v5613
        %v5618 = vsub.f32 %v5554, %v5614
        %v5619 = vsub.f32 %v5558, %v5615
        %v5620 = vmul.f32 %v5616, %v5616
        %v5621 = vmul.f32 %v5617, %v5617
        %v5622 = vmul.f32 %v5618, %v5618
        %v5623 = vmul.f32 %v5619, %v5619
        %5624 = vadd.xlane.f32.xlu0 %v5620
        %v5625 = vpop.xlane.xlu0 %5624
        %5626 = vadd.xlane.f32.xlu0 %v5621
        %v5627 = vpop.xlane.xlu0 %5626
        %5628 = vadd.xlane.f32.xlu0 %v5622
        %v5629 = vpop.xlane.xlu0 %5628
        %5630 = vadd.xlane.f32.xlu0 %v5623
        %v5631 = vpop.xlane.xlu0 %5630
        %v5632 = vmul.f32 %v5625, %v1224
        %v5633 = vmul.f32 %v5627, %v1224
        %v5634 = vmul.f32 %v5629, %v1224
        %v5635 = vmul.f32 %v5631, %v1224
        %v5636 = vadd.f32 %v5632, 1e-05
        %v5637 = vadd.f32 %v5633, 1e-05
        %v5638 = vadd.f32 %v5634, 1e-05
        %v5639 = vadd.f32 %v5635, 1e-05
        %v5640 = vrsqrt.pop %v5636
        %v5641 = vrsqrt.pop %v5637
        %v5642 = vrsqrt.pop %v5638
        %v5643 = vrsqrt.pop %v5639
        %v5644 = vmul.f32 %v5616, %v5640
        %v5645 = vmul.f32 %v5617, %v5641
        %v5646 = vmul.f32 %v5618, %v5642
        %v5647 = vmul.f32 %v5619, %v5643
        %5649 = vset.pattern.permute.xlu0 0
        %5650 = vperm.xlu0 %5649, %v5490
        %v5651 = vpop.permute.xlu0 %5650
        %5654 = vset.pattern.permute.xlu0 0
        %5655 = vperm.xlu0 %5654, %v5491
        %v5656 = vpop.permute.xlu0 %5655
        %5659 = vset.pattern.permute.xlu0 0
        %5660 = vperm.xlu0 %5659, %v5492
        %v5661 = vpop.permute.xlu0 %5660
        %5664 = vset.pattern.permute.xlu0 0
        %5665 = vperm.xlu0 %5664, %v5493
        %v5666 = vpop.permute.xlu0 %5665
        %v5668 = vmul.f32 %v5600, %v5651
        %v5669 = vmul.f32 %v5644, %v5651
        %v5670 = vmul.f32 %v5601, %v5656
        %v5671 = vmul.f32 %v5645, %v5656
        %v5672 = vmul.f32 %v5602, %v5661
        %v5673 = vmul.f32 %v5646, %v5661
        %v5674 = vmul.f32 %v5603, %v5666
        %v5675 = vmul.f32 %v5647, %v5666
        %5677 = vset.pattern.permute.xlu0 0
        %5678 = vperm.xlu0 %5677, %v5495
        %v5679 = vpop.permute.xlu0 %5678
        %5682 = vset.pattern.permute.xlu0 0
        %5683 = vperm.xlu0 %5682, %v5496
        %v5684 = vpop.permute.xlu0 %5683
        %5687 = vset.pattern.permute.xlu0 0
        %5688 = vperm.xlu0 %5687, %v5497
        %v5689 = vpop.permute.xlu0 %5688
        %5692 = vset.pattern.permute.xlu0 0
        %5693 = vperm.xlu0 %5692, %v5498
        %v5694 = vpop.permute.xlu0 %5693
        %v5696 = vadd.f32 %v5668, %v5679
        %v5697 = vadd.f32 %v5669, %v5679
        %v5698 = vadd.f32 %v5670, %v5684
        %v5699 = vadd.f32 %v5671, %v5684
        %v5700 = vadd.f32 %v5672, %v5689
        %v5701 = vadd.f32 %v5673, %v5689
        %v5702 = vadd.f32 %v5674, %v5694
        %v5703 = vadd.f32 %v5675, %v5694
        %v5704 = vxor.u32 %v5700, 2147483648
        %v5705 = vxor.u32 %v5701, 2147483648
        %v5706 = vxor.u32 %v5702, 2147483648
        %v5707 = vxor.u32 %v5703, 2147483648
        %v5708 = vmul.f32 %v5704, 1.442695
        %v5709 = vpow.pop %v5708
        %v5710 = vmul.f32 %v5705, 1.442695
        %v5711 = vpow.pop %v5710
        %v5712 = vmul.f32 %v5706, 1.442695
        %v5713 = vpow.pop %v5712
        %v5714 = vmul.f32 %v5707, 1.442695
        %v5715 = vpow.pop %v5714
        %v5716 = vadd.f32 %v5709, 1.0
        %v5717 = vadd.f32 %v5711, 1.0
        %v5718 = vadd.f32 %v5713, 1.0
        %v5719 = vadd.f32 %v5715, 1.0
        %v5720 = vrcp.pop %v5716
        %v5721 = vmul.f32 1.0, %v5720
        %v5722 = vrcp.pop %v5717
        %v5723 = vmul.f32 1.0, %v5722
        %v5724 = vrcp.pop %v5718
        %v5725 = vmul.f32 1.0, %v5724
        %v5726 = vrcp.pop %v5719
        %v5727 = vmul.f32 1.0, %v5726
        %v5728 = vmul.f32 %v5696, %v5721
        %v5729 = vmul.f32 %v5697, %v5723
        %v5730 = vmul.f32 %v5698, %v5725
        %v5731 = vmul.f32 %v5699, %v5727
        %v5732 = vadd.f32 %v5478, %v5728
        %v5733 = vadd.f32 %v5479, %v5729
        %v5734 = vadd.f32 %v5480, %v5730
        %v5735 = vadd.f32 %v5481, %v5731
        %v5736 = vmul.f32 %v5732, 0.70710677
        %v5737 = vmul.f32 %v5733, 0.70710677
        %v5738 = vmul.f32 %v5734, 0.70710677
        %v5739 = vmul.f32 %v5735, 0.70710677
        %v5740 = vmax.f32 %v5736, 0.0
        %v5741 = vmax.f32 %v5737, 0.0
        %v5742 = vadd.f32 %v3968, %v5740
        %v5743 = vadd.f32 %v3969, %v5741
        %s5744 = scalar_lea.vmem %s6, 32
        %v5745 = vld [vmem:[%s5744] sm:$0xff]
        %v5746 = vld [vmem:[%s5744 + $0x8] sm:$0xff]
        %v5747 = vpack.c.bf16 %v5746, %v5745
        %v5748 = vpack.c.bf16 %v5738, %v5738
        %v5749 = vpack.c.bf16 %v5739, %v5739
        %v5751 = vsel %vm2209, %v5747, 0
        %v5754 = vsel %vm2213, %v5748, 0
        %v5757 = vsel %vm2213, %v5749, 0
        %5759 = vmatprep.subr.bf16.mxu0 %v5757
        %5760 = vmatpush1.bf16.msra.mxu0 %v5754
        %5761 = vmatprep.subr.bf16.mxu0 0
        %5762 = vmatpush1.bf16.msra.mxu0 0
        %5763 = vmatprep.subr.bf16.mxu0 0
        %5764 = vmatpush1.bf16.msra.mxu0 0
        %5765 = vmatprep.subr.bf16.mxu0 0
        %5766 = vmatpush1.bf16.msra.mxu0 0
        %5767 = vmatprep.subr.bf16.mxu0 0
        %5768 = vmatpush1.bf16.msra.mxu0 0
        %5769 = vmatprep.subr.bf16.mxu0 0
        %5770 = vmatpush1.bf16.msra.mxu0 0
        %5771 = vmatprep.subr.bf16.mxu0 0
        %5772 = vmatpush1.bf16.msra.mxu0 0
        %5773 = vmatprep.subr.bf16.mxu0 0
        %5774 = vmatpush1.bf16.msra.mxu0 0
        %5775 = vmatprep.subr.bf16.mxu0 0
        %5776 = vmatpush1.bf16.msra.mxu0 0
        %5777 = vmatprep.subr.bf16.mxu0 0
        %5778 = vmatpush1.bf16.msra.mxu0 0
        %5779 = vmatprep.subr.bf16.mxu0 0
        %5780 = vmatpush1.bf16.msra.mxu0 0
        %5781 = vmatprep.subr.bf16.mxu0 0
        %5782 = vmatpush1.bf16.msra.mxu0 0
        %5783 = vmatprep.subr.bf16.mxu0 0
        %5784 = vmatpush1.bf16.msra.mxu0 0
        %5785 = vmatprep.subr.bf16.mxu0 0
        %5786 = vmatpush1.bf16.msra.mxu0 0
        %5787 = vmatprep.subr.bf16.mxu0 0
        %5788 = vmatpush1.bf16.msra.mxu0 0
        %5789 = vmatprep.subr.bf16.mxu0 0
        %5790 = vmatpush1.bf16.msra.mxu0 0
        %5791 = vmatprep.mubr.bf16.mxu0 0
        %5792 = vmatmul.mubr.bf16.gmra.mrb[0].mxu0 %v5751
        %v5793 = vpop.f32.mrb[0].mxu0
        %v5794 = vadd.f32 0.0, %v5793
        %v5795 = vpop.f32.mrb[0].mxu0
        %v5796 = vadd.f32 0.0, %v5795
        %v5797 = vpop.f32.mrb[0].mxu0
        %v5798 = vadd.f32 0.0, %v5797
        %v5799 = vpop.f32.mrb[0].mxu0
        %v5800 = vadd.f32 0.0, %v5799
        %5801 = vdwg.mxu0
        %s5802 = scalar_lea.vmem %s7, 32
        %v5803 = vld [vmem:[%s5802] sm:$0xff]
        %v5804 = vld [vmem:[%s5802 + $0x8] sm:$0xff]
        %s5805 = scalar_lea.vmem %s7, 80
        %v5806 = vld [vmem:[%s5805] sm:$0xff]
        %v5807 = vld [vmem:[%s5805 + $0x8] sm:$0xff]
        %5808 = vadd.xlane.f32.xlu0 %v5794
        %v5809 = vpop.xlane.xlu0 %5808
        %5810 = vadd.xlane.f32.xlu0 %v5798
        %v5811 = vpop.xlane.xlu0 %5810
        %v5812 = vmul.f32 %v5809, %v1224
        %v5813 = vmul.f32 %v5811, %v1224
        %v5814 = vsub.f32 %v5794, %v5812
        %v5815 = vsub.f32 %v5798, %v5813
        %v5816 = vmul.f32 %v5814, %v5814
        %v5817 = vmul.f32 %v5815, %v5815
        %5818 = vadd.xlane.f32.xlu0 %v5816
        %v5819 = vpop.xlane.xlu0 %5818
        %5820 = vadd.xlane.f32.xlu0 %v5817
        %v5821 = vpop.xlane.xlu0 %5820
        %v5822 = vmul.f32 %v5819, %v1224
        %v5823 = vmul.f32 %v5821, %v1224
        %v5824 = vadd.f32 %v5822, 1e-05
        %v5825 = vadd.f32 %v5823, 1e-05
        %v5826 = vrsqrt.pop %v5824
        %v5827 = vrsqrt.pop %v5825
        %v5828 = vmul.f32 %v5814, %v5826
        %v5829 = vmul.f32 %v5815, %v5827
        %5830 = vadd.xlane.f32.xlu0 %v5796
        %v5831 = vpop.xlane.xlu0 %5830
        %5832 = vadd.xlane.f32.xlu0 %v5800
        %v5833 = vpop.xlane.xlu0 %5832
        %v5834 = vmul.f32 %v5831, %v1224
        %v5835 = vmul.f32 %v5833, %v1224
        %v5836 = vsub.f32 %v5796, %v5834
        %v5837 = vsub.f32 %v5800, %v5835
        %v5838 = vmul.f32 %v5836, %v5836
        %v5839 = vmul.f32 %v5837, %v5837
        %5840 = vadd.xlane.f32.xlu0 %v5838
        %v5841 = vpop.xlane.xlu0 %5840
        %5842 = vadd.xlane.f32.xlu0 %v5839
        %v5843 = vpop.xlane.xlu0 %5842
        %v5844 = vmul.f32 %v5841, %v1224
        %v5845 = vmul.f32 %v5843, %v1224
        %v5846 = vadd.f32 %v5844, 1e-05
        %v5847 = vadd.f32 %v5845, 1e-05
        %v5848 = vrsqrt.pop %v5846
        %v5849 = vrsqrt.pop %v5847
        %v5850 = vmul.f32 %v5836, %v5848
        %v5851 = vmul.f32 %v5837, %v5849
        %5853 = vset.pattern.permute.xlu0 0
        %5854 = vperm.xlu0 %5853, %v5803
        %v5855 = vpop.permute.xlu0 %5854
        %5858 = vset.pattern.permute.xlu0 0
        %5859 = vperm.xlu0 %5858, %v5804
        %v5860 = vpop.permute.xlu0 %5859
        %v5862 = vmul.f32 %v5828, %v5855
        %v5863 = vmul.f32 %v5850, %v5855
        %v5864 = vmul.f32 %v5829, %v5860
        %v5865 = vmul.f32 %v5851, %v5860
        %5867 = vset.pattern.permute.xlu0 0
        %5868 = vperm.xlu0 %5867, %v5806
        %v5869 = vpop.permute.xlu0 %5868
        %5872 = vset.pattern.permute.xlu0 0
        %5873 = vperm.xlu0 %5872, %v5807
        %v5874 = vpop.permute.xlu0 %5873
        %v5876 = vadd.f32 %v5862, %v5869
        %v5877 = vadd.f32 %v5863, %v5869
        %v5878 = vadd.f32 %v5864, %v5874
        %v5879 = vadd.f32 %v5865, %v5874
        %v5880 = vmul.f32 %v5876, %v4734
        %v5881 = vmul.f32 %v5877, %v4735
        %v5882 = vmul.f32 %v5878, %v4736
        %v5883 = vmul.f32 %v5879, %v4737
        %v5884 = vlaneseq
        %v5885 = vshrl.u32 %v5884, 7
        %v5886 = vsub.s32 0, %v5885
        %v5887 = vrot.slane %v5880, %v5886
        %v5888 = vlaneseq
        %v5889 = vshrl.u32 %v5888, 7
        %v5890 = vsub.s32 0, %v5889
        %v5891 = vrot.slane %v5881, %v5890
        %vm5892 = vcmp.ge.f32.partialorder %v5887, %v5880
        %vm5893 = vcmp.ge.f32.partialorder %v5891, %v5881
        %vm5894 = vcmp.ge.f32.partialorder %v5887, %v5882
        %vm5895 = vcmp.ge.f32.partialorder %v5891, %v5883
        %v5896 = vsel %vm5892, 1, 0
        %v5897 = vsel %vm5893, 1, 0
        %v5898 = vsel %vm5894, 1, 0
        %v5899 = vsel %vm5895, 1, 0
        %v5900 = vcvt.s32.f32 %v5896
        %v5901 = vcvt.s32.f32 %v5897
        %v5902 = vcvt.s32.f32 %v5898
        %v5903 = vcvt.s32.f32 %v5899
        %v5904 = vadd.f32 %v5900, 0.0
        %v5905 = vadd.f32 %v5901, 0.0
        %v5906 = vadd.f32 %v5902, 0.0
        %v5907 = vadd.f32 %v5903, 0.0
        %v5908 = vmul.f32 %v5900, %v5887
        %v5909 = vmul.f32 %v5901, %v5891
        %v5910 = vmul.f32 %v5902, %v5887
        %v5911 = vmul.f32 %v5903, %v5891
        %v5912 = vadd.f32 %v5908, 0.0
        %v5913 = vadd.f32 %v5909, 0.0
        %v5914 = vadd.f32 %v5910, 0.0
        %v5915 = vadd.f32 %v5911, 0.0
        %v5916 = vlaneseq
        %v5917 = vshrl.u32 %v5916, 7
        %v5918 = vsub.s32 1, %v5917
        %v5919 = vrot.slane %v5880, %v5918
        %v5920 = vlaneseq
        %v5921 = vshrl.u32 %v5920, 7
        %v5922 = vsub.s32 1, %v5921
        %v5923 = vrot.slane %v5881, %v5922
        %vm5924 = vcmp.ge.f32.partialorder %v5919, %v5880
        %vm5925 = vcmp.ge.f32.partialorder %v5923, %v5881
        %vm5926 = vcmp.ge.f32.partialorder %v5919, %v5882
        %vm5927 = vcmp.ge.f32.partialorder %v5923, %v5883
        %v5928 = vsel %vm5924, 1, 0
        %v5929 = vsel %vm5925, 1, 0
        %v5930 = vsel %vm5926, 1, 0
        %v5931 = vsel %vm5927, 1, 0
        %v5932 = vcvt.s32.f32 %v5928
        %v5933 = vcvt.s32.f32 %v5929
        %v5934 = vcvt.s32.f32 %v5930
        %v5935 = vcvt.s32.f32 %v5931
        %v5936 = vadd.f32 %v5904, %v5932
        %v5937 = vadd.f32 %v5905, %v5933
        %v5938 = vadd.f32 %v5906, %v5934
        %v5939 = vadd.f32 %v5907, %v5935
        %v5940 = vmul.f32 %v5932, %v5919
        %v5941 = vmul.f32 %v5933, %v5923
        %v5942 = vmul.f32 %v5934, %v5919
        %v5943 = vmul.f32 %v5935, %v5923
        %v5944 = vadd.f32 %v5912, %v5940
        %v5945 = vadd.f32 %v5913, %v5941
        %v5946 = vadd.f32 %v5914, %v5942
        %v5947 = vadd.f32 %v5915, %v5943
        %v5948 = vlaneseq
        %v5949 = vshrl.u32 %v5948, 7
        %v5950 = vsub.s32 2, %v5949
        %v5951 = vrot.slane %v5880, %v5950
        %v5952 = vlaneseq
        %v5953 = vshrl.u32 %v5952, 7
        %v5954 = vsub.s32 2, %v5953
        %v5955 = vrot.slane %v5881, %v5954
        %vm5956 = vcmp.ge.f32.partialorder %v5951, %v5880
        %vm5957 = vcmp.ge.f32.partialorder %v5955, %v5881
        %vm5958 = vcmp.ge.f32.partialorder %v5951, %v5882
        %vm5959 = vcmp.ge.f32.partialorder %v5955, %v5883
        %v5960 = vsel %vm5956, 1, 0
        %v5961 = vsel %vm5957, 1, 0
        %v5962 = vsel %vm5958, 1, 0
        %v5963 = vsel %vm5959, 1, 0
        %v5964 = vcvt.s32.f32 %v5960
        %v5965 = vcvt.s32.f32 %v5961
        %v5966 = vcvt.s32.f32 %v5962
        %v5967 = vcvt.s32.f32 %v5963
        %v5968 = vadd.f32 %v5936, %v5964
        %v5969 = vadd.f32 %v5937, %v5965
        %v5970 = vadd.f32 %v5938, %v5966
        %v5971 = vadd.f32 %v5939, %v5967
        %v5972 = vmul.f32 %v5964, %v5951
        %v5973 = vmul.f32 %v5965, %v5955
        %v5974 = vmul.f32 %v5966, %v5951
        %v5975 = vmul.f32 %v5967, %v5955
        %v5976 = vadd.f32 %v5944, %v5972
        %v5977 = vadd.f32 %v5945, %v5973
        %v5978 = vadd.f32 %v5946, %v5974
        %v5979 = vadd.f32 %v5947, %v5975
        %v5980 = vlaneseq
        %v5981 = vshrl.u32 %v5980, 7
        %v5982 = vsub.s32 3, %v5981
        %v5983 = vrot.slane %v5880, %v5982
        %v5984 = vlaneseq
        %v5985 = vshrl.u32 %v5984, 7
        %v5986 = vsub.s32 3, %v5985
        %v5987 = vrot.slane %v5881, %v5986
        %vm5988 = vcmp.ge.f32.partialorder %v5983, %v5880
        %vm5989 = vcmp.ge.f32.partialorder %v5987, %v5881
        %vm5990 = vcmp.ge.f32.partialorder %v5983, %v5882
        %vm5991 = vcmp.ge.f32.partialorder %v5987, %v5883
        %v5992 = vsel %vm5988, 1, 0
        %v5993 = vsel %vm5989, 1, 0
        %v5994 = vsel %vm5990, 1, 0
        %v5995 = vsel %vm5991, 1, 0
        %v5996 = vcvt.s32.f32 %v5992
        %v5997 = vcvt.s32.f32 %v5993
        %v5998 = vcvt.s32.f32 %v5994
        %v5999 = vcvt.s32.f32 %v5995
        %v6000 = vadd.f32 %v5968, %v5996
        %v6001 = vadd.f32 %v5969, %v5997
        %v6002 = vadd.f32 %v5970, %v5998
        %v6003 = vadd.f32 %v5971, %v5999
        %v6004 = vmul.f32 %v5996, %v5983
        %v6005 = vmul.f32 %v5997, %v5987
        %v6006 = vmul.f32 %v5998, %v5983
        %v6007 = vmul.f32 %v5999, %v5987
        %v6008 = vadd.f32 %v5976, %v6004
        %v6009 = vadd.f32 %v5977, %v6005
        %v6010 = vadd.f32 %v5978, %v6006
        %v6011 = vadd.f32 %v5979, %v6007
        %v6012 = vlaneseq
        %v6013 = vshrl.u32 %v6012, 7
        %v6014 = vsub.s32 4, %v6013
        %v6015 = vrot.slane %v5880, %v6014
        %v6016 = vlaneseq
        %v6017 = vshrl.u32 %v6016, 7
        %v6018 = vsub.s32 4, %v6017
        %v6019 = vrot.slane %v5881, %v6018
        %vm6020 = vcmp.ge.f32.partialorder %v6015, %v5880
        %vm6021 = vcmp.ge.f32.partialorder %v6019, %v5881
        %vm6022 = vcmp.ge.f32.partialorder %v6015, %v5882
        %vm6023 = vcmp.ge.f32.partialorder %v6019, %v5883
        %v6024 = vsel %vm6020, 1, 0
        %v6025 = vsel %vm6021, 1, 0
        %v6026 = vsel %vm6022, 1, 0
        %v6027 = vsel %vm6023, 1, 0
        %v6028 = vcvt.s32.f32 %v6024
        %v6029 = vcvt.s32.f32 %v6025
        %v6030 = vcvt.s32.f32 %v6026
        %v6031 = vcvt.s32.f32 %v6027
        %v6032 = vadd.f32 %v6000, %v6028
        %v6033 = vadd.f32 %v6001, %v6029
        %v6034 = vadd.f32 %v6002, %v6030
        %v6035 = vadd.f32 %v6003, %v6031
        %v6036 = vmul.f32 %v6028, %v6015
        %v6037 = vmul.f32 %v6029, %v6019
        %v6038 = vmul.f32 %v6030, %v6015
        %v6039 = vmul.f32 %v6031, %v6019
        %v6040 = vadd.f32 %v6008, %v6036
        %v6041 = vadd.f32 %v6009, %v6037
        %v6042 = vadd.f32 %v6010, %v6038
        %v6043 = vadd.f32 %v6011, %v6039
        %v6044 = vlaneseq
        %v6045 = vshrl.u32 %v6044, 7
        %v6046 = vsub.s32 5, %v6045
        %v6047 = vrot.slane %v5880, %v6046
        %v6048 = vlaneseq
        %v6049 = vshrl.u32 %v6048, 7
        %v6050 = vsub.s32 5, %v6049
        %v6051 = vrot.slane %v5881, %v6050
        %vm6052 = vcmp.ge.f32.partialorder %v6047, %v5880
        %vm6053 = vcmp.ge.f32.partialorder %v6051, %v5881
        %vm6054 = vcmp.ge.f32.partialorder %v6047, %v5882
        %vm6055 = vcmp.ge.f32.partialorder %v6051, %v5883
        %v6056 = vsel %vm6052, 1, 0
        %v6057 = vsel %vm6053, 1, 0
        %v6058 = vsel %vm6054, 1, 0
        %v6059 = vsel %vm6055, 1, 0
        %v6060 = vcvt.s32.f32 %v6056
        %v6061 = vcvt.s32.f32 %v6057
        %v6062 = vcvt.s32.f32 %v6058
        %v6063 = vcvt.s32.f32 %v6059
        %v6064 = vadd.f32 %v6032, %v6060
        %v6065 = vadd.f32 %v6033, %v6061
        %v6066 = vadd.f32 %v6034, %v6062
        %v6067 = vadd.f32 %v6035, %v6063
        %v6068 = vmul.f32 %v6060, %v6047
        %v6069 = vmul.f32 %v6061, %v6051
        %v6070 = vmul.f32 %v6062, %v6047
        %v6071 = vmul.f32 %v6063, %v6051
        %v6072 = vadd.f32 %v6040, %v6068
        %v6073 = vadd.f32 %v6041, %v6069
        %v6074 = vadd.f32 %v6042, %v6070
        %v6075 = vadd.f32 %v6043, %v6071
        %v6076 = vlaneseq
        %v6077 = vshrl.u32 %v6076, 7
        %v6078 = vsub.s32 6, %v6077
        %v6079 = vrot.slane %v5880, %v6078
        %v6080 = vlaneseq
        %v6081 = vshrl.u32 %v6080, 7
        %v6082 = vsub.s32 6, %v6081
        %v6083 = vrot.slane %v5881, %v6082
        %vm6084 = vcmp.ge.f32.partialorder %v6079, %v5880
        %vm6085 = vcmp.ge.f32.partialorder %v6083, %v5881
        %vm6086 = vcmp.ge.f32.partialorder %v6079, %v5882
        %vm6087 = vcmp.ge.f32.partialorder %v6083, %v5883
        %v6088 = vsel %vm6084, 1, 0
        %v6089 = vsel %vm6085, 1, 0
        %v6090 = vsel %vm6086, 1, 0
        %v6091 = vsel %vm6087, 1, 0
        %v6092 = vcvt.s32.f32 %v6088
        %v6093 = vcvt.s32.f32 %v6089
        %v6094 = vcvt.s32.f32 %v6090
        %v6095 = vcvt.s32.f32 %v6091
        %v6096 = vadd.f32 %v6064, %v6092
        %v6097 = vadd.f32 %v6065, %v6093
        %v6098 = vadd.f32 %v6066, %v6094
        %v6099 = vadd.f32 %v6067, %v6095
        %v6100 = vmul.f32 %v6092, %v6079
        %v6101 = vmul.f32 %v6093, %v6083
        %v6102 = vmul.f32 %v6094, %v6079
        %v6103 = vmul.f32 %v6095, %v6083
        %v6104 = vadd.f32 %v6072, %v6100
        %v6105 = vadd.f32 %v6073, %v6101
        %v6106 = vadd.f32 %v6074, %v6102
        %v6107 = vadd.f32 %v6075, %v6103
        %v6108 = vlaneseq
        %v6109 = vshrl.u32 %v6108, 7
        %v6110 = vsub.s32 7, %v6109
        %v6111 = vrot.slane %v5880, %v6110
        %v6112 = vlaneseq
        %v6113 = vshrl.u32 %v6112, 7
        %v6114 = vsub.s32 7, %v6113
        %v6115 = vrot.slane %v5881, %v6114
        %vm6116 = vcmp.ge.f32.partialorder %v6111, %v5880
        %vm6117 = vcmp.ge.f32.partialorder %v6115, %v5881
        %vm6118 = vcmp.ge.f32.partialorder %v6111, %v5882
        %vm6119 = vcmp.ge.f32.partialorder %v6115, %v5883
        %v6120 = vsel %vm6116, 1, 0
        %v6121 = vsel %vm6117, 1, 0
        %v6122 = vsel %vm6118, 1, 0
        %v6123 = vsel %vm6119, 1, 0
        %v6124 = vcvt.s32.f32 %v6120
        %v6125 = vcvt.s32.f32 %v6121
        %v6126 = vcvt.s32.f32 %v6122
        %v6127 = vcvt.s32.f32 %v6123
        %v6128 = vadd.f32 %v6096, %v6124
        %v6129 = vadd.f32 %v6097, %v6125
        %v6130 = vadd.f32 %v6098, %v6126
        %v6131 = vadd.f32 %v6099, %v6127
        %v6132 = vmul.f32 %v6124, %v6111
        %v6133 = vmul.f32 %v6125, %v6115
        %v6134 = vmul.f32 %v6126, %v6111
        %v6135 = vmul.f32 %v6127, %v6115
        %v6136 = vadd.f32 %v6104, %v6132
        %v6137 = vadd.f32 %v6105, %v6133
        %v6138 = vadd.f32 %v6106, %v6134
        %v6139 = vadd.f32 %v6107, %v6135
        %v6140 = vlaneseq
        %v6141 = vshrl.u32 %v6140, 7
        %v6142 = vsub.s32 0, %v6141
        %v6143 = vrot.slane %v5882, %v6142
        %v6144 = vlaneseq
        %v6145 = vshrl.u32 %v6144, 7
        %v6146 = vsub.s32 0, %v6145
        %v6147 = vrot.slane %v5883, %v6146
        %vm6148 = vcmp.ge.f32.partialorder %v6143, %v5880
        %vm6149 = vcmp.ge.f32.partialorder %v6147, %v5881
        %vm6150 = vcmp.ge.f32.partialorder %v6143, %v5882
        %vm6151 = vcmp.ge.f32.partialorder %v6147, %v5883
        %v6152 = vsel %vm6148, 1, 0
        %v6153 = vsel %vm6149, 1, 0
        %v6154 = vsel %vm6150, 1, 0
        %v6155 = vsel %vm6151, 1, 0
        %v6156 = vcvt.s32.f32 %v6152
        %v6157 = vcvt.s32.f32 %v6153
        %v6158 = vcvt.s32.f32 %v6154
        %v6159 = vcvt.s32.f32 %v6155
        %v6160 = vadd.f32 %v6128, %v6156
        %v6161 = vadd.f32 %v6129, %v6157
        %v6162 = vadd.f32 %v6130, %v6158
        %v6163 = vadd.f32 %v6131, %v6159
        %v6164 = vmul.f32 %v6156, %v6143
        %v6165 = vmul.f32 %v6157, %v6147
        %v6166 = vmul.f32 %v6158, %v6143
        %v6167 = vmul.f32 %v6159, %v6147
        %v6168 = vadd.f32 %v6136, %v6164
        %v6169 = vadd.f32 %v6137, %v6165
        %v6170 = vadd.f32 %v6138, %v6166
        %v6171 = vadd.f32 %v6139, %v6167
        %v6172 = vlaneseq
        %v6173 = vshrl.u32 %v6172, 7
        %v6174 = vsub.s32 1, %v6173
        %v6175 = vrot.slane %v5882, %v6174
        %v6176 = vlaneseq
        %v6177 = vshrl.u32 %v6176, 7
        %v6178 = vsub.s32 1, %v6177
        %v6179 = vrot.slane %v5883, %v6178
        %vm6180 = vcmp.ge.f32.partialorder %v6175, %v5880
        %vm6181 = vcmp.ge.f32.partialorder %v6179, %v5881
        %vm6182 = vcmp.ge.f32.partialorder %v6175, %v5882
        %vm6183 = vcmp.ge.f32.partialorder %v6179, %v5883
        %v6184 = vsel %vm6180, 1, 0
        %v6185 = vsel %vm6181, 1, 0
        %v6186 = vsel %vm6182, 1, 0
        %v6187 = vsel %vm6183, 1, 0
        %v6188 = vcvt.s32.f32 %v6184
        %v6189 = vcvt.s32.f32 %v6185
        %v6190 = vcvt.s32.f32 %v6186
        %v6191 = vcvt.s32.f32 %v6187
        %v6192 = vadd.f32 %v6160, %v6188
        %v6193 = vadd.f32 %v6161, %v6189
        %v6194 = vadd.f32 %v6162, %v6190
        %v6195 = vadd.f32 %v6163, %v6191
        %v6196 = vmul.f32 %v6188, %v6175
        %v6197 = vmul.f32 %v6189, %v6179
        %v6198 = vmul.f32 %v6190, %v6175
        %v6199 = vmul.f32 %v6191, %v6179
        %v6200 = vadd.f32 %v6168, %v6196
        %v6201 = vadd.f32 %v6169, %v6197
        %v6202 = vadd.f32 %v6170, %v6198
        %v6203 = vadd.f32 %v6171, %v6199
        %v6204 = vlaneseq
        %v6205 = vshrl.u32 %v6204, 7
        %v6206 = vsub.s32 2, %v6205
        %v6207 = vrot.slane %v5882, %v6206
        %v6208 = vlaneseq
        %v6209 = vshrl.u32 %v6208, 7
        %v6210 = vsub.s32 2, %v6209
        %v6211 = vrot.slane %v5883, %v6210
        %vm6212 = vcmp.ge.f32.partialorder %v6207, %v5880
        %vm6213 = vcmp.ge.f32.partialorder %v6211, %v5881
        %vm6214 = vcmp.ge.f32.partialorder %v6207, %v5882
        %vm6215 = vcmp.ge.f32.partialorder %v6211, %v5883
        %v6216 = vsel %vm6212, 1, 0
        %v6217 = vsel %vm6213, 1, 0
        %v6218 = vsel %vm6214, 1, 0
        %v6219 = vsel %vm6215, 1, 0
        %v6220 = vcvt.s32.f32 %v6216
        %v6221 = vcvt.s32.f32 %v6217
        %v6222 = vcvt.s32.f32 %v6218
        %v6223 = vcvt.s32.f32 %v6219
        %v6224 = vadd.f32 %v6192, %v6220
        %v6225 = vadd.f32 %v6193, %v6221
        %v6226 = vadd.f32 %v6194, %v6222
        %v6227 = vadd.f32 %v6195, %v6223
        %v6228 = vmul.f32 %v6220, %v6207
        %v6229 = vmul.f32 %v6221, %v6211
        %v6230 = vmul.f32 %v6222, %v6207
        %v6231 = vmul.f32 %v6223, %v6211
        %v6232 = vadd.f32 %v6200, %v6228
        %v6233 = vadd.f32 %v6201, %v6229
        %v6234 = vadd.f32 %v6202, %v6230
        %v6235 = vadd.f32 %v6203, %v6231
        %v6236 = vlaneseq
        %v6237 = vshrl.u32 %v6236, 7
        %v6238 = vsub.s32 3, %v6237
        %v6239 = vrot.slane %v5882, %v6238
        %v6240 = vlaneseq
        %v6241 = vshrl.u32 %v6240, 7
        %v6242 = vsub.s32 3, %v6241
        %v6243 = vrot.slane %v5883, %v6242
        %vm6244 = vcmp.ge.f32.partialorder %v6239, %v5880
        %vm6245 = vcmp.ge.f32.partialorder %v6243, %v5881
        %vm6246 = vcmp.ge.f32.partialorder %v6239, %v5882
        %vm6247 = vcmp.ge.f32.partialorder %v6243, %v5883
        %v6248 = vsel %vm6244, 1, 0
        %v6249 = vsel %vm6245, 1, 0
        %v6250 = vsel %vm6246, 1, 0
        %v6251 = vsel %vm6247, 1, 0
        %v6252 = vcvt.s32.f32 %v6248
        %v6253 = vcvt.s32.f32 %v6249
        %v6254 = vcvt.s32.f32 %v6250
        %v6255 = vcvt.s32.f32 %v6251
        %v6256 = vadd.f32 %v6224, %v6252
        %v6257 = vadd.f32 %v6225, %v6253
        %v6258 = vadd.f32 %v6226, %v6254
        %v6259 = vadd.f32 %v6227, %v6255
        %v6260 = vmul.f32 %v6252, %v6239
        %v6261 = vmul.f32 %v6253, %v6243
        %v6262 = vmul.f32 %v6254, %v6239
        %v6263 = vmul.f32 %v6255, %v6243
        %v6264 = vadd.f32 %v6232, %v6260
        %v6265 = vadd.f32 %v6233, %v6261
        %v6266 = vadd.f32 %v6234, %v6262
        %v6267 = vadd.f32 %v6235, %v6263
        %v6268 = vlaneseq
        %v6269 = vshrl.u32 %v6268, 7
        %v6270 = vsub.s32 4, %v6269
        %v6271 = vrot.slane %v5882, %v6270
        %v6272 = vlaneseq
        %v6273 = vshrl.u32 %v6272, 7
        %v6274 = vsub.s32 4, %v6273
        %v6275 = vrot.slane %v5883, %v6274
        %vm6276 = vcmp.ge.f32.partialorder %v6271, %v5880
        %vm6277 = vcmp.ge.f32.partialorder %v6275, %v5881
        %vm6278 = vcmp.ge.f32.partialorder %v6271, %v5882
        %vm6279 = vcmp.ge.f32.partialorder %v6275, %v5883
        %v6280 = vsel %vm6276, 1, 0
        %v6281 = vsel %vm6277, 1, 0
        %v6282 = vsel %vm6278, 1, 0
        %v6283 = vsel %vm6279, 1, 0
        %v6284 = vcvt.s32.f32 %v6280
        %v6285 = vcvt.s32.f32 %v6281
        %v6286 = vcvt.s32.f32 %v6282
        %v6287 = vcvt.s32.f32 %v6283
        %v6288 = vadd.f32 %v6256, %v6284
        %v6289 = vadd.f32 %v6257, %v6285
        %v6290 = vadd.f32 %v6258, %v6286
        %v6291 = vadd.f32 %v6259, %v6287
        %v6292 = vmul.f32 %v6284, %v6271
        %v6293 = vmul.f32 %v6285, %v6275
        %v6294 = vmul.f32 %v6286, %v6271
        %v6295 = vmul.f32 %v6287, %v6275
        %v6296 = vadd.f32 %v6264, %v6292
        %v6297 = vadd.f32 %v6265, %v6293
        %v6298 = vadd.f32 %v6266, %v6294
        %v6299 = vadd.f32 %v6267, %v6295
        %v6300 = vlaneseq
        %v6301 = vshrl.u32 %v6300, 7
        %v6302 = vsub.s32 5, %v6301
        %v6303 = vrot.slane %v5882, %v6302
        %v6304 = vlaneseq
        %v6305 = vshrl.u32 %v6304, 7
        %v6306 = vsub.s32 5, %v6305
        %v6307 = vrot.slane %v5883, %v6306
        %vm6308 = vcmp.ge.f32.partialorder %v6303, %v5880
        %vm6309 = vcmp.ge.f32.partialorder %v6307, %v5881
        %vm6310 = vcmp.ge.f32.partialorder %v6303, %v5882
        %vm6311 = vcmp.ge.f32.partialorder %v6307, %v5883
        %v6312 = vsel %vm6308, 1, 0
        %v6313 = vsel %vm6309, 1, 0
        %v6314 = vsel %vm6310, 1, 0
        %v6315 = vsel %vm6311, 1, 0
        %v6316 = vcvt.s32.f32 %v6312
        %v6317 = vcvt.s32.f32 %v6313
        %v6318 = vcvt.s32.f32 %v6314
        %v6319 = vcvt.s32.f32 %v6315
        %v6320 = vadd.f32 %v6288, %v6316
        %v6321 = vadd.f32 %v6289, %v6317
        %v6322 = vadd.f32 %v6290, %v6318
        %v6323 = vadd.f32 %v6291, %v6319
        %v6324 = vmul.f32 %v6316, %v6303
        %v6325 = vmul.f32 %v6317, %v6307
        %v6326 = vmul.f32 %v6318, %v6303
        %v6327 = vmul.f32 %v6319, %v6307
        %v6328 = vadd.f32 %v6296, %v6324
        %v6329 = vadd.f32 %v6297, %v6325
        %v6330 = vadd.f32 %v6298, %v6326
        %v6331 = vadd.f32 %v6299, %v6327
        %v6332 = vlaneseq
        %v6333 = vshrl.u32 %v6332, 7
        %v6334 = vsub.s32 6, %v6333
        %v6335 = vrot.slane %v5882, %v6334
        %v6336 = vlaneseq
        %v6337 = vshrl.u32 %v6336, 7
        %v6338 = vsub.s32 6, %v6337
        %v6339 = vrot.slane %v5883, %v6338
        %vm6340 = vcmp.ge.f32.partialorder %v6335, %v5880
        %vm6341 = vcmp.ge.f32.partialorder %v6339, %v5881
        %vm6342 = vcmp.ge.f32.partialorder %v6335, %v5882
        %vm6343 = vcmp.ge.f32.partialorder %v6339, %v5883
        %v6344 = vsel %vm6340, 1, 0
        %v6345 = vsel %vm6341, 1, 0
        %v6346 = vsel %vm6342, 1, 0
        %v6347 = vsel %vm6343, 1, 0
        %v6348 = vcvt.s32.f32 %v6344
        %v6349 = vcvt.s32.f32 %v6345
        %v6350 = vcvt.s32.f32 %v6346
        %v6351 = vcvt.s32.f32 %v6347
        %v6352 = vadd.f32 %v6320, %v6348
        %v6353 = vadd.f32 %v6321, %v6349
        %v6354 = vadd.f32 %v6322, %v6350
        %v6355 = vadd.f32 %v6323, %v6351
        %v6356 = vmul.f32 %v6348, %v6335
        %v6357 = vmul.f32 %v6349, %v6339
        %v6358 = vmul.f32 %v6350, %v6335
        %v6359 = vmul.f32 %v6351, %v6339
        %v6360 = vadd.f32 %v6328, %v6356
        %v6361 = vadd.f32 %v6329, %v6357
        %v6362 = vadd.f32 %v6330, %v6358
        %v6363 = vadd.f32 %v6331, %v6359
        %v6364 = vlaneseq
        %v6365 = vshrl.u32 %v6364, 7
        %v6366 = vsub.s32 7, %v6365
        %v6367 = vrot.slane %v5882, %v6366
        %v6368 = vlaneseq
        %v6369 = vshrl.u32 %v6368, 7
        %v6370 = vsub.s32 7, %v6369
        %v6371 = vrot.slane %v5883, %v6370
        %vm6372 = vcmp.ge.f32.partialorder %v6367, %v5880
        %vm6373 = vcmp.ge.f32.partialorder %v6371, %v5881
        %vm6374 = vcmp.ge.f32.partialorder %v6367, %v5882
        %vm6375 = vcmp.ge.f32.partialorder %v6371, %v5883
        %v6376 = vsel %vm6372, 1, 0
        %v6377 = vsel %vm6373, 1, 0
        %v6378 = vsel %vm6374, 1, 0
        %v6379 = vsel %vm6375, 1, 0
        %v6380 = vcvt.s32.f32 %v6376
        %v6381 = vcvt.s32.f32 %v6377
        %v6382 = vcvt.s32.f32 %v6378
        %v6383 = vcvt.s32.f32 %v6379
        %v6384 = vadd.f32 %v6352, %v6380
        %v6385 = vadd.f32 %v6353, %v6381
        %v6386 = vadd.f32 %v6354, %v6382
        %v6387 = vadd.f32 %v6355, %v6383
        %v6388 = vmul.f32 %v6380, %v6367
        %v6389 = vmul.f32 %v6381, %v6371
        %v6390 = vmul.f32 %v6382, %v6367
        %v6391 = vmul.f32 %v6383, %v6371
        %v6392 = vadd.f32 %v6360, %v6388
        %v6393 = vadd.f32 %v6361, %v6389
        %v6394 = vadd.f32 %v6362, %v6390
        %v6395 = vadd.f32 %v6363, %v6391
        %v6396 = vmul.f32 %v6384, %v5880
        %v6397 = vmul.f32 %v6385, %v5881
        %v6398 = vmul.f32 %v6386, %v5882
        %v6399 = vmul.f32 %v6387, %v5883
        %v6400 = vadd.f32 %v6396, 1.0
        %v6401 = vadd.f32 %v6397, 1.0
        %v6402 = vadd.f32 %v6398, 1.0
        %v6403 = vadd.f32 %v6399, 1.0
        %v6404 = vsub.f32 %v6400, %v6392
        %v6405 = vsub.f32 %v6401, %v6393
        %v6406 = vsub.f32 %v6402, %v6394
        %v6407 = vsub.f32 %v6403, %v6395
        %vm6408 = vcmp.gt.f32.partialorder %v6404, 0.0
        %vm6409 = vcmp.gt.f32.partialorder %v6405, 0.0
        %vm6410 = vcmp.gt.f32.partialorder %v6406, 0.0
        %vm6411 = vcmp.gt.f32.partialorder %v6407, 0.0
        %v6412 = vsel %vm6408, 1, 0
        %v6413 = vsel %vm6409, 1, 0
        %v6414 = vsel %vm6410, 1, 0
        %v6415 = vsel %vm6411, 1, 0
        %v6416 = vcvt.s32.f32 %v6412
        %v6417 = vcvt.s32.f32 %v6413
        %v6418 = vcvt.s32.f32 %v6414
        %v6419 = vcvt.s32.f32 %v6415
        %v6420 = vadd.f32 %v6416, %v6418
        %v6421 = vrot.slane %v6420, 4
        %v6422 = vadd.f32 %v6420, %v6421
        %v6423 = vrot.slane %v6422, 2
        %v6424 = vadd.f32 %v6422, %v6423
        %v6425 = vrot.slane %v6424, 1
        %v6426 = vadd.f32 %v6424, %v6425
        %v6427 = vadd.f32 %v6417, %v6419
        %v6428 = vrot.slane %v6427, 4
        %v6429 = vadd.f32 %v6427, %v6428
        %v6430 = vrot.slane %v6429, 2
        %v6431 = vadd.f32 %v6429, %v6430
        %v6432 = vrot.slane %v6431, 1
        %v6433 = vadd.f32 %v6431, %v6432
        %v6434 = vmul.f32 %v5880, %v6416
        %v6435 = vmul.f32 %v5881, %v6417
        %v6436 = vmul.f32 %v5882, %v6418
        %v6437 = vmul.f32 %v5883, %v6419
        %v6438 = vadd.f32 %v6434, %v6436
        %v6439 = vrot.slane %v6438, 4
        %v6440 = vadd.f32 %v6438, %v6439
        %v6441 = vrot.slane %v6440, 2
        %v6442 = vadd.f32 %v6440, %v6441
        %v6443 = vrot.slane %v6442, 1
        %v6444 = vadd.f32 %v6442, %v6443
        %v6445 = vadd.f32 %v6435, %v6437
        %v6446 = vrot.slane %v6445, 4
        %v6447 = vadd.f32 %v6445, %v6446
        %v6448 = vrot.slane %v6447, 2
        %v6449 = vadd.f32 %v6447, %v6448
        %v6450 = vrot.slane %v6449, 1
        %v6451 = vadd.f32 %v6449, %v6450
        %v6452 = vsub.f32 %v6444, 1.0
        %v6453 = vsub.f32 %v6451, 1.0
        %v6454 = vrcp.pop %v6426
        %v6455 = vmul.f32 %v6452, %v6454
        %v6456 = vrcp.pop %v6433
        %v6457 = vmul.f32 %v6453, %v6456
        %v6458 = vsub.f32 %v5880, %v6455
        %v6459 = vsub.f32 %v5881, %v6457
        %v6460 = vsub.f32 %v5882, %v6455
        %v6461 = vsub.f32 %v5883, %v6457
        %v6462 = vmax.f32 %v6458, 0.0
        %v6463 = vmax.f32 %v6459, 0.0
        %v6464 = vmax.f32 %v6460, 0.0
        %v6465 = vmax.f32 %v6461, 0.0
        %v6466 = vadd.f32 %v6462, 1e-15
        %v6467 = vadd.f32 %v6463, 1e-15
        %v6468 = vadd.f32 %v6464, 1e-15
        %v6469 = vadd.f32 %v6465, 1e-15
        %v6470 = vlog2.pop %v6466
        %v6471 = vmul.f32 %v6470, 0.6931472
        %v6472 = vlog2.pop %v6467
        %v6473 = vmul.f32 %v6472, 0.6931472
        %v6474 = vlog2.pop %v6468
        %v6475 = vmul.f32 %v6474, 0.6931472
        %v6476 = vlog2.pop %v6469
        %v6477 = vmul.f32 %v6476, 0.6931472
        %v6478 = vmul.f32 %v6462, %v6471
        %v6479 = vmul.f32 %v6463, %v6473
        %v6480 = vmul.f32 %v6464, %v6475
        %v6481 = vmul.f32 %v6465, %v6477
        %v6482 = vadd.f32 %v6478, %v6480
        %v6483 = vrot.slane %v6482, 4
        %v6484 = vadd.f32 %v6482, %v6483
        %v6485 = vrot.slane %v6484, 2
        %v6486 = vadd.f32 %v6484, %v6485
        %v6487 = vrot.slane %v6486, 1
        %v6488 = vadd.f32 %v6486, %v6487
        %v6489 = vadd.f32 %v6479, %v6481
        %v6490 = vrot.slane %v6489, 4
        %v6491 = vadd.f32 %v6489, %v6490
        %v6492 = vrot.slane %v6491, 2
        %v6493 = vadd.f32 %v6491, %v6492
        %v6494 = vrot.slane %v6493, 1
        %v6495 = vadd.f32 %v6493, %v6494
        %v6496 = vadd.f32 %v6488, %v6495
        %6497 = vadd.xlane.f32.xlu0 %v6496
        %v6498 = vpop.xlane.xlu0 %6497
        %s6499 = vtos %v6498
        %v6500 = vrcp.pop 256.0
        %s6501 = vtos %v6500
        %s6502 = smul.f32 %s6499, %s6501
        %s6503 = sadd.f32 %s4729, %s6502
        %v6504 = vmul.f32 %v6462, %v1289
        %v6505 = vmul.f32 %v6463, %v1290
        %v6506 = vmul.f32 %v6464, %v1291
        %v6507 = vmul.f32 %v6465, %v1292
        %s6508 = scalar_lea.vmem %s5, 384
        %v6509 = vld [vmem:[%s6508] sm:$0xff]
        %v6510 = vld [vmem:[%s6508 + $0x8] sm:$0xff]
        %v6511 = vld [vmem:[%s6508 + $0x10] sm:$0xff]
        %v6512 = vld [vmem:[%s6508 + $0x18] sm:$0xff]
        %s6513 = scalar_lea.vmem %s5, 896
        %v6514 = vld [vmem:[%s6513] sm:$0xff]
        %v6515 = vld [vmem:[%s6513 + $0x8] sm:$0xff]
        %v6516 = vld [vmem:[%s6513 + $0x10] sm:$0xff]
        %v6517 = vld [vmem:[%s6513 + $0x18] sm:$0xff]
        %v6518 = vpack.c.bf16 %v6506, %v6504
        %v6519 = vpack.c.bf16 %v6507, %v6505
        %6520 = vmatprep.subr.bf16.mxu0 %v6519
        %6521 = vmatpush1.bf16.msra.mxu0 %v6518
        %6522 = vmatprep.subr.bf16.mxu0 0
        %6523 = vmatpush1.bf16.msra.mxu0 0
        %6524 = vmatprep.subr.bf16.mxu0 0
        %6525 = vmatpush1.bf16.msra.mxu0 0
        %6526 = vmatprep.subr.bf16.mxu0 0
        %6527 = vmatpush1.bf16.msra.mxu0 0
        %6528 = vmatprep.subr.bf16.mxu0 0
        %6529 = vmatpush1.bf16.msra.mxu0 0
        %6530 = vmatprep.subr.bf16.mxu0 0
        %6531 = vmatpush1.bf16.msra.mxu0 0
        %6532 = vmatprep.subr.bf16.mxu0 0
        %6533 = vmatpush1.bf16.msra.mxu0 0
        %6534 = vmatprep.subr.bf16.mxu0 0
        %6535 = vmatpush1.bf16.msra.mxu0 0
        %6536 = vmatprep.subr.bf16.mxu0 0
        %6537 = vmatpush1.bf16.msra.mxu0 0
        %6538 = vmatprep.subr.bf16.mxu0 0
        %6539 = vmatpush1.bf16.msra.mxu0 0
        %6540 = vmatprep.subr.bf16.mxu0 0
        %6541 = vmatpush1.bf16.msra.mxu0 0
        %6542 = vmatprep.subr.bf16.mxu0 0
        %6543 = vmatpush1.bf16.msra.mxu0 0
        %6544 = vmatprep.subr.bf16.mxu0 0
        %6545 = vmatpush1.bf16.msra.mxu0 0
        %6546 = vmatprep.subr.bf16.mxu0 0
        %6547 = vmatpush1.bf16.msra.mxu0 0
        %6548 = vmatprep.subr.bf16.mxu0 0
        %6549 = vmatpush1.bf16.msra.mxu0 0
        %6550 = vmatprep.subr.bf16.mxu0 0
        %6551 = vmatpush1.bf16.msra.mxu0 0
        %6552 = vmatprep.mubr.bf16.mxu0 0
        %6553 = vmatmul.mubr.bf16.gmra.mrb[0].mxu0 %v1306
        %v6554 = vpop.f32.mrb[0].mxu0
        %v6555 = vadd.f32 0.0, %v6554
        %v6556 = vpop.f32.mrb[0].mxu0
        %v6557 = vadd.f32 0.0, %v6556
        %v6558 = vpop.f32.mrb[0].mxu0
        %v6559 = vadd.f32 0.0, %v6558
        %v6560 = vpop.f32.mrb[0].mxu0
        %v6561 = vadd.f32 0.0, %v6560
        %6562 = vmatprep.mubr.bf16.mxu0 0
        %6563 = vmatmul.mubr.bf16.gmra.mrb[0].mxu0 %v1309
        %v6564 = vpop.f32.mrb[0].mxu0
        %v6565 = vadd.f32 0.0, %v6564
        %v6566 = vpop.f32.mrb[0].mxu0
        %v6567 = vadd.f32 0.0, %v6566
        %v6568 = vpop.f32.mrb[0].mxu0
        %v6569 = vadd.f32 0.0, %v6568
        %v6570 = vpop.f32.mrb[0].mxu0
        %v6571 = vadd.f32 0.0, %v6570
        %6572 = vdwg.mxu0
        %6573 = vadd.xlane.f32.xlu0 %v6555
        %v6574 = vpop.xlane.xlu0 %6573
        %6575 = vadd.xlane.f32.xlu0 %v6559
        %v6576 = vpop.xlane.xlu0 %6575
        %6577 = vadd.xlane.f32.xlu0 %v6565
        %v6578 = vpop.xlane.xlu0 %6577
        %6579 = vadd.xlane.f32.xlu0 %v6569
        %v6580 = vpop.xlane.xlu0 %6579
        %v6581 = vmul.f32 %v6574, %v1224
        %v6582 = vmul.f32 %v6576, %v1224
        %v6583 = vmul.f32 %v6578, %v1224
        %v6584 = vmul.f32 %v6580, %v1224
        %v6585 = vsub.f32 %v6555, %v6581
        %v6586 = vsub.f32 %v6559, %v6582
        %v6587 = vsub.f32 %v6565, %v6583
        %v6588 = vsub.f32 %v6569, %v6584
        %v6589 = vmul.f32 %v6585, %v6585
        %v6590 = vmul.f32 %v6586, %v6586
        %v6591 = vmul.f32 %v6587, %v6587
        %v6592 = vmul.f32 %v6588, %v6588
        %6593 = vadd.xlane.f32.xlu0 %v6589
        %v6594 = vpop.xlane.xlu0 %6593
        %6595 = vadd.xlane.f32.xlu0 %v6590
        %v6596 = vpop.xlane.xlu0 %6595
        %6597 = vadd.xlane.f32.xlu0 %v6591
        %v6598 = vpop.xlane.xlu0 %6597
        %6599 = vadd.xlane.f32.xlu0 %v6592
        %v6600 = vpop.xlane.xlu0 %6599
        %v6601 = vmul.f32 %v6594, %v1224
        %v6602 = vmul.f32 %v6596, %v1224
        %v6603 = vmul.f32 %v6598, %v1224
        %v6604 = vmul.f32 %v6600, %v1224
        %v6605 = vadd.f32 %v6601, 1e-05
        %v6606 = vadd.f32 %v6602, 1e-05
        %v6607 = vadd.f32 %v6603, 1e-05
        %v6608 = vadd.f32 %v6604, 1e-05
        %v6609 = vrsqrt.pop %v6605
        %v6610 = vrsqrt.pop %v6606
        %v6611 = vrsqrt.pop %v6607
        %v6612 = vrsqrt.pop %v6608
        %v6613 = vmul.f32 %v6585, %v6609
        %v6614 = vmul.f32 %v6586, %v6610
        %v6615 = vmul.f32 %v6587, %v6611
        %v6616 = vmul.f32 %v6588, %v6612
        %6617 = vadd.xlane.f32.xlu0 %v6557
        %v6618 = vpop.xlane.xlu0 %6617
        %6619 = vadd.xlane.f32.xlu0 %v6561
        %v6620 = vpop.xlane.xlu0 %6619
        %6621 = vadd.xlane.f32.xlu0 %v6567
        %v6622 = vpop.xlane.xlu0 %6621
        %6623 = vadd.xlane.f32.xlu0 %v6571
        %v6624 = vpop.xlane.xlu0 %6623
        %v6625 = vmul.f32 %v6618, %v1224
        %v6626 = vmul.f32 %v6620, %v1224
        %v6627 = vmul.f32 %v6622, %v1224
        %v6628 = vmul.f32 %v6624, %v1224
        %v6629 = vsub.f32 %v6557, %v6625
        %v6630 = vsub.f32 %v6561, %v6626
        %v6631 = vsub.f32 %v6567, %v6627
        %v6632 = vsub.f32 %v6571, %v6628
        %v6633 = vmul.f32 %v6629, %v6629
        %v6634 = vmul.f32 %v6630, %v6630
        %v6635 = vmul.f32 %v6631, %v6631
        %v6636 = vmul.f32 %v6632, %v6632
        %6637 = vadd.xlane.f32.xlu0 %v6633
        %v6638 = vpop.xlane.xlu0 %6637
        %6639 = vadd.xlane.f32.xlu0 %v6634
        %v6640 = vpop.xlane.xlu0 %6639
        %6641 = vadd.xlane.f32.xlu0 %v6635
        %v6642 = vpop.xlane.xlu0 %6641
        %6643 = vadd.xlane.f32.xlu0 %v6636
        %v6644 = vpop.xlane.xlu0 %6643
        %v6645 = vmul.f32 %v6638, %v1224
        %v6646 = vmul.f32 %v6640, %v1224
        %v6647 = vmul.f32 %v6642, %v1224
        %v6648 = vmul.f32 %v6644, %v1224
        %v6649 = vadd.f32 %v6645, 1e-05
        %v6650 = vadd.f32 %v6646, 1e-05
        %v6651 = vadd.f32 %v6647, 1e-05
        %v6652 = vadd.f32 %v6648, 1e-05
        %v6653 = vrsqrt.pop %v6649
        %v6654 = vrsqrt.pop %v6650
        %v6655 = vrsqrt.pop %v6651
        %v6656 = vrsqrt.pop %v6652
        %v6657 = vmul.f32 %v6629, %v6653
        %v6658 = vmul.f32 %v6630, %v6654
        %v6659 = vmul.f32 %v6631, %v6655
        %v6660 = vmul.f32 %v6632, %v6656
        %6662 = vset.pattern.permute.xlu0 0
        %6663 = vperm.xlu0 %6662, %v6509
        %v6664 = vpop.permute.xlu0 %6663
        %6667 = vset.pattern.permute.xlu0 0
        %6668 = vperm.xlu0 %6667, %v6510
        %v6669 = vpop.permute.xlu0 %6668
        %6672 = vset.pattern.permute.xlu0 0
        %6673 = vperm.xlu0 %6672, %v6511
        %v6674 = vpop.permute.xlu0 %6673
        %6677 = vset.pattern.permute.xlu0 0
        %6678 = vperm.xlu0 %6677, %v6512
        %v6679 = vpop.permute.xlu0 %6678
        %v6681 = vmul.f32 %v6613, %v6664
        %v6682 = vmul.f32 %v6657, %v6664
        %v6683 = vmul.f32 %v6614, %v6669
        %v6684 = vmul.f32 %v6658, %v6669
        %v6685 = vmul.f32 %v6615, %v6674
        %v6686 = vmul.f32 %v6659, %v6674
        %v6687 = vmul.f32 %v6616, %v6679
        %v6688 = vmul.f32 %v6660, %v6679
        %6690 = vset.pattern.permute.xlu0 0
        %6691 = vperm.xlu0 %6690, %v6514
        %v6692 = vpop.permute.xlu0 %6691
        %6695 = vset.pattern.permute.xlu0 0
        %6696 = vperm.xlu0 %6695, %v6515
        %v6697 = vpop.permute.xlu0 %6696
        %6700 = vset.pattern.permute.xlu0 0
        %6701 = vperm.xlu0 %6700, %v6516
        %v6702 = vpop.permute.xlu0 %6701
        %6705 = vset.pattern.permute.xlu0 0
        %6706 = vperm.xlu0 %6705, %v6517
        %v6707 = vpop.permute.xlu0 %6706
        %v6709 = vadd.f32 %v6681, %v6692
        %v6710 = vadd.f32 %v6682, %v6692
        %v6711 = vadd.f32 %v6683, %v6697
        %v6712 = vadd.f32 %v6684, %v6697
        %v6713 = vadd.f32 %v6685, %v6702
        %v6714 = vadd.f32 %v6686, %v6702
        %v6715 = vadd.f32 %v6687, %v6707
        %v6716 = vadd.f32 %v6688, %v6707
        %v6717 = vxor.u32 %v6713, 2147483648
        %v6718 = vxor.u32 %v6714, 2147483648
        %v6719 = vxor.u32 %v6715, 2147483648
        %v6720 = vxor.u32 %v6716, 2147483648
        %v6721 = vmul.f32 %v6717, 1.442695
        %v6722 = vpow.pop %v6721
        %v6723 = vmul.f32 %v6718, 1.442695
        %v6724 = vpow.pop %v6723
        %v6725 = vmul.f32 %v6719, 1.442695
        %v6726 = vpow.pop %v6725
        %v6727 = vmul.f32 %v6720, 1.442695
        %v6728 = vpow.pop %v6727
        %v6729 = vadd.f32 %v6722, 1.0
        %v6730 = vadd.f32 %v6724, 1.0
        %v6731 = vadd.f32 %v6726, 1.0
        %v6732 = vadd.f32 %v6728, 1.0
        %v6733 = vrcp.pop %v6729
        %v6734 = vmul.f32 1.0, %v6733
        %v6735 = vrcp.pop %v6730
        %v6736 = vmul.f32 1.0, %v6735
        %v6737 = vrcp.pop %v6731
        %v6738 = vmul.f32 1.0, %v6737
        %v6739 = vrcp.pop %v6732
        %v6740 = vmul.f32 1.0, %v6739
        %v6741 = vmul.f32 %v6709, %v6734
        %v6742 = vmul.f32 %v6710, %v6736
        %v6743 = vmul.f32 %v6711, %v6738
        %v6744 = vmul.f32 %v6712, %v6740
        %s6745 = scalar_lea.vmem %s5, 416
        %v6746 = vld [vmem:[%s6745] sm:$0xff]
        %v6747 = vld [vmem:[%s6745 + $0x8] sm:$0xff]
        %v6748 = vld [vmem:[%s6745 + $0x10] sm:$0xff]
        %v6749 = vld [vmem:[%s6745 + $0x18] sm:$0xff]
        %s6750 = scalar_lea.vmem %s5, 928
        %v6751 = vld [vmem:[%s6750] sm:$0xff]
        %v6752 = vld [vmem:[%s6750 + $0x8] sm:$0xff]
        %v6753 = vld [vmem:[%s6750 + $0x10] sm:$0xff]
        %v6754 = vld [vmem:[%s6750 + $0x18] sm:$0xff]
        %v6755 = vpack.c.bf16 %v6743, %v6741
        %v6756 = vpack.c.bf16 %v6744, %v6742
        %6757 = vmatprep.subr.bf16.mxu0 %v6756
        %6758 = vmatpush1.bf16.msra.mxu0 %v6755
        %6759 = vmatprep.subr.bf16.mxu0 0
        %6760 = vmatpush1.bf16.msra.mxu0 0
        %6761 = vmatprep.subr.bf16.mxu0 0
        %6762 = vmatpush1.bf16.msra.mxu0 0
        %6763 = vmatprep.subr.bf16.mxu0 0
        %6764 = vmatpush1.bf16.msra.mxu0 0
        %6765 = vmatprep.subr.bf16.mxu0 0
        %6766 = vmatpush1.bf16.msra.mxu0 0
        %6767 = vmatprep.subr.bf16.mxu0 0
        %6768 = vmatpush1.bf16.msra.mxu0 0
        %6769 = vmatprep.subr.bf16.mxu0 0
        %6770 = vmatpush1.bf16.msra.mxu0 0
        %6771 = vmatprep.subr.bf16.mxu0 0
        %6772 = vmatpush1.bf16.msra.mxu0 0
        %6773 = vmatprep.subr.bf16.mxu0 0
        %6774 = vmatpush1.bf16.msra.mxu0 0
        %6775 = vmatprep.subr.bf16.mxu0 0
        %6776 = vmatpush1.bf16.msra.mxu0 0
        %6777 = vmatprep.subr.bf16.mxu0 0
        %6778 = vmatpush1.bf16.msra.mxu0 0
        %6779 = vmatprep.subr.bf16.mxu0 0
        %6780 = vmatpush1.bf16.msra.mxu0 0
        %6781 = vmatprep.subr.bf16.mxu0 0
        %6782 = vmatpush1.bf16.msra.mxu0 0
        %6783 = vmatprep.subr.bf16.mxu0 0
        %6784 = vmatpush1.bf16.msra.mxu0 0
        %6785 = vmatprep.subr.bf16.mxu0 0
        %6786 = vmatpush1.bf16.msra.mxu0 0
        %6787 = vmatprep.subr.bf16.mxu0 0
        %6788 = vmatpush1.bf16.msra.mxu0 0
        %6789 = vmatprep.mubr.bf16.mxu0 0
        %6790 = vmatmul.mubr.bf16.gmra.mrb[0].mxu0 %v1549
        %v6791 = vpop.f32.mrb[0].mxu0
        %v6792 = vadd.f32 0.0, %v6791
        %v6793 = vpop.f32.mrb[0].mxu0
        %v6794 = vadd.f32 0.0, %v6793
        %v6795 = vpop.f32.mrb[0].mxu0
        %v6796 = vadd.f32 0.0, %v6795
        %v6797 = vpop.f32.mrb[0].mxu0
        %v6798 = vadd.f32 0.0, %v6797
        %6799 = vmatprep.mubr.bf16.mxu0 0
        %6800 = vmatmul.mubr.bf16.gmra.mrb[0].mxu0 %v1552
        %v6801 = vpop.f32.mrb[0].mxu0
        %v6802 = vadd.f32 0.0, %v6801
        %v6803 = vpop.f32.mrb[0].mxu0
        %v6804 = vadd.f32 0.0, %v6803
        %v6805 = vpop.f32.mrb[0].mxu0
        %v6806 = vadd.f32 0.0, %v6805
        %v6807 = vpop.f32.mrb[0].mxu0
        %v6808 = vadd.f32 0.0, %v6807
        %6809 = vdwg.mxu0
        %6810 = vadd.xlane.f32.xlu0 %v6792
        %v6811 = vpop.xlane.xlu0 %6810
        %6812 = vadd.xlane.f32.xlu0 %v6796
        %v6813 = vpop.xlane.xlu0 %6812
        %6814 = vadd.xlane.f32.xlu0 %v6802
        %v6815 = vpop.xlane.xlu0 %6814
        %6816 = vadd.xlane.f32.xlu0 %v6806
        %v6817 = vpop.xlane.xlu0 %6816
        %v6818 = vmul.f32 %v6811, %v1224
        %v6819 = vmul.f32 %v6813, %v1224
        %v6820 = vmul.f32 %v6815, %v1224
        %v6821 = vmul.f32 %v6817, %v1224
        %v6822 = vsub.f32 %v6792, %v6818
        %v6823 = vsub.f32 %v6796, %v6819
        %v6824 = vsub.f32 %v6802, %v6820
        %v6825 = vsub.f32 %v6806, %v6821
        %v6826 = vmul.f32 %v6822, %v6822
        %v6827 = vmul.f32 %v6823, %v6823
        %v6828 = vmul.f32 %v6824, %v6824
        %v6829 = vmul.f32 %v6825, %v6825
        %6830 = vadd.xlane.f32.xlu0 %v6826
        %v6831 = vpop.xlane.xlu0 %6830
        %6832 = vadd.xlane.f32.xlu0 %v6827
        %v6833 = vpop.xlane.xlu0 %6832
        %6834 = vadd.xlane.f32.xlu0 %v6828
        %v6835 = vpop.xlane.xlu0 %6834
        %6836 = vadd.xlane.f32.xlu0 %v6829
        %v6837 = vpop.xlane.xlu0 %6836
        %v6838 = vmul.f32 %v6831, %v1224
        %v6839 = vmul.f32 %v6833, %v1224
        %v6840 = vmul.f32 %v6835, %v1224
        %v6841 = vmul.f32 %v6837, %v1224
        %v6842 = vadd.f32 %v6838, 1e-05
        %v6843 = vadd.f32 %v6839, 1e-05
        %v6844 = vadd.f32 %v6840, 1e-05
        %v6845 = vadd.f32 %v6841, 1e-05
        %v6846 = vrsqrt.pop %v6842
        %v6847 = vrsqrt.pop %v6843
        %v6848 = vrsqrt.pop %v6844
        %v6849 = vrsqrt.pop %v6845
        %v6850 = vmul.f32 %v6822, %v6846
        %v6851 = vmul.f32 %v6823, %v6847
        %v6852 = vmul.f32 %v6824, %v6848
        %v6853 = vmul.f32 %v6825, %v6849
        %6854 = vadd.xlane.f32.xlu0 %v6794
        %v6855 = vpop.xlane.xlu0 %6854
        %6856 = vadd.xlane.f32.xlu0 %v6798
        %v6857 = vpop.xlane.xlu0 %6856
        %6858 = vadd.xlane.f32.xlu0 %v6804
        %v6859 = vpop.xlane.xlu0 %6858
        %6860 = vadd.xlane.f32.xlu0 %v6808
        %v6861 = vpop.xlane.xlu0 %6860
        %v6862 = vmul.f32 %v6855, %v1224
        %v6863 = vmul.f32 %v6857, %v1224
        %v6864 = vmul.f32 %v6859, %v1224
        %v6865 = vmul.f32 %v6861, %v1224
        %v6866 = vsub.f32 %v6794, %v6862
        %v6867 = vsub.f32 %v6798, %v6863
        %v6868 = vsub.f32 %v6804, %v6864
        %v6869 = vsub.f32 %v6808, %v6865
        %v6870 = vmul.f32 %v6866, %v6866
        %v6871 = vmul.f32 %v6867, %v6867
        %v6872 = vmul.f32 %v6868, %v6868
        %v6873 = vmul.f32 %v6869, %v6869
        %6874 = vadd.xlane.f32.xlu0 %v6870
        %v6875 = vpop.xlane.xlu0 %6874
        %6876 = vadd.xlane.f32.xlu0 %v6871
        %v6877 = vpop.xlane.xlu0 %6876
        %6878 = vadd.xlane.f32.xlu0 %v6872
        %v6879 = vpop.xlane.xlu0 %6878
        %6880 = vadd.xlane.f32.xlu0 %v6873
        %v6881 = vpop.xlane.xlu0 %6880
        %v6882 = vmul.f32 %v6875, %v1224
        %v6883 = vmul.f32 %v6877, %v1224
        %v6884 = vmul.f32 %v6879, %v1224
        %v6885 = vmul.f32 %v6881, %v1224
        %v6886 = vadd.f32 %v6882, 1e-05
        %v6887 = vadd.f32 %v6883, 1e-05
        %v6888 = vadd.f32 %v6884, 1e-05
        %v6889 = vadd.f32 %v6885, 1e-05
        %v6890 = vrsqrt.pop %v6886
        %v6891 = vrsqrt.pop %v6887
        %v6892 = vrsqrt.pop %v6888
        %v6893 = vrsqrt.pop %v6889
        %v6894 = vmul.f32 %v6866, %v6890
        %v6895 = vmul.f32 %v6867, %v6891
        %v6896 = vmul.f32 %v6868, %v6892
        %v6897 = vmul.f32 %v6869, %v6893
        %6899 = vset.pattern.permute.xlu0 0
        %6900 = vperm.xlu0 %6899, %v6746
        %v6901 = vpop.permute.xlu0 %6900
        %6904 = vset.pattern.permute.xlu0 0
        %6905 = vperm.xlu0 %6904, %v6747
        %v6906 = vpop.permute.xlu0 %6905
        %6909 = vset.pattern.permute.xlu0 0
        %6910 = vperm.xlu0 %6909, %v6748
        %v6911 = vpop.permute.xlu0 %6910
        %6914 = vset.pattern.permute.xlu0 0
        %6915 = vperm.xlu0 %6914, %v6749
        %v6916 = vpop.permute.xlu0 %6915
        %v6918 = vmul.f32 %v6850, %v6901
        %v6919 = vmul.f32 %v6894, %v6901
        %v6920 = vmul.f32 %v6851, %v6906
        %v6921 = vmul.f32 %v6895, %v6906
        %v6922 = vmul.f32 %v6852, %v6911
        %v6923 = vmul.f32 %v6896, %v6911
        %v6924 = vmul.f32 %v6853, %v6916
        %v6925 = vmul.f32 %v6897, %v6916
        %6927 = vset.pattern.permute.xlu0 0
        %6928 = vperm.xlu0 %6927, %v6751
        %v6929 = vpop.permute.xlu0 %6928
        %6932 = vset.pattern.permute.xlu0 0
        %6933 = vperm.xlu0 %6932, %v6752
        %v6934 = vpop.permute.xlu0 %6933
        %6937 = vset.pattern.permute.xlu0 0
        %6938 = vperm.xlu0 %6937, %v6753
        %v6939 = vpop.permute.xlu0 %6938
        %6942 = vset.pattern.permute.xlu0 0
        %6943 = vperm.xlu0 %6942, %v6754
        %v6944 = vpop.permute.xlu0 %6943
        %v6946 = vadd.f32 %v6918, %v6929
        %v6947 = vadd.f32 %v6919, %v6929
        %v6948 = vadd.f32 %v6920, %v6934
        %v6949 = vadd.f32 %v6921, %v6934
        %v6950 = vadd.f32 %v6922, %v6939
        %v6951 = vadd.f32 %v6923, %v6939
        %v6952 = vadd.f32 %v6924, %v6944
        %v6953 = vadd.f32 %v6925, %v6944
        %v6954 = vxor.u32 %v6950, 2147483648
        %v6955 = vxor.u32 %v6951, 2147483648
        %v6956 = vxor.u32 %v6952, 2147483648
        %v6957 = vxor.u32 %v6953, 2147483648
        %v6958 = vmul.f32 %v6954, 1.442695
        %v6959 = vpow.pop %v6958
        %v6960 = vmul.f32 %v6955, 1.442695
        %v6961 = vpow.pop %v6960
        %v6962 = vmul.f32 %v6956, 1.442695
        %v6963 = vpow.pop %v6962
        %v6964 = vmul.f32 %v6957, 1.442695
        %v6965 = vpow.pop %v6964
        %v6966 = vadd.f32 %v6959, 1.0
        %v6967 = vadd.f32 %v6961, 1.0
        %v6968 = vadd.f32 %v6963, 1.0
        %v6969 = vadd.f32 %v6965, 1.0
        %v6970 = vrcp.pop %v6966
        %v6971 = vmul.f32 1.0, %v6970
        %v6972 = vrcp.pop %v6967
        %v6973 = vmul.f32 1.0, %v6972
        %v6974 = vrcp.pop %v6968
        %v6975 = vmul.f32 1.0, %v6974
        %v6976 = vrcp.pop %v6969
        %v6977 = vmul.f32 1.0, %v6976
        %v6978 = vmul.f32 %v6946, %v6971
        %v6979 = vmul.f32 %v6947, %v6973
        %v6980 = vmul.f32 %v6948, %v6975
        %v6981 = vmul.f32 %v6949, %v6977
        %v6982 = vadd.f32 %v6741, %v6978
        %v6983 = vadd.f32 %v6742, %v6979
        %v6984 = vadd.f32 %v6743, %v6980
        %v6985 = vadd.f32 %v6744, %v6981
        %v6986 = vmul.f32 %v6982, 0.70710677
        %v6987 = vmul.f32 %v6983, 0.70710677
        %v6988 = vmul.f32 %v6984, 0.70710677
        %v6989 = vmul.f32 %v6985, 0.70710677
        %s6990 = scalar_lea.vmem %s4, 192
        %v6991 = vld [vmem:[%s6990] sm:$0xff]
        %v6992 = vld [vmem:[%s6990 + $0x8] sm:$0xff]
        %v6993 = vld [vmem:[%s6990 + $0x10] sm:$0xff]
        %v6994 = vld [vmem:[%s6990 + $0x18] sm:$0xff]
        %v6995 = vpack.c.bf16 %v6992, %v6991
        %v6996 = vpack.c.bf16 %v6994, %v6993
        %s6997 = scalar_lea.vmem %s5, 448
        %v6998 = vld [vmem:[%s6997] sm:$0xff]
        %v6999 = vld [vmem:[%s6997 + $0x8] sm:$0xff]
        %v7000 = vld [vmem:[%s6997 + $0x10] sm:$0xff]
        %v7001 = vld [vmem:[%s6997 + $0x18] sm:$0xff]
        %s7002 = scalar_lea.vmem %s5, 960
        %v7003 = vld [vmem:[%s7002] sm:$0xff]
        %v7004 = vld [vmem:[%s7002 + $0x8] sm:$0xff]
        %v7005 = vld [vmem:[%s7002 + $0x10] sm:$0xff]
        %v7006 = vld [vmem:[%s7002 + $0x18] sm:$0xff]
        %v7007 = vpack.c.bf16 %v6988, %v6986
        %v7008 = vpack.c.bf16 %v6989, %v6987
        %v7010 = vsel %vm1304, %v6995, 0
        %v7013 = vsel %vm1304, %v6996, 0
        %7015 = vmatprep.subr.bf16.mxu0 %v7008
        %7016 = vmatpush1.bf16.msra.mxu0 %v7007
        %7017 = vmatprep.subr.bf16.mxu0 0
        %7018 = vmatpush1.bf16.msra.mxu0 0
        %7019 = vmatprep.subr.bf16.mxu0 0
        %7020 = vmatpush1.bf16.msra.mxu0 0
        %7021 = vmatprep.subr.bf16.mxu0 0
        %7022 = vmatpush1.bf16.msra.mxu0 0
        %7023 = vmatprep.subr.bf16.mxu0 0
        %7024 = vmatpush1.bf16.msra.mxu0 0
        %7025 = vmatprep.subr.bf16.mxu0 0
        %7026 = vmatpush1.bf16.msra.mxu0 0
        %7027 = vmatprep.subr.bf16.mxu0 0
        %7028 = vmatpush1.bf16.msra.mxu0 0
        %7029 = vmatprep.subr.bf16.mxu0 0
        %7030 = vmatpush1.bf16.msra.mxu0 0
        %7031 = vmatprep.subr.bf16.mxu0 0
        %7032 = vmatpush1.bf16.msra.mxu0 0
        %7033 = vmatprep.subr.bf16.mxu0 0
        %7034 = vmatpush1.bf16.msra.mxu0 0
        %7035 = vmatprep.subr.bf16.mxu0 0
        %7036 = vmatpush1.bf16.msra.mxu0 0
        %7037 = vmatprep.subr.bf16.mxu0 0
        %7038 = vmatpush1.bf16.msra.mxu0 0
        %7039 = vmatprep.subr.bf16.mxu0 0
        %7040 = vmatpush1.bf16.msra.mxu0 0
        %7041 = vmatprep.subr.bf16.mxu0 0
        %7042 = vmatpush1.bf16.msra.mxu0 0
        %7043 = vmatprep.subr.bf16.mxu0 0
        %7044 = vmatpush1.bf16.msra.mxu0 0
        %7045 = vmatprep.subr.bf16.mxu0 0
        %7046 = vmatpush1.bf16.msra.mxu0 0
        %7047 = vmatprep.mubr.bf16.mxu0 0
        %7048 = vmatmul.mubr.bf16.gmra.mrb[0].mxu0 %v7010
        %v7049 = vpop.f32.mrb[0].mxu0
        %v7050 = vadd.f32 0.0, %v7049
        %v7051 = vpop.f32.mrb[0].mxu0
        %v7052 = vadd.f32 0.0, %v7051
        %v7053 = vpop.f32.mrb[0].mxu0
        %v7054 = vadd.f32 0.0, %v7053
        %v7055 = vpop.f32.mrb[0].mxu0
        %v7056 = vadd.f32 0.0, %v7055
        %7057 = vmatprep.mubr.bf16.mxu0 0
        %7058 = vmatmul.mubr.bf16.gmra.mrb[0].mxu0 %v7013
        %v7059 = vpop.f32.mrb[0].mxu0
        %v7060 = vadd.f32 0.0, %v7059
        %v7061 = vpop.f32.mrb[0].mxu0
        %v7062 = vadd.f32 0.0, %v7061
        %v7063 = vpop.f32.mrb[0].mxu0
        %v7064 = vadd.f32 0.0, %v7063
        %v7065 = vpop.f32.mrb[0].mxu0
        %v7066 = vadd.f32 0.0, %v7065
        %7067 = vdwg.mxu0
        %7068 = vadd.xlane.f32.xlu0 %v7050
        %v7069 = vpop.xlane.xlu0 %7068
        %7070 = vadd.xlane.f32.xlu0 %v7054
        %v7071 = vpop.xlane.xlu0 %7070
        %7072 = vadd.xlane.f32.xlu0 %v7060
        %v7073 = vpop.xlane.xlu0 %7072
        %7074 = vadd.xlane.f32.xlu0 %v7064
        %v7075 = vpop.xlane.xlu0 %7074
        %v7076 = vmul.f32 %v7069, %v1224
        %v7077 = vmul.f32 %v7071, %v1224
        %v7078 = vmul.f32 %v7073, %v1224
        %v7079 = vmul.f32 %v7075, %v1224
        %v7080 = vsub.f32 %v7050, %v7076
        %v7081 = vsub.f32 %v7054, %v7077
        %v7082 = vsub.f32 %v7060, %v7078
        %v7083 = vsub.f32 %v7064, %v7079
        %v7084 = vmul.f32 %v7080, %v7080
        %v7085 = vmul.f32 %v7081, %v7081
        %v7086 = vmul.f32 %v7082, %v7082
        %v7087 = vmul.f32 %v7083, %v7083
        %7088 = vadd.xlane.f32.xlu0 %v7084
        %v7089 = vpop.xlane.xlu0 %7088
        %7090 = vadd.xlane.f32.xlu0 %v7085
        %v7091 = vpop.xlane.xlu0 %7090
        %7092 = vadd.xlane.f32.xlu0 %v7086
        %v7093 = vpop.xlane.xlu0 %7092
        %7094 = vadd.xlane.f32.xlu0 %v7087
        %v7095 = vpop.xlane.xlu0 %7094
        %v7096 = vmul.f32 %v7089, %v1224
        %v7097 = vmul.f32 %v7091, %v1224
        %v7098 = vmul.f32 %v7093, %v1224
        %v7099 = vmul.f32 %v7095, %v1224
        %v7100 = vadd.f32 %v7096, 1e-05
        %v7101 = vadd.f32 %v7097, 1e-05
        %v7102 = vadd.f32 %v7098, 1e-05
        %v7103 = vadd.f32 %v7099, 1e-05
        %v7104 = vrsqrt.pop %v7100
        %v7105 = vrsqrt.pop %v7101
        %v7106 = vrsqrt.pop %v7102
        %v7107 = vrsqrt.pop %v7103
        %v7108 = vmul.f32 %v7080, %v7104
        %v7109 = vmul.f32 %v7081, %v7105
        %v7110 = vmul.f32 %v7082, %v7106
        %v7111 = vmul.f32 %v7083, %v7107
        %7112 = vadd.xlane.f32.xlu0 %v7052
        %v7113 = vpop.xlane.xlu0 %7112
        %7114 = vadd.xlane.f32.xlu0 %v7056
        %v7115 = vpop.xlane.xlu0 %7114
        %7116 = vadd.xlane.f32.xlu0 %v7062
        %v7117 = vpop.xlane.xlu0 %7116
        %7118 = vadd.xlane.f32.xlu0 %v7066
        %v7119 = vpop.xlane.xlu0 %7118
        %v7120 = vmul.f32 %v7113, %v1224
        %v7121 = vmul.f32 %v7115, %v1224
        %v7122 = vmul.f32 %v7117, %v1224
        %v7123 = vmul.f32 %v7119, %v1224
        %v7124 = vsub.f32 %v7052, %v7120
        %v7125 = vsub.f32 %v7056, %v7121
        %v7126 = vsub.f32 %v7062, %v7122
        %v7127 = vsub.f32 %v7066, %v7123
        %v7128 = vmul.f32 %v7124, %v7124
        %v7129 = vmul.f32 %v7125, %v7125
        %v7130 = vmul.f32 %v7126, %v7126
        %v7131 = vmul.f32 %v7127, %v7127
        %7132 = vadd.xlane.f32.xlu0 %v7128
        %v7133 = vpop.xlane.xlu0 %7132
        %7134 = vadd.xlane.f32.xlu0 %v7129
        %v7135 = vpop.xlane.xlu0 %7134
        %7136 = vadd.xlane.f32.xlu0 %v7130
        %v7137 = vpop.xlane.xlu0 %7136
        %7138 = vadd.xlane.f32.xlu0 %v7131
        %v7139 = vpop.xlane.xlu0 %7138
        %v7140 = vmul.f32 %v7133, %v1224
        %v7141 = vmul.f32 %v7135, %v1224
        %v7142 = vmul.f32 %v7137, %v1224
        %v7143 = vmul.f32 %v7139, %v1224
        %v7144 = vadd.f32 %v7140, 1e-05
        %v7145 = vadd.f32 %v7141, 1e-05
        %v7146 = vadd.f32 %v7142, 1e-05
        %v7147 = vadd.f32 %v7143, 1e-05
        %v7148 = vrsqrt.pop %v7144
        %v7149 = vrsqrt.pop %v7145
        %v7150 = vrsqrt.pop %v7146
        %v7151 = vrsqrt.pop %v7147
        %v7152 = vmul.f32 %v7124, %v7148
        %v7153 = vmul.f32 %v7125, %v7149
        %v7154 = vmul.f32 %v7126, %v7150
        %v7155 = vmul.f32 %v7127, %v7151
        %7157 = vset.pattern.permute.xlu0 0
        %7158 = vperm.xlu0 %7157, %v6998
        %v7159 = vpop.permute.xlu0 %7158
        %7162 = vset.pattern.permute.xlu0 0
        %7163 = vperm.xlu0 %7162, %v6999
        %v7164 = vpop.permute.xlu0 %7163
        %7167 = vset.pattern.permute.xlu0 0
        %7168 = vperm.xlu0 %7167, %v7000
        %v7169 = vpop.permute.xlu0 %7168
        %7172 = vset.pattern.permute.xlu0 0
        %7173 = vperm.xlu0 %7172, %v7001
        %v7174 = vpop.permute.xlu0 %7173
        %v7176 = vmul.f32 %v7108, %v7159
        %v7177 = vmul.f32 %v7152, %v7159
        %v7178 = vmul.f32 %v7109, %v7164
        %v7179 = vmul.f32 %v7153, %v7164
        %v7180 = vmul.f32 %v7110, %v7169
        %v7181 = vmul.f32 %v7154, %v7169
        %v7182 = vmul.f32 %v7111, %v7174
        %v7183 = vmul.f32 %v7155, %v7174
        %7185 = vset.pattern.permute.xlu0 0
        %7186 = vperm.xlu0 %7185, %v7003
        %v7187 = vpop.permute.xlu0 %7186
        %7190 = vset.pattern.permute.xlu0 0
        %7191 = vperm.xlu0 %7190, %v7004
        %v7192 = vpop.permute.xlu0 %7191
        %7195 = vset.pattern.permute.xlu0 0
        %7196 = vperm.xlu0 %7195, %v7005
        %v7197 = vpop.permute.xlu0 %7196
        %7200 = vset.pattern.permute.xlu0 0
        %7201 = vperm.xlu0 %7200, %v7006
        %v7202 = vpop.permute.xlu0 %7201
        %v7204 = vadd.f32 %v7176, %v7187
        %v7205 = vadd.f32 %v7177, %v7187
        %v7206 = vadd.f32 %v7178, %v7192
        %v7207 = vadd.f32 %v7179, %v7192
        %v7208 = vadd.f32 %v7180, %v7197
        %v7209 = vadd.f32 %v7181, %v7197
        %v7210 = vadd.f32 %v7182, %v7202
        %v7211 = vadd.f32 %v7183, %v7202
        %v7212 = vxor.u32 %v7208, 2147483648
        %v7213 = vxor.u32 %v7209, 2147483648
        %v7214 = vxor.u32 %v7210, 2147483648
        %v7215 = vxor.u32 %v7211, 2147483648
        %v7216 = vmul.f32 %v7212, 1.442695
        %v7217 = vpow.pop %v7216
        %v7218 = vmul.f32 %v7213, 1.442695
        %v7219 = vpow.pop %v7218
        %v7220 = vmul.f32 %v7214, 1.442695
        %v7221 = vpow.pop %v7220
        %v7222 = vmul.f32 %v7215, 1.442695
        %v7223 = vpow.pop %v7222
        %v7224 = vadd.f32 %v7217, 1.0
        %v7225 = vadd.f32 %v7219, 1.0
        %v7226 = vadd.f32 %v7221, 1.0
        %v7227 = vadd.f32 %v7223, 1.0
        %v7228 = vrcp.pop %v7224
        %v7229 = vmul.f32 1.0, %v7228
        %v7230 = vrcp.pop %v7225
        %v7231 = vmul.f32 1.0, %v7230
        %v7232 = vrcp.pop %v7226
        %v7233 = vmul.f32 1.0, %v7232
        %v7234 = vrcp.pop %v7227
        %v7235 = vmul.f32 1.0, %v7234
        %v7236 = vmul.f32 %v7204, %v7229
        %v7237 = vmul.f32 %v7205, %v7231
        %v7238 = vmul.f32 %v7206, %v7233
        %v7239 = vmul.f32 %v7207, %v7235
        %v7240 = vadd.f32 %v6986, %v7236
        %v7241 = vadd.f32 %v6987, %v7237
        %v7242 = vadd.f32 %v6988, %v7238
        %v7243 = vadd.f32 %v6989, %v7239
        %v7244 = vmul.f32 %v7240, 0.70710677
        %v7245 = vmul.f32 %v7241, 0.70710677
        %v7246 = vmul.f32 %v7242, 0.70710677
        %v7247 = vmul.f32 %v7243, 0.70710677
        %s7248 = scalar_lea.vmem %s4, 224
        %v7249 = vld [vmem:[%s7248] sm:$0xff]
        %v7250 = vld [vmem:[%s7248 + $0x8] sm:$0xff]
        %v7251 = vld [vmem:[%s7248 + $0x10] sm:$0xff]
        %v7252 = vld [vmem:[%s7248 + $0x18] sm:$0xff]
        %v7253 = vpack.c.bf16 %v7250, %v7249
        %v7254 = vpack.c.bf16 %v7252, %v7251
        %s7255 = scalar_lea.vmem %s5, 480
        %v7256 = vld [vmem:[%s7255] sm:$0xff]
        %v7257 = vld [vmem:[%s7255 + $0x10] sm:$0xff]
        %s7258 = scalar_lea.vmem %s5, 992
        %v7259 = vld [vmem:[%s7258] sm:$0xff]
        %v7260 = vld [vmem:[%s7258 + $0x10] sm:$0xff]
        %v7261 = vpack.c.bf16 %v7246, %v7244
        %v7262 = vpack.c.bf16 %v7247, %v7245
        %v7264 = vsel %vm1304, %v7253, 0
        %v7267 = vsel %vm1304, %v7254, 0
        %7269 = vmatprep.subr.bf16.mxu0 %v7262
        %7270 = vmatpush1.bf16.msra.mxu0 %v7261
        %7271 = vmatprep.subr.bf16.mxu0 0
        %7272 = vmatpush1.bf16.msra.mxu0 0
        %7273 = vmatprep.subr.bf16.mxu0 0
        %7274 = vmatpush1.bf16.msra.mxu0 0
        %7275 = vmatprep.subr.bf16.mxu0 0
        %7276 = vmatpush1.bf16.msra.mxu0 0
        %7277 = vmatprep.subr.bf16.mxu0 0
        %7278 = vmatpush1.bf16.msra.mxu0 0
        %7279 = vmatprep.subr.bf16.mxu0 0
        %7280 = vmatpush1.bf16.msra.mxu0 0
        %7281 = vmatprep.subr.bf16.mxu0 0
        %7282 = vmatpush1.bf16.msra.mxu0 0
        %7283 = vmatprep.subr.bf16.mxu0 0
        %7284 = vmatpush1.bf16.msra.mxu0 0
        %7285 = vmatprep.subr.bf16.mxu0 0
        %7286 = vmatpush1.bf16.msra.mxu0 0
        %7287 = vmatprep.subr.bf16.mxu0 0
        %7288 = vmatpush1.bf16.msra.mxu0 0
        %7289 = vmatprep.subr.bf16.mxu0 0
        %7290 = vmatpush1.bf16.msra.mxu0 0
        %7291 = vmatprep.subr.bf16.mxu0 0
        %7292 = vmatpush1.bf16.msra.mxu0 0
        %7293 = vmatprep.subr.bf16.mxu0 0
        %7294 = vmatpush1.bf16.msra.mxu0 0
        %7295 = vmatprep.subr.bf16.mxu0 0
        %7296 = vmatpush1.bf16.msra.mxu0 0
        %7297 = vmatprep.subr.bf16.mxu0 0
        %7298 = vmatpush1.bf16.msra.mxu0 0
        %7299 = vmatprep.subr.bf16.mxu0 0
        %7300 = vmatpush1.bf16.msra.mxu0 0
        %7301 = vmatprep.mubr.bf16.mxu0 0
        %7302 = vmatmul.mubr.bf16.gmra.mrb[0].mxu0 %v7264
        %v7303 = vpop.f32.mrb[0].mxu0
        %v7304 = vadd.f32 0.0, %v7303
        %v7305 = vpop.f32.mrb[0].mxu0
        %v7306 = vadd.f32 0.0, %v7305
        %v7307 = vpop.f32.mrb[0].mxu0
        %v7308 = vpop.f32.mrb[0].mxu0
        %7309 = vmatprep.mubr.bf16.mxu0 0
        %7310 = vmatmul.mubr.bf16.gmra.mrb[0].mxu0 %v7267
        %v7311 = vpop.f32.mrb[0].mxu0
        %v7312 = vadd.f32 0.0, %v7311
        %v7313 = vpop.f32.mrb[0].mxu0
        %v7314 = vadd.f32 0.0, %v7313
        %v7315 = vpop.f32.mrb[0].mxu0
        %v7316 = vpop.f32.mrb[0].mxu0
        %7317 = vdwg.mxu0
        %7318 = vadd.xlane.f32.xlu0 %v7304
        %v7319 = vpop.xlane.xlu0 %7318
        %7320 = vadd.xlane.f32.xlu0 %v7312
        %v7321 = vpop.xlane.xlu0 %7320
        %v7322 = vmul.f32 %v7319, %v1224
        %v7323 = vmul.f32 %v7321, %v1224
        %v7324 = vsub.f32 %v7304, %v7322
        %v7325 = vsub.f32 %v7312, %v7323
        %v7326 = vmul.f32 %v7324, %v7324
        %v7327 = vmul.f32 %v7325, %v7325
        %7328 = vadd.xlane.f32.xlu0 %v7326
        %v7329 = vpop.xlane.xlu0 %7328
        %7330 = vadd.xlane.f32.xlu0 %v7327
        %v7331 = vpop.xlane.xlu0 %7330
        %v7332 = vmul.f32 %v7329, %v1224
        %v7333 = vmul.f32 %v7331, %v1224
        %v7334 = vadd.f32 %v7332, 1e-05
        %v7335 = vadd.f32 %v7333, 1e-05
        %v7336 = vrsqrt.pop %v7334
        %v7337 = vrsqrt.pop %v7335
        %v7338 = vmul.f32 %v7324, %v7336
        %v7339 = vmul.f32 %v7325, %v7337
        %7340 = vadd.xlane.f32.xlu0 %v7306
        %v7341 = vpop.xlane.xlu0 %7340
        %7342 = vadd.xlane.f32.xlu0 %v7314
        %v7343 = vpop.xlane.xlu0 %7342
        %v7344 = vmul.f32 %v7341, %v1224
        %v7345 = vmul.f32 %v7343, %v1224
        %v7346 = vsub.f32 %v7306, %v7344
        %v7347 = vsub.f32 %v7314, %v7345
        %v7348 = vmul.f32 %v7346, %v7346
        %v7349 = vmul.f32 %v7347, %v7347
        %7350 = vadd.xlane.f32.xlu0 %v7348
        %v7351 = vpop.xlane.xlu0 %7350
        %7352 = vadd.xlane.f32.xlu0 %v7349
        %v7353 = vpop.xlane.xlu0 %7352
        %v7354 = vmul.f32 %v7351, %v1224
        %v7355 = vmul.f32 %v7353, %v1224
        %v7356 = vadd.f32 %v7354, 1e-05
        %v7357 = vadd.f32 %v7355, 1e-05
        %v7358 = vrsqrt.pop %v7356
        %v7359 = vrsqrt.pop %v7357
        %v7360 = vmul.f32 %v7346, %v7358
        %v7361 = vmul.f32 %v7347, %v7359
        %7363 = vset.pattern.permute.xlu0 0
        %7364 = vperm.xlu0 %7363, %v7256
        %v7365 = vpop.permute.xlu0 %7364
        %7368 = vset.pattern.permute.xlu0 0
        %7369 = vperm.xlu0 %7368, %v7257
        %v7370 = vpop.permute.xlu0 %7369
        %v7372 = vmul.f32 %v7338, %v7365
        %v7373 = vmul.f32 %v7360, %v7365
        %v7374 = vmul.f32 %v7339, %v7370
        %v7375 = vmul.f32 %v7361, %v7370
        %7377 = vset.pattern.permute.xlu0 0
        %7378 = vperm.xlu0 %7377, %v7259
        %v7379 = vpop.permute.xlu0 %7378
        %7382 = vset.pattern.permute.xlu0 0
        %7383 = vperm.xlu0 %7382, %v7260
        %v7384 = vpop.permute.xlu0 %7383
        %v7386 = vadd.f32 %v7372, %v7379
        %v7387 = vadd.f32 %v7373, %v7379
        %v7388 = vadd.f32 %v7374, %v7384
        %v7389 = vadd.f32 %v7375, %v7384
        %v7390 = vxor.u32 %v7388, 2147483648
        %v7391 = vxor.u32 %v7389, 2147483648
        %v7392 = vmul.f32 %v7390, 1.442695
        %v7393 = vpow.pop %v7392
        %v7394 = vmul.f32 %v7391, 1.442695
        %v7395 = vpow.pop %v7394
        %v7396 = vadd.f32 %v7393, 1.0
        %v7397 = vadd.f32 %v7395, 1.0
        %v7398 = vrcp.pop %v7396
        %v7399 = vmul.f32 1.0, %v7398
        %v7400 = vrcp.pop %v7397
        %v7401 = vmul.f32 1.0, %v7400
        %v7402 = vmul.f32 %v7386, %v7399
        %v7403 = vmul.f32 %v7387, %v7401
        %v7404 = vadd.f32 %v7244, %v7402
        %v7405 = vadd.f32 %v7245, %v7403
        %v7406 = vmul.f32 %v7404, 0.70710677
        %v7407 = vmul.f32 %v7405, 0.70710677
        %v7408 = vmax.f32 %v7406, 0.0
        %v7409 = vmax.f32 %v7407, 0.0
        %v7410 = vadd.f32 %v5742, %v7408
        %v7411 = vadd.f32 %v5743, %v7409
        %v7412 = vrcp.pop 3.0
        %s7413 = vtos %v7412
        %s7414 = smul.f32 %s6503, %s7413
        %v7415 = vpack.c.bf16 %v7410, %v7410
        %v7416 = vpack.c.bf16 %v7411, %v7411
        %v7418 = vsel %vm2209, %v415, 0
        %v7421 = vsel %vm2213, %v7415, 0
        %v7424 = vsel %vm2213, %v7416, 0
        %7426 = vmatprep.subr.bf16.mxu0 %v7424
        %7427 = vmatpush1.bf16.msra.mxu0 %v7421
        %7428 = vmatprep.subr.bf16.mxu0 0
        %7429 = vmatpush1.bf16.msra.mxu0 0
        %7430 = vmatprep.subr.bf16.mxu0 0
        %7431 = vmatpush1.bf16.msra.mxu0 0
        %7432 = vmatprep.subr.bf16.mxu0 0
        %7433 = vmatpush1.bf16.msra.mxu0 0
        %7434 = vmatprep.subr.bf16.mxu0 0
        %7435 = vmatpush1.bf16.msra.mxu0 0
        %7436 = vmatprep.subr.bf16.mxu0 0
        %7437 = vmatpush1.bf16.msra.mxu0 0
        %7438 = vmatprep.subr.bf16.mxu0 0
        %7439 = vmatpush1.bf16.msra.mxu0 0
        %7440 = vmatprep.subr.bf16.mxu0 0
        %7441 = vmatpush1.bf16.msra.mxu0 0
        %7442 = vmatprep.subr.bf16.mxu0 0
        %7443 = vmatpush1.bf16.msra.mxu0 0
        %7444 = vmatprep.subr.bf16.mxu0 0
        %7445 = vmatpush1.bf16.msra.mxu0 0
        %7446 = vmatprep.subr.bf16.mxu0 0
        %7447 = vmatpush1.bf16.msra.mxu0 0
        %7448 = vmatprep.subr.bf16.mxu0 0
        %7449 = vmatpush1.bf16.msra.mxu0 0
        %7450 = vmatprep.subr.bf16.mxu0 0
        %7451 = vmatpush1.bf16.msra.mxu0 0
        %7452 = vmatprep.subr.bf16.mxu0 0
        %7453 = vmatpush1.bf16.msra.mxu0 0
        %7454 = vmatprep.subr.bf16.mxu0 0
        %7455 = vmatpush1.bf16.msra.mxu0 0
        %7456 = vmatprep.subr.bf16.mxu0 0
        %7457 = vmatpush1.bf16.msra.mxu0 0
        %7458 = vmatprep.mubr.bf16.mxu0 0
        %7459 = vmatmul.mubr.bf16.gmra.mrb[0].mxu0 %v7418
        %v7460 = vpop.f32.mrb[0].mxu0
        %v7461 = vadd.f32 0.0, %v7460
        %v7462 = vpop.f32.mrb[0].mxu0
        %v7463 = vadd.f32 0.0, %v7462
        %v7464 = vpop.f32.mrb[0].mxu0
        %v7465 = vpop.f32.mrb[0].mxu0
        %7466 = vdwg.mxu0
        %7467 = vst [vmem:[%s392] sm:$0xff] %v7461
        %7468 = vst [vmem:[%s392 + $0x8] sm:$0xff] %v7463
        %v7469 = vstv %s7414
        %7470 = vst [vmem:[%s396] sm:$0x1] %v7469
        %s7471 = smul.u32 2, %s22
        %p7472 = scmp.lt.s32.totalorder %s7471, 3
        %s7473 = scalar_select %p7472, %s7471, 3
        %s7474 = smul.addr %s7473, 8
        %s7475 = scalar_lea.vmem %s9, %s7474
        %p7476 = scmp.lt.s32.totalorder %s22, 1
        %s7477 = scalar_select %p7476, %s22, 1
        %s7478 = scalar_lea.vmem %s10, %s7477
        // Predicated region
        $region80: #{tsp_tabnet_forward.1} parent=74 // pred_check
          %p7479 = pneg %p234
        $region81: #{tsp_tabnet_forward.1} parent=74 // pred_check_branch
          %7481 = sbr.rel (%p7479) target = $region83
        $region82: #{tsp_tabnet_forward.1} parent=74 // pred_region
          %s7482 = smul.u32 2, %s22
        $region83: #{tsp_tabnet_forward.1} parent=74 // pred_fallthru
          _
        // Predicated region
        $region84: #{tsp_tabnet_forward.1} parent=74 // pred_check
          %p7483 = pneg %p260
        $region85: #{tsp_tabnet_forward.1} parent=74 // pred_check_branch
          %7485 = sbr.rel (%p7483) target = $region87
        $region86: #{tsp_tabnet_forward.1} parent=74 // pred_region
          _
        $region87: #{tsp_tabnet_forward.1} parent=74 // pred_fallthru
          _
      $region75: #{tsp_tabnet_forward.1} parent=5 // pred_fallthru
        _
      %p7486 = scmp.le.s32.totalorder 2, %s17
      // Predicated region
      $region88: #{tsp_tabnet_forward.1} parent=5 // pred_check
        %p7487 = pneg %p7486
      $region89: #{tsp_tabnet_forward.1} parent=5 // pred_check_branch
        %7489 = sbr.rel (%p7487) target = $region91
      $region90: #{tsp_tabnet_forward.1} parent=5 // pred_region
        %s7490 = ssub.s32 %s17, 2
        // Predicated region
        $region92: #{tsp_tabnet_forward.1} parent=90 // pred_check
          %p7491 = pneg %p240
        $region93: #{tsp_tabnet_forward.1} parent=90 // pred_check_branch
          %7493 = sbr.rel (%p7491) target = $region95
        $region94: #{tsp_tabnet_forward.1} parent=90 // pred_region
          %s7494 = smul.u32 2, %s23
          %p7495 = scmp.lt.s32.totalorder %s7494, 3
          %s7496 = scalar_select %p7495, %s7494, 3
          %s7497 = smul.addr %s7496, 8
          %s7498 = scalar_lea.vmem %s9, %s7497
        $region95: #{tsp_tabnet_forward.1} parent=90 // pred_fallthru
          _
        // Predicated region
        $region96: #{tsp_tabnet_forward.1} parent=90 // pred_check
          %p7499 = pneg %p266
        $region97: #{tsp_tabnet_forward.1} parent=90 // pred_check_branch
          %7501 = sbr.rel (%p7499) target = $region99
        $region98: #{tsp_tabnet_forward.1} parent=90 // pred_region
          %p7502 = scmp.lt.s32.totalorder %s23, 1
          %s7503 = scalar_select %p7502, %s23, 1
          %s7504 = scalar_lea.vmem %s10, %s7503
        $region99: #{tsp_tabnet_forward.1} parent=90 // pred_fallthru
          _
      $region91: #{tsp_tabnet_forward.1} parent=5 // pred_fallthru
        _
    $region6: #{tsp_tabnet_forward.1} parent=1 // loop_footer
      %s21 = sadd.s32 1, %s17
    $region7: #{tsp_tabnet_forward.1} parent=1 // loop_footer_branch
      %16 = sbr.rel target = $region3
    $region8: #{tsp_tabnet_forward.1} parent=1 // loop_exit
      _

</llo_original>
